<compile_context>
chip_gen: v7x
topology: tpu7x:2x2x1
jax: 0.10.0
libtpu: 0.0.40
codegen_flags: <defaults>
</compile_context>

<pallas_src>
import jax
import jax.numpy as jnp
from jax.experimental import pallas as pl
from jax.experimental.pallas import tpu as pltpu

BN_EPS = 1e-5
LANE = 128      # pad output channels to this (lane-dense MXU / VPU / stores)
SUBLANE = 8     # pad the conv1 input-channel dim to this


def _round_up(x, m):
    return (x + m - 1) // m * m


def _vmem_limit_bytes():
    # Size the scoped-VMEM limit per generation (v7x: 64 MiB physical,
    # v5e/v6e: 128 MiB) instead of a flat constant.
    try:
        cap = int(pltpu.get_tpu_info().vmem_capacity_bytes)
    except Exception:
        cap = 64 * 1024 * 1024
    return min((cap * 5) // 8, 96 * 1024 * 1024)


def _compiler_params():
    return pltpu.CompilerParams(
        dimension_semantics=("parallel",),          # batch grid -> both v7x TCs
        vmem_limit_bytes=_vmem_limit_bytes(),
    )


# ---------------------------------------------------------------------------
# Kernel A: conv1 (3x3, pad=1) + bias, dh-packed fused im2col, BN partials.
# ---------------------------------------------------------------------------
def conv1_stats_kernel(x_ref, w_ref, b_ref, y_ref, part_ref):
    """x_ref:    (H, W+2, 3*cin_p) bf16  dh row-taps pre-packed into channels,
                 spatially zero-padded in W (built once, in bf16, in the wrapper)
       w_ref:    (3, 3*cin_p, Cp)  bf16  per-dw packed taps (K = 3*cin_p)
       b_ref:    (1, Cp)           f32
       y_ref:    (H, W, Cp)        bf16  conv1 output (pre-BN)
       part_ref: (2, Cp)           f32   per-image [sum(y); sum(y*y)]"""
    h, wp, k3 = x_ref.shape
    w = wp - 2
    cp = y_ref.shape[-1]

    acc = jnp.zeros((h * w, cp), jnp.float32)
    for dw in range(3):                                     # 3 MXU passes (was 9)
        slab = x_ref[:, dw:dw + w, :].reshape(h * w, k3)    # fused im2col tap
        acc = acc + jnp.dot(slab, w_ref[dw], preferred_element_type=jnp.float32)

    y = acc + b_ref[...]                                    # (H*W, Cp) f32
    y_ref[...] = y.reshape(h, w, cp).astype(y_ref.dtype)
    part_ref[0:1, :] = jnp.sum(y, axis=0, keepdims=True)
    part_ref[1:2, :] = jnp.sum(y * y, axis=0, keepdims=True)


# ---------------------------------------------------------------------------
# Kernel B: BN1 + ReLU -> conv2 (3x3, pad=1) + bias; h1 stays in VMEM (bf16).
# Tap pairs (dh=0, dh=1) are packed into a single K = 2*Cp contraction.
# Also emits BN2 partial stats.
# ---------------------------------------------------------------------------
def bn_relu_conv2_stats_kernel(y1_ref, s1_ref, t1_ref, w2p_ref, w2l_ref, b_ref,
                               y2_ref, part_ref, hpad_ref):
    """y1_ref: (H, W, Cp) bf16;  s1/t1: (1, Cp) f32 folded BN1 scale/shift
       w2p_ref: (3, 2*Cp, Cp) bf16  taps (dh=0,dw) and (dh=1,dw) stacked on K
       w2l_ref: (3,   Cp, Cp) bf16  taps (dh=2,dw)
       b_ref:   (1, Cp) f32
       y2_ref:  (H, W, Cp) bf16;  part_ref: (2, Cp) f32
       hpad_ref: (H+2, W+9, 2*Cp) bf16 VMEM scratch.
         channels [0:Cp]   hold h1 at row offset +1  (serves dh=0 and dh=2 taps)
         channels [Cp:2Cp] hold h1 at row offset  0  (serves dh=1, paired with dh=0)
         the interior starts at column 8 so the big stores are sublane-aligned."""
    h, w, cp = y1_ref.shape
    cp2 = 2 * cp

    # BN1 + ReLU in f32; cast to bf16 exactly once (no per-tap converts).
    h1 = jnp.maximum(y1_ref[...].astype(jnp.float32) * s1_ref[...] + t1_ref[...], 0.0)
    h1b = h1.astype(jnp.bfloat16)

    # Zero only the halo bands (the interior is fully rewritten each grid step,
    # and nothing depends on cross-step scratch state -> safe under "parallel").
    hpad_ref[:, 0:8, :] = jnp.zeros((h + 2, 8, cp2), jnp.bfloat16)          # left band (halo col 7)
    hpad_ref[:, 8 + w:9 + w, :] = jnp.zeros((h + 2, 1, cp2), jnp.bfloat16)  # right halo col
    hpad_ref[0:1, :, 0:cp] = jnp.zeros((1, w + 9, cp), jnp.bfloat16)        # top halo row
    hpad_ref[h + 1:h + 2, :, 0:cp] = jnp.zeros((1, w + 9, cp), jnp.bfloat16)  # bottom halo row

    # Sublane-aligned, lane-dense, unmasked interior stores.
    hpad_ref[1:h + 1, 8:8 + w, 0:cp] = h1b
    hpad_ref[0:h, 8:8 + w, cp:cp2] = h1b

    acc = jnp.zeros((h * w, cp), jnp.float32)
    for dw in range(3):
        # taps (dh=0,dw) + (dh=1,dw): one K = 2*Cp dot fills a 256-deep MXU.
        pair = hpad_ref[0:h, 7 + dw:7 + dw + w, :].reshape(h * w, cp2)
        acc = acc + jnp.dot(pair, w2p_ref[dw], preferred_element_type=jnp.float32)
        # tap (dh=2,dw): K = Cp.
        last = hpad_ref[2:2 + h, 7 + dw:7 + dw + w, 0:cp].reshape(h * w, cp)
        acc = acc + jnp.dot(last, w2l_ref[dw], preferred_element_type=jnp.float32)

    y2 = acc + b_ref[...]
    y2_ref[...] = y2.reshape(h, w, cp).astype(y2_ref.dtype)
    part_ref[0:1, :] = jnp.sum(y2, axis=0, keepdims=True)
    part_ref[1:2, :] = jnp.sum(y2 * y2, axis=0, keepdims=True)


# ---------------------------------------------------------------------------
# Kernel C: BN2 + ReLU with the 2x2 max-pool fused in; bf16 lane-dense outputs.
# ---------------------------------------------------------------------------
def bn_relu_pool_kernel(y_ref, s_ref, t_ref, h_ref, p_ref):
    h, w, cp = h_ref.shape
    act = jnp.maximum(y_ref[...].astype(jnp.float32) * s_ref[...] + t_ref[...], 0.0)
    h_ref[...] = act.astype(h_ref.dtype)

    # Row pairing via a leading-dim reshape (layout-trivial), then a single
    # vectorized column pairing + one lane-dense store (no per-column loop).
    rows = act.reshape(h // 2, 2, w, cp)
    row_max = jnp.maximum(rows[:, 0], rows[:, 1])                # (H//2, W, Cp)
    p_ref[...] = jnp.max(row_max.reshape(h // 2, w // 2, 2, cp),
                         axis=2).astype(p_ref.dtype)


# ---------------------------------------------------------------------------
# pallas_call wrappers
# ---------------------------------------------------------------------------
def conv1_stats(x3, w1p, bias):
    n, h, wp, k3 = x3.shape
    w = wp - 2
    cp = w1p.shape[-1]
    flops = 2 * n * h * w * 3 * k3 * cp
    bytes_acc = (x3.size * 2 + w1p.size * 2 + bias.size * 4
                 + n * h * w * cp * 2 + n * 2 * cp * 4)
    return pl.pallas_call(
        conv1_stats_kernel,
        grid=(n,),
        in_specs=[
            pl.BlockSpec((None, h, wp, k3), lambda i: (i, 0, 0, 0)),
            pl.BlockSpec((3, k3, cp), lambda i: (0, 0, 0)),       # resident weights
            pl.BlockSpec((1, cp), lambda i: (0, 0)),
        ],
        out_specs=[
            pl.BlockSpec((None, h, w, cp), lambda i: (i, 0, 0, 0)),
            pl.BlockSpec((None, 2, cp), lambda i: (i, 0, 0)),
        ],
        out_shape=[
            jax.ShapeDtypeStruct((n, h, w, cp), jnp.bfloat16),
            jax.ShapeDtypeStruct((n, 2, cp), jnp.float32),
        ],
        compiler_params=_compiler_params(),
        cost_estimate=pl.CostEstimate(flops=flops, transcendentals=0,
                                      bytes_accessed=bytes_acc),
    )(x3, w1p, bias)


def bn_relu_conv2_stats(y1, scale1, shift1, w2p, w2l, bias):
    n, h, w, cp = y1.shape
    flops = 2 * n * h * w * 9 * cp * cp
    bytes_acc = (y1.size * 2 + w2p.size * 2 + w2l.size * 2 + 3 * cp * 4
                 + n * h * w * cp * 2 + n * 2 * cp * 4)
    return pl.pallas_call(
        bn_relu_conv2_stats_kernel,
        grid=(n,),
        in_specs=[
            pl.BlockSpec((None, h, w, cp), lambda i: (i, 0, 0, 0)),
            pl.BlockSpec((1, cp), lambda i: (0, 0)),
            pl.BlockSpec((1, cp), lambda i: (0, 0)),
            pl.BlockSpec((3, 2 * cp, cp), lambda i: (0, 0, 0)),
            pl.BlockSpec((3, cp, cp), lambda i: (0, 0, 0)),
            pl.BlockSpec((1, cp), lambda i: (0, 0)),
        ],
        out_specs=[
            pl.BlockSpec((None, h, w, cp), lambda i: (i, 0, 0, 0)),
            pl.BlockSpec((None, 2, cp), lambda i: (i, 0, 0)),
        ],
        out_shape=[
            jax.ShapeDtypeStruct((n, h, w, cp), jnp.bfloat16),
            jax.ShapeDtypeStruct((n, 2, cp), jnp.float32),
        ],
        scratch_shapes=[pltpu.VMEM((h + 2, w + 9, 2 * cp), jnp.bfloat16)],
        compiler_params=_compiler_params(),
        cost_estimate=pl.CostEstimate(flops=flops, transcendentals=0,
                                      bytes_accessed=bytes_acc),
    )(y1, scale1, shift1, w2p, w2l, bias)


def bn_relu_pool(y2, scale2, shift2):
    n, h, w, cp = y2.shape
    flops = 6 * n * h * w * cp
    bytes_acc = (y2.size * 2 + 2 * cp * 4
                 + n * h * w * cp * 2 + n * (h // 2) * (w // 2) * cp * 2)
    return pl.pallas_call(
        bn_relu_pool_kernel,
        grid=(n,),
        in_specs=[
            pl.BlockSpec((None, h, w, cp), lambda i: (i, 0, 0, 0)),
            pl.BlockSpec((1, cp), lambda i: (0, 0)),
            pl.BlockSpec((1, cp), lambda i: (0, 0)),
        ],
        out_specs=[
            pl.BlockSpec((None, h, w, cp), lambda i: (i, 0, 0, 0)),
            pl.BlockSpec((None, h // 2, w // 2, cp), lambda i: (i, 0, 0, 0)),
        ],
        out_shape=[
            jax.ShapeDtypeStruct((n, h, w, cp), jnp.bfloat16),
            jax.ShapeDtypeStruct((n, h // 2, w // 2, cp), jnp.bfloat16),
        ],
        compiler_params=_compiler_params(),
        cost_estimate=pl.CostEstimate(flops=flops, transcendentals=0,
                                      bytes_accessed=bytes_acc),
    )(y2, scale2, shift2)


# ---------------------------------------------------------------------------
# Tiny plain-JAX glue: parameter packing / folded BN scale-shift / transposes.
# ---------------------------------------------------------------------------
def _bn_scale_shift(part, gamma, beta, count):
    """part: (N, 2, Cp) per-image [sum, sumsq] partials -> folded (scale, shift)."""
    s = jnp.sum(part, axis=0)                            # (2, Cp) f32
    mean = s[0] / count
    var = jnp.maximum(s[1] / count - mean * mean, 0.0)   # biased batch variance
    scale = gamma * jax.lax.rsqrt(var + BN_EPS)          # (1, Cp)
    shift = beta - mean * scale
    return scale.astype(jnp.float32), shift.astype(jnp.float32)


def down_block(x_nchw, params):
    """Forward of DownBlock: returns (x, x_pooled), both NCHW like PyTorch."""
    n, c_in, h, w = x_nchw.shape
    assert h % 2 == 0 and w % 2 == 0, "MaxPool2d(2) path assumes even H, W"
    c_out = params["w1"].shape[-1]
    cin_p = _round_up(c_in, SUBLANE)
    cp = _round_up(c_out, LANE)

    # NCHW -> NHWC, spatial + channel zero-pad, cast to bf16 once.
    x = jnp.transpose(x_nchw, (0, 2, 3, 1))
    x_pad = jnp.pad(x, ((0, 0), (1, 1), (1, 1), (0, cin_p - c_in))).astype(jnp.bfloat16)
    # Pre-pack the three dh row-taps into channels: (N, H, W+2, 3*cin_p).
    x3 = jnp.concatenate(
        [x_pad[:, 0:h, :, :], x_pad[:, 1:h + 1, :, :], x_pad[:, 2:h + 2, :, :]], axis=-1)

    # conv1 weights (3,3,Ci,Co) HWIO -> per-dw dh-packed taps (3, 3*cin_p, cp).
    w1 = jnp.pad(params["w1"], ((0, 0), (0, 0), (0, cin_p - c_in), (0, cp - c_out)))
    w1p = jnp.transpose(w1, (1, 0, 2, 3)).reshape(3, 3 * cin_p, cp).astype(jnp.bfloat16)

    # conv2 weights: (dh=0,dw)+(dh=1,dw) stacked on K (fills a 256-deep MXU),
    # plus the (dh=2,dw) singles.
    w2 = jnp.pad(params["w2"], ((0, 0), (0, 0), (0, cp - c_out), (0, cp - c_out)))
    w2p = jnp.concatenate([w2[0], w2[1]], axis=1).astype(jnp.bfloat16)   # (3, 2cp, cp)
    w2l = w2[2].astype(jnp.bfloat16)                                     # (3, cp, cp)

    pad_c = ((0, 0), (0, cp - c_out))
    b1 = jnp.pad(params["b1"], pad_c)
    g1 = jnp.pad(params["g1"], pad_c)
    be1 = jnp.pad(params["be1"], pad_c)
    b2 = jnp.pad(params["b2"], pad_c)
    g2 = jnp.pad(params["g2"], pad_c)
    be2 = jnp.pad(params["be2"], pad_c)

    count = n * h * w

    # conv1 (+ BN1 partial stats)
    y1, part1 = conv1_stats(x3, w1p, b1)
    scale1, shift1 = _bn_scale_shift(part1, g1, be1, count)

    # BN1 + ReLU + conv2 fused (h1 never leaves VMEM), + BN2 partial stats
    y2, part2 = bn_relu_conv2_stats(y1, scale1, shift1, w2p, w2l, b2)
    scale2, shift2 = _bn_scale_shift(part2, g2, be2, count)

    # BN2 + ReLU + fused 2x2 max-pool (bf16 outputs)
    h2, pooled = bn_relu_pool(y2, scale2, shift2)

    # TODO(synk): fuse the channel slice + NHWC->NCHW transpose into kernel C
    # (c_out-wide or transposed out block) to drop this padded HBM round trip.
    h2 = jnp.transpose(h2[:, :, :, :c_out], (0, 3, 1, 2)).astype(jnp.float32)
    pooled = jnp.transpose(pooled[:, :, :, :c_out], (0, 3, 1, 2)).astype(jnp.float32)
    return h2, pooled


# ---------------------------------------------------------------------------
# Pure-JAX f32 reference (PyTorch semantics) for a sanity check.
# ---------------------------------------------------------------------------
def reference_down_block(x_nchw, params):
    def conv(x, w_hwio, b):
        y = jax.lax.conv_general_dilated(
            x, w_hwio, window_strides=(1, 1), padding="SAME",
            dimension_numbers=("NCHW", "HWIO", "NCHW"),
            precision=jax.lax.Precision.HIGHEST)
        return y + b.reshape(1, -1, 1, 1)

    def bn_relu(y, g, be):
        mean = jnp.mean(y, axis=(0, 2, 3), keepdims=True)
        var = jnp.mean((y - mean) ** 2, axis=(0, 2, 3), keepdims=True)
        yh = (y - mean) * jax.lax.rsqrt(var + BN_EPS)
        return jnp.maximum(yh * g.reshape(1, -1, 1, 1) + be.reshape(1, -1, 1, 1), 0.0)

    h1 = bn_relu(conv(x_nchw, params["w1"], params["b1"]), params["g1"], params["be1"])
    h2 = bn_relu(conv(h1, params["w2"], params["b2"]), params["g2"], params["be2"])
    n, c, hh, ww = h2.shape
    pooled = h2.reshape(n, c, hh // 2, 2, ww // 2, 2).max(axis=(3, 5))
    return h2, pooled


# ---------------------------------------------------------------------------
# Main
# ---------------------------------------------------------------------------
if __name__ == "__main__":
    key = jax.random.PRNGKey(0)
    N, C_IN, H, W = 2, 4, 16, 16
    C_OUT = 8

    ks = jax.random.split(key, 10)
    x = jax.random.normal(ks[0], (N, C_IN, H, W), jnp.float32)

    # Deterministic synthetic parameters (shapes per nn.Module.__init__; HWIO weights).
    params = {
        "w1": 0.2 * jax.random.normal(ks[1], (3, 3, C_IN, C_OUT), jnp.float32),
        "b1": 0.1 * jax.random.normal(ks[2], (1, C_OUT), jnp.float32),
        "g1": 1.0 + 0.1 * jax.random.normal(ks[3], (1, C_OUT), jnp.float32),
        "be1": 0.1 * jax.random.normal(ks[4], (1, C_OUT), jnp.float32),
        "w2": 0.2 * jax.random.normal(ks[5], (3, 3, C_OUT, C_OUT), jnp.float32),
        "b2": 0.1 * jax.random.normal(ks[6], (1, C_OUT), jnp.float32),
        "g2": 1.0 + 0.1 * jax.random.normal(ks[7], (1, C_OUT), jnp.float32),
        "be2": 0.1 * jax.random.normal(ks[8], (1, C_OUT), jnp.float32),
    }

    x_full, x_pooled = jax.jit(down_block)(x, params)
    jax.block_until_ready((x_full, x_pooled))

    assert x_full.shape == (N, C_OUT, H, W)
    assert x_pooled.shape == (N, C_OUT, H // 2, W // 2)

    # Numerical sanity check against a pure-f32 reference.  The kernel path
    # uses bf16 MXU operands and bf16 intermediates / outputs (f32 accumulation
    # and f32 BN epilogues), so allow bf16-level end-to-end tolerance.
    ref_full, ref_pooled = reference_down_block(x, params)
    err_full = float(jnp.max(jnp.abs(x_full - ref_full)))
    err_pool = float(jnp.max(jnp.abs(x_pooled - ref_pooled)))
    assert err_full < 1e-1 and err_pool < 1e-1, (err_full, err_pool)

    print("KERNEL_OK")
</pallas_src>

<mosaic_0001>
module attributes {stable_mosaic.version = 11 : i64} {
  func.func @conv1_stats_kernel(%arg0: i32, %arg1: memref<1x16x18x24xbf16, #tpu.memory_space<vmem>>, %arg2: memref<3x24x128xbf16, #tpu.memory_space<vmem>>, %arg3: memref<1x128xf32, #tpu.memory_space<vmem>>, %arg4: memref<1x16x16x128xbf16, #tpu.memory_space<vmem>>, %arg5: memref<1x2x128xf32, #tpu.memory_space<vmem>>) attributes {dimension_semantics = [#tpu.dimension_semantics<parallel>], iteration_bounds = array<i64: 2>, scalar_prefetch = 0 : i64, scratch_operands = 0 : i64, tpu.core_type = #tpu.core_type<tc>, window_params = [{transform_indices = @transform_0, window_bounds = array<i64: 1, 16, 18, 24>}, {pipeline_mode = #tpu.pipeline_mode<synchronous>, transform_indices = @transform_1, window_bounds = array<i64: 3, 24, 128>}, {pipeline_mode = #tpu.pipeline_mode<synchronous>, transform_indices = @transform_2, window_bounds = array<i64: 1, 128>}, {transform_indices = @transform_3, window_bounds = array<i64: 1, 16, 16, 128>}, {transform_indices = @transform_4, window_bounds = array<i64: 1, 2, 128>}]} {
    %cst = arith.constant 0.000000e+00 : f32
    %0 = vector.broadcast %cst : f32 to vector<256x128xf32>
    %c0 = arith.constant 0 : index
    %c0_0 = arith.constant 0 : index
    %c0_1 = arith.constant 0 : index
    %c0_2 = arith.constant 0 : index
    %1 = vector.load %arg1[%c0, %c0_0, %c0_1, %c0_2] : memref<1x16x18x24xbf16, #tpu.memory_space<vmem>>, vector<1x16x16x24xbf16>
    %2 = vector.shape_cast %1 : vector<1x16x16x24xbf16> to vector<16x16x24xbf16>
    %3 = vector.shape_cast %2 : vector<16x16x24xbf16> to vector<256x24xbf16>
    %c0_3 = arith.constant 0 : index
    %c0_4 = arith.constant 0 : index
    %c0_5 = arith.constant 0 : index
    %4 = vector.load %arg2[%c0_3, %c0_4, %c0_5] : memref<3x24x128xbf16, #tpu.memory_space<vmem>>, vector<1x24x128xbf16>
    %5 = vector.shape_cast %4 : vector<1x24x128xbf16> to vector<24x128xbf16>
    %cst_6 = arith.constant dense<0.000000e+00> : vector<256x128xf32>
    %6 = tpu.matmul %3, %5, %cst_6 {dimension_numbers = #tpu.dot_dimension_numbers<[1], [0], [0], [1], [0, 0, 1, 1], [], []>} : vector<256x24xbf16>, vector<24x128xbf16>, vector<256x128xf32> -> vector<256x128xf32>
    %7 = arith.addf %0, %6 : vector<256x128xf32>
    %c0_7 = arith.constant 0 : index
    %c0_8 = arith.constant 0 : index
    %c1 = arith.constant 1 : index
    %c0_9 = arith.constant 0 : index
    %8 = vector.load %arg1[%c0_7, %c0_8, %c1, %c0_9] : memref<1x16x18x24xbf16, #tpu.memory_space<vmem>>, vector<1x16x16x24xbf16>
    %9 = vector.shape_cast %8 : vector<1x16x16x24xbf16> to vector<16x16x24xbf16>
    %10 = vector.shape_cast %9 : vector<16x16x24xbf16> to vector<256x24xbf16>
    %c1_10 = arith.constant 1 : index
    %c0_11 = arith.constant 0 : index
    %c0_12 = arith.constant 0 : index
    %11 = vector.load %arg2[%c1_10, %c0_11, %c0_12] : memref<3x24x128xbf16, #tpu.memory_space<vmem>>, vector<1x24x128xbf16>
    %12 = vector.shape_cast %11 : vector<1x24x128xbf16> to vector<24x128xbf16>
    %cst_13 = arith.constant dense<0.000000e+00> : vector<256x128xf32>
    %13 = tpu.matmul %10, %12, %cst_13 {dimension_numbers = #tpu.dot_dimension_numbers<[1], [0], [0], [1], [0, 0, 1, 1], [], []>} : vector<256x24xbf16>, vector<24x128xbf16>, vector<256x128xf32> -> vector<256x128xf32>
    %14 = arith.addf %7, %13 : vector<256x128xf32>
    %c0_14 = arith.constant 0 : index
    %c0_15 = arith.constant 0 : index
    %c2 = arith.constant 2 : index
    %c0_16 = arith.constant 0 : index
    %15 = vector.load %arg1[%c0_14, %c0_15, %c2, %c0_16] : memref<1x16x18x24xbf16, #tpu.memory_space<vmem>>, vector<1x16x16x24xbf16>
    %16 = vector.shape_cast %15 : vector<1x16x16x24xbf16> to vector<16x16x24xbf16>
    %17 = vector.shape_cast %16 : vector<16x16x24xbf16> to vector<256x24xbf16>
    %c2_17 = arith.constant 2 : index
    %c0_18 = arith.constant 0 : index
    %c0_19 = arith.constant 0 : index
    %18 = vector.load %arg2[%c2_17, %c0_18, %c0_19] : memref<3x24x128xbf16, #tpu.memory_space<vmem>>, vector<1x24x128xbf16>
    %19 = vector.shape_cast %18 : vector<1x24x128xbf16> to vector<24x128xbf16>
    %cst_20 = arith.constant dense<0.000000e+00> : vector<256x128xf32>
    %20 = tpu.matmul %17, %19, %cst_20 {dimension_numbers = #tpu.dot_dimension_numbers<[1], [0], [0], [1], [0, 0, 1, 1], [], []>} : vector<256x24xbf16>, vector<24x128xbf16>, vector<256x128xf32> -> vector<256x128xf32>
    %21 = arith.addf %14, %20 : vector<256x128xf32>
    %c0_21 = arith.constant 0 : index
    %c0_22 = arith.constant 0 : index
    %22 = vector.load %arg3[%c0_21, %c0_22] : memref<1x128xf32, #tpu.memory_space<vmem>>, vector<1x128xf32>
    %23 = vector.broadcast %22 : vector<1x128xf32> to vector<256x128xf32>
    %24 = arith.addf %21, %23 : vector<256x128xf32>
    %25 = vector.shape_cast %24 : vector<256x128xf32> to vector<16x16x128xf32>
    %26 = arith.truncf %25 : vector<16x16x128xf32> to vector<16x16x128xbf16>
    %c0_23 = arith.constant 0 : index
    %c0_24 = arith.constant 0 : index
    %c0_25 = arith.constant 0 : index
    %c0_26 = arith.constant 0 : index
    %27 = vector.load %arg4[%c0_23, %c0_24, %c0_25, %c0_26] : memref<1x16x16x128xbf16, #tpu.memory_space<vmem>>, vector<1x16x16x128xbf16>
    %28 = vector.shape_cast %27 : vector<1x16x16x128xbf16> to vector<16x16x128xbf16>
    %29 = vector.shape_cast %26 : vector<16x16x128xbf16> to vector<1x16x16x128xbf16>
    tpu.vector_store %arg4[%c0_23, %c0_24, %c0_25, %c0_26], %29 {strides = array<i32>} : memref<1x16x16x128xbf16, #tpu.memory_space<vmem>>, vector<1x16x16x128xbf16>,
    %cst_27 = arith.constant dense<0.000000e+00> : vector<128xf32>
    %30 = vector.multi_reduction <add>, %24, %cst_27 [0] : vector<256x128xf32> to vector<128xf32>
    %31 = vector.shape_cast %30 : vector<128xf32> to vector<1x128xf32>
    %c0_28 = arith.constant 0 : index
    %c0_29 = arith.constant 0 : index
    %c0_30 = arith.constant 0 : index
    %32 = vector.load %arg5[%c0_28, %c0_29, %c0_30] : memref<1x2x128xf32, #tpu.memory_space<vmem>>, vector<1x1x128xf32>
    %33 = vector.shape_cast %32 : vector<1x1x128xf32> to vector<1x128xf32>
    %34 = vector.shape_cast %31 : vector<1x128xf32> to vector<1x1x128xf32>
    tpu.vector_store %arg5[%c0_28, %c0_29, %c0_30], %34 {strides = array<i32>} : memref<1x2x128xf32, #tpu.memory_space<vmem>>, vector<1x1x128xf32>,
    %35 = arith.mulf %24, %24 : vector<256x128xf32>
    %cst_31 = arith.constant dense<0.000000e+00> : vector<128xf32>
    %36 = vector.multi_reduction <add>, %35, %cst_31 [0] : vector<256x128xf32> to vector<128xf32>
    %37 = vector.shape_cast %36 : vector<128xf32> to vector<1x128xf32>
    %c0_32 = arith.constant 0 : index
    %c1_33 = arith.constant 1 : index
    %c0_34 = arith.constant 0 : index
    %38 = vector.load %arg5[%c0_32, %c1_33, %c0_34] : memref<1x2x128xf32, #tpu.memory_space<vmem>>, vector<1x1x128xf32>
    %39 = vector.shape_cast %38 : vector<1x1x128xf32> to vector<1x128xf32>
    %40 = vector.shape_cast %37 : vector<1x128xf32> to vector<1x1x128xf32>
    tpu.vector_store %arg5[%c0_32, %c1_33, %c0_34], %40 {strides = array<i32>} : memref<1x2x128xf32, #tpu.memory_space<vmem>>, vector<1x1x128xf32>,
    return
  }
  func.func @transform_0(%arg0: i32) -> (i32, i32, i32, i32) {
    %c0_i32 = arith.constant 0 : i32
    %c0_i32_0 = arith.constant 0 : i32
    %c0_i32_1 = arith.constant 0 : i32
    %c0_i32_2 = arith.constant 0 : i32
    return %arg0, %c0_i32, %c0_i32_0, %c0_i32_1 : i32, i32, i32, i32
  }
  func.func @transform_1(%arg0: i32) -> (i32, i32, i32) {
    %c0_i32 = arith.constant 0 : i32
    %c0_i32_0 = arith.constant 0 : i32
    %c0_i32_1 = arith.constant 0 : i32
    %c0_i32_2 = arith.constant 0 : i32
    return %c0_i32, %c0_i32_0, %c0_i32_1 : i32, i32, i32
  }
  func.func @transform_2(%arg0: i32) -> (i32, i32) {
    %c0_i32 = arith.constant 0 : i32
    %c0_i32_0 = arith.constant 0 : i32
    %c0_i32_1 = arith.constant 0 : i32
    return %c0_i32, %c0_i32_0 : i32, i32
  }
  func.func @transform_3(%arg0: i32) -> (i32, i32, i32, i32) {
    %c0_i32 = arith.constant 0 : i32
    %c0_i32_0 = arith.constant 0 : i32
    %c0_i32_1 = arith.constant 0 : i32
    %c0_i32_2 = arith.constant 0 : i32
    return %arg0, %c0_i32, %c0_i32_0, %c0_i32_1 : i32, i32, i32, i32
  }
  func.func @transform_4(%arg0: i32) -> (i32, i32, i32) {
    %c0_i32 = arith.constant 0 : i32
    %c0_i32_0 = arith.constant 0 : i32
    %c0_i32_1 = arith.constant 0 : i32
    return %arg0, %c0_i32, %c0_i32_0 : i32, i32, i32
  }
}

module attributes {stable_mosaic.version = 11 : i64} {
  func.func @bn_relu_pool_kernel(%arg0: i32, %arg1: memref<1x16x16x128xbf16, #tpu.memory_space<vmem>>, %arg2: memref<1x128xf32, #tpu.memory_space<vmem>>, %arg3: memref<1x128xf32, #tpu.memory_space<vmem>>, %arg4: memref<1x16x16x128xbf16, #tpu.memory_space<vmem>>, %arg5: memref<1x8x8x128xbf16, #tpu.memory_space<vmem>>) attributes {dimension_semantics = [#tpu.dimension_semantics<parallel>], iteration_bounds = array<i64: 2>, scalar_prefetch = 0 : i64, scratch_operands = 0 : i64, tpu.core_type = #tpu.core_type<tc>, window_params = [{transform_indices = @transform_0, window_bounds = array<i64: 1, 16, 16, 128>}, {pipeline_mode = #tpu.pipeline_mode<synchronous>, transform_indices = @transform_1, window_bounds = array<i64: 1, 128>}, {pipeline_mode = #tpu.pipeline_mode<synchronous>, transform_indices = @transform_2, window_bounds = array<i64: 1, 128>}, {transform_indices = @transform_3, window_bounds = array<i64: 1, 16, 16, 128>}, {transform_indices = @transform_4, window_bounds = array<i64: 1, 8, 8, 128>}]} {
    %c0 = arith.constant 0 : index
    %c0_0 = arith.constant 0 : index
    %c0_1 = arith.constant 0 : index
    %c0_2 = arith.constant 0 : index
    %0 = vector.load %arg1[%c0, %c0_0, %c0_1, %c0_2] : memref<1x16x16x128xbf16, #tpu.memory_space<vmem>>, vector<1x16x16x128xbf16>
    %1 = vector.shape_cast %0 : vector<1x16x16x128xbf16> to vector<16x16x128xbf16>
    %2 = arith.extf %1 : vector<16x16x128xbf16> to vector<16x16x128xf32>
    %c0_3 = arith.constant 0 : index
    %c0_4 = arith.constant 0 : index
    %3 = vector.load %arg2[%c0_3, %c0_4] : memref<1x128xf32, #tpu.memory_space<vmem>>, vector<1x128xf32>
    %4 = vector.shape_cast %3 : vector<1x128xf32> to vector<1x1x128xf32>
    %5 = vector.broadcast %4 : vector<1x1x128xf32> to vector<16x16x128xf32>
    %6 = arith.mulf %2, %5 : vector<16x16x128xf32>
    %c0_5 = arith.constant 0 : index
    %c0_6 = arith.constant 0 : index
    %7 = vector.load %arg3[%c0_5, %c0_6] : memref<1x128xf32, #tpu.memory_space<vmem>>, vector<1x128xf32>
    %8 = vector.shape_cast %7 : vector<1x128xf32> to vector<1x1x128xf32>
    %9 = vector.broadcast %8 : vector<1x1x128xf32> to vector<16x16x128xf32>
    %10 = arith.addf %6, %9 : vector<16x16x128xf32>
    %cst = arith.constant 0.000000e+00 : f32
    %11 = vector.broadcast %cst : f32 to vector<16x16x128xf32>
    %12 = arith.maximumf %10, %11 : vector<16x16x128xf32>
    %13 = arith.truncf %12 : vector<16x16x128xf32> to vector<16x16x128xbf16>
    %c0_7 = arith.constant 0 : index
    %c0_8 = arith.constant 0 : index
    %c0_9 = arith.constant 0 : index
    %c0_10 = arith.constant 0 : index
    %14 = vector.load %arg4[%c0_7, %c0_8, %c0_9, %c0_10] : memref<1x16x16x128xbf16, #tpu.memory_space<vmem>>, vector<1x16x16x128xbf16>
    %15 = vector.shape_cast %14 : vector<1x16x16x128xbf16> to vector<16x16x128xbf16>
    %16 = vector.shape_cast %13 : vector<16x16x128xbf16> to vector<1x16x16x128xbf16>
    tpu.vector_store %arg4[%c0_7, %c0_8, %c0_9, %c0_10], %16 {strides = array<i32>} : memref<1x16x16x128xbf16, #tpu.memory_space<vmem>>, vector<1x16x16x128xbf16>,
    %17 = vector.shape_cast %12 : vector<16x16x128xf32> to vector<8x2x16x128xf32>
    %18 = vector.extract_strided_slice %17 {offsets = [0, 0, 0, 0], sizes = [8, 1, 16, 128], strides = [1, 1, 1, 1]} : vector<8x2x16x128xf32> to vector<8x1x16x128xf32>
    %19 = vector.shape_cast %18 : vector<8x1x16x128xf32> to vector<8x16x128xf32>
    %20 = vector.extract_strided_slice %17 {offsets = [0, 1, 0, 0], sizes = [8, 1, 16, 128], strides = [1, 1, 1, 1]} : vector<8x2x16x128xf32> to vector<8x1x16x128xf32>
    %21 = vector.shape_cast %20 : vector<8x1x16x128xf32> to vector<8x16x128xf32>
    %22 = arith.maximumf %19, %21 : vector<8x16x128xf32>
    %23 = vector.shape_cast %22 : vector<8x16x128xf32> to vector<8x8x2x128xf32>
    %cst_11 = arith.constant dense<0xFF800000> : vector<8x8x128xf32>
    %24 = vector.multi_reduction <maximumf>, %23, %cst_11 [2] : vector<8x8x2x128xf32> to vector<8x8x128xf32>
    %25 = arith.truncf %24 : vector<8x8x128xf32> to vector<8x8x128xbf16>
    %c0_12 = arith.constant 0 : index
    %c0_13 = arith.constant 0 : index
    %c0_14 = arith.constant 0 : index
    %c0_15 = arith.constant 0 : index
    %26 = vector.load %arg5[%c0_12, %c0_13, %c0_14, %c0_15] : memref<1x8x8x128xbf16, #tpu.memory_space<vmem>>, vector<1x8x8x128xbf16>
    %27 = vector.shape_cast %26 : vector<1x8x8x128xbf16> to vector<8x8x128xbf16>
    %28 = vector.shape_cast %25 : vector<8x8x128xbf16> to vector<1x8x8x128xbf16>
    tpu.vector_store %arg5[%c0_12, %c0_13, %c0_14, %c0_15], %28 {strides = array<i32>} : memref<1x8x8x128xbf16, #tpu.memory_space<vmem>>, vector<1x8x8x128xbf16>,
    return
  }
  func.func @transform_0(%arg0: i32) -> (i32, i32, i32, i32) {
    %c0_i32 = arith.constant 0 : i32
    %c0_i32_0 = arith.constant 0 : i32
    %c0_i32_1 = arith.constant 0 : i32
    %c0_i32_2 = arith.constant 0 : i32
    return %arg0, %c0_i32, %c0_i32_0, %c0_i32_1 : i32, i32, i32, i32
  }
  func.func @transform_1(%arg0: i32) -> (i32, i32) {
    %c0_i32 = arith.constant 0 : i32
    %c0_i32_0 = arith.constant 0 : i32
    %c0_i32_1 = arith.constant 0 : i32
    return %c0_i32, %c0_i32_0 : i32, i32
  }
  func.func @transform_2(%arg0: i32) -> (i32, i32) {
    %c0_i32 = arith.constant 0 : i32
    %c0_i32_0 = arith.constant 0 : i32
    %c0_i32_1 = arith.constant 0 : i32
    return %c0_i32, %c0_i32_0 : i32, i32
  }
  func.func @transform_3(%arg0: i32) -> (i32, i32, i32, i32) {
    %c0_i32 = arith.constant 0 : i32
    %c0_i32_0 = arith.constant 0 : i32
    %c0_i32_1 = arith.constant 0 : i32
    %c0_i32_2 = arith.constant 0 : i32
    return %arg0, %c0_i32, %c0_i32_0, %c0_i32_1 : i32, i32, i32, i32
  }
  func.func @transform_4(%arg0: i32) -> (i32, i32, i32, i32) {
    %c0_i32 = arith.constant 0 : i32
    %c0_i32_0 = arith.constant 0 : i32
    %c0_i32_1 = arith.constant 0 : i32
    %c0_i32_2 = arith.constant 0 : i32
    return %arg0, %c0_i32, %c0_i32_0, %c0_i32_1 : i32, i32, i32, i32
  }
}

module attributes {stable_mosaic.version = 11 : i64} {
  func.func @bn_relu_conv2_stats_kernel(%arg0: i32, %arg1: memref<1x16x16x128xbf16, #tpu.memory_space<vmem>>, %arg2: memref<1x128xf32, #tpu.memory_space<vmem>>, %arg3: memref<1x128xf32, #tpu.memory_space<vmem>>, %arg4: memref<3x256x128xbf16, #tpu.memory_space<vmem>>, %arg5: memref<3x128x128xbf16, #tpu.memory_space<vmem>>, %arg6: memref<1x128xf32, #tpu.memory_space<vmem>>, %arg7: memref<1x16x16x128xbf16, #tpu.memory_space<vmem>>, %arg8: memref<1x2x128xf32, #tpu.memory_space<vmem>>, %arg9: memref<18x25x256xbf16, #tpu.memory_space<vmem>>) attributes {dimension_semantics = [#tpu.dimension_semantics<parallel>], iteration_bounds = array<i64: 2>, scalar_prefetch = 0 : i64, scratch_operands = 1 : i64, tpu.core_type = #tpu.core_type<tc>, window_params = [{transform_indices = @transform_0, window_bounds = array<i64: 1, 16, 16, 128>}, {pipeline_mode = #tpu.pipeline_mode<synchronous>, transform_indices = @transform_1, window_bounds = array<i64: 1, 128>}, {pipeline_mode = #tpu.pipeline_mode<synchronous>, transform_indices = @transform_2, window_bounds = array<i64: 1, 128>}, {pipeline_mode = #tpu.pipeline_mode<synchronous>, transform_indices = @transform_3, window_bounds = array<i64: 3, 256, 128>}, {pipeline_mode = #tpu.pipeline_mode<synchronous>, transform_indices = @transform_4, window_bounds = array<i64: 3, 128, 128>}, {pipeline_mode = #tpu.pipeline_mode<synchronous>, transform_indices = @transform_5, window_bounds = array<i64: 1, 128>}, {transform_indices = @transform_6, window_bounds = array<i64: 1, 16, 16, 128>}, {transform_indices = @transform_7, window_bounds = array<i64: 1, 2, 128>}]} {
    %c0 = arith.constant 0 : index
    %c0_0 = arith.constant 0 : index
    %c0_1 = arith.constant 0 : index
    %c0_2 = arith.constant 0 : index
    %0 = vector.load %arg1[%c0, %c0_0, %c0_1, %c0_2] : memref<1x16x16x128xbf16, #tpu.memory_space<vmem>>, vector<1x16x16x128xbf16>
    %1 = vector.shape_cast %0 : vector<1x16x16x128xbf16> to vector<16x16x128xbf16>
    %2 = arith.extf %1 : vector<16x16x128xbf16> to vector<16x16x128xf32>
    %c0_3 = arith.constant 0 : index
    %c0_4 = arith.constant 0 : index
    %3 = vector.load %arg2[%c0_3, %c0_4] : memref<1x128xf32, #tpu.memory_space<vmem>>, vector<1x128xf32>
    %4 = vector.shape_cast %3 : vector<1x128xf32> to vector<1x1x128xf32>
    %5 = vector.broadcast %4 : vector<1x1x128xf32> to vector<16x16x128xf32>
    %6 = arith.mulf %2, %5 : vector<16x16x128xf32>
    %c0_5 = arith.constant 0 : index
    %c0_6 = arith.constant 0 : index
    %7 = vector.load %arg3[%c0_5, %c0_6] : memref<1x128xf32, #tpu.memory_space<vmem>>, vector<1x128xf32>
    %8 = vector.shape_cast %7 : vector<1x128xf32> to vector<1x1x128xf32>
    %9 = vector.broadcast %8 : vector<1x1x128xf32> to vector<16x16x128xf32>
    %10 = arith.addf %6, %9 : vector<16x16x128xf32>
    %cst = arith.constant 0.000000e+00 : f32
    %11 = vector.broadcast %cst : f32 to vector<16x16x128xf32>
    %12 = arith.maximumf %10, %11 : vector<16x16x128xf32>
    %13 = arith.truncf %12 : vector<16x16x128xf32> to vector<16x16x128xbf16>
    %cst_7 = arith.constant 0.000000e+00 : bf16
    %14 = vector.broadcast %cst_7 : bf16 to vector<18x8x256xbf16>
    %c0_8 = arith.constant 0 : index
    %c0_9 = arith.constant 0 : index
    %c0_10 = arith.constant 0 : index
    %15 = vector.load %arg9[%c0_8, %c0_9, %c0_10] : memref<18x25x256xbf16, #tpu.memory_space<vmem>>, vector<18x8x256xbf16>
    tpu.vector_store %arg9[%c0_8, %c0_9, %c0_10], %14 {strides = array<i32>} : memref<18x25x256xbf16, #tpu.memory_space<vmem>>, vector<18x8x256xbf16>,
    %cst_11 = arith.constant 0.000000e+00 : bf16
    %16 = vector.broadcast %cst_11 : bf16 to vector<18x1x256xbf16>
    %c0_12 = arith.constant 0 : index
    %c24 = arith.constant 24 : index
    %c0_13 = arith.constant 0 : index
    %17 = vector.load %arg9[%c0_12, %c24, %c0_13] : memref<18x25x256xbf16, #tpu.memory_space<vmem>>, vector<18x1x256xbf16>
    tpu.vector_store %arg9[%c0_12, %c24, %c0_13], %16 {strides = array<i32>} : memref<18x25x256xbf16, #tpu.memory_space<vmem>>, vector<18x1x256xbf16>,
    %cst_14 = arith.constant 0.000000e+00 : bf16
    %18 = vector.broadcast %cst_14 : bf16 to vector<1x25x128xbf16>
    %c0_15 = arith.constant 0 : index
    %c0_16 = arith.constant 0 : index
    %c0_17 = arith.constant 0 : index
    %19 = vector.load %arg9[%c0_15, %c0_16, %c0_17] : memref<18x25x256xbf16, #tpu.memory_space<vmem>>, vector<1x25x128xbf16>
    tpu.vector_store %arg9[%c0_15, %c0_16, %c0_17], %18 {strides = array<i32>} : memref<18x25x256xbf16, #tpu.memory_space<vmem>>, vector<1x25x128xbf16>,
    %cst_18 = arith.constant 0.000000e+00 : bf16
    %20 = vector.broadcast %cst_18 : bf16 to vector<1x25x128xbf16>
    %c17 = arith.constant 17 : index
    %c0_19 = arith.constant 0 : index
    %c0_20 = arith.constant 0 : index
    %21 = vector.load %arg9[%c17, %c0_19, %c0_20] : memref<18x25x256xbf16, #tpu.memory_space<vmem>>, vector<1x25x128xbf16>
    tpu.vector_store %arg9[%c17, %c0_19, %c0_20], %20 {strides = array<i32>} : memref<18x25x256xbf16, #tpu.memory_space<vmem>>, vector<1x25x128xbf16>,
    %c1 = arith.constant 1 : index
    %c8 = arith.constant 8 : index
    %c0_21 = arith.constant 0 : index
    %22 = vector.load %arg9[%c1, %c8, %c0_21] : memref<18x25x256xbf16, #tpu.memory_space<vmem>>, vector<16x16x128xbf16>
    tpu.vector_store %arg9[%c1, %c8, %c0_21], %13 {strides = array<i32>} : memref<18x25x256xbf16, #tpu.memory_space<vmem>>, vector<16x16x128xbf16>,
    %c0_22 = arith.constant 0 : index
    %c8_23 = arith.constant 8 : index
    %c128 = arith.constant 128 : index
    %23 = vector.load %arg9[%c0_22, %c8_23, %c128] : memref<18x25x256xbf16, #tpu.memory_space<vmem>>, vector<16x16x128xbf16>
    tpu.vector_store %arg9[%c0_22, %c8_23, %c128], %13 {strides = array<i32>} : memref<18x25x256xbf16, #tpu.memory_space<vmem>>, vector<16x16x128xbf16>,
    %cst_24 = arith.constant 0.000000e+00 : f32
    %24 = vector.broadcast %cst_24 : f32 to vector<256x128xf32>
    %c0_25 = arith.constant 0 : index
    %c7 = arith.constant 7 : index
    %c0_26 = arith.constant 0 : index
    %25 = vector.load %arg9[%c0_25, %c7, %c0_26] : memref<18x25x256xbf16, #tpu.memory_space<vmem>>, vector<16x16x256xbf16>
    %26 = vector.shape_cast %25 : vector<16x16x256xbf16> to vector<256x256xbf16>
    %c0_27 = arith.constant 0 : index
    %c0_28 = arith.constant 0 : index
    %c0_29 = arith.constant 0 : index
    %27 = vector.load %arg4[%c0_27, %c0_28, %c0_29] : memref<3x256x128xbf16, #tpu.memory_space<vmem>>, vector<1x256x128xbf16>
    %28 = vector.shape_cast %27 : vector<1x256x128xbf16> to vector<256x128xbf16>
    %cst_30 = arith.constant dense<0.000000e+00> : vector<256x128xf32>
    %29 = tpu.matmul %26, %28, %cst_30 {dimension_numbers = #tpu.dot_dimension_numbers<[1], [0], [0], [1], [0, 0, 1, 1], [], []>} : vector<256x256xbf16>, vector<256x128xbf16>, vector<256x128xf32> -> vector<256x128xf32>
    %30 = arith.addf %24, %29 : vector<256x128xf32>
    %c2 = arith.constant 2 : index
    %c7_31 = arith.constant 7 : index
    %c0_32 = arith.constant 0 : index
    %31 = vector.load %arg9[%c2, %c7_31, %c0_32] : memref<18x25x256xbf16, #tpu.memory_space<vmem>>, vector<16x16x128xbf16>
    %32 = vector.shape_cast %31 : vector<16x16x128xbf16> to vector<256x128xbf16>
    %c0_33 = arith.constant 0 : index
    %c0_34 = arith.constant 0 : index
    %c0_35 = arith.constant 0 : index
    %33 = vector.load %arg5[%c0_33, %c0_34, %c0_35] : memref<3x128x128xbf16, #tpu.memory_space<vmem>>, vector<1x128x128xbf16>
    %34 = vector.shape_cast %33 : vector<1x128x128xbf16> to vector<128x128xbf16>
    %cst_36 = arith.constant dense<0.000000e+00> : vector<256x128xf32>
    %35 = tpu.matmul %32, %34, %cst_36 {dimension_numbers = #tpu.dot_dimension_numbers<[1], [0], [0], [1], [0, 0, 1, 1], [], []>} : vector<256x128xbf16>, vector<128x128xbf16>, vector<256x128xf32> -> vector<256x128xf32>
    %36 = arith.addf %30, %35 : vector<256x128xf32>
    %c0_37 = arith.constant 0 : index
    %c8_38 = arith.constant 8 : index
    %c0_39 = arith.constant 0 : index
    %37 = vector.load %arg9[%c0_37, %c8_38, %c0_39] : memref<18x25x256xbf16, #tpu.memory_space<vmem>>, vector<16x16x256xbf16>
    %38 = vector.shape_cast %37 : vector<16x16x256xbf16> to vector<256x256xbf16>
    %c1_40 = arith.constant 1 : index
    %c0_41 = arith.constant 0 : index
    %c0_42 = arith.constant 0 : index
    %39 = vector.load %arg4[%c1_40, %c0_41, %c0_42] : memref<3x256x128xbf16, #tpu.memory_space<vmem>>, vector<1x256x128xbf16>
    %40 = vector.shape_cast %39 : vector<1x256x128xbf16> to vector<256x128xbf16>
    %cst_43 = arith.constant dense<0.000000e+00> : vector<256x128xf32>
    %41 = tpu.matmul %38, %40, %cst_43 {dimension_numbers = #tpu.dot_dimension_numbers<[1], [0], [0], [1], [0, 0, 1, 1], [], []>} : vector<256x256xbf16>, vector<256x128xbf16>, vector<256x128xf32> -> vector<256x128xf32>
    %42 = arith.addf %36, %41 : vector<256x128xf32>
    %c2_44 = arith.constant 2 : index
    %c8_45 = arith.constant 8 : index
    %c0_46 = arith.constant 0 : index
    %43 = vector.load %arg9[%c2_44, %c8_45, %c0_46] : memref<18x25x256xbf16, #tpu.memory_space<vmem>>, vector<16x16x128xbf16>
    %44 = vector.shape_cast %43 : vector<16x16x128xbf16> to vector<256x128xbf16>
    %c1_47 = arith.constant 1 : index
    %c0_48 = arith.constant 0 : index
    %c0_49 = arith.constant 0 : index
    %45 = vector.load %arg5[%c1_47, %c0_48, %c0_49] : memref<3x128x128xbf16, #tpu.memory_space<vmem>>, vector<1x128x128xbf16>
    %46 = vector.shape_cast %45 : vector<1x128x128xbf16> to vector<128x128xbf16>
    %cst_50 = arith.constant dense<0.000000e+00> : vector<256x128xf32>
    %47 = tpu.matmul %44, %46, %cst_50 {dimension_numbers = #tpu.dot_dimension_numbers<[1], [0], [0], [1], [0, 0, 1, 1], [], []>} : vector<256x128xbf16>, vector<128x128xbf16>, vector<256x128xf32> -> vector<256x128xf32>
    %48 = arith.addf %42, %47 : vector<256x128xf32>
    %c0_51 = arith.constant 0 : index
    %c9 = arith.constant 9 : index
    %c0_52 = arith.constant 0 : index
    %49 = vector.load %arg9[%c0_51, %c9, %c0_52] : memref<18x25x256xbf16, #tpu.memory_space<vmem>>, vector<16x16x256xbf16>
    %50 = vector.shape_cast %49 : vector<16x16x256xbf16> to vector<256x256xbf16>
    %c2_53 = arith.constant 2 : index
    %c0_54 = arith.constant 0 : index
    %c0_55 = arith.constant 0 : index
    %51 = vector.load %arg4[%c2_53, %c0_54, %c0_55] : memref<3x256x128xbf16, #tpu.memory_space<vmem>>, vector<1x256x128xbf16>
    %52 = vector.shape_cast %51 : vector<1x256x128xbf16> to vector<256x128xbf16>
    %cst_56 = arith.constant dense<0.000000e+00> : vector<256x128xf32>
    %53 = tpu.matmul %50, %52, %cst_56 {dimension_numbers = #tpu.dot_dimension_numbers<[1], [0], [0], [1], [0, 0, 1, 1], [], []>} : vector<256x256xbf16>, vector<256x128xbf16>, vector<256x128xf32> -> vector<256x128xf32>
    %54 = arith.addf %48, %53 : vector<256x128xf32>
    %c2_57 = arith.constant 2 : index
    %c9_58 = arith.constant 9 : index
    %c0_59 = arith.constant 0 : index
    %55 = vector.load %arg9[%c2_57, %c9_58, %c0_59] : memref<18x25x256xbf16, #tpu.memory_space<vmem>>, vector<16x16x128xbf16>
    %56 = vector.shape_cast %55 : vector<16x16x128xbf16> to vector<256x128xbf16>
    %c2_60 = arith.constant 2 : index
    %c0_61 = arith.constant 0 : index
    %c0_62 = arith.constant 0 : index
    %57 = vector.load %arg5[%c2_60, %c0_61, %c0_62] : memref<3x128x128xbf16, #tpu.memory_space<vmem>>, vector<1x128x128xbf16>
    %58 = vector.shape_cast %57 : vector<1x128x128xbf16> to vector<128x128xbf16>
    %cst_63 = arith.constant dense<0.000000e+00> : vector<256x128xf32>
    %59 = tpu.matmul %56, %58, %cst_63 {dimension_numbers = #tpu.dot_dimension_numbers<[1], [0], [0], [1], [0, 0, 1, 1], [], []>} : vector<256x128xbf16>, vector<128x128xbf16>, vector<256x128xf32> -> vector<256x128xf32>
    %60 = arith.addf %54, %59 : vector<256x128xf32>
    %c0_64 = arith.constant 0 : index
    %c0_65 = arith.constant 0 : index
    %61 = vector.load %arg6[%c0_64, %c0_65] : memref<1x128xf32, #tpu.memory_space<vmem>>, vector<1x128xf32>
    %62 = vector.broadcast %61 : vector<1x128xf32> to vector<256x128xf32>
    %63 = arith.addf %60, %62 : vector<256x128xf32>
    %64 = vector.shape_cast %63 : vector<256x128xf32> to vector<16x16x128xf32>
    %65 = arith.truncf %64 : vector<16x16x128xf32> to vector<16x16x128xbf16>
    %c0_66 = arith.constant 0 : index
    %c0_67 = arith.constant 0 : index
    %c0_68 = arith.constant 0 : index
    %c0_69 = arith.constant 0 : index
    %66 = vector.load %arg7[%c0_66, %c0_67, %c0_68, %c0_69] : memref<1x16x16x128xbf16, #tpu.memory_space<vmem>>, vector<1x16x16x128xbf16>
    %67 = vector.shape_cast %66 : vector<1x16x16x128xbf16> to vector<16x16x128xbf16>
    %68 = vector.shape_cast %65 : vector<16x16x128xbf16> to vector<1x16x16x128xbf16>
    tpu.vector_store %arg7[%c0_66, %c0_67, %c0_68, %c0_69], %68 {strides = array<i32>} : memref<1x16x16x128xbf16, #tpu.memory_space<vmem>>, vector<1x16x16x128xbf16>,
    %cst_70 = arith.constant dense<0.000000e+00> : vector<128xf32>
    %69 = vector.multi_reduction <add>, %63, %cst_70 [0] : vector<256x128xf32> to vector<128xf32>
    %70 = vector.shape_cast %69 : vector<128xf32> to vector<1x128xf32>
    %c0_71 = arith.constant 0 : index
    %c0_72 = arith.constant 0 : index
    %c0_73 = arith.constant 0 : index
    %71 = vector.load %arg8[%c0_71, %c0_72, %c0_73] : memref<1x2x128xf32, #tpu.memory_space<vmem>>, vector<1x1x128xf32>
    %72 = vector.shape_cast %71 : vector<1x1x128xf32> to vector<1x128xf32>
    %73 = vector.shape_cast %70 : vector<1x128xf32> to vector<1x1x128xf32>
    tpu.vector_store %arg8[%c0_71, %c0_72, %c0_73], %73 {strides = array<i32>} : memref<1x2x128xf32, #tpu.memory_space<vmem>>, vector<1x1x128xf32>,
    %74 = arith.mulf %63, %63 : vector<256x128xf32>
    %cst_74 = arith.constant dense<0.000000e+00> : vector<128xf32>
    %75 = vector.multi_reduction <add>, %74, %cst_74 [0] : vector<256x128xf32> to vector<128xf32>
    %76 = vector.shape_cast %75 : vector<128xf32> to vector<1x128xf32>
    %c0_75 = arith.constant 0 : index
    %c1_76 = arith.constant 1 : index
    %c0_77 = arith.constant 0 : index
    %77 = vector.load %arg8[%c0_75, %c1_76, %c0_77] : memref<1x2x128xf32, #tpu.memory_space<vmem>>, vector<1x1x128xf32>
    %78 = vector.shape_cast %77 : vector<1x1x128xf32> to vector<1x128xf32>
    %79 = vector.shape_cast %76 : vector<1x128xf32> to vector<1x1x128xf32>
    tpu.vector_store %arg8[%c0_75, %c1_76, %c0_77], %79 {strides = array<i32>} : memref<1x2x128xf32, #tpu.memory_space<vmem>>, vector<1x1x128xf32>,
    return
  }
  func.func @transform_0(%arg0: i32) -> (i32, i32, i32, i32) {
    %c0_i32 = arith.constant 0 : i32
    %c0_i32_0 = arith.constant 0 : i32
    %c0_i32_1 = arith.constant 0 : i32
    %c0_i32_2 = arith.constant 0 : i32
    return %arg0, %c0_i32, %c0_i32_0, %c0_i32_1 : i32, i32, i32, i32
  }
  func.func @transform_1(%arg0: i32) -> (i32, i32) {
    %c0_i32 = arith.constant 0 : i32
    %c0_i32_0 = arith.constant 0 : i32
    %c0_i32_1 = arith.constant 0 : i32
    return %c0_i32, %c0_i32_0 : i32, i32
  }
  func.func @transform_2(%arg0: i32) -> (i32, i32) {
    %c0_i32 = arith.constant 0 : i32
    %c0_i32_0 = arith.constant 0 : i32
    %c0_i32_1 = arith.constant 0 : i32
    return %c0_i32, %c0_i32_0 : i32, i32
  }
  func.func @transform_3(%arg0: i32) -> (i32, i32, i32) {
    %c0_i32 = arith.constant 0 : i32
    %c0_i32_0 = arith.constant 0 : i32
    %c0_i32_1 = arith.constant 0 : i32
    %c0_i32_2 = arith.constant 0 : i32
    return %c0_i32, %c0_i32_0, %c0_i32_1 : i32, i32, i32
  }
  func.func @transform_4(%arg0: i32) -> (i32, i32, i32) {
    %c0_i32 = arith.constant 0 : i32
    %c0_i32_0 = arith.constant 0 : i32
    %c0_i32_1 = arith.constant 0 : i32
    %c0_i32_2 = arith.constant 0 : i32
    return %c0_i32, %c0_i32_0, %c0_i32_1 : i32, i32, i32
  }
  func.func @transform_5(%arg0: i32) -> (i32, i32) {
    %c0_i32 = arith.constant 0 : i32
    %c0_i32_0 = arith.constant 0 : i32
    %c0_i32_1 = arith.constant 0 : i32
    return %c0_i32, %c0_i32_0 : i32, i32
  }
  func.func @transform_6(%arg0: i32) -> (i32, i32, i32, i32) {
    %c0_i32 = arith.constant 0 : i32
    %c0_i32_0 = arith.constant 0 : i32
    %c0_i32_1 = arith.constant 0 : i32
    %c0_i32_2 = arith.constant 0 : i32
    return %arg0, %c0_i32, %c0_i32_0, %c0_i32_1 : i32, i32, i32, i32
  }
  func.func @transform_7(%arg0: i32) -> (i32, i32, i32) {
    %c0_i32 = arith.constant 0 : i32
    %c0_i32_0 = arith.constant 0 : i32
    %c0_i32_1 = arith.constant 0 : i32
    return %arg0, %c0_i32, %c0_i32_0 : i32, i32, i32
  }
}

</mosaic_0001>

<llo_original>
// kernel: down_block.3
$region0: #{down_block.3}
  #allocation0 [shape = 'u32[]', space=smem, size = 0x4, offset = 0x4, fixed_abs, tag = 'smem constant byte address 0x4 - core index']
  #allocation1 [shape = 'u32[144,128]{1,0:T(1,128)}', space=vmem, size = 0x12000, scoped, tag = 'internal scratch']
  %s0 = inlined_call_operand.vmem [shape: bf16[2,16,18,24], index: 0, kind: input, shape index: {}]
  %s1 = inlined_call_operand.vmem [shape: bf16[3,24,128], index: 1, kind: input, shape index: {}]
  %s2 = inlined_call_operand.vmem [shape: f32[1,128], index: 2, kind: input, shape index: {}]
  %s3 = inlined_call_operand.vmem [shape: bf16[2,16,16,128], index: 3, kind: output, shape index: {0}]
  %s4 = inlined_call_operand.vmem [shape: f32[2,2,128], index: 4, kind: output, shape index: {1}]
  %5 = xla_tuple %s3, %s4
  %s6 = sld [smem:[#allocation0]]
  $region53: #{down_block.3} parent=0
    _
  %s8 = ssub.s32 1, %s6
  %s9 = scalar_select 0, %s8, %s6
  loop: start=0, step=1, limit=4
  $region2: #{down_block.3} parent=0 // loop_pre_header
    _
  $region3: #{down_block.3} parent=0 // loop_header
    %s11 = sphi 0, %s15
    %p12 = scmp.ge.s32.totalorder %s11, 4
    %s21 = sphi 0, %s23
    %s24 = sphi 0, %s21
    %s25 = sphi 0, %s24
    %s41 = sphi 0, %s25
    %s45 = sphi 0, %s45
    %s47 = sphi 0, %s45
    %s48 = sphi 0, %s47
    %s62 = sphi 0, %s48
    %s66 = sphi 0, %s66
    %s68 = sphi 0, %s66
    %s69 = sphi 0, %s68
    %s83 = sphi 0, %s69
    %s89 = sphi 0, %s91
    %s92 = sphi 0, %s89
    %s93 = sphi 0, %s92
    %s109 = sphi 0, %s93
    %s115 = sphi 0, %s117
    %s118 = sphi 0, %s115
    %s119 = sphi 0, %s118
    %s135 = sphi 0, %s119
  $region4: #{down_block.3} parent=0 // loop_header_branch
    %14 = sbr.rel (%p12) target = $region8
  $region5: #{down_block.3} parent=0 // loop_body
    %s16 = ssub.s32 %s11, 1
    %s17 = ssub.s32 %s11, 2
    %s18 = sadd.s32 %s11, 1
    %s19 = ssub.s32 %s11, %s18
    %p20 = scmp.eq.s32.totalorder %s19, 0
    %s22 = sadd.s32 %s21, 1
    %s23 = scalar_select %p20, %s21, %s22
    %p26 = pneg %p20
    %p27 = scmp.eq.s32.totalorder %s11, 1
    %p28 = por %p26, %p27
    %p29 = scmp.ne.s32.totalorder %s21, %s24
    %p30 = scmp.eq.s32.totalorder %s11, 0
    %p31 = por %p29, %p30
    %p32 = scmp.ne.s32.totalorder %s21, %s24
    %p33 = scmp.eq.s32.totalorder %s16, 1
    %p34 = por %p32, %p33
    %p35 = scmp.ne.s32.totalorder %s24, %s25
    %p36 = scmp.eq.s32.totalorder %s16, 0
    %p37 = por %p35, %p36
    %p38 = scmp.ne.s32.totalorder %s24, %s25
    %p39 = scmp.eq.s32.totalorder %s17, 1
    %p40 = por %p38, %p39
    %p42 = scmp.ne.s32.totalorder %s25, %s41
    %p43 = scmp.eq.s32.totalorder %s17, 0
    %p44 = por %p42, %p43
    %s46 = sadd.s32 %s45, 1
    %p49 = scmp.eq.s32.totalorder %s11, 1
    %p50 = scmp.ne.s32.totalorder %s45, %s47
    %p51 = scmp.eq.s32.totalorder %s11, 0
    %p52 = por %p50, %p51
    %p53 = scmp.ne.s32.totalorder %s45, %s47
    %p54 = scmp.eq.s32.totalorder %s16, 1
    %p55 = por %p53, %p54
    %p56 = scmp.ne.s32.totalorder %s47, %s48
    %p57 = scmp.eq.s32.totalorder %s16, 0
    %p58 = por %p56, %p57
    %p59 = scmp.ne.s32.totalorder %s47, %s48
    %p60 = scmp.eq.s32.totalorder %s17, 1
    %p61 = por %p59, %p60
    %p63 = scmp.ne.s32.totalorder %s48, %s62
    %p64 = scmp.eq.s32.totalorder %s17, 0
    %p65 = por %p63, %p64
    %s67 = sadd.s32 %s66, 1
    %p70 = scmp.eq.s32.totalorder %s11, 1
    %p71 = scmp.ne.s32.totalorder %s66, %s68
    %p72 = scmp.eq.s32.totalorder %s11, 0
    %p73 = por %p71, %p72
    %p74 = scmp.ne.s32.totalorder %s66, %s68
    %p75 = scmp.eq.s32.totalorder %s16, 1
    %p76 = por %p74, %p75
    %p77 = scmp.ne.s32.totalorder %s68, %s69
    %p78 = scmp.eq.s32.totalorder %s16, 0
    %p79 = por %p77, %p78
    %p80 = scmp.ne.s32.totalorder %s68, %s69
    %p81 = scmp.eq.s32.totalorder %s17, 1
    %p82 = por %p80, %p81
    %p84 = scmp.ne.s32.totalorder %s69, %s83
    %p85 = scmp.eq.s32.totalorder %s17, 0
    %p86 = por %p84, %p85
    %s87 = ssub.s32 %s11, %s18
    %p88 = scmp.eq.s32.totalorder %s87, 0
    %s90 = sadd.s32 %s89, 1
    %s91 = scalar_select %p88, %s89, %s90
    %p94 = pneg %p88
    %p95 = scmp.eq.s32.totalorder %s11, 1
    %p96 = por %p94, %p95
    %p97 = scmp.ne.s32.totalorder %s89, %s92
    %p98 = scmp.eq.s32.totalorder %s11, 0
    %p99 = por %p97, %p98
    %p100 = scmp.ne.s32.totalorder %s89, %s92
    %p101 = scmp.eq.s32.totalorder %s16, 1
    %p102 = por %p100, %p101
    %p103 = scmp.ne.s32.totalorder %s92, %s93
    %p104 = scmp.eq.s32.totalorder %s16, 0
    %p105 = por %p103, %p104
    %p106 = scmp.ne.s32.totalorder %s92, %s93
    %p107 = scmp.eq.s32.totalorder %s17, 1
    %p108 = por %p106, %p107
    %p110 = scmp.ne.s32.totalorder %s93, %s109
    %p111 = scmp.eq.s32.totalorder %s17, 0
    %p112 = por %p110, %p111
    %s113 = ssub.s32 %s11, %s18
    %p114 = scmp.eq.s32.totalorder %s113, 0
    %s116 = sadd.s32 %s115, 1
    %s117 = scalar_select %p114, %s115, %s116
    %p120 = pneg %p114
    %p121 = scmp.eq.s32.totalorder %s11, 1
    %p122 = por %p120, %p121
    %p123 = scmp.ne.s32.totalorder %s115, %s118
    %p124 = scmp.eq.s32.totalorder %s11, 0
    %p125 = por %p123, %p124
    %p126 = scmp.ne.s32.totalorder %s115, %s118
    %p127 = scmp.eq.s32.totalorder %s16, 1
    %p128 = por %p126, %p127
    %p129 = scmp.ne.s32.totalorder %s118, %s119
    %p130 = scmp.eq.s32.totalorder %s16, 0
    %p131 = por %p129, %p130
    %p132 = scmp.ne.s32.totalorder %s118, %s119
    %p133 = scmp.eq.s32.totalorder %s17, 1
    %p134 = por %p132, %p133
    %p136 = scmp.ne.s32.totalorder %s119, %s135
    %p137 = scmp.eq.s32.totalorder %s17, 0
    %p138 = por %p136, %p137
    %p139 = scmp.le.s32.totalorder 1, %s11
    %p140 = scmp.lt.s32.totalorder %s11, 3
    %p141 = pnand %p139, %p140
    %p142 = pneg %p141
    // Predicated region
    $region9: #{down_block.3} parent=5 // pred_check
      _
    $region10: #{down_block.3} parent=5 // pred_check_branch
      %144 = sbr.rel (%p141) target = $region12
    $region11: #{down_block.3} parent=5 // pred_region
      %s145 = ssub.s32 %s11, 1
      // Predicated region
      $region13: #{down_block.3} parent=11 // pred_check
        %p146 = pneg %p58
      $region14: #{down_block.3} parent=11 // pred_check_branch
        %148 = sbr.rel (%p146) target = $region16
      $region15: #{down_block.3} parent=11 // pred_region
        _
      $region16: #{down_block.3} parent=11 // pred_fallthru
        _
      // Predicated region
      $region17: #{down_block.3} parent=11 // pred_check
        %p149 = pneg %p79
      $region18: #{down_block.3} parent=11 // pred_check_branch
        %151 = sbr.rel (%p149) target = $region20
      $region19: #{down_block.3} parent=11 // pred_region
        _
      $region20: #{down_block.3} parent=11 // pred_fallthru
        _
    $region12: #{down_block.3} parent=5 // pred_fallthru
      _
    %p152 = scmp.lt.s32.totalorder %s11, 2
    // Predicated region
    $region21: #{down_block.3} parent=5 // pred_check
      %p153 = pneg %p152
    $region22: #{down_block.3} parent=5 // pred_check_branch
      %155 = sbr.rel (%p153) target = $region24
    $region23: #{down_block.3} parent=5 // pred_region
      // Predicated region
      $region25: #{down_block.3} parent=23 // pred_check
        %p156 = pneg %p31
      $region26: #{down_block.3} parent=23 // pred_check_branch
        %158 = sbr.rel (%p156) target = $region28
      $region27: #{down_block.3} parent=23 // pred_region
        %p159 = scmp.lt.s32.totalorder %s11, 1
        %s160 = scalar_select %p159, %s11, 1
        %s161 = smul.addr %s160, 48
        %s162 = smul.addr %s161, 4
        %s163 = scalar_lea.vmem %s0, %s162
      $region28: #{down_block.3} parent=23 // pred_fallthru
        _
    $region24: #{down_block.3} parent=5 // pred_fallthru
      _
    %p164 = scmp.le.s32.totalorder 1, %s11
    %p165 = scmp.lt.s32.totalorder %s11, 3
    %p166 = pnand %p164, %p165
    %p167 = pneg %p166
    // Predicated region
    $region29: #{down_block.3} parent=5 // pred_check
      _
    $region30: #{down_block.3} parent=5 // pred_check_branch
      %169 = sbr.rel (%p166) target = $region32
    $region31: #{down_block.3} parent=5 // pred_region
      %s170 = ssub.s32 %s11, 1
      %p171 = scmp.lt.s32.totalorder %s16, 1
      %s172 = scalar_select %p171, %s16, 1
      %s173 = smul.addr %s172, 48
      %s174 = smul.addr %s173, 4
      %s175 = scalar_lea.vmem %s0, %s174
      %p176 = pneg %p37
      %p177 = pneg %p34
      %p178 = pneg %p58
      %p179 = pneg %p55
      %p180 = pneg %p79
      %p181 = pneg %p76
      %p182 = pneg %p105
      %p183 = pneg %p102
      %p184 = scmp.lt.s32.totalorder %s16, 1
      %s185 = scalar_select %p184, %s16, 1
      %s186 = smul.addr %s185, 32
      %s187 = smul.addr %s186, 4
      %s188 = scalar_lea.vmem %s3, %s187
      %p189 = pneg %p131
      %p190 = pneg %p128
      %p191 = scmp.lt.s32.totalorder %s16, 1
      %s192 = scalar_select %p191, %s16, 1
      %s193 = smul.addr %s192, 2
      %s194 = scalar_lea.vmem %s4, %s193
      %p195 = scmp.lt.s32.totalorder %s16, 1
      %s196 = scalar_select %p195, %s16, 1
      %s197 = smul.addr %s196, 48
      %s198 = smul.addr %s197, 4
      %s199 = scalar_lea.vmem %s0, %s198
      %p200 = scmp.lt.s32.totalorder %s16, 1
      %s201 = scalar_select %p200, %s16, 1
      %s202 = smul.addr %s201, 32
      %s203 = smul.addr %s202, 4
      %s204 = scalar_lea.vmem %s3, %s203
      %p205 = scmp.lt.s32.totalorder %s16, 1
      %s206 = scalar_select %p205, %s16, 1
      %s207 = smul.addr %s206, 2
      %s208 = scalar_lea.vmem %s4, %s207
      %v210 = vld [vmem:[%s199] sm:$0xf]
      %v211 = vld [vmem:[%s199 + $0x4] sm:$0xf]
      %v212 = vld [vmem:[%s199 + $0xc] sm:$0xf]
      %v213 = vld [vmem:[%s199 + $0x10] sm:$0xf]
      %v214 = vld [vmem:[%s199 + $0x18] sm:$0xf]
      %v215 = vld [vmem:[%s199 + $0x1c] sm:$0xf]
      %v216 = vld [vmem:[%s199 + $0x24] sm:$0xf]
      %v217 = vld [vmem:[%s199 + $0x28] sm:$0xf]
      %v218 = vld [vmem:[%s199 + $0x30] sm:$0xf]
      %v219 = vld [vmem:[%s199 + $0x34] sm:$0xf]
      %v220 = vld [vmem:[%s199 + $0x3c] sm:$0xf]
      %v221 = vld [vmem:[%s199 + $0x40] sm:$0xf]
      %v222 = vld [vmem:[%s199 + $0x48] sm:$0xf]
      %v223 = vld [vmem:[%s199 + $0x4c] sm:$0xf]
      %v224 = vld [vmem:[%s199 + $0x54] sm:$0xf]
      %v225 = vld [vmem:[%s199 + $0x58] sm:$0xf]
      %v226 = vld [vmem:[%s199 + $0x60] sm:$0xf]
      %v227 = vld [vmem:[%s199 + $0x64] sm:$0xf]
      %v228 = vld [vmem:[%s199 + $0x6c] sm:$0xf]
      %v229 = vld [vmem:[%s199 + $0x70] sm:$0xf]
      %v230 = vld [vmem:[%s199 + $0x78] sm:$0xf]
      %v231 = vld [vmem:[%s199 + $0x7c] sm:$0xf]
      %v232 = vld [vmem:[%s199 + $0x84] sm:$0xf]
      %v233 = vld [vmem:[%s199 + $0x88] sm:$0xf]
      %v234 = vld [vmem:[%s199 + $0x90] sm:$0xf]
      %v235 = vld [vmem:[%s199 + $0x94] sm:$0xf]
      %v236 = vld [vmem:[%s199 + $0x9c] sm:$0xf]
      %v237 = vld [vmem:[%s199 + $0xa0] sm:$0xf]
      %v238 = vld [vmem:[%s199 + $0xa8] sm:$0xf]
      %v239 = vld [vmem:[%s199 + $0xac] sm:$0xf]
      %v240 = vld [vmem:[%s199 + $0xb4] sm:$0xf]
      %v241 = vld [vmem:[%s199 + $0xb8] sm:$0xf]
      %v242 = vld [vmem:[%s1] sm:$0xf]
      %v243 = vld [vmem:[%s1 + $0x4] sm:$0xf]
      %v244 = vld [vmem:[%s1 + $0x8] sm:$0xf]
      %v245 = vld [vmem:[%s199 + $0x8] sm:$0x1]
      %v246 = vld [vmem:[%s199 + $0x14] sm:$0x1]
      %v247 = vld [vmem:[%s199 + $0x20] sm:$0x1]
      %v248 = vld [vmem:[%s199 + $0x2c] sm:$0x1]
      %v249 = vld [vmem:[%s199 + $0x38] sm:$0x1]
      %v250 = vld [vmem:[%s199 + $0x44] sm:$0x1]
      %v251 = vld [vmem:[%s199 + $0x50] sm:$0x1]
      %v252 = vld [vmem:[%s199 + $0x5c] sm:$0x1]
      %v253 = vld [vmem:[%s199 + $0x68] sm:$0x1]
      %v254 = vld [vmem:[%s199 + $0x74] sm:$0x1]
      %v255 = vld [vmem:[%s199 + $0x80] sm:$0x1]
      %v256 = vld [vmem:[%s199 + $0x8c] sm:$0x1]
      %v257 = vld [vmem:[%s199 + $0x98] sm:$0x1]
      %v258 = vld [vmem:[%s199 + $0xa4] sm:$0x1]
      %v259 = vld [vmem:[%s199 + $0xb0] sm:$0x1]
      %v260 = vld [vmem:[%s199 + $0xbc] sm:$0x1]
      %vm261 = vsmask.f32 3328
      %vm262 = vsmask.f32 7440
      %vm263 = vmor %vm261, %vm262
      %v265 = vshrl.u32 %v210, 16
      %v267 = vrot.slane %v265, 4
      %v268 = vshll.u32 %v210, 16
      %v270 = vrot.slane %v268, 5
      %v271 = vor.u32 %v267, %v270
      %v272 = vrot.slane %v271, 4
      %v274 = vshll.u32 %v211, 16
      %v276 = vrot.slane %v274, 5
      %v277 = vsel %vm263, %v272, %v276
      %v278 = vshrl.u32 %v211, 16
      %v280 = vrot.slane %v278, 4
      %v281 = vor.u32 %v280, %v276
      %v282 = vrot.slane %v281, 4
      %v284 = vshll.u32 %v245, 16
      %v286 = vrot.slane %v284, 5
      %v287 = vsel %vm263, %v282, %v286
      %v289 = vshrl.u32 %v212, 16
      %v291 = vrot.slane %v289, 4
      %v292 = vshll.u32 %v212, 16
      %v294 = vrot.slane %v292, 5
      %v295 = vor.u32 %v291, %v294
      %v296 = vrot.slane %v295, 4
      %v298 = vshll.u32 %v213, 16
      %v300 = vrot.slane %v298, 5
      %v301 = vsel %vm263, %v296, %v300
      %v302 = vshrl.u32 %v213, 16
      %v304 = vrot.slane %v302, 4
      %v305 = vor.u32 %v304, %v300
      %v306 = vrot.slane %v305, 4
      %v308 = vshll.u32 %v246, 16
      %v310 = vrot.slane %v308, 5
      %v311 = vsel %vm263, %v306, %v310
      %v313 = vshrl.u32 %v214, 16
      %v315 = vrot.slane %v313, 4
      %v316 = vshll.u32 %v214, 16
      %v318 = vrot.slane %v316, 5
      %v319 = vor.u32 %v315, %v318
      %v320 = vrot.slane %v319, 4
      %v322 = vshll.u32 %v215, 16
      %v324 = vrot.slane %v322, 5
      %v325 = vsel %vm263, %v320, %v324
      %v326 = vshrl.u32 %v215, 16
      %v328 = vrot.slane %v326, 4
      %v329 = vor.u32 %v328, %v324
      %v330 = vrot.slane %v329, 4
      %v332 = vshll.u32 %v247, 16
      %v334 = vrot.slane %v332, 5
      %v335 = vsel %vm263, %v330, %v334
      %v337 = vshrl.u32 %v216, 16
      %v339 = vrot.slane %v337, 4
      %v340 = vshll.u32 %v216, 16
      %v342 = vrot.slane %v340, 5
      %v343 = vor.u32 %v339, %v342
      %v344 = vrot.slane %v343, 4
      %v346 = vshll.u32 %v217, 16
      %v348 = vrot.slane %v346, 5
      %v349 = vsel %vm263, %v344, %v348
      %v350 = vshrl.u32 %v217, 16
      %v352 = vrot.slane %v350, 4
      %v353 = vor.u32 %v352, %v348
      %v354 = vrot.slane %v353, 4
      %v356 = vshll.u32 %v248, 16
      %v358 = vrot.slane %v356, 5
      %v359 = vsel %vm263, %v354, %v358
      %v361 = vshrl.u32 %v218, 16
      %v363 = vrot.slane %v361, 4
      %v364 = vshll.u32 %v218, 16
      %v366 = vrot.slane %v364, 5
      %v367 = vor.u32 %v363, %v366
      %v368 = vrot.slane %v367, 4
      %v370 = vshll.u32 %v219, 16
      %v372 = vrot.slane %v370, 5
      %v373 = vsel %vm263, %v368, %v372
      %v374 = vshrl.u32 %v219, 16
      %v376 = vrot.slane %v374, 4
      %v377 = vor.u32 %v376, %v372
      %v378 = vrot.slane %v377, 4
      %v380 = vshll.u32 %v249, 16
      %v382 = vrot.slane %v380, 5
      %v383 = vsel %vm263, %v378, %v382
      %v385 = vshrl.u32 %v220, 16
      %v387 = vrot.slane %v385, 4
      %v388 = vshll.u32 %v220, 16
      %v390 = vrot.slane %v388, 5
      %v391 = vor.u32 %v387, %v390
      %v392 = vrot.slane %v391, 4
      %v394 = vshll.u32 %v221, 16
      %v396 = vrot.slane %v394, 5
      %v397 = vsel %vm263, %v392, %v396
      %v398 = vshrl.u32 %v221, 16
      %v400 = vrot.slane %v398, 4
      %v401 = vor.u32 %v400, %v396
      %v402 = vrot.slane %v401, 4
      %v404 = vshll.u32 %v250, 16
      %v406 = vrot.slane %v404, 5
      %v407 = vsel %vm263, %v402, %v406
      %v409 = vshrl.u32 %v222, 16
      %v411 = vrot.slane %v409, 4
      %v412 = vshll.u32 %v222, 16
      %v414 = vrot.slane %v412, 5
      %v415 = vor.u32 %v411, %v414
      %v416 = vrot.slane %v415, 4
      %v418 = vshll.u32 %v223, 16
      %v420 = vrot.slane %v418, 5
      %v421 = vsel %vm263, %v416, %v420
      %v422 = vshrl.u32 %v223, 16
      %v424 = vrot.slane %v422, 4
      %v425 = vor.u32 %v424, %v420
      %v426 = vrot.slane %v425, 4
      %v428 = vshll.u32 %v251, 16
      %v430 = vrot.slane %v428, 5
      %v431 = vsel %vm263, %v426, %v430
      %v433 = vshrl.u32 %v224, 16
      %v435 = vrot.slane %v433, 4
      %v436 = vshll.u32 %v224, 16
      %v438 = vrot.slane %v436, 5
      %v439 = vor.u32 %v435, %v438
      %v440 = vrot.slane %v439, 4
      %v442 = vshll.u32 %v225, 16
      %v444 = vrot.slane %v442, 5
      %v445 = vsel %vm263, %v440, %v444
      %v446 = vshrl.u32 %v225, 16
      %v448 = vrot.slane %v446, 4
      %v449 = vor.u32 %v448, %v444
      %v450 = vrot.slane %v449, 4
      %v452 = vshll.u32 %v252, 16
      %v454 = vrot.slane %v452, 5
      %v455 = vsel %vm263, %v450, %v454
      %v457 = vshrl.u32 %v226, 16
      %v459 = vrot.slane %v457, 4
      %v460 = vshll.u32 %v226, 16
      %v462 = vrot.slane %v460, 5
      %v463 = vor.u32 %v459, %v462
      %v464 = vrot.slane %v463, 4
      %v466 = vshll.u32 %v227, 16
      %v468 = vrot.slane %v466, 5
      %v469 = vsel %vm263, %v464, %v468
      %v470 = vshrl.u32 %v227, 16
      %v472 = vrot.slane %v470, 4
      %v473 = vor.u32 %v472, %v468
      %v474 = vrot.slane %v473, 4
      %v476 = vshll.u32 %v253, 16
      %v478 = vrot.slane %v476, 5
      %v479 = vsel %vm263, %v474, %v478
      %v481 = vshrl.u32 %v228, 16
      %v483 = vrot.slane %v481, 4
      %v484 = vshll.u32 %v228, 16
      %v486 = vrot.slane %v484, 5
      %v487 = vor.u32 %v483, %v486
      %v488 = vrot.slane %v487, 4
      %v490 = vshll.u32 %v229, 16
      %v492 = vrot.slane %v490, 5
      %v493 = vsel %vm263, %v488, %v492
      %v494 = vshrl.u32 %v229, 16
      %v496 = vrot.slane %v494, 4
      %v497 = vor.u32 %v496, %v492
      %v498 = vrot.slane %v497, 4
      %v500 = vshll.u32 %v254, 16
      %v502 = vrot.slane %v500, 5
      %v503 = vsel %vm263, %v498, %v502
      %v505 = vshrl.u32 %v230, 16
      %v507 = vrot.slane %v505, 4
      %v508 = vshll.u32 %v230, 16
      %v510 = vrot.slane %v508, 5
      %v511 = vor.u32 %v507, %v510
      %v512 = vrot.slane %v511, 4
      %v514 = vshll.u32 %v231, 16
      %v516 = vrot.slane %v514, 5
      %v517 = vsel %vm263, %v512, %v516
      %v518 = vshrl.u32 %v231, 16
      %v520 = vrot.slane %v518, 4
      %v521 = vor.u32 %v520, %v516
      %v522 = vrot.slane %v521, 4
      %v524 = vshll.u32 %v255, 16
      %v526 = vrot.slane %v524, 5
      %v527 = vsel %vm263, %v522, %v526
      %v529 = vshrl.u32 %v232, 16
      %v531 = vrot.slane %v529, 4
      %v532 = vshll.u32 %v232, 16
      %v534 = vrot.slane %v532, 5
      %v535 = vor.u32 %v531, %v534
      %v536 = vrot.slane %v535, 4
      %v538 = vshll.u32 %v233, 16
      %v540 = vrot.slane %v538, 5
      %v541 = vsel %vm263, %v536, %v540
      %v542 = vshrl.u32 %v233, 16
      %v544 = vrot.slane %v542, 4
      %v545 = vor.u32 %v544, %v540
      %v546 = vrot.slane %v545, 4
      %v548 = vshll.u32 %v256, 16
      %v550 = vrot.slane %v548, 5
      %v551 = vsel %vm263, %v546, %v550
      %v553 = vshrl.u32 %v234, 16
      %v555 = vrot.slane %v553, 4
      %v556 = vshll.u32 %v234, 16
      %v558 = vrot.slane %v556, 5
      %v559 = vor.u32 %v555, %v558
      %v560 = vrot.slane %v559, 4
      %v562 = vshll.u32 %v235, 16
      %v564 = vrot.slane %v562, 5
      %v565 = vsel %vm263, %v560, %v564
      %v566 = vshrl.u32 %v235, 16
      %v568 = vrot.slane %v566, 4
      %v569 = vor.u32 %v568, %v564
      %v570 = vrot.slane %v569, 4
      %v572 = vshll.u32 %v257, 16
      %v574 = vrot.slane %v572, 5
      %v575 = vsel %vm263, %v570, %v574
      %v577 = vshrl.u32 %v236, 16
      %v579 = vrot.slane %v577, 4
      %v580 = vshll.u32 %v236, 16
      %v582 = vrot.slane %v580, 5
      %v583 = vor.u32 %v579, %v582
      %v584 = vrot.slane %v583, 4
      %v586 = vshll.u32 %v237, 16
      %v588 = vrot.slane %v586, 5
      %v589 = vsel %vm263, %v584, %v588
      %v590 = vshrl.u32 %v237, 16
      %v592 = vrot.slane %v590, 4
      %v593 = vor.u32 %v592, %v588
      %v594 = vrot.slane %v593, 4
      %v596 = vshll.u32 %v258, 16
      %v598 = vrot.slane %v596, 5
      %v599 = vsel %vm263, %v594, %v598
      %v601 = vshrl.u32 %v238, 16
      %v603 = vrot.slane %v601, 4
      %v604 = vshll.u32 %v238, 16
      %v606 = vrot.slane %v604, 5
      %v607 = vor.u32 %v603, %v606
      %v608 = vrot.slane %v607, 4
      %v610 = vshll.u32 %v239, 16
      %v612 = vrot.slane %v610, 5
      %v613 = vsel %vm263, %v608, %v612
      %v614 = vshrl.u32 %v239, 16
      %v616 = vrot.slane %v614, 4
      %v617 = vor.u32 %v616, %v612
      %v618 = vrot.slane %v617, 4
      %v620 = vshll.u32 %v259, 16
      %v622 = vrot.slane %v620, 5
      %v623 = vsel %vm263, %v618, %v622
      %v625 = vshrl.u32 %v240, 16
      %v627 = vrot.slane %v625, 4
      %v628 = vshll.u32 %v240, 16
      %v630 = vrot.slane %v628, 5
      %v631 = vor.u32 %v627, %v630
      %v632 = vrot.slane %v631, 4
      %v634 = vshll.u32 %v241, 16
      %v636 = vrot.slane %v634, 5
      %v637 = vsel %vm263, %v632, %v636
      %v638 = vshrl.u32 %v241, 16
      %v640 = vrot.slane %v638, 4
      %v641 = vor.u32 %v640, %v636
      %v642 = vrot.slane %v641, 4
      %v644 = vshll.u32 %v260, 16
      %v646 = vrot.slane %v644, 5
      %v647 = vsel %vm263, %v642, %v646
      %s648 = scalar_lea.vmem %s1, 12
      %v649 = vld [vmem:[%s648] sm:$0xf]
      %v650 = vld [vmem:[%s648 + $0x4] sm:$0xf]
      %v651 = vld [vmem:[%s648 + $0x8] sm:$0xf]
      %v652 = vunpack.c.l.b16 %v277
      %v653 = vunpack.c.l.b16 %v287
      %v654 = vunpack.c.l.b16 %v301
      %v655 = vunpack.c.l.b16 %v311
      %v656 = vunpack.c.l.b16 %v325
      %v657 = vunpack.c.l.b16 %v335
      %v658 = vunpack.c.l.b16 %v349
      %v659 = vunpack.c.l.b16 %v359
      %v660 = vunpack.c.l.b16 %v373
      %v661 = vunpack.c.l.b16 %v383
      %v662 = vunpack.c.l.b16 %v397
      %v663 = vunpack.c.l.b16 %v407
      %v664 = vunpack.c.l.b16 %v421
      %v665 = vunpack.c.l.b16 %v431
      %v666 = vunpack.c.l.b16 %v445
      %v667 = vunpack.c.l.b16 %v455
      %v668 = vunpack.c.l.b16 %v469
      %v669 = vunpack.c.l.b16 %v479
      %v670 = vunpack.c.l.b16 %v493
      %v671 = vunpack.c.l.b16 %v503
      %v672 = vunpack.c.l.b16 %v517
      %v673 = vunpack.c.l.b16 %v527
      %v674 = vunpack.c.l.b16 %v541
      %v675 = vunpack.c.l.b16 %v551
      %v676 = vunpack.c.l.b16 %v565
      %v677 = vunpack.c.l.b16 %v575
      %v678 = vunpack.c.l.b16 %v589
      %v679 = vunpack.c.l.b16 %v599
      %v680 = vunpack.c.l.b16 %v613
      %v681 = vunpack.c.l.b16 %v623
      %v682 = vunpack.c.l.b16 %v637
      %v683 = vunpack.c.l.b16 %v647
      %v684 = vpack.c.b16 %v653, %v652
      %v685 = vpack.c.b16 %v655, %v654
      %v686 = vpack.c.b16 %v657, %v656
      %v687 = vpack.c.b16 %v659, %v658
      %v688 = vpack.c.b16 %v661, %v660
      %v689 = vpack.c.b16 %v663, %v662
      %v690 = vpack.c.b16 %v665, %v664
      %v691 = vpack.c.b16 %v667, %v666
      %v692 = vpack.c.b16 %v669, %v668
      %v693 = vpack.c.b16 %v671, %v670
      %v694 = vpack.c.b16 %v673, %v672
      %v695 = vpack.c.b16 %v675, %v674
      %v696 = vpack.c.b16 %v677, %v676
      %v697 = vpack.c.b16 %v679, %v678
      %v698 = vpack.c.b16 %v681, %v680
      %v699 = vpack.c.b16 %v683, %v682
      %v703 = vunpack.c.l.b16 %v649
      %v704 = vunpack.c.l.b16 %v650
      %v705 = vunpack.c.l.b16 %v651
      %v706 = vpack.c.b16 %v704, %v703
      %v707 = vpack.c.b16 %v705, %v705
      %vm709 = vcmask 195584
      %v711 = vsel %vm709, %v684, 0
      %v714 = vsel %vm709, %v685, 0
      %v717 = vsel %vm709, %v686, 0
      %v720 = vsel %vm709, %v687, 0
      %v723 = vsel %vm709, %v688, 0
      %v726 = vsel %vm709, %v689, 0
      %v729 = vsel %vm709, %v690, 0
      %v732 = vsel %vm709, %v691, 0
      %v735 = vsel %vm709, %v692, 0
      %v738 = vsel %vm709, %v693, 0
      %v741 = vsel %vm709, %v694, 0
      %v744 = vsel %vm709, %v695, 0
      %v747 = vsel %vm709, %v696, 0
      %v750 = vsel %vm709, %v697, 0
      %v753 = vsel %vm709, %v698, 0
      %v756 = vsel %vm709, %v699, 0
      %vm758 = vcmask 1043456
      %v760 = vsel %vm758, %v707, 0
      %762 = vmatprep.subr.bf16.mxu0 0
      %763 = vmatpush1.bf16.msra.mxu0 %v706
      %764 = vmatprep.subr.bf16.mxu0 0
      %765 = vmatpush1.bf16.msra.mxu0 %v760
      %766 = vmatprep.subr.bf16.mxu0 0
      %767 = vmatpush1.bf16.msra.mxu0 0
      %768 = vmatprep.subr.bf16.mxu0 0
      %769 = vmatpush1.bf16.msra.mxu0 0
      %770 = vmatprep.subr.bf16.mxu0 0
      %771 = vmatpush1.bf16.msra.mxu0 0
      %772 = vmatprep.subr.bf16.mxu0 0
      %773 = vmatpush1.bf16.msra.mxu0 0
      %774 = vmatprep.subr.bf16.mxu0 0
      %775 = vmatpush1.bf16.msra.mxu0 0
      %776 = vmatprep.subr.bf16.mxu0 0
      %777 = vmatpush1.bf16.msra.mxu0 0
      %778 = vmatprep.subr.bf16.mxu0 0
      %779 = vmatpush1.bf16.msra.mxu0 0
      %780 = vmatprep.subr.bf16.mxu0 0
      %781 = vmatpush1.bf16.msra.mxu0 0
      %782 = vmatprep.subr.bf16.mxu0 0
      %783 = vmatpush1.bf16.msra.mxu0 0
      %784 = vmatprep.subr.bf16.mxu0 0
      %785 = vmatpush1.bf16.msra.mxu0 0
      %786 = vmatprep.subr.bf16.mxu0 0
      %787 = vmatpush1.bf16.msra.mxu0 0
      %788 = vmatprep.subr.bf16.mxu0 0
      %789 = vmatpush1.bf16.msra.mxu0 0
      %790 = vmatprep.subr.bf16.mxu0 0
      %791 = vmatpush1.bf16.msra.mxu0 0
      %792 = vmatprep.subr.bf16.mxu0 0
      %793 = vmatpush1.bf16.msra.mxu0 0
      %794 = vmatprep.mubr.bf16.mxu0 0
      %795 = vmatmul.mubr.bf16.gmra.mrb[0].mxu0 %v711
      %v796 = vpop.f32.mrb[0].mxu0
      %v797 = vadd.f32 0.0, %v796
      %v798 = vpop.f32.mrb[0].mxu0
      %v799 = vpop.f32.mrb[0].mxu0
      %v800 = vadd.f32 0.0, %v799
      %v801 = vpop.f32.mrb[0].mxu0
      %802 = vmatprep.mubr.bf16.mxu0 0
      %803 = vmatmul.mubr.bf16.gmra.mrb[0].mxu0 %v714
      %v804 = vpop.f32.mrb[0].mxu0
      %v805 = vadd.f32 0.0, %v804
      %v806 = vpop.f32.mrb[0].mxu0
      %v807 = vpop.f32.mrb[0].mxu0
      %v808 = vadd.f32 0.0, %v807
      %v809 = vpop.f32.mrb[0].mxu0
      %810 = vmatprep.mubr.bf16.mxu0 0
      %811 = vmatmul.mubr.bf16.gmra.mrb[0].mxu0 %v717
      %v812 = vpop.f32.mrb[0].mxu0
      %v813 = vadd.f32 0.0, %v812
      %v814 = vpop.f32.mrb[0].mxu0
      %v815 = vpop.f32.mrb[0].mxu0
      %v816 = vadd.f32 0.0, %v815
      %v817 = vpop.f32.mrb[0].mxu0
      %818 = vmatprep.mubr.bf16.mxu0 0
      %819 = vmatmul.mubr.bf16.gmra.mrb[0].mxu0 %v720
      %v820 = vpop.f32.mrb[0].mxu0
      %v821 = vadd.f32 0.0, %v820
      %v822 = vpop.f32.mrb[0].mxu0
      %v823 = vpop.f32.mrb[0].mxu0
      %v824 = vadd.f32 0.0, %v823
      %v825 = vpop.f32.mrb[0].mxu0
      %826 = vmatprep.mubr.bf16.mxu0 0
      %827 = vmatmul.mubr.bf16.gmra.mrb[0].mxu0 %v723
      %v828 = vpop.f32.mrb[0].mxu0
      %v829 = vadd.f32 0.0, %v828
      %v830 = vpop.f32.mrb[0].mxu0
      %v831 = vpop.f32.mrb[0].mxu0
      %v832 = vadd.f32 0.0, %v831
      %v833 = vpop.f32.mrb[0].mxu0
      %834 = vmatprep.mubr.bf16.mxu0 0
      %835 = vmatmul.mubr.bf16.gmra.mrb[0].mxu0 %v726
      %v836 = vpop.f32.mrb[0].mxu0
      %v837 = vadd.f32 0.0, %v836
      %v838 = vpop.f32.mrb[0].mxu0
      %v839 = vpop.f32.mrb[0].mxu0
      %v840 = vadd.f32 0.0, %v839
      %v841 = vpop.f32.mrb[0].mxu0
      %842 = vmatprep.mubr.bf16.mxu0 0
      %843 = vmatmul.mubr.bf16.gmra.mrb[0].mxu0 %v729
      %v844 = vpop.f32.mrb[0].mxu0
      %v845 = vadd.f32 0.0, %v844
      %v846 = vpop.f32.mrb[0].mxu0
      %v847 = vpop.f32.mrb[0].mxu0
      %v848 = vadd.f32 0.0, %v847
      %v849 = vpop.f32.mrb[0].mxu0
      %850 = vmatprep.mubr.bf16.mxu0 0
      %851 = vmatmul.mubr.bf16.gmra.mrb[0].mxu0 %v732
      %v852 = vpop.f32.mrb[0].mxu0
      %v853 = vadd.f32 0.0, %v852
      %v854 = vpop.f32.mrb[0].mxu0
      %v855 = vpop.f32.mrb[0].mxu0
      %v856 = vadd.f32 0.0, %v855
      %v857 = vpop.f32.mrb[0].mxu0
      %858 = vmatprep.mubr.bf16.mxu0 0
      %859 = vmatmul.mubr.bf16.gmra.mrb[0].mxu0 %v735
      %v860 = vpop.f32.mrb[0].mxu0
      %v861 = vadd.f32 0.0, %v860
      %v862 = vpop.f32.mrb[0].mxu0
      %v863 = vpop.f32.mrb[0].mxu0
      %v864 = vadd.f32 0.0, %v863
      %v865 = vpop.f32.mrb[0].mxu0
      %866 = vmatprep.mubr.bf16.mxu0 0
      %867 = vmatmul.mubr.bf16.gmra.mrb[0].mxu0 %v738
      %v868 = vpop.f32.mrb[0].mxu0
      %v869 = vadd.f32 0.0, %v868
      %v870 = vpop.f32.mrb[0].mxu0
      %v871 = vpop.f32.mrb[0].mxu0
      %v872 = vadd.f32 0.0, %v871
      %v873 = vpop.f32.mrb[0].mxu0
      %874 = vmatprep.mubr.bf16.mxu0 0
      %875 = vmatmul.mubr.bf16.gmra.mrb[0].mxu0 %v741
      %v876 = vpop.f32.mrb[0].mxu0
      %v877 = vadd.f32 0.0, %v876
      %v878 = vpop.f32.mrb[0].mxu0
      %v879 = vpop.f32.mrb[0].mxu0
      %v880 = vadd.f32 0.0, %v879
      %v881 = vpop.f32.mrb[0].mxu0
      %882 = vmatprep.mubr.bf16.mxu0 0
      %883 = vmatmul.mubr.bf16.gmra.mrb[0].mxu0 %v744
      %v884 = vpop.f32.mrb[0].mxu0
      %v885 = vadd.f32 0.0, %v884
      %v886 = vpop.f32.mrb[0].mxu0
      %v887 = vpop.f32.mrb[0].mxu0
      %v888 = vadd.f32 0.0, %v887
      %v889 = vpop.f32.mrb[0].mxu0
      %890 = vmatprep.mubr.bf16.mxu0 0
      %891 = vmatmul.mubr.bf16.gmra.mrb[0].mxu0 %v747
      %v892 = vpop.f32.mrb[0].mxu0
      %v893 = vadd.f32 0.0, %v892
      %v894 = vpop.f32.mrb[0].mxu0
      %v895 = vpop.f32.mrb[0].mxu0
      %v896 = vadd.f32 0.0, %v895
      %v897 = vpop.f32.mrb[0].mxu0
      %898 = vmatprep.mubr.bf16.mxu0 0
      %899 = vmatmul.mubr.bf16.gmra.mrb[0].mxu0 %v750
      %v900 = vpop.f32.mrb[0].mxu0
      %v901 = vadd.f32 0.0, %v900
      %v902 = vpop.f32.mrb[0].mxu0
      %v903 = vpop.f32.mrb[0].mxu0
      %v904 = vadd.f32 0.0, %v903
      %v905 = vpop.f32.mrb[0].mxu0
      %906 = vmatprep.mubr.bf16.mxu0 0
      %907 = vmatmul.mubr.bf16.gmra.mrb[0].mxu0 %v753
      %v908 = vpop.f32.mrb[0].mxu0
      %v909 = vadd.f32 0.0, %v908
      %v910 = vpop.f32.mrb[0].mxu0
      %v911 = vpop.f32.mrb[0].mxu0
      %v912 = vadd.f32 0.0, %v911
      %v913 = vpop.f32.mrb[0].mxu0
      %914 = vmatprep.mubr.bf16.mxu0 0
      %915 = vmatmul.mubr.bf16.gmra.mrb[0].mxu0 %v756
      %v916 = vpop.f32.mrb[0].mxu0
      %v917 = vadd.f32 0.0, %v916
      %v918 = vpop.f32.mrb[0].mxu0
      %v919 = vpop.f32.mrb[0].mxu0
      %v920 = vadd.f32 0.0, %v919
      %v921 = vpop.f32.mrb[0].mxu0
      %922 = vdwg.mxu0
      %v955 = vunpack.c.l.b16 %v210
      %v956 = vunpack.c.l.b16 %v211
      %v957 = vunpack.c.l.b16 %v212
      %v958 = vunpack.c.l.b16 %v213
      %v959 = vunpack.c.l.b16 %v214
      %v960 = vunpack.c.l.b16 %v215
      %v961 = vunpack.c.l.b16 %v216
      %v962 = vunpack.c.l.b16 %v217
      %v963 = vunpack.c.l.b16 %v218
      %v964 = vunpack.c.l.b16 %v219
      %v965 = vunpack.c.l.b16 %v220
      %v966 = vunpack.c.l.b16 %v221
      %v967 = vunpack.c.l.b16 %v222
      %v968 = vunpack.c.l.b16 %v223
      %v969 = vunpack.c.l.b16 %v224
      %v970 = vunpack.c.l.b16 %v225
      %v971 = vunpack.c.l.b16 %v226
      %v972 = vunpack.c.l.b16 %v227
      %v973 = vunpack.c.l.b16 %v228
      %v974 = vunpack.c.l.b16 %v229
      %v975 = vunpack.c.l.b16 %v230
      %v976 = vunpack.c.l.b16 %v231
      %v977 = vunpack.c.l.b16 %v232
      %v978 = vunpack.c.l.b16 %v233
      %v979 = vunpack.c.l.b16 %v234
      %v980 = vunpack.c.l.b16 %v235
      %v981 = vunpack.c.l.b16 %v236
      %v982 = vunpack.c.l.b16 %v237
      %v983 = vunpack.c.l.b16 %v238
      %v984 = vunpack.c.l.b16 %v239
      %v985 = vunpack.c.l.b16 %v240
      %v986 = vunpack.c.l.b16 %v241
      %v987 = vpack.c.b16 %v956, %v955
      %v988 = vpack.c.b16 %v958, %v957
      %v989 = vpack.c.b16 %v960, %v959
      %v990 = vpack.c.b16 %v962, %v961
      %v991 = vpack.c.b16 %v964, %v963
      %v992 = vpack.c.b16 %v966, %v965
      %v993 = vpack.c.b16 %v968, %v967
      %v994 = vpack.c.b16 %v970, %v969
      %v995 = vpack.c.b16 %v972, %v971
      %v996 = vpack.c.b16 %v974, %v973
      %v997 = vpack.c.b16 %v976, %v975
      %v998 = vpack.c.b16 %v978, %v977
      %v999 = vpack.c.b16 %v980, %v979
      %v1000 = vpack.c.b16 %v982, %v981
      %v1001 = vpack.c.b16 %v984, %v983
      %v1002 = vpack.c.b16 %v986, %v985
      %v1006 = vunpack.c.l.b16 %v242
      %v1007 = vunpack.c.l.b16 %v243
      %v1008 = vunpack.c.l.b16 %v244
      %v1009 = vpack.c.b16 %v1007, %v1006
      %v1010 = vpack.c.b16 %v1008, %v1008
      %v1013 = vsel %vm709, %v987, 0
      %v1016 = vsel %vm709, %v988, 0
      %v1019 = vsel %vm709, %v989, 0
      %v1022 = vsel %vm709, %v990, 0
      %v1025 = vsel %vm709, %v991, 0
      %v1028 = vsel %vm709, %v992, 0
      %v1031 = vsel %vm709, %v993, 0
      %v1034 = vsel %vm709, %v994, 0
      %v1037 = vsel %vm709, %v995, 0
      %v1040 = vsel %vm709, %v996, 0
      %v1043 = vsel %vm709, %v997, 0
      %v1046 = vsel %vm709, %v998, 0
      %v1049 = vsel %vm709, %v999, 0
      %v1052 = vsel %vm709, %v1000, 0
      %v1055 = vsel %vm709, %v1001, 0
      %v1058 = vsel %vm709, %v1002, 0
      %v1061 = vsel %vm758, %v1010, 0
      %1063 = vmatprep.subr.bf16.mxu0 0
      %1064 = vmatpush1.bf16.msra.mxu0 %v1009
      %1065 = vmatprep.subr.bf16.mxu0 0
      %1066 = vmatpush1.bf16.msra.mxu0 %v1061
      %1067 = vmatprep.subr.bf16.mxu0 0
      %1068 = vmatpush1.bf16.msra.mxu0 0
      %1069 = vmatprep.subr.bf16.mxu0 0
      %1070 = vmatpush1.bf16.msra.mxu0 0
      %1071 = vmatprep.subr.bf16.mxu0 0
      %1072 = vmatpush1.bf16.msra.mxu0 0
      %1073 = vmatprep.subr.bf16.mxu0 0
      %1074 = vmatpush1.bf16.msra.mxu0 0
      %1075 = vmatprep.subr.bf16.mxu0 0
      %1076 = vmatpush1.bf16.msra.mxu0 0
      %1077 = vmatprep.subr.bf16.mxu0 0
      %1078 = vmatpush1.bf16.msra.mxu0 0
      %1079 = vmatprep.subr.bf16.mxu0 0
      %1080 = vmatpush1.bf16.msra.mxu0 0
      %1081 = vmatprep.subr.bf16.mxu0 0
      %1082 = vmatpush1.bf16.msra.mxu0 0
      %1083 = vmatprep.subr.bf16.mxu0 0
      %1084 = vmatpush1.bf16.msra.mxu0 0
      %1085 = vmatprep.subr.bf16.mxu0 0
      %1086 = vmatpush1.bf16.msra.mxu0 0
      %1087 = vmatprep.subr.bf16.mxu0 0
      %1088 = vmatpush1.bf16.msra.mxu0 0
      %1089 = vmatprep.subr.bf16.mxu0 0
      %1090 = vmatpush1.bf16.msra.mxu0 0
      %1091 = vmatprep.subr.bf16.mxu0 0
      %1092 = vmatpush1.bf16.msra.mxu0 0
      %1093 = vmatprep.subr.bf16.mxu0 0
      %1094 = vmatpush1.bf16.msra.mxu0 0
      %1095 = vmatprep.mubr.bf16.mxu0 0
      %1096 = vmatmul.mubr.bf16.gmra.mrb[0].mxu0 %v1013
      %v1097 = vpop.f32.mrb[0].mxu0
      %v1098 = vadd.f32 %v797, %v1097
      %v1099 = vpop.f32.mrb[0].mxu0
      %v1100 = vpop.f32.mrb[0].mxu0
      %v1101 = vadd.f32 %v800, %v1100
      %v1102 = vpop.f32.mrb[0].mxu0
      %1103 = vmatprep.mubr.bf16.mxu0 0
      %1104 = vmatmul.mubr.bf16.gmra.mrb[0].mxu0 %v1016
      %v1105 = vpop.f32.mrb[0].mxu0
      %v1106 = vadd.f32 %v805, %v1105
      %v1107 = vpop.f32.mrb[0].mxu0
      %v1108 = vpop.f32.mrb[0].mxu0
      %v1109 = vadd.f32 %v808, %v1108
      %v1110 = vpop.f32.mrb[0].mxu0
      %1111 = vmatprep.mubr.bf16.mxu0 0
      %1112 = vmatmul.mubr.bf16.gmra.mrb[0].mxu0 %v1019
      %v1113 = vpop.f32.mrb[0].mxu0
      %v1114 = vadd.f32 %v813, %v1113
      %v1115 = vpop.f32.mrb[0].mxu0
      %v1116 = vpop.f32.mrb[0].mxu0
      %v1117 = vadd.f32 %v816, %v1116
      %v1118 = vpop.f32.mrb[0].mxu0
      %1119 = vmatprep.mubr.bf16.mxu0 0
      %1120 = vmatmul.mubr.bf16.gmra.mrb[0].mxu0 %v1022
      %v1121 = vpop.f32.mrb[0].mxu0
      %v1122 = vadd.f32 %v821, %v1121
      %v1123 = vpop.f32.mrb[0].mxu0
      %v1124 = vpop.f32.mrb[0].mxu0
      %v1125 = vadd.f32 %v824, %v1124
      %v1126 = vpop.f32.mrb[0].mxu0
      %1127 = vmatprep.mubr.bf16.mxu0 0
      %1128 = vmatmul.mubr.bf16.gmra.mrb[0].mxu0 %v1025
      %v1129 = vpop.f32.mrb[0].mxu0
      %v1130 = vadd.f32 %v829, %v1129
      %v1131 = vpop.f32.mrb[0].mxu0
      %v1132 = vpop.f32.mrb[0].mxu0
      %v1133 = vadd.f32 %v832, %v1132
      %v1134 = vpop.f32.mrb[0].mxu0
      %1135 = vmatprep.mubr.bf16.mxu0 0
      %1136 = vmatmul.mubr.bf16.gmra.mrb[0].mxu0 %v1028
      %v1137 = vpop.f32.mrb[0].mxu0
      %v1138 = vadd.f32 %v837, %v1137
      %v1139 = vpop.f32.mrb[0].mxu0
      %v1140 = vpop.f32.mrb[0].mxu0
      %v1141 = vadd.f32 %v840, %v1140
      %v1142 = vpop.f32.mrb[0].mxu0
      %1143 = vmatprep.mubr.bf16.mxu0 0
      %1144 = vmatmul.mubr.bf16.gmra.mrb[0].mxu0 %v1031
      %v1145 = vpop.f32.mrb[0].mxu0
      %v1146 = vadd.f32 %v845, %v1145
      %v1147 = vpop.f32.mrb[0].mxu0
      %v1148 = vpop.f32.mrb[0].mxu0
      %v1149 = vadd.f32 %v848, %v1148
      %v1150 = vpop.f32.mrb[0].mxu0
      %1151 = vmatprep.mubr.bf16.mxu0 0
      %1152 = vmatmul.mubr.bf16.gmra.mrb[0].mxu0 %v1034
      %v1153 = vpop.f32.mrb[0].mxu0
      %v1154 = vadd.f32 %v853, %v1153
      %v1155 = vpop.f32.mrb[0].mxu0
      %v1156 = vpop.f32.mrb[0].mxu0
      %v1157 = vadd.f32 %v856, %v1156
      %v1158 = vpop.f32.mrb[0].mxu0
      %1159 = vmatprep.mubr.bf16.mxu0 0
      %1160 = vmatmul.mubr.bf16.gmra.mrb[0].mxu0 %v1037
      %v1161 = vpop.f32.mrb[0].mxu0
      %v1162 = vadd.f32 %v861, %v1161
      %v1163 = vpop.f32.mrb[0].mxu0
      %v1164 = vpop.f32.mrb[0].mxu0
      %v1165 = vadd.f32 %v864, %v1164
      %v1166 = vpop.f32.mrb[0].mxu0
      %1167 = vmatprep.mubr.bf16.mxu0 0
      %1168 = vmatmul.mubr.bf16.gmra.mrb[0].mxu0 %v1040
      %v1169 = vpop.f32.mrb[0].mxu0
      %v1170 = vadd.f32 %v869, %v1169
      %v1171 = vpop.f32.mrb[0].mxu0
      %v1172 = vpop.f32.mrb[0].mxu0
      %v1173 = vadd.f32 %v872, %v1172
      %v1174 = vpop.f32.mrb[0].mxu0
      %1175 = vmatprep.mubr.bf16.mxu0 0
      %1176 = vmatmul.mubr.bf16.gmra.mrb[0].mxu0 %v1043
      %v1177 = vpop.f32.mrb[0].mxu0
      %v1178 = vadd.f32 %v877, %v1177
      %v1179 = vpop.f32.mrb[0].mxu0
      %v1180 = vpop.f32.mrb[0].mxu0
      %v1181 = vadd.f32 %v880, %v1180
      %v1182 = vpop.f32.mrb[0].mxu0
      %1183 = vmatprep.mubr.bf16.mxu0 0
      %1184 = vmatmul.mubr.bf16.gmra.mrb[0].mxu0 %v1046
      %v1185 = vpop.f32.mrb[0].mxu0
      %v1186 = vadd.f32 %v885, %v1185
      %v1187 = vpop.f32.mrb[0].mxu0
      %v1188 = vpop.f32.mrb[0].mxu0
      %v1189 = vadd.f32 %v888, %v1188
      %v1190 = vpop.f32.mrb[0].mxu0
      %1191 = vmatprep.mubr.bf16.mxu0 0
      %1192 = vmatmul.mubr.bf16.gmra.mrb[0].mxu0 %v1049
      %v1193 = vpop.f32.mrb[0].mxu0
      %v1194 = vadd.f32 %v893, %v1193
      %v1195 = vpop.f32.mrb[0].mxu0
      %v1196 = vpop.f32.mrb[0].mxu0
      %v1197 = vadd.f32 %v896, %v1196
      %v1198 = vpop.f32.mrb[0].mxu0
      %1199 = vmatprep.mubr.bf16.mxu0 0
      %1200 = vmatmul.mubr.bf16.gmra.mrb[0].mxu0 %v1052
      %v1201 = vpop.f32.mrb[0].mxu0
      %v1202 = vadd.f32 %v901, %v1201
      %v1203 = vpop.f32.mrb[0].mxu0
      %v1204 = vpop.f32.mrb[0].mxu0
      %v1205 = vadd.f32 %v904, %v1204
      %v1206 = vpop.f32.mrb[0].mxu0
      %1207 = vmatprep.mubr.bf16.mxu0 0
      %1208 = vmatmul.mubr.bf16.gmra.mrb[0].mxu0 %v1055
      %v1209 = vpop.f32.mrb[0].mxu0
      %v1210 = vadd.f32 %v909, %v1209
      %v1211 = vpop.f32.mrb[0].mxu0
      %v1212 = vpop.f32.mrb[0].mxu0
      %v1213 = vadd.f32 %v912, %v1212
      %v1214 = vpop.f32.mrb[0].mxu0
      %1215 = vmatprep.mubr.bf16.mxu0 0
      %1216 = vmatmul.mubr.bf16.gmra.mrb[0].mxu0 %v1058
      %v1217 = vpop.f32.mrb[0].mxu0
      %v1218 = vadd.f32 %v917, %v1217
      %v1219 = vpop.f32.mrb[0].mxu0
      %v1220 = vpop.f32.mrb[0].mxu0
      %v1221 = vadd.f32 %v920, %v1220
      %v1222 = vpop.f32.mrb[0].mxu0
      %1223 = vdwg.mxu0
      %v1224 = vld [vmem:[%s199] sm:$0xe]
      %v1225 = vld [vmem:[%s199 + $0xc] sm:$0xe]
      %v1226 = vld [vmem:[%s199 + $0x18] sm:$0xe]
      %v1227 = vld [vmem:[%s199 + $0x24] sm:$0xe]
      %v1228 = vld [vmem:[%s199 + $0x30] sm:$0xe]
      %v1229 = vld [vmem:[%s199 + $0x3c] sm:$0xe]
      %v1230 = vld [vmem:[%s199 + $0x48] sm:$0xe]
      %v1231 = vld [vmem:[%s199 + $0x54] sm:$0xe]
      %v1232 = vld [vmem:[%s199 + $0x60] sm:$0xe]
      %v1233 = vld [vmem:[%s199 + $0x6c] sm:$0xe]
      %v1234 = vld [vmem:[%s199 + $0x78] sm:$0xe]
      %v1235 = vld [vmem:[%s199 + $0x84] sm:$0xe]
      %v1236 = vld [vmem:[%s199 + $0x90] sm:$0xe]
      %v1237 = vld [vmem:[%s199 + $0x9c] sm:$0xe]
      %v1238 = vld [vmem:[%s199 + $0xa8] sm:$0xe]
      %v1239 = vld [vmem:[%s199 + $0xb4] sm:$0xe]
      %vm1272 = vcmask 1042432
      %vm1273 = vcmask 1046532
      %vm1274 = vmor %vm1272, %vm1273
      %v1275 = vrot.slane %v1224, 5
      %v1276 = vrot.slane %v1275, 4
      %v1277 = vrot.slane %v211, 5
      %v1278 = vsel %vm1274, %v1276, %v1277
      %v1279 = vrot.slane %v1277, 4
      %v1280 = vrot.slane %v245, 5
      %v1281 = vsel %vm1274, %v1279, %v1280
      %v1282 = vrot.slane %v1225, 5
      %v1283 = vrot.slane %v1282, 4
      %v1284 = vrot.slane %v213, 5
      %v1285 = vsel %vm1274, %v1283, %v1284
      %v1286 = vrot.slane %v1284, 4
      %v1287 = vrot.slane %v246, 5
      %v1288 = vsel %vm1274, %v1286, %v1287
      %v1289 = vrot.slane %v1226, 5
      %v1290 = vrot.slane %v1289, 4
      %v1291 = vrot.slane %v215, 5
      %v1292 = vsel %vm1274, %v1290, %v1291
      %v1293 = vrot.slane %v1291, 4
      %v1294 = vrot.slane %v247, 5
      %v1295 = vsel %vm1274, %v1293, %v1294
      %v1296 = vrot.slane %v1227, 5
      %v1297 = vrot.slane %v1296, 4
      %v1298 = vrot.slane %v217, 5
      %v1299 = vsel %vm1274, %v1297, %v1298
      %v1300 = vrot.slane %v1298, 4
      %v1301 = vrot.slane %v248, 5
      %v1302 = vsel %vm1274, %v1300, %v1301
      %v1303 = vrot.slane %v1228, 5
      %v1304 = vrot.slane %v1303, 4
      %v1305 = vrot.slane %v219, 5
      %v1306 = vsel %vm1274, %v1304, %v1305
      %v1307 = vrot.slane %v1305, 4
      %v1308 = vrot.slane %v249, 5
      %v1309 = vsel %vm1274, %v1307, %v1308
      %v1310 = vrot.slane %v1229, 5
      %v1311 = vrot.slane %v1310, 4
      %v1312 = vrot.slane %v221, 5
      %v1313 = vsel %vm1274, %v1311, %v1312
      %v1314 = vrot.slane %v1312, 4
      %v1315 = vrot.slane %v250, 5
      %v1316 = vsel %vm1274, %v1314, %v1315
      %v1317 = vrot.slane %v1230, 5
      %v1318 = vrot.slane %v1317, 4
      %v1319 = vrot.slane %v223, 5
      %v1320 = vsel %vm1274, %v1318, %v1319
      %v1321 = vrot.slane %v1319, 4
      %v1322 = vrot.slane %v251, 5
      %v1323 = vsel %vm1274, %v1321, %v1322
      %v1324 = vrot.slane %v1231, 5
      %v1325 = vrot.slane %v1324, 4
      %v1326 = vrot.slane %v225, 5
      %v1327 = vsel %vm1274, %v1325, %v1326
      %v1328 = vrot.slane %v1326, 4
      %v1329 = vrot.slane %v252, 5
      %v1330 = vsel %vm1274, %v1328, %v1329
      %v1331 = vrot.slane %v1232, 5
      %v1332 = vrot.slane %v1331, 4
      %v1333 = vrot.slane %v227, 5
      %v1334 = vsel %vm1274, %v1332, %v1333
      %v1335 = vrot.slane %v1333, 4
      %v1336 = vrot.slane %v253, 5
      %v1337 = vsel %vm1274, %v1335, %v1336
      %v1338 = vrot.slane %v1233, 5
      %v1339 = vrot.slane %v1338, 4
      %v1340 = vrot.slane %v229, 5
      %v1341 = vsel %vm1274, %v1339, %v1340
      %v1342 = vrot.slane %v1340, 4
      %v1343 = vrot.slane %v254, 5
      %v1344 = vsel %vm1274, %v1342, %v1343
      %v1345 = vrot.slane %v1234, 5
      %v1346 = vrot.slane %v1345, 4
      %v1347 = vrot.slane %v231, 5
      %v1348 = vsel %vm1274, %v1346, %v1347
      %v1349 = vrot.slane %v1347, 4
      %v1350 = vrot.slane %v255, 5
      %v1351 = vsel %vm1274, %v1349, %v1350
      %v1352 = vrot.slane %v1235, 5
      %v1353 = vrot.slane %v1352, 4
      %v1354 = vrot.slane %v233, 5
      %v1355 = vsel %vm1274, %v1353, %v1354
      %v1356 = vrot.slane %v1354, 4
      %v1357 = vrot.slane %v256, 5
      %v1358 = vsel %vm1274, %v1356, %v1357
      %v1359 = vrot.slane %v1236, 5
      %v1360 = vrot.slane %v1359, 4
      %v1361 = vrot.slane %v235, 5
      %v1362 = vsel %vm1274, %v1360, %v1361
      %v1363 = vrot.slane %v1361, 4
      %v1364 = vrot.slane %v257, 5
      %v1365 = vsel %vm1274, %v1363, %v1364
      %v1366 = vrot.slane %v1237, 5
      %v1367 = vrot.slane %v1366, 4
      %v1368 = vrot.slane %v237, 5
      %v1369 = vsel %vm1274, %v1367, %v1368
      %v1370 = vrot.slane %v1368, 4
      %v1371 = vrot.slane %v258, 5
      %v1372 = vsel %vm1274, %v1370, %v1371
      %v1373 = vrot.slane %v1238, 5
      %v1374 = vrot.slane %v1373, 4
      %v1375 = vrot.slane %v239, 5
      %v1376 = vsel %vm1274, %v1374, %v1375
      %v1377 = vrot.slane %v1375, 4
      %v1378 = vrot.slane %v259, 5
      %v1379 = vsel %vm1274, %v1377, %v1378
      %v1380 = vrot.slane %v1239, 5
      %v1381 = vrot.slane %v1380, 4
      %v1382 = vrot.slane %v241, 5
      %v1383 = vsel %vm1274, %v1381, %v1382
      %v1384 = vrot.slane %v1382, 4
      %v1385 = vrot.slane %v260, 5
      %v1386 = vsel %vm1274, %v1384, %v1385
      %s1387 = scalar_lea.vmem %s1, 24
      %v1388 = vld [vmem:[%s1387] sm:$0xf]
      %v1389 = vld [vmem:[%s1387 + $0x4] sm:$0xf]
      %v1390 = vld [vmem:[%s1387 + $0x8] sm:$0xf]
      %v1391 = vunpack.c.l.b16 %v1278
      %v1392 = vunpack.c.l.b16 %v1281
      %v1393 = vunpack.c.l.b16 %v1285
      %v1394 = vunpack.c.l.b16 %v1288
      %v1395 = vunpack.c.l.b16 %v1292
      %v1396 = vunpack.c.l.b16 %v1295
      %v1397 = vunpack.c.l.b16 %v1299
      %v1398 = vunpack.c.l.b16 %v1302
      %v1399 = vunpack.c.l.b16 %v1306
      %v1400 = vunpack.c.l.b16 %v1309
      %v1401 = vunpack.c.l.b16 %v1313
      %v1402 = vunpack.c.l.b16 %v1316
      %v1403 = vunpack.c.l.b16 %v1320
      %v1404 = vunpack.c.l.b16 %v1323
      %v1405 = vunpack.c.l.b16 %v1327
      %v1406 = vunpack.c.l.b16 %v1330
      %v1407 = vunpack.c.l.b16 %v1334
      %v1408 = vunpack.c.l.b16 %v1337
      %v1409 = vunpack.c.l.b16 %v1341
      %v1410 = vunpack.c.l.b16 %v1344
      %v1411 = vunpack.c.l.b16 %v1348
      %v1412 = vunpack.c.l.b16 %v1351
      %v1413 = vunpack.c.l.b16 %v1355
      %v1414 = vunpack.c.l.b16 %v1358
      %v1415 = vunpack.c.l.b16 %v1362
      %v1416 = vunpack.c.l.b16 %v1365
      %v1417 = vunpack.c.l.b16 %v1369
      %v1418 = vunpack.c.l.b16 %v1372
      %v1419 = vunpack.c.l.b16 %v1376
      %v1420 = vunpack.c.l.b16 %v1379
      %v1421 = vunpack.c.l.b16 %v1383
      %v1422 = vunpack.c.l.b16 %v1386
      %v1423 = vpack.c.b16 %v1392, %v1391
      %v1424 = vpack.c.b16 %v1394, %v1393
      %v1425 = vpack.c.b16 %v1396, %v1395
      %v1426 = vpack.c.b16 %v1398, %v1397
      %v1427 = vpack.c.b16 %v1400, %v1399
      %v1428 = vpack.c.b16 %v1402, %v1401
      %v1429 = vpack.c.b16 %v1404, %v1403
      %v1430 = vpack.c.b16 %v1406, %v1405
      %v1431 = vpack.c.b16 %v1408, %v1407
      %v1432 = vpack.c.b16 %v1410, %v1409
      %v1433 = vpack.c.b16 %v1412, %v1411
      %v1434 = vpack.c.b16 %v1414, %v1413
      %v1435 = vpack.c.b16 %v1416, %v1415
      %v1436 = vpack.c.b16 %v1418, %v1417
      %v1437 = vpack.c.b16 %v1420, %v1419
      %v1438 = vpack.c.b16 %v1422, %v1421
      %v1442 = vunpack.c.l.b16 %v1388
      %v1443 = vunpack.c.l.b16 %v1389
      %v1444 = vunpack.c.l.b16 %v1390
      %v1445 = vpack.c.b16 %v1443, %v1442
      %v1446 = vpack.c.b16 %v1444, %v1444
      %v1449 = vsel %vm709, %v1423, 0
      %v1452 = vsel %vm709, %v1424, 0
      %v1455 = vsel %vm709, %v1425, 0
      %v1458 = vsel %vm709, %v1426, 0
      %v1461 = vsel %vm709, %v1427, 0
      %v1464 = vsel %vm709, %v1428, 0
      %v1467 = vsel %vm709, %v1429, 0
      %v1470 = vsel %vm709, %v1430, 0
      %v1473 = vsel %vm709, %v1431, 0
      %v1476 = vsel %vm709, %v1432, 0
      %v1479 = vsel %vm709, %v1433, 0
      %v1482 = vsel %vm709, %v1434, 0
      %v1485 = vsel %vm709, %v1435, 0
      %v1488 = vsel %vm709, %v1436, 0
      %v1491 = vsel %vm709, %v1437, 0
      %v1494 = vsel %vm709, %v1438, 0
      %v1497 = vsel %vm758, %v1446, 0
      %1499 = vmatprep.subr.bf16.mxu0 0
      %1500 = vmatpush1.bf16.msra.mxu0 %v1445
      %1501 = vmatprep.subr.bf16.mxu0 0
      %1502 = vmatpush1.bf16.msra.mxu0 %v1497
      %1503 = vmatprep.subr.bf16.mxu0 0
      %1504 = vmatpush1.bf16.msra.mxu0 0
      %1505 = vmatprep.subr.bf16.mxu0 0
      %1506 = vmatpush1.bf16.msra.mxu0 0
      %1507 = vmatprep.subr.bf16.mxu0 0
      %1508 = vmatpush1.bf16.msra.mxu0 0
      %1509 = vmatprep.subr.bf16.mxu0 0
      %1510 = vmatpush1.bf16.msra.mxu0 0
      %1511 = vmatprep.subr.bf16.mxu0 0
      %1512 = vmatpush1.bf16.msra.mxu0 0
      %1513 = vmatprep.subr.bf16.mxu0 0
      %1514 = vmatpush1.bf16.msra.mxu0 0
      %1515 = vmatprep.subr.bf16.mxu0 0
      %1516 = vmatpush1.bf16.msra.mxu0 0
      %1517 = vmatprep.subr.bf16.mxu0 0
      %1518 = vmatpush1.bf16.msra.mxu0 0
      %1519 = vmatprep.subr.bf16.mxu0 0
      %1520 = vmatpush1.bf16.msra.mxu0 0
      %1521 = vmatprep.subr.bf16.mxu0 0
      %1522 = vmatpush1.bf16.msra.mxu0 0
      %1523 = vmatprep.subr.bf16.mxu0 0
      %1524 = vmatpush1.bf16.msra.mxu0 0
      %1525 = vmatprep.subr.bf16.mxu0 0
      %1526 = vmatpush1.bf16.msra.mxu0 0
      %1527 = vmatprep.subr.bf16.mxu0 0
      %1528 = vmatpush1.bf16.msra.mxu0 0
      %1529 = vmatprep.subr.bf16.mxu0 0
      %1530 = vmatpush1.bf16.msra.mxu0 0
      %1531 = vmatprep.mubr.bf16.mxu0 0
      %1532 = vmatmul.mubr.bf16.gmra.mrb[0].mxu0 %v1449
      %v1533 = vpop.f32.mrb[0].mxu0
      %v1534 = vadd.f32 0.0, %v1533
      %v1535 = vpop.f32.mrb[0].mxu0
      %v1536 = vpop.f32.mrb[0].mxu0
      %v1537 = vadd.f32 0.0, %v1536
      %v1538 = vpop.f32.mrb[0].mxu0
      %1539 = vmatprep.mubr.bf16.mxu0 0
      %1540 = vmatmul.mubr.bf16.gmra.mrb[0].mxu0 %v1452
      %v1541 = vpop.f32.mrb[0].mxu0
      %v1542 = vadd.f32 0.0, %v1541
      %v1543 = vpop.f32.mrb[0].mxu0
      %v1544 = vpop.f32.mrb[0].mxu0
      %v1545 = vadd.f32 0.0, %v1544
      %v1546 = vpop.f32.mrb[0].mxu0
      %1547 = vmatprep.mubr.bf16.mxu0 0
      %1548 = vmatmul.mubr.bf16.gmra.mrb[0].mxu0 %v1455
      %v1549 = vpop.f32.mrb[0].mxu0
      %v1550 = vadd.f32 0.0, %v1549
      %v1551 = vpop.f32.mrb[0].mxu0
      %v1552 = vpop.f32.mrb[0].mxu0
      %v1553 = vadd.f32 0.0, %v1552
      %v1554 = vpop.f32.mrb[0].mxu0
      %1555 = vmatprep.mubr.bf16.mxu0 0
      %1556 = vmatmul.mubr.bf16.gmra.mrb[0].mxu0 %v1458
      %v1557 = vpop.f32.mrb[0].mxu0
      %v1558 = vadd.f32 0.0, %v1557
      %v1559 = vpop.f32.mrb[0].mxu0
      %v1560 = vpop.f32.mrb[0].mxu0
      %v1561 = vadd.f32 0.0, %v1560
      %v1562 = vpop.f32.mrb[0].mxu0
      %1563 = vmatprep.mubr.bf16.mxu0 0
      %1564 = vmatmul.mubr.bf16.gmra.mrb[0].mxu0 %v1461
      %v1565 = vpop.f32.mrb[0].mxu0
      %v1566 = vadd.f32 0.0, %v1565
      %v1567 = vpop.f32.mrb[0].mxu0
      %v1568 = vpop.f32.mrb[0].mxu0
      %v1569 = vadd.f32 0.0, %v1568
      %v1570 = vpop.f32.mrb[0].mxu0
      %1571 = vmatprep.mubr.bf16.mxu0 0
      %1572 = vmatmul.mubr.bf16.gmra.mrb[0].mxu0 %v1464
      %v1573 = vpop.f32.mrb[0].mxu0
      %v1574 = vadd.f32 0.0, %v1573
      %v1575 = vpop.f32.mrb[0].mxu0
      %v1576 = vpop.f32.mrb[0].mxu0
      %v1577 = vadd.f32 0.0, %v1576
      %v1578 = vpop.f32.mrb[0].mxu0
      %1579 = vmatprep.mubr.bf16.mxu0 0
      %1580 = vmatmul.mubr.bf16.gmra.mrb[0].mxu0 %v1467
      %v1581 = vpop.f32.mrb[0].mxu0
      %v1582 = vadd.f32 0.0, %v1581
      %v1583 = vpop.f32.mrb[0].mxu0
      %v1584 = vpop.f32.mrb[0].mxu0
      %v1585 = vadd.f32 0.0, %v1584
      %v1586 = vpop.f32.mrb[0].mxu0
      %1587 = vmatprep.mubr.bf16.mxu0 0
      %1588 = vmatmul.mubr.bf16.gmra.mrb[0].mxu0 %v1470
      %v1589 = vpop.f32.mrb[0].mxu0
      %v1590 = vadd.f32 0.0, %v1589
      %v1591 = vpop.f32.mrb[0].mxu0
      %v1592 = vpop.f32.mrb[0].mxu0
      %v1593 = vadd.f32 0.0, %v1592
      %v1594 = vpop.f32.mrb[0].mxu0
      %1595 = vmatprep.mubr.bf16.mxu0 0
      %1596 = vmatmul.mubr.bf16.gmra.mrb[0].mxu0 %v1473
      %v1597 = vpop.f32.mrb[0].mxu0
      %v1598 = vadd.f32 0.0, %v1597
      %v1599 = vpop.f32.mrb[0].mxu0
      %v1600 = vpop.f32.mrb[0].mxu0
      %v1601 = vadd.f32 0.0, %v1600
      %v1602 = vpop.f32.mrb[0].mxu0
      %1603 = vmatprep.mubr.bf16.mxu0 0
      %1604 = vmatmul.mubr.bf16.gmra.mrb[0].mxu0 %v1476
      %v1605 = vpop.f32.mrb[0].mxu0
      %v1606 = vadd.f32 0.0, %v1605
      %v1607 = vpop.f32.mrb[0].mxu0
      %v1608 = vpop.f32.mrb[0].mxu0
      %v1609 = vadd.f32 0.0, %v1608
      %v1610 = vpop.f32.mrb[0].mxu0
      %1611 = vmatprep.mubr.bf16.mxu0 0
      %1612 = vmatmul.mubr.bf16.gmra.mrb[0].mxu0 %v1479
      %v1613 = vpop.f32.mrb[0].mxu0
      %v1614 = vadd.f32 0.0, %v1613
      %v1615 = vpop.f32.mrb[0].mxu0
      %v1616 = vpop.f32.mrb[0].mxu0
      %v1617 = vadd.f32 0.0, %v1616
      %v1618 = vpop.f32.mrb[0].mxu0
      %1619 = vmatprep.mubr.bf16.mxu0 0
      %1620 = vmatmul.mubr.bf16.gmra.mrb[0].mxu0 %v1482
      %v1621 = vpop.f32.mrb[0].mxu0
      %v1622 = vadd.f32 0.0, %v1621
      %v1623 = vpop.f32.mrb[0].mxu0
      %v1624 = vpop.f32.mrb[0].mxu0
      %v1625 = vadd.f32 0.0, %v1624
      %v1626 = vpop.f32.mrb[0].mxu0
      %1627 = vmatprep.mubr.bf16.mxu0 0
      %1628 = vmatmul.mubr.bf16.gmra.mrb[0].mxu0 %v1485
      %v1629 = vpop.f32.mrb[0].mxu0
      %v1630 = vadd.f32 0.0, %v1629
      %v1631 = vpop.f32.mrb[0].mxu0
      %v1632 = vpop.f32.mrb[0].mxu0
      %v1633 = vadd.f32 0.0, %v1632
      %v1634 = vpop.f32.mrb[0].mxu0
      %1635 = vmatprep.mubr.bf16.mxu0 0
      %1636 = vmatmul.mubr.bf16.gmra.mrb[0].mxu0 %v1488
      %v1637 = vpop.f32.mrb[0].mxu0
      %v1638 = vadd.f32 0.0, %v1637
      %v1639 = vpop.f32.mrb[0].mxu0
      %v1640 = vpop.f32.mrb[0].mxu0
      %v1641 = vadd.f32 0.0, %v1640
      %v1642 = vpop.f32.mrb[0].mxu0
      %1643 = vmatprep.mubr.bf16.mxu0 0
      %1644 = vmatmul.mubr.bf16.gmra.mrb[0].mxu0 %v1491
      %v1645 = vpop.f32.mrb[0].mxu0
      %v1646 = vadd.f32 0.0, %v1645
      %v1647 = vpop.f32.mrb[0].mxu0
      %v1648 = vpop.f32.mrb[0].mxu0
      %v1649 = vadd.f32 0.0, %v1648
      %v1650 = vpop.f32.mrb[0].mxu0
      %1651 = vmatprep.mubr.bf16.mxu0 0
      %1652 = vmatmul.mubr.bf16.gmra.mrb[0].mxu0 %v1494
      %v1653 = vpop.f32.mrb[0].mxu0
      %v1654 = vadd.f32 0.0, %v1653
      %v1655 = vpop.f32.mrb[0].mxu0
      %v1656 = vpop.f32.mrb[0].mxu0
      %v1657 = vadd.f32 0.0, %v1656
      %v1658 = vpop.f32.mrb[0].mxu0
      %1659 = vdwg.mxu0
      %v1660 = vadd.f32 %v1098, %v1534
      %v1661 = vadd.f32 %v1101, %v1537
      %v1662 = vadd.f32 %v1106, %v1542
      %v1663 = vadd.f32 %v1109, %v1545
      %v1664 = vadd.f32 %v1114, %v1550
      %v1665 = vadd.f32 %v1117, %v1553
      %v1666 = vadd.f32 %v1122, %v1558
      %v1667 = vadd.f32 %v1125, %v1561
      %v1668 = vadd.f32 %v1130, %v1566
      %v1669 = vadd.f32 %v1133, %v1569
      %v1670 = vadd.f32 %v1138, %v1574
      %v1671 = vadd.f32 %v1141, %v1577
      %v1672 = vadd.f32 %v1146, %v1582
      %v1673 = vadd.f32 %v1149, %v1585
      %v1674 = vadd.f32 %v1154, %v1590
      %v1675 = vadd.f32 %v1157, %v1593
      %v1676 = vadd.f32 %v1162, %v1598
      %v1677 = vadd.f32 %v1165, %v1601
      %v1678 = vadd.f32 %v1170, %v1606
      %v1679 = vadd.f32 %v1173, %v1609
      %v1680 = vadd.f32 %v1178, %v1614
      %v1681 = vadd.f32 %v1181, %v1617
      %v1682 = vadd.f32 %v1186, %v1622
      %v1683 = vadd.f32 %v1189, %v1625
      %v1684 = vadd.f32 %v1194, %v1630
      %v1685 = vadd.f32 %v1197, %v1633
      %v1686 = vadd.f32 %v1202, %v1638
      %v1687 = vadd.f32 %v1205, %v1641
      %v1688 = vadd.f32 %v1210, %v1646
      %v1689 = vadd.f32 %v1213, %v1649
      %v1690 = vadd.f32 %v1218, %v1654
      %v1691 = vadd.f32 %v1221, %v1657
      %v1692 = vld [vmem:[%s2] sm:$0x1]
      %v1694 = vlaneseq
      %v1695 = vshrl.u32 %v1694, 7
      %v1696 = vsub.s32 0, %v1695
      %v1697 = vrot.slane %v1692, %v1696
      %v1699 = vadd.f32 %v1660, %v1697
      %v1700 = vadd.f32 %v1661, %v1697
      %v1701 = vadd.f32 %v1662, %v1697
      %v1702 = vadd.f32 %v1663, %v1697
      %v1703 = vadd.f32 %v1664, %v1697
      %v1704 = vadd.f32 %v1665, %v1697
      %v1705 = vadd.f32 %v1666, %v1697
      %v1706 = vadd.f32 %v1667, %v1697
      %v1707 = vadd.f32 %v1668, %v1697
      %v1708 = vadd.f32 %v1669, %v1697
      %v1709 = vadd.f32 %v1670, %v1697
      %v1710 = vadd.f32 %v1671, %v1697
      %v1711 = vadd.f32 %v1672, %v1697
      %v1712 = vadd.f32 %v1673, %v1697
      %v1713 = vadd.f32 %v1674, %v1697
      %v1714 = vadd.f32 %v1675, %v1697
      %v1715 = vadd.f32 %v1676, %v1697
      %v1716 = vadd.f32 %v1677, %v1697
      %v1717 = vadd.f32 %v1678, %v1697
      %v1718 = vadd.f32 %v1679, %v1697
      %v1719 = vadd.f32 %v1680, %v1697
      %v1720 = vadd.f32 %v1681, %v1697
      %v1721 = vadd.f32 %v1682, %v1697
      %v1722 = vadd.f32 %v1683, %v1697
      %v1723 = vadd.f32 %v1684, %v1697
      %v1724 = vadd.f32 %v1685, %v1697
      %v1725 = vadd.f32 %v1686, %v1697
      %v1726 = vadd.f32 %v1687, %v1697
      %v1727 = vadd.f32 %v1688, %v1697
      %v1728 = vadd.f32 %v1689, %v1697
      %v1729 = vadd.f32 %v1690, %v1697
      %v1730 = vadd.f32 %v1691, %v1697
      %v1731 = vpack.c.bf16 %v1700, %v1699
      %v1732 = vpack.c.bf16 %v1702, %v1701
      %v1733 = vpack.c.bf16 %v1704, %v1703
      %v1734 = vpack.c.bf16 %v1706, %v1705
      %v1735 = vpack.c.bf16 %v1708, %v1707
      %v1736 = vpack.c.bf16 %v1710, %v1709
      %v1737 = vpack.c.bf16 %v1712, %v1711
      %v1738 = vpack.c.bf16 %v1714, %v1713
      %v1739 = vpack.c.bf16 %v1716, %v1715
      %v1740 = vpack.c.bf16 %v1718, %v1717
      %v1741 = vpack.c.bf16 %v1720, %v1719
      %v1742 = vpack.c.bf16 %v1722, %v1721
      %v1743 = vpack.c.bf16 %v1724, %v1723
      %v1744 = vpack.c.bf16 %v1726, %v1725
      %v1745 = vpack.c.bf16 %v1728, %v1727
      %v1746 = vpack.c.bf16 %v1730, %v1729
      %v1763 = vunpack.c.l.b16 %v1731
      %v1764 = vunpack.c.h.b16 %v1731
      %v1765 = vunpack.c.l.b16 %v1732
      %v1766 = vunpack.c.h.b16 %v1732
      %v1767 = vunpack.c.l.b16 %v1733
      %v1768 = vunpack.c.h.b16 %v1733
      %v1769 = vunpack.c.l.b16 %v1734
      %v1770 = vunpack.c.h.b16 %v1734
      %v1771 = vunpack.c.l.b16 %v1735
      %v1772 = vunpack.c.h.b16 %v1735
      %v1773 = vunpack.c.l.b16 %v1736
      %v1774 = vunpack.c.h.b16 %v1736
      %v1775 = vunpack.c.l.b16 %v1737
      %v1776 = vunpack.c.h.b16 %v1737
      %v1777 = vunpack.c.l.b16 %v1738
      %v1778 = vunpack.c.h.b16 %v1738
      %v1779 = vunpack.c.l.b16 %v1739
      %v1780 = vunpack.c.h.b16 %v1739
      %v1781 = vunpack.c.l.b16 %v1740
      %v1782 = vunpack.c.h.b16 %v1740
      %v1783 = vunpack.c.l.b16 %v1741
      %v1784 = vunpack.c.h.b16 %v1741
      %v1785 = vunpack.c.l.b16 %v1742
      %v1786 = vunpack.c.h.b16 %v1742
      %v1787 = vunpack.c.l.b16 %v1743
      %v1788 = vunpack.c.h.b16 %v1743
      %v1789 = vunpack.c.l.b16 %v1744
      %v1790 = vunpack.c.h.b16 %v1744
      %v1791 = vunpack.c.l.b16 %v1745
      %v1792 = vunpack.c.h.b16 %v1745
      %v1793 = vunpack.c.l.b16 %v1746
      %v1794 = vunpack.c.h.b16 %v1746
      %v1795 = vpack.c.b16 %v1763, %v1763
      %v1796 = vpack.c.b16 %v1764, %v1764
      %v1797 = vpack.c.b16 %v1765, %v1765
      %v1798 = vpack.c.b16 %v1766, %v1766
      %v1799 = vpack.c.b16 %v1767, %v1767
      %v1800 = vpack.c.b16 %v1768, %v1768
      %v1801 = vpack.c.b16 %v1769, %v1769
      %v1802 = vpack.c.b16 %v1770, %v1770
      %v1803 = vpack.c.b16 %v1771, %v1771
      %v1804 = vpack.c.b16 %v1772, %v1772
      %v1805 = vpack.c.b16 %v1773, %v1773
      %v1806 = vpack.c.b16 %v1774, %v1774
      %v1807 = vpack.c.b16 %v1775, %v1775
      %v1808 = vpack.c.b16 %v1776, %v1776
      %v1809 = vpack.c.b16 %v1777, %v1777
      %v1810 = vpack.c.b16 %v1778, %v1778
      %v1811 = vpack.c.b16 %v1779, %v1779
      %v1812 = vpack.c.b16 %v1780, %v1780
      %v1813 = vpack.c.b16 %v1781, %v1781
      %v1814 = vpack.c.b16 %v1782, %v1782
      %v1815 = vpack.c.b16 %v1783, %v1783
      %v1816 = vpack.c.b16 %v1784, %v1784
      %v1817 = vpack.c.b16 %v1785, %v1785
      %v1818 = vpack.c.b16 %v1786, %v1786
      %v1819 = vpack.c.b16 %v1787, %v1787
      %v1820 = vpack.c.b16 %v1788, %v1788
      %v1821 = vpack.c.b16 %v1789, %v1789
      %v1822 = vpack.c.b16 %v1790, %v1790
      %v1823 = vpack.c.b16 %v1791, %v1791
      %v1824 = vpack.c.b16 %v1792, %v1792
      %v1825 = vpack.c.b16 %v1793, %v1793
      %v1826 = vpack.c.b16 %v1794, %v1794
      %1859 = vst [vmem:[%s204] sm:$0xf] %v1795
      %1860 = vst [vmem:[%s204 + $0x4] sm:$0xf] %v1796
      %1861 = vst [vmem:[%s204 + $0x8] sm:$0xf] %v1797
      %1862 = vst [vmem:[%s204 + $0xc] sm:$0xf] %v1798
      %1863 = vst [vmem:[%s204 + $0x10] sm:$0xf] %v1799
      %1864 = vst [vmem:[%s204 + $0x14] sm:$0xf] %v1800
      %1865 = vst [vmem:[%s204 + $0x18] sm:$0xf] %v1801
      %1866 = vst [vmem:[%s204 + $0x1c] sm:$0xf] %v1802
      %1867 = vst [vmem:[%s204 + $0x20] sm:$0xf] %v1803
      %1868 = vst [vmem:[%s204 + $0x24] sm:$0xf] %v1804
      %1869 = vst [vmem:[%s204 + $0x28] sm:$0xf] %v1805
      %1870 = vst [vmem:[%s204 + $0x2c] sm:$0xf] %v1806
      %1871 = vst [vmem:[%s204 + $0x30] sm:$0xf] %v1807
      %1872 = vst [vmem:[%s204 + $0x34] sm:$0xf] %v1808
      %1873 = vst [vmem:[%s204 + $0x38] sm:$0xf] %v1809
      %1874 = vst [vmem:[%s204 + $0x3c] sm:$0xf] %v1810
      %1875 = vst [vmem:[%s204 + $0x40] sm:$0xf] %v1811
      %1876 = vst [vmem:[%s204 + $0x44] sm:$0xf] %v1812
      %1877 = vst [vmem:[%s204 + $0x48] sm:$0xf] %v1813
      %1878 = vst [vmem:[%s204 + $0x4c] sm:$0xf] %v1814
      %1879 = vst [vmem:[%s204 + $0x50] sm:$0xf] %v1815
      %1880 = vst [vmem:[%s204 + $0x54] sm:$0xf] %v1816
      %1881 = vst [vmem:[%s204 + $0x58] sm:$0xf] %v1817
      %1882 = vst [vmem:[%s204 + $0x5c] sm:$0xf] %v1818
      %1883 = vst [vmem:[%s204 + $0x60] sm:$0xf] %v1819
      %1884 = vst [vmem:[%s204 + $0x64] sm:$0xf] %v1820
      %1885 = vst [vmem:[%s204 + $0x68] sm:$0xf] %v1821
      %1886 = vst [vmem:[%s204 + $0x6c] sm:$0xf] %v1822
      %1887 = vst [vmem:[%s204 + $0x70] sm:$0xf] %v1823
      %1888 = vst [vmem:[%s204 + $0x74] sm:$0xf] %v1824
      %1889 = vst [vmem:[%s204 + $0x78] sm:$0xf] %v1825
      %1890 = vst [vmem:[%s204 + $0x7c] sm:$0xf] %v1826
      %v1891 = vadd.f32 %v1699, %v1700
      %v1892 = vadd.f32 %v1891, %v1701
      %v1893 = vadd.f32 %v1892, %v1702
      %v1894 = vadd.f32 %v1893, %v1703
      %v1895 = vadd.f32 %v1894, %v1704
      %v1896 = vadd.f32 %v1895, %v1705
      %v1897 = vadd.f32 %v1896, %v1706
      %v1898 = vadd.f32 %v1897, %v1707
      %v1899 = vadd.f32 %v1898, %v1708
      %v1900 = vadd.f32 %v1899, %v1709
      %v1901 = vadd.f32 %v1900, %v1710
      %v1902 = vadd.f32 %v1901, %v1711
      %v1903 = vadd.f32 %v1902, %v1712
      %v1904 = vadd.f32 %v1903, %v1713
      %v1905 = vadd.f32 %v1904, %v1714
      %v1906 = vadd.f32 %v1905, %v1715
      %v1907 = vadd.f32 %v1906, %v1716
      %v1908 = vadd.f32 %v1907, %v1717
      %v1909 = vadd.f32 %v1908, %v1718
      %v1910 = vadd.f32 %v1909, %v1719
      %v1911 = vadd.f32 %v1910, %v1720
      %v1912 = vadd.f32 %v1911, %v1721
      %v1913 = vadd.f32 %v1912, %v1722
      %v1914 = vadd.f32 %v1913, %v1723
      %v1915 = vadd.f32 %v1914, %v1724
      %v1916 = vadd.f32 %v1915, %v1725
      %v1917 = vadd.f32 %v1916, %v1726
      %v1918 = vadd.f32 %v1917, %v1727
      %v1919 = vadd.f32 %v1918, %v1728
      %v1920 = vadd.f32 %v1919, %v1729
      %v1921 = vadd.f32 %v1920, %v1730
      %v1922 = vrot.slane %v1921, 4
      %v1923 = vadd.f32 %v1921, %v1922
      %v1924 = vrot.slane %v1923, 2
      %v1925 = vadd.f32 %v1923, %v1924
      %v1926 = vrot.slane %v1925, 1
      %v1927 = vadd.f32 %v1925, %v1926
      %1928 = vst [vmem:[%s208] sm:$0x1] %v1927
      %v1929 = vmul.f32 %v1699, %v1699
      %v1930 = vmul.f32 %v1700, %v1700
      %v1931 = vmul.f32 %v1701, %v1701
      %v1932 = vmul.f32 %v1702, %v1702
      %v1933 = vmul.f32 %v1703, %v1703
      %v1934 = vmul.f32 %v1704, %v1704
      %v1935 = vmul.f32 %v1705, %v1705
      %v1936 = vmul.f32 %v1706, %v1706
      %v1937 = vmul.f32 %v1707, %v1707
      %v1938 = vmul.f32 %v1708, %v1708
      %v1939 = vmul.f32 %v1709, %v1709
      %v1940 = vmul.f32 %v1710, %v1710
      %v1941 = vmul.f32 %v1711, %v1711
      %v1942 = vmul.f32 %v1712, %v1712
      %v1943 = vmul.f32 %v1713, %v1713
      %v1944 = vmul.f32 %v1714, %v1714
      %v1945 = vmul.f32 %v1715, %v1715
      %v1946 = vmul.f32 %v1716, %v1716
      %v1947 = vmul.f32 %v1717, %v1717
      %v1948 = vmul.f32 %v1718, %v1718
      %v1949 = vmul.f32 %v1719, %v1719
      %v1950 = vmul.f32 %v1720, %v1720
      %v1951 = vmul.f32 %v1721, %v1721
      %v1952 = vmul.f32 %v1722, %v1722
      %v1953 = vmul.f32 %v1723, %v1723
      %v1954 = vmul.f32 %v1724, %v1724
      %v1955 = vmul.f32 %v1725, %v1725
      %v1956 = vmul.f32 %v1726, %v1726
      %v1957 = vmul.f32 %v1727, %v1727
      %v1958 = vmul.f32 %v1728, %v1728
      %v1959 = vmul.f32 %v1729, %v1729
      %v1960 = vmul.f32 %v1730, %v1730
      %v1961 = vadd.f32 %v1929, %v1930
      %v1962 = vadd.f32 %v1961, %v1931
      %v1963 = vadd.f32 %v1962, %v1932
      %v1964 = vadd.f32 %v1963, %v1933
      %v1965 = vadd.f32 %v1964, %v1934
      %v1966 = vadd.f32 %v1965, %v1935
      %v1967 = vadd.f32 %v1966, %v1936
      %v1968 = vadd.f32 %v1967, %v1937
      %v1969 = vadd.f32 %v1968, %v1938
      %v1970 = vadd.f32 %v1969, %v1939
      %v1971 = vadd.f32 %v1970, %v1940
      %v1972 = vadd.f32 %v1971, %v1941
      %v1973 = vadd.f32 %v1972, %v1942
      %v1974 = vadd.f32 %v1973, %v1943
      %v1975 = vadd.f32 %v1974, %v1944
      %v1976 = vadd.f32 %v1975, %v1945
      %v1977 = vadd.f32 %v1976, %v1946
      %v1978 = vadd.f32 %v1977, %v1947
      %v1979 = vadd.f32 %v1978, %v1948
      %v1980 = vadd.f32 %v1979, %v1949
      %v1981 = vadd.f32 %v1980, %v1950
      %v1982 = vadd.f32 %v1981, %v1951
      %v1983 = vadd.f32 %v1982, %v1952
      %v1984 = vadd.f32 %v1983, %v1953
      %v1985 = vadd.f32 %v1984, %v1954
      %v1986 = vadd.f32 %v1985, %v1955
      %v1987 = vadd.f32 %v1986, %v1956
      %v1988 = vadd.f32 %v1987, %v1957
      %v1989 = vadd.f32 %v1988, %v1958
      %v1990 = vadd.f32 %v1989, %v1959
      %v1991 = vadd.f32 %v1990, %v1960
      %v1992 = vrot.slane %v1991, 4
      %v1993 = vadd.f32 %v1991, %v1992
      %v1994 = vrot.slane %v1993, 2
      %v1995 = vadd.f32 %v1993, %v1994
      %v1996 = vrot.slane %v1995, 1
      %v1997 = vadd.f32 %v1995, %v1996
      %1998 = vst [vmem:[%s208 + $0x1] sm:$0x1] %v1997
      %p1999 = scmp.lt.s32.totalorder %s16, 1
      %s2000 = scalar_select %p1999, %s16, 1
      %s2001 = smul.addr %s2000, 32
      %s2002 = smul.addr %s2001, 4
      %s2003 = scalar_lea.vmem %s3, %s2002
      %p2004 = scmp.lt.s32.totalorder %s16, 1
      %s2005 = scalar_select %p2004, %s16, 1
      %s2006 = smul.addr %s2005, 2
      %s2007 = scalar_lea.vmem %s4, %s2006
      // Predicated region
      $region33: #{down_block.3} parent=31 // pred_check
        %p2008 = pneg %p102
      $region34: #{down_block.3} parent=31 // pred_check_branch
        %2010 = sbr.rel (%p2008) target = $region36
      $region35: #{down_block.3} parent=31 // pred_region
        _
      $region36: #{down_block.3} parent=31 // pred_fallthru
        _
      // Predicated region
      $region37: #{down_block.3} parent=31 // pred_check
        %p2011 = pneg %p128
      $region38: #{down_block.3} parent=31 // pred_check_branch
        %2013 = sbr.rel (%p2011) target = $region40
      $region39: #{down_block.3} parent=31 // pred_region
        _
      $region40: #{down_block.3} parent=31 // pred_fallthru
        _
    $region32: #{down_block.3} parent=5 // pred_fallthru
      _
    %p2014 = scmp.le.s32.totalorder 2, %s11
    // Predicated region
    $region41: #{down_block.3} parent=5 // pred_check
      %p2015 = pneg %p2014
    $region42: #{down_block.3} parent=5 // pred_check_branch
      %2017 = sbr.rel (%p2015) target = $region44
    $region43: #{down_block.3} parent=5 // pred_region
      %s2018 = ssub.s32 %s11, 2
      // Predicated region
      $region45: #{down_block.3} parent=43 // pred_check
        %p2019 = pneg %p108
      $region46: #{down_block.3} parent=43 // pred_check_branch
        %2021 = sbr.rel (%p2019) target = $region48
      $region47: #{down_block.3} parent=43 // pred_region
        %p2022 = scmp.lt.s32.totalorder %s17, 1
        %s2023 = scalar_select %p2022, %s17, 1
        %s2024 = smul.addr %s2023, 32
        %s2025 = smul.addr %s2024, 4
        %s2026 = scalar_lea.vmem %s3, %s2025
      $region48: #{down_block.3} parent=43 // pred_fallthru
        _
      // Predicated region
      $region49: #{down_block.3} parent=43 // pred_check
        %p2027 = pneg %p134
      $region50: #{down_block.3} parent=43 // pred_check_branch
        %2029 = sbr.rel (%p2027) target = $region52
      $region51: #{down_block.3} parent=43 // pred_region
        %p2030 = scmp.lt.s32.totalorder %s17, 1
        %s2031 = scalar_select %p2030, %s17, 1
        %s2032 = smul.addr %s2031, 2
        %s2033 = scalar_lea.vmem %s4, %s2032
      $region52: #{down_block.3} parent=43 // pred_fallthru
        _
    $region44: #{down_block.3} parent=5 // pred_fallthru
      _
  $region6: #{down_block.3} parent=0 // loop_footer
    %s15 = sadd.s32 1, %s11
  $region7: #{down_block.3} parent=0 // loop_footer_branch
    %10 = sbr.rel target = $region3
  $region8: #{down_block.3} parent=0 // loop_exit
    _

// kernel: down_block.5
$region0: #{down_block.5}
  #allocation0 [shape = 'u32[]', space=smem, size = 0x4, offset = 0x4, fixed_abs, tag = 'smem constant byte address 0x4 - core index']
  #allocation1 [shape = 'u32[144,128]{1,0:T(1,128)}', space=vmem, size = 0x12000, scoped, tag = 'internal scratch']
  %s0 = inlined_call_operand.vmem [shape: bf16[2,16,16,128], index: 0, kind: input, shape index: {}]
  %s1 = inlined_call_operand.vmem [shape: f32[1,128], index: 1, kind: input, shape index: {}]
  %s2 = inlined_call_operand.vmem [shape: f32[1,128], index: 2, kind: input, shape index: {}]
  %s3 = inlined_call_operand.vmem [shape: bf16[2,16,16,128], index: 3, kind: output, shape index: {0}]
  %s4 = inlined_call_operand.vmem [shape: bf16[2,8,8,128], index: 4, kind: output, shape index: {1}]
  %5 = xla_tuple %s3, %s4
  %s6 = sld [smem:[#allocation0]]
  $region53: #{down_block.5} parent=0
    _
  %s8 = ssub.s32 1, %s6
  %s9 = scalar_select 0, %s8, %s6
  loop: start=0, step=1, limit=4
  $region2: #{down_block.5} parent=0 // loop_pre_header
    _
  $region3: #{down_block.5} parent=0 // loop_header
    %s11 = sphi 0, %s15
    %p12 = scmp.ge.s32.totalorder %s11, 4
    %s21 = sphi 0, %s23
    %s24 = sphi 0, %s21
    %s25 = sphi 0, %s24
    %s41 = sphi 0, %s25
    %s45 = sphi 0, %s45
    %s47 = sphi 0, %s45
    %s48 = sphi 0, %s47
    %s62 = sphi 0, %s48
    %s66 = sphi 0, %s66
    %s68 = sphi 0, %s66
    %s69 = sphi 0, %s68
    %s83 = sphi 0, %s69
    %s89 = sphi 0, %s91
    %s92 = sphi 0, %s89
    %s93 = sphi 0, %s92
    %s109 = sphi 0, %s93
    %s115 = sphi 0, %s117
    %s118 = sphi 0, %s115
    %s119 = sphi 0, %s118
    %s135 = sphi 0, %s119
  $region4: #{down_block.5} parent=0 // loop_header_branch
    %14 = sbr.rel (%p12) target = $region8
  $region5: #{down_block.5} parent=0 // loop_body
    %s16 = ssub.s32 %s11, 1
    %s17 = ssub.s32 %s11, 2
    %s18 = sadd.s32 %s11, 1
    %s19 = ssub.s32 %s11, %s18
    %p20 = scmp.eq.s32.totalorder %s19, 0
    %s22 = sadd.s32 %s21, 1
    %s23 = scalar_select %p20, %s21, %s22
    %p26 = pneg %p20
    %p27 = scmp.eq.s32.totalorder %s11, 1
    %p28 = por %p26, %p27
    %p29 = scmp.ne.s32.totalorder %s21, %s24
    %p30 = scmp.eq.s32.totalorder %s11, 0
    %p31 = por %p29, %p30
    %p32 = scmp.ne.s32.totalorder %s21, %s24
    %p33 = scmp.eq.s32.totalorder %s16, 1
    %p34 = por %p32, %p33
    %p35 = scmp.ne.s32.totalorder %s24, %s25
    %p36 = scmp.eq.s32.totalorder %s16, 0
    %p37 = por %p35, %p36
    %p38 = scmp.ne.s32.totalorder %s24, %s25
    %p39 = scmp.eq.s32.totalorder %s17, 1
    %p40 = por %p38, %p39
    %p42 = scmp.ne.s32.totalorder %s25, %s41
    %p43 = scmp.eq.s32.totalorder %s17, 0
    %p44 = por %p42, %p43
    %s46 = sadd.s32 %s45, 1
    %p49 = scmp.eq.s32.totalorder %s11, 1
    %p50 = scmp.ne.s32.totalorder %s45, %s47
    %p51 = scmp.eq.s32.totalorder %s11, 0
    %p52 = por %p50, %p51
    %p53 = scmp.ne.s32.totalorder %s45, %s47
    %p54 = scmp.eq.s32.totalorder %s16, 1
    %p55 = por %p53, %p54
    %p56 = scmp.ne.s32.totalorder %s47, %s48
    %p57 = scmp.eq.s32.totalorder %s16, 0
    %p58 = por %p56, %p57
    %p59 = scmp.ne.s32.totalorder %s47, %s48
    %p60 = scmp.eq.s32.totalorder %s17, 1
    %p61 = por %p59, %p60
    %p63 = scmp.ne.s32.totalorder %s48, %s62
    %p64 = scmp.eq.s32.totalorder %s17, 0
    %p65 = por %p63, %p64
    %s67 = sadd.s32 %s66, 1
    %p70 = scmp.eq.s32.totalorder %s11, 1
    %p71 = scmp.ne.s32.totalorder %s66, %s68
    %p72 = scmp.eq.s32.totalorder %s11, 0
    %p73 = por %p71, %p72
    %p74 = scmp.ne.s32.totalorder %s66, %s68
    %p75 = scmp.eq.s32.totalorder %s16, 1
    %p76 = por %p74, %p75
    %p77 = scmp.ne.s32.totalorder %s68, %s69
    %p78 = scmp.eq.s32.totalorder %s16, 0
    %p79 = por %p77, %p78
    %p80 = scmp.ne.s32.totalorder %s68, %s69
    %p81 = scmp.eq.s32.totalorder %s17, 1
    %p82 = por %p80, %p81
    %p84 = scmp.ne.s32.totalorder %s69, %s83
    %p85 = scmp.eq.s32.totalorder %s17, 0
    %p86 = por %p84, %p85
    %s87 = ssub.s32 %s11, %s18
    %p88 = scmp.eq.s32.totalorder %s87, 0
    %s90 = sadd.s32 %s89, 1
    %s91 = scalar_select %p88, %s89, %s90
    %p94 = pneg %p88
    %p95 = scmp.eq.s32.totalorder %s11, 1
    %p96 = por %p94, %p95
    %p97 = scmp.ne.s32.totalorder %s89, %s92
    %p98 = scmp.eq.s32.totalorder %s11, 0
    %p99 = por %p97, %p98
    %p100 = scmp.ne.s32.totalorder %s89, %s92
    %p101 = scmp.eq.s32.totalorder %s16, 1
    %p102 = por %p100, %p101
    %p103 = scmp.ne.s32.totalorder %s92, %s93
    %p104 = scmp.eq.s32.totalorder %s16, 0
    %p105 = por %p103, %p104
    %p106 = scmp.ne.s32.totalorder %s92, %s93
    %p107 = scmp.eq.s32.totalorder %s17, 1
    %p108 = por %p106, %p107
    %p110 = scmp.ne.s32.totalorder %s93, %s109
    %p111 = scmp.eq.s32.totalorder %s17, 0
    %p112 = por %p110, %p111
    %s113 = ssub.s32 %s11, %s18
    %p114 = scmp.eq.s32.totalorder %s113, 0
    %s116 = sadd.s32 %s115, 1
    %s117 = scalar_select %p114, %s115, %s116
    %p120 = pneg %p114
    %p121 = scmp.eq.s32.totalorder %s11, 1
    %p122 = por %p120, %p121
    %p123 = scmp.ne.s32.totalorder %s115, %s118
    %p124 = scmp.eq.s32.totalorder %s11, 0
    %p125 = por %p123, %p124
    %p126 = scmp.ne.s32.totalorder %s115, %s118
    %p127 = scmp.eq.s32.totalorder %s16, 1
    %p128 = por %p126, %p127
    %p129 = scmp.ne.s32.totalorder %s118, %s119
    %p130 = scmp.eq.s32.totalorder %s16, 0
    %p131 = por %p129, %p130
    %p132 = scmp.ne.s32.totalorder %s118, %s119
    %p133 = scmp.eq.s32.totalorder %s17, 1
    %p134 = por %p132, %p133
    %p136 = scmp.ne.s32.totalorder %s119, %s135
    %p137 = scmp.eq.s32.totalorder %s17, 0
    %p138 = por %p136, %p137
    %p139 = scmp.le.s32.totalorder 1, %s11
    %p140 = scmp.lt.s32.totalorder %s11, 3
    %p141 = pnand %p139, %p140
    %p142 = pneg %p141
    // Predicated region
    $region9: #{down_block.5} parent=5 // pred_check
      _
    $region10: #{down_block.5} parent=5 // pred_check_branch
      %144 = sbr.rel (%p141) target = $region12
    $region11: #{down_block.5} parent=5 // pred_region
      %s145 = ssub.s32 %s11, 1
      // Predicated region
      $region13: #{down_block.5} parent=11 // pred_check
        %p146 = pneg %p58
      $region14: #{down_block.5} parent=11 // pred_check_branch
        %148 = sbr.rel (%p146) target = $region16
      $region15: #{down_block.5} parent=11 // pred_region
        _
      $region16: #{down_block.5} parent=11 // pred_fallthru
        _
      // Predicated region
      $region17: #{down_block.5} parent=11 // pred_check
        %p149 = pneg %p79
      $region18: #{down_block.5} parent=11 // pred_check_branch
        %151 = sbr.rel (%p149) target = $region20
      $region19: #{down_block.5} parent=11 // pred_region
        _
      $region20: #{down_block.5} parent=11 // pred_fallthru
        _
    $region12: #{down_block.5} parent=5 // pred_fallthru
      _
    %p152 = scmp.lt.s32.totalorder %s11, 2
    // Predicated region
    $region21: #{down_block.5} parent=5 // pred_check
      %p153 = pneg %p152
    $region22: #{down_block.5} parent=5 // pred_check_branch
      %155 = sbr.rel (%p153) target = $region24
    $region23: #{down_block.5} parent=5 // pred_region
      // Predicated region
      $region25: #{down_block.5} parent=23 // pred_check
        %p156 = pneg %p31
      $region26: #{down_block.5} parent=23 // pred_check_branch
        %158 = sbr.rel (%p156) target = $region28
      $region27: #{down_block.5} parent=23 // pred_region
        %p159 = scmp.lt.s32.totalorder %s11, 1
        %s160 = scalar_select %p159, %s11, 1
        %s161 = smul.addr %s160, 32
        %s162 = smul.addr %s161, 4
        %s163 = scalar_lea.vmem %s0, %s162
      $region28: #{down_block.5} parent=23 // pred_fallthru
        _
    $region24: #{down_block.5} parent=5 // pred_fallthru
      _
    %p164 = scmp.le.s32.totalorder 1, %s11
    %p165 = scmp.lt.s32.totalorder %s11, 3
    %p166 = pnand %p164, %p165
    %p167 = pneg %p166
    // Predicated region
    $region29: #{down_block.5} parent=5 // pred_check
      _
    $region30: #{down_block.5} parent=5 // pred_check_branch
      %169 = sbr.rel (%p166) target = $region32
    $region31: #{down_block.5} parent=5 // pred_region
      %s170 = ssub.s32 %s11, 1
      %p171 = scmp.lt.s32.totalorder %s16, 1
      %s172 = scalar_select %p171, %s16, 1
      %s173 = smul.addr %s172, 32
      %s174 = smul.addr %s173, 4
      %s175 = scalar_lea.vmem %s0, %s174
      %p176 = pneg %p37
      %p177 = pneg %p34
      %p178 = pneg %p58
      %p179 = pneg %p55
      %p180 = pneg %p79
      %p181 = pneg %p76
      %p182 = pneg %p105
      %p183 = pneg %p102
      %p184 = scmp.lt.s32.totalorder %s16, 1
      %s185 = scalar_select %p184, %s16, 1
      %s186 = smul.addr %s185, 32
      %s187 = smul.addr %s186, 4
      %s188 = scalar_lea.vmem %s3, %s187
      %p189 = pneg %p131
      %p190 = pneg %p128
      %p191 = scmp.lt.s32.totalorder %s16, 1
      %s192 = scalar_select %p191, %s16, 1
      %s193 = smul.addr %s192, 8
      %s194 = smul.addr %s193, 4
      %s195 = scalar_lea.vmem %s4, %s194
      %p196 = scmp.lt.s32.totalorder %s16, 1
      %s197 = scalar_select %p196, %s16, 1
      %s198 = smul.addr %s197, 32
      %s199 = smul.addr %s198, 4
      %s200 = scalar_lea.vmem %s0, %s199
      %p201 = scmp.lt.s32.totalorder %s16, 1
      %s202 = scalar_select %p201, %s16, 1
      %s203 = smul.addr %s202, 32
      %s204 = smul.addr %s203, 4
      %s205 = scalar_lea.vmem %s3, %s204
      %p206 = scmp.lt.s32.totalorder %s16, 1
      %s207 = scalar_select %p206, %s16, 1
      %s208 = smul.addr %s207, 8
      %s209 = smul.addr %s208, 4
      %s210 = scalar_lea.vmem %s4, %s209
      %v211 = vld [vmem:[%s200] sm:$0xf]
      %v212 = vld [vmem:[%s200 + $0x4] sm:$0xf]
      %v213 = vld [vmem:[%s200 + $0x8] sm:$0xf]
      %v214 = vld [vmem:[%s200 + $0xc] sm:$0xf]
      %v215 = vld [vmem:[%s200 + $0x10] sm:$0xf]
      %v216 = vld [vmem:[%s200 + $0x14] sm:$0xf]
      %v217 = vld [vmem:[%s200 + $0x18] sm:$0xf]
      %v218 = vld [vmem:[%s200 + $0x1c] sm:$0xf]
      %v219 = vld [vmem:[%s200 + $0x20] sm:$0xf]
      %v220 = vld [vmem:[%s200 + $0x24] sm:$0xf]
      %v221 = vld [vmem:[%s200 + $0x28] sm:$0xf]
      %v222 = vld [vmem:[%s200 + $0x2c] sm:$0xf]
      %v223 = vld [vmem:[%s200 + $0x30] sm:$0xf]
      %v224 = vld [vmem:[%s200 + $0x34] sm:$0xf]
      %v225 = vld [vmem:[%s200 + $0x38] sm:$0xf]
      %v226 = vld [vmem:[%s200 + $0x3c] sm:$0xf]
      %v227 = vld [vmem:[%s200 + $0x40] sm:$0xf]
      %v228 = vld [vmem:[%s200 + $0x44] sm:$0xf]
      %v229 = vld [vmem:[%s200 + $0x48] sm:$0xf]
      %v230 = vld [vmem:[%s200 + $0x4c] sm:$0xf]
      %v231 = vld [vmem:[%s200 + $0x50] sm:$0xf]
      %v232 = vld [vmem:[%s200 + $0x54] sm:$0xf]
      %v233 = vld [vmem:[%s200 + $0x58] sm:$0xf]
      %v234 = vld [vmem:[%s200 + $0x5c] sm:$0xf]
      %v235 = vld [vmem:[%s200 + $0x60] sm:$0xf]
      %v236 = vld [vmem:[%s200 + $0x64] sm:$0xf]
      %v237 = vld [vmem:[%s200 + $0x68] sm:$0xf]
      %v238 = vld [vmem:[%s200 + $0x6c] sm:$0xf]
      %v239 = vld [vmem:[%s200 + $0x70] sm:$0xf]
      %v240 = vld [vmem:[%s200 + $0x74] sm:$0xf]
      %v241 = vld [vmem:[%s200 + $0x78] sm:$0xf]
      %v242 = vld [vmem:[%s200 + $0x7c] sm:$0xf]
      %v243 = vunpack.c.l.bf16 %v211
      %v244 = vunpack.c.l.bf16 %v212
      %v245 = vunpack.c.l.bf16 %v213
      %v246 = vunpack.c.l.bf16 %v214
      %v247 = vunpack.c.l.bf16 %v215
      %v248 = vunpack.c.l.bf16 %v216
      %v249 = vunpack.c.l.bf16 %v217
      %v250 = vunpack.c.l.bf16 %v218
      %v251 = vunpack.c.l.bf16 %v219
      %v252 = vunpack.c.l.bf16 %v220
      %v253 = vunpack.c.l.bf16 %v221
      %v254 = vunpack.c.l.bf16 %v222
      %v255 = vunpack.c.l.bf16 %v223
      %v256 = vunpack.c.l.bf16 %v224
      %v257 = vunpack.c.l.bf16 %v225
      %v258 = vunpack.c.l.bf16 %v226
      %v259 = vunpack.c.l.bf16 %v227
      %v260 = vunpack.c.l.bf16 %v228
      %v261 = vunpack.c.l.bf16 %v229
      %v262 = vunpack.c.l.bf16 %v230
      %v263 = vunpack.c.l.bf16 %v231
      %v264 = vunpack.c.l.bf16 %v232
      %v265 = vunpack.c.l.bf16 %v233
      %v266 = vunpack.c.l.bf16 %v234
      %v267 = vunpack.c.l.bf16 %v235
      %v268 = vunpack.c.l.bf16 %v236
      %v269 = vunpack.c.l.bf16 %v237
      %v270 = vunpack.c.l.bf16 %v238
      %v271 = vunpack.c.l.bf16 %v239
      %v272 = vunpack.c.l.bf16 %v240
      %v273 = vunpack.c.l.bf16 %v241
      %v274 = vunpack.c.l.bf16 %v242
      %v275 = vld [vmem:[%s1] sm:$0x1]
      %v277 = vlaneseq
      %v278 = vshrl.u32 %v277, 7
      %v279 = vsub.s32 0, %v278
      %v280 = vrot.slane %v275, %v279
      %v282 = vmul.f32 %v243, %v280
      %v283 = vmul.f32 %v244, %v280
      %v284 = vmul.f32 %v245, %v280
      %v285 = vmul.f32 %v246, %v280
      %v286 = vmul.f32 %v247, %v280
      %v287 = vmul.f32 %v248, %v280
      %v288 = vmul.f32 %v249, %v280
      %v289 = vmul.f32 %v250, %v280
      %v290 = vmul.f32 %v251, %v280
      %v291 = vmul.f32 %v252, %v280
      %v292 = vmul.f32 %v253, %v280
      %v293 = vmul.f32 %v254, %v280
      %v294 = vmul.f32 %v255, %v280
      %v295 = vmul.f32 %v256, %v280
      %v296 = vmul.f32 %v257, %v280
      %v297 = vmul.f32 %v258, %v280
      %v298 = vmul.f32 %v259, %v280
      %v299 = vmul.f32 %v260, %v280
      %v300 = vmul.f32 %v261, %v280
      %v301 = vmul.f32 %v262, %v280
      %v302 = vmul.f32 %v263, %v280
      %v303 = vmul.f32 %v264, %v280
      %v304 = vmul.f32 %v265, %v280
      %v305 = vmul.f32 %v266, %v280
      %v306 = vmul.f32 %v267, %v280
      %v307 = vmul.f32 %v268, %v280
      %v308 = vmul.f32 %v269, %v280
      %v309 = vmul.f32 %v270, %v280
      %v310 = vmul.f32 %v271, %v280
      %v311 = vmul.f32 %v272, %v280
      %v312 = vmul.f32 %v273, %v280
      %v313 = vmul.f32 %v274, %v280
      %v314 = vld [vmem:[%s2] sm:$0x1]
      %v316 = vlaneseq
      %v317 = vshrl.u32 %v316, 7
      %v318 = vsub.s32 0, %v317
      %v319 = vrot.slane %v314, %v318
      %v321 = vadd.f32 %v282, %v319
      %v322 = vadd.f32 %v283, %v319
      %v323 = vadd.f32 %v284, %v319
      %v324 = vadd.f32 %v285, %v319
      %v325 = vadd.f32 %v286, %v319
      %v326 = vadd.f32 %v287, %v319
      %v327 = vadd.f32 %v288, %v319
      %v328 = vadd.f32 %v289, %v319
      %v329 = vadd.f32 %v290, %v319
      %v330 = vadd.f32 %v291, %v319
      %v331 = vadd.f32 %v292, %v319
      %v332 = vadd.f32 %v293, %v319
      %v333 = vadd.f32 %v294, %v319
      %v334 = vadd.f32 %v295, %v319
      %v335 = vadd.f32 %v296, %v319
      %v336 = vadd.f32 %v297, %v319
      %v337 = vadd.f32 %v298, %v319
      %v338 = vadd.f32 %v299, %v319
      %v339 = vadd.f32 %v300, %v319
      %v340 = vadd.f32 %v301, %v319
      %v341 = vadd.f32 %v302, %v319
      %v342 = vadd.f32 %v303, %v319
      %v343 = vadd.f32 %v304, %v319
      %v344 = vadd.f32 %v305, %v319
      %v345 = vadd.f32 %v306, %v319
      %v346 = vadd.f32 %v307, %v319
      %v347 = vadd.f32 %v308, %v319
      %v348 = vadd.f32 %v309, %v319
      %v349 = vadd.f32 %v310, %v319
      %v350 = vadd.f32 %v311, %v319
      %v351 = vadd.f32 %v312, %v319
      %v352 = vadd.f32 %v313, %v319
      %v353 = vmax.f32 %v321, 0.0
      %v354 = vmax.f32 %v322, 0.0
      %v355 = vmax.f32 %v323, 0.0
      %v356 = vmax.f32 %v324, 0.0
      %v357 = vmax.f32 %v325, 0.0
      %v358 = vmax.f32 %v326, 0.0
      %v359 = vmax.f32 %v327, 0.0
      %v360 = vmax.f32 %v328, 0.0
      %v361 = vmax.f32 %v329, 0.0
      %v362 = vmax.f32 %v330, 0.0
      %v363 = vmax.f32 %v331, 0.0
      %v364 = vmax.f32 %v332, 0.0
      %v365 = vmax.f32 %v333, 0.0
      %v366 = vmax.f32 %v334, 0.0
      %v367 = vmax.f32 %v335, 0.0
      %v368 = vmax.f32 %v336, 0.0
      %v369 = vmax.f32 %v337, 0.0
      %v370 = vmax.f32 %v338, 0.0
      %v371 = vmax.f32 %v339, 0.0
      %v372 = vmax.f32 %v340, 0.0
      %v373 = vmax.f32 %v341, 0.0
      %v374 = vmax.f32 %v342, 0.0
      %v375 = vmax.f32 %v343, 0.0
      %v376 = vmax.f32 %v344, 0.0
      %v377 = vmax.f32 %v345, 0.0
      %v378 = vmax.f32 %v346, 0.0
      %v379 = vmax.f32 %v347, 0.0
      %v380 = vmax.f32 %v348, 0.0
      %v381 = vmax.f32 %v349, 0.0
      %v382 = vmax.f32 %v350, 0.0
      %v383 = vmax.f32 %v351, 0.0
      %v384 = vmax.f32 %v352, 0.0
      %v385 = vpack.c.bf16 %v354, %v353
      %v386 = vpack.c.bf16 %v356, %v355
      %v387 = vpack.c.bf16 %v358, %v357
      %v388 = vpack.c.bf16 %v360, %v359
      %v389 = vpack.c.bf16 %v362, %v361
      %v390 = vpack.c.bf16 %v364, %v363
      %v391 = vpack.c.bf16 %v366, %v365
      %v392 = vpack.c.bf16 %v368, %v367
      %v393 = vpack.c.bf16 %v370, %v369
      %v394 = vpack.c.bf16 %v372, %v371
      %v395 = vpack.c.bf16 %v374, %v373
      %v396 = vpack.c.bf16 %v376, %v375
      %v397 = vpack.c.bf16 %v378, %v377
      %v398 = vpack.c.bf16 %v380, %v379
      %v399 = vpack.c.bf16 %v382, %v381
      %v400 = vpack.c.bf16 %v384, %v383
      %v417 = vunpack.c.l.b16 %v385
      %v418 = vunpack.c.h.b16 %v385
      %v419 = vunpack.c.l.b16 %v386
      %v420 = vunpack.c.h.b16 %v386
      %v421 = vunpack.c.l.b16 %v387
      %v422 = vunpack.c.h.b16 %v387
      %v423 = vunpack.c.l.b16 %v388
      %v424 = vunpack.c.h.b16 %v388
      %v425 = vunpack.c.l.b16 %v389
      %v426 = vunpack.c.h.b16 %v389
      %v427 = vunpack.c.l.b16 %v390
      %v428 = vunpack.c.h.b16 %v390
      %v429 = vunpack.c.l.b16 %v391
      %v430 = vunpack.c.h.b16 %v391
      %v431 = vunpack.c.l.b16 %v392
      %v432 = vunpack.c.h.b16 %v392
      %v433 = vunpack.c.l.b16 %v393
      %v434 = vunpack.c.h.b16 %v393
      %v435 = vunpack.c.l.b16 %v394
      %v436 = vunpack.c.h.b16 %v394
      %v437 = vunpack.c.l.b16 %v395
      %v438 = vunpack.c.h.b16 %v395
      %v439 = vunpack.c.l.b16 %v396
      %v440 = vunpack.c.h.b16 %v396
      %v441 = vunpack.c.l.b16 %v397
      %v442 = vunpack.c.h.b16 %v397
      %v443 = vunpack.c.l.b16 %v398
      %v444 = vunpack.c.h.b16 %v398
      %v445 = vunpack.c.l.b16 %v399
      %v446 = vunpack.c.h.b16 %v399
      %v447 = vunpack.c.l.b16 %v400
      %v448 = vunpack.c.h.b16 %v400
      %v449 = vpack.c.b16 %v417, %v417
      %v450 = vpack.c.b16 %v418, %v418
      %v451 = vpack.c.b16 %v419, %v419
      %v452 = vpack.c.b16 %v420, %v420
      %v453 = vpack.c.b16 %v421, %v421
      %v454 = vpack.c.b16 %v422, %v422
      %v455 = vpack.c.b16 %v423, %v423
      %v456 = vpack.c.b16 %v424, %v424
      %v457 = vpack.c.b16 %v425, %v425
      %v458 = vpack.c.b16 %v426, %v426
      %v459 = vpack.c.b16 %v427, %v427
      %v460 = vpack.c.b16 %v428, %v428
      %v461 = vpack.c.b16 %v429, %v429
      %v462 = vpack.c.b16 %v430, %v430
      %v463 = vpack.c.b16 %v431, %v431
      %v464 = vpack.c.b16 %v432, %v432
      %v465 = vpack.c.b16 %v433, %v433
      %v466 = vpack.c.b16 %v434, %v434
      %v467 = vpack.c.b16 %v435, %v435
      %v468 = vpack.c.b16 %v436, %v436
      %v469 = vpack.c.b16 %v437, %v437
      %v470 = vpack.c.b16 %v438, %v438
      %v471 = vpack.c.b16 %v439, %v439
      %v472 = vpack.c.b16 %v440, %v440
      %v473 = vpack.c.b16 %v441, %v441
      %v474 = vpack.c.b16 %v442, %v442
      %v475 = vpack.c.b16 %v443, %v443
      %v476 = vpack.c.b16 %v444, %v444
      %v477 = vpack.c.b16 %v445, %v445
      %v478 = vpack.c.b16 %v446, %v446
      %v479 = vpack.c.b16 %v447, %v447
      %v480 = vpack.c.b16 %v448, %v448
      %513 = vst [vmem:[%s205] sm:$0xf] %v449
      %514 = vst [vmem:[%s205 + $0x4] sm:$0xf] %v450
      %515 = vst [vmem:[%s205 + $0x8] sm:$0xf] %v451
      %516 = vst [vmem:[%s205 + $0xc] sm:$0xf] %v452
      %517 = vst [vmem:[%s205 + $0x10] sm:$0xf] %v453
      %518 = vst [vmem:[%s205 + $0x14] sm:$0xf] %v454
      %519 = vst [vmem:[%s205 + $0x18] sm:$0xf] %v455
      %520 = vst [vmem:[%s205 + $0x1c] sm:$0xf] %v456
      %521 = vst [vmem:[%s205 + $0x20] sm:$0xf] %v457
      %522 = vst [vmem:[%s205 + $0x24] sm:$0xf] %v458
      %523 = vst [vmem:[%s205 + $0x28] sm:$0xf] %v459
      %524 = vst [vmem:[%s205 + $0x2c] sm:$0xf] %v460
      %525 = vst [vmem:[%s205 + $0x30] sm:$0xf] %v461
      %526 = vst [vmem:[%s205 + $0x34] sm:$0xf] %v462
      %527 = vst [vmem:[%s205 + $0x38] sm:$0xf] %v463
      %528 = vst [vmem:[%s205 + $0x3c] sm:$0xf] %v464
      %529 = vst [vmem:[%s205 + $0x40] sm:$0xf] %v465
      %530 = vst [vmem:[%s205 + $0x44] sm:$0xf] %v466
      %531 = vst [vmem:[%s205 + $0x48] sm:$0xf] %v467
      %532 = vst [vmem:[%s205 + $0x4c] sm:$0xf] %v468
      %533 = vst [vmem:[%s205 + $0x50] sm:$0xf] %v469
      %534 = vst [vmem:[%s205 + $0x54] sm:$0xf] %v470
      %535 = vst [vmem:[%s205 + $0x58] sm:$0xf] %v471
      %536 = vst [vmem:[%s205 + $0x5c] sm:$0xf] %v472
      %537 = vst [vmem:[%s205 + $0x60] sm:$0xf] %v473
      %538 = vst [vmem:[%s205 + $0x64] sm:$0xf] %v474
      %539 = vst [vmem:[%s205 + $0x68] sm:$0xf] %v475
      %540 = vst [vmem:[%s205 + $0x6c] sm:$0xf] %v476
      %541 = vst [vmem:[%s205 + $0x70] sm:$0xf] %v477
      %542 = vst [vmem:[%s205 + $0x74] sm:$0xf] %v478
      %543 = vst [vmem:[%s205 + $0x78] sm:$0xf] %v479
      %544 = vst [vmem:[%s205 + $0x7c] sm:$0xf] %v480
      %v545 = vmax.f32 %v353, %v355
      %v546 = vmax.f32 %v354, %v356
      %v547 = vmax.f32 %v357, %v359
      %v548 = vmax.f32 %v358, %v360
      %v549 = vmax.f32 %v361, %v363
      %v550 = vmax.f32 %v362, %v364
      %v551 = vmax.f32 %v365, %v367
      %v552 = vmax.f32 %v366, %v368
      %v553 = vmax.f32 %v369, %v371
      %v554 = vmax.f32 %v370, %v372
      %v555 = vmax.f32 %v373, %v375
      %v556 = vmax.f32 %v374, %v376
      %v557 = vmax.f32 %v377, %v379
      %v558 = vmax.f32 %v378, %v380
      %v559 = vmax.f32 %v381, %v383
      %v560 = vmax.f32 %v382, %v384
      %v577 = vcombine.high %v545, %v545
      %v579 = vunpack.c.l.s4 1983009808
      %v580 = vunpack.c.0.s8 %v579
      %v581 = vlaneseq
      %v582 = vshrl.u32 %v581, 7
      %v583 = vsub.s32 %v580, %v582
      %v584 = vrot.slane %v545, %v583
      %v586 = vunpack.c.l.s4 1983009808
      %v587 = vunpack.c.0.s8 %v586
      %v588 = vlaneseq
      %v589 = vshrl.u32 %v588, 7
      %v590 = vsub.s32 %v587, %v589
      %v591 = vrot.slane %v577, %v590
      %v592 = vcombine.high %v584, %v584
      %v593 = vcombine.high %v591, %v591
      %v594 = vcombine.high %v546, %v546
      %v596 = vunpack.c.l.s4 1983009808
      %v597 = vunpack.c.0.s8 %v596
      %v598 = vlaneseq
      %v599 = vshrl.u32 %v598, 7
      %v600 = vsub.s32 %v597, %v599
      %v601 = vrot.slane %v546, %v600
      %v603 = vunpack.c.l.s4 1983009808
      %v604 = vunpack.c.0.s8 %v603
      %v605 = vlaneseq
      %v606 = vshrl.u32 %v605, 7
      %v607 = vsub.s32 %v604, %v606
      %v608 = vrot.slane %v594, %v607
      %v609 = vcombine.high %v601, %v601
      %v610 = vcombine.high %v608, %v608
      %v611 = vcombine.high %v547, %v547
      %v613 = vunpack.c.l.s4 1983009808
      %v614 = vunpack.c.0.s8 %v613
      %v615 = vlaneseq
      %v616 = vshrl.u32 %v615, 7
      %v617 = vsub.s32 %v614, %v616
      %v618 = vrot.slane %v547, %v617
      %v620 = vunpack.c.l.s4 1983009808
      %v621 = vunpack.c.0.s8 %v620
      %v622 = vlaneseq
      %v623 = vshrl.u32 %v622, 7
      %v624 = vsub.s32 %v621, %v623
      %v625 = vrot.slane %v611, %v624
      %v626 = vcombine.high %v618, %v618
      %v627 = vcombine.high %v625, %v625
      %v628 = vcombine.high %v548, %v548
      %v630 = vunpack.c.l.s4 1983009808
      %v631 = vunpack.c.0.s8 %v630
      %v632 = vlaneseq
      %v633 = vshrl.u32 %v632, 7
      %v634 = vsub.s32 %v631, %v633
      %v635 = vrot.slane %v548, %v634
      %v637 = vunpack.c.l.s4 1983009808
      %v638 = vunpack.c.0.s8 %v637
      %v639 = vlaneseq
      %v640 = vshrl.u32 %v639, 7
      %v641 = vsub.s32 %v638, %v640
      %v642 = vrot.slane %v628, %v641
      %v643 = vcombine.high %v635, %v635
      %v644 = vcombine.high %v642, %v642
      %v645 = vcombine.high %v549, %v549
      %v647 = vunpack.c.l.s4 1983009808
      %v648 = vunpack.c.0.s8 %v647
      %v649 = vlaneseq
      %v650 = vshrl.u32 %v649, 7
      %v651 = vsub.s32 %v648, %v650
      %v652 = vrot.slane %v549, %v651
      %v654 = vunpack.c.l.s4 1983009808
      %v655 = vunpack.c.0.s8 %v654
      %v656 = vlaneseq
      %v657 = vshrl.u32 %v656, 7
      %v658 = vsub.s32 %v655, %v657
      %v659 = vrot.slane %v645, %v658
      %v660 = vcombine.high %v652, %v652
      %v661 = vcombine.high %v659, %v659
      %v662 = vcombine.high %v550, %v550
      %v664 = vunpack.c.l.s4 1983009808
      %v665 = vunpack.c.0.s8 %v664
      %v666 = vlaneseq
      %v667 = vshrl.u32 %v666, 7
      %v668 = vsub.s32 %v665, %v667
      %v669 = vrot.slane %v550, %v668
      %v671 = vunpack.c.l.s4 1983009808
      %v672 = vunpack.c.0.s8 %v671
      %v673 = vlaneseq
      %v674 = vshrl.u32 %v673, 7
      %v675 = vsub.s32 %v672, %v674
      %v676 = vrot.slane %v662, %v675
      %v677 = vcombine.high %v669, %v669
      %v678 = vcombine.high %v676, %v676
      %v679 = vcombine.high %v551, %v551
      %v681 = vunpack.c.l.s4 1983009808
      %v682 = vunpack.c.0.s8 %v681
      %v683 = vlaneseq
      %v684 = vshrl.u32 %v683, 7
      %v685 = vsub.s32 %v682, %v684
      %v686 = vrot.slane %v551, %v685
      %v688 = vunpack.c.l.s4 1983009808
      %v689 = vunpack.c.0.s8 %v688
      %v690 = vlaneseq
      %v691 = vshrl.u32 %v690, 7
      %v692 = vsub.s32 %v689, %v691
      %v693 = vrot.slane %v679, %v692
      %v694 = vcombine.high %v686, %v686
      %v695 = vcombine.high %v693, %v693
      %v696 = vcombine.high %v552, %v552
      %v698 = vunpack.c.l.s4 1983009808
      %v699 = vunpack.c.0.s8 %v698
      %v700 = vlaneseq
      %v701 = vshrl.u32 %v700, 7
      %v702 = vsub.s32 %v699, %v701
      %v703 = vrot.slane %v552, %v702
      %v705 = vunpack.c.l.s4 1983009808
      %v706 = vunpack.c.0.s8 %v705
      %v707 = vlaneseq
      %v708 = vshrl.u32 %v707, 7
      %v709 = vsub.s32 %v706, %v708
      %v710 = vrot.slane %v696, %v709
      %v711 = vcombine.high %v703, %v703
      %v712 = vcombine.high %v710, %v710
      %v713 = vcombine.high %v553, %v553
      %v715 = vunpack.c.l.s4 1983009808
      %v716 = vunpack.c.0.s8 %v715
      %v717 = vlaneseq
      %v718 = vshrl.u32 %v717, 7
      %v719 = vsub.s32 %v716, %v718
      %v720 = vrot.slane %v553, %v719
      %v722 = vunpack.c.l.s4 1983009808
      %v723 = vunpack.c.0.s8 %v722
      %v724 = vlaneseq
      %v725 = vshrl.u32 %v724, 7
      %v726 = vsub.s32 %v723, %v725
      %v727 = vrot.slane %v713, %v726
      %v728 = vcombine.high %v720, %v720
      %v729 = vcombine.high %v727, %v727
      %v730 = vcombine.high %v554, %v554
      %v732 = vunpack.c.l.s4 1983009808
      %v733 = vunpack.c.0.s8 %v732
      %v734 = vlaneseq
      %v735 = vshrl.u32 %v734, 7
      %v736 = vsub.s32 %v733, %v735
      %v737 = vrot.slane %v554, %v736
      %v739 = vunpack.c.l.s4 1983009808
      %v740 = vunpack.c.0.s8 %v739
      %v741 = vlaneseq
      %v742 = vshrl.u32 %v741, 7
      %v743 = vsub.s32 %v740, %v742
      %v744 = vrot.slane %v730, %v743
      %v745 = vcombine.high %v737, %v737
      %v746 = vcombine.high %v744, %v744
      %v747 = vcombine.high %v555, %v555
      %v749 = vunpack.c.l.s4 1983009808
      %v750 = vunpack.c.0.s8 %v749
      %v751 = vlaneseq
      %v752 = vshrl.u32 %v751, 7
      %v753 = vsub.s32 %v750, %v752
      %v754 = vrot.slane %v555, %v753
      %v756 = vunpack.c.l.s4 1983009808
      %v757 = vunpack.c.0.s8 %v756
      %v758 = vlaneseq
      %v759 = vshrl.u32 %v758, 7
      %v760 = vsub.s32 %v757, %v759
      %v761 = vrot.slane %v747, %v760
      %v762 = vcombine.high %v754, %v754
      %v763 = vcombine.high %v761, %v761
      %v764 = vcombine.high %v556, %v556
      %v766 = vunpack.c.l.s4 1983009808
      %v767 = vunpack.c.0.s8 %v766
      %v768 = vlaneseq
      %v769 = vshrl.u32 %v768, 7
      %v770 = vsub.s32 %v767, %v769
      %v771 = vrot.slane %v556, %v770
      %v773 = vunpack.c.l.s4 1983009808
      %v774 = vunpack.c.0.s8 %v773
      %v775 = vlaneseq
      %v776 = vshrl.u32 %v775, 7
      %v777 = vsub.s32 %v774, %v776
      %v778 = vrot.slane %v764, %v777
      %v779 = vcombine.high %v771, %v771
      %v780 = vcombine.high %v778, %v778
      %v781 = vcombine.high %v557, %v557
      %v783 = vunpack.c.l.s4 1983009808
      %v784 = vunpack.c.0.s8 %v783
      %v785 = vlaneseq
      %v786 = vshrl.u32 %v785, 7
      %v787 = vsub.s32 %v784, %v786
      %v788 = vrot.slane %v557, %v787
      %v790 = vunpack.c.l.s4 1983009808
      %v791 = vunpack.c.0.s8 %v790
      %v792 = vlaneseq
      %v793 = vshrl.u32 %v792, 7
      %v794 = vsub.s32 %v791, %v793
      %v795 = vrot.slane %v781, %v794
      %v796 = vcombine.high %v788, %v788
      %v797 = vcombine.high %v795, %v795
      %v798 = vcombine.high %v558, %v558
      %v800 = vunpack.c.l.s4 1983009808
      %v801 = vunpack.c.0.s8 %v800
      %v802 = vlaneseq
      %v803 = vshrl.u32 %v802, 7
      %v804 = vsub.s32 %v801, %v803
      %v805 = vrot.slane %v558, %v804
      %v807 = vunpack.c.l.s4 1983009808
      %v808 = vunpack.c.0.s8 %v807
      %v809 = vlaneseq
      %v810 = vshrl.u32 %v809, 7
      %v811 = vsub.s32 %v808, %v810
      %v812 = vrot.slane %v798, %v811
      %v813 = vcombine.high %v805, %v805
      %v814 = vcombine.high %v812, %v812
      %v815 = vcombine.high %v559, %v559
      %v817 = vunpack.c.l.s4 1983009808
      %v818 = vunpack.c.0.s8 %v817
      %v819 = vlaneseq
      %v820 = vshrl.u32 %v819, 7
      %v821 = vsub.s32 %v818, %v820
      %v822 = vrot.slane %v559, %v821
      %v824 = vunpack.c.l.s4 1983009808
      %v825 = vunpack.c.0.s8 %v824
      %v826 = vlaneseq
      %v827 = vshrl.u32 %v826, 7
      %v828 = vsub.s32 %v825, %v827
      %v829 = vrot.slane %v815, %v828
      %v830 = vcombine.high %v822, %v822
      %v831 = vcombine.high %v829, %v829
      %v832 = vcombine.high %v560, %v560
      %v834 = vunpack.c.l.s4 1983009808
      %v835 = vunpack.c.0.s8 %v834
      %v836 = vlaneseq
      %v837 = vshrl.u32 %v836, 7
      %v838 = vsub.s32 %v835, %v837
      %v839 = vrot.slane %v560, %v838
      %v841 = vunpack.c.l.s4 1983009808
      %v842 = vunpack.c.0.s8 %v841
      %v843 = vlaneseq
      %v844 = vshrl.u32 %v843, 7
      %v845 = vsub.s32 %v842, %v844
      %v846 = vrot.slane %v832, %v845
      %v847 = vcombine.high %v839, %v839
      %v848 = vcombine.high %v846, %v846
      %vm913 = vcmask 1041408
      %v914 = vsel %vm913, %v584, -inf
      %v915 = vrot.slane %v914, 4
      %v916 = vmax.f32 %v914, %v915
      %v917 = vrot.slane %v916, 2
      %v918 = vmax.f32 %v916, %v917
      %v919 = vrot.slane %v918, 1
      %v920 = vmax.f32 %v918, %v919
      %v921 = vsel %vm913, %v592, -inf
      %v922 = vrot.slane %v921, 4
      %v923 = vmax.f32 %v921, %v922
      %v924 = vrot.slane %v923, 2
      %v925 = vmax.f32 %v923, %v924
      %v926 = vrot.slane %v925, 1
      %v927 = vmax.f32 %v925, %v926
      %v928 = vsel %vm913, %v591, -inf
      %v929 = vrot.slane %v928, 4
      %v930 = vmax.f32 %v928, %v929
      %v931 = vrot.slane %v930, 2
      %v932 = vmax.f32 %v930, %v931
      %v933 = vrot.slane %v932, 1
      %v934 = vmax.f32 %v932, %v933
      %v935 = vsel %vm913, %v593, -inf
      %v936 = vrot.slane %v935, 4
      %v937 = vmax.f32 %v935, %v936
      %v938 = vrot.slane %v937, 2
      %v939 = vmax.f32 %v937, %v938
      %v940 = vrot.slane %v939, 1
      %v941 = vmax.f32 %v939, %v940
      %v942 = vsel %vm913, %v601, -inf
      %v943 = vrot.slane %v942, 4
      %v944 = vmax.f32 %v942, %v943
      %v945 = vrot.slane %v944, 2
      %v946 = vmax.f32 %v944, %v945
      %v947 = vrot.slane %v946, 1
      %v948 = vmax.f32 %v946, %v947
      %v949 = vsel %vm913, %v609, -inf
      %v950 = vrot.slane %v949, 4
      %v951 = vmax.f32 %v949, %v950
      %v952 = vrot.slane %v951, 2
      %v953 = vmax.f32 %v951, %v952
      %v954 = vrot.slane %v953, 1
      %v955 = vmax.f32 %v953, %v954
      %v956 = vsel %vm913, %v608, -inf
      %v957 = vrot.slane %v956, 4
      %v958 = vmax.f32 %v956, %v957
      %v959 = vrot.slane %v958, 2
      %v960 = vmax.f32 %v958, %v959
      %v961 = vrot.slane %v960, 1
      %v962 = vmax.f32 %v960, %v961
      %v963 = vsel %vm913, %v610, -inf
      %v964 = vrot.slane %v963, 4
      %v965 = vmax.f32 %v963, %v964
      %v966 = vrot.slane %v965, 2
      %v967 = vmax.f32 %v965, %v966
      %v968 = vrot.slane %v967, 1
      %v969 = vmax.f32 %v967, %v968
      %v970 = vsel %vm913, %v618, -inf
      %v971 = vrot.slane %v970, 4
      %v972 = vmax.f32 %v970, %v971
      %v973 = vrot.slane %v972, 2
      %v974 = vmax.f32 %v972, %v973
      %v975 = vrot.slane %v974, 1
      %v976 = vmax.f32 %v974, %v975
      %v977 = vsel %vm913, %v626, -inf
      %v978 = vrot.slane %v977, 4
      %v979 = vmax.f32 %v977, %v978
      %v980 = vrot.slane %v979, 2
      %v981 = vmax.f32 %v979, %v980
      %v982 = vrot.slane %v981, 1
      %v983 = vmax.f32 %v981, %v982
      %v984 = vsel %vm913, %v625, -inf
      %v985 = vrot.slane %v984, 4
      %v986 = vmax.f32 %v984, %v985
      %v987 = vrot.slane %v986, 2
      %v988 = vmax.f32 %v986, %v987
      %v989 = vrot.slane %v988, 1
      %v990 = vmax.f32 %v988, %v989
      %v991 = vsel %vm913, %v627, -inf
      %v992 = vrot.slane %v991, 4
      %v993 = vmax.f32 %v991, %v992
      %v994 = vrot.slane %v993, 2
      %v995 = vmax.f32 %v993, %v994
      %v996 = vrot.slane %v995, 1
      %v997 = vmax.f32 %v995, %v996
      %v998 = vsel %vm913, %v635, -inf
      %v999 = vrot.slane %v998, 4
      %v1000 = vmax.f32 %v998, %v999
      %v1001 = vrot.slane %v1000, 2
      %v1002 = vmax.f32 %v1000, %v1001
      %v1003 = vrot.slane %v1002, 1
      %v1004 = vmax.f32 %v1002, %v1003
      %v1005 = vsel %vm913, %v643, -inf
      %v1006 = vrot.slane %v1005, 4
      %v1007 = vmax.f32 %v1005, %v1006
      %v1008 = vrot.slane %v1007, 2
      %v1009 = vmax.f32 %v1007, %v1008
      %v1010 = vrot.slane %v1009, 1
      %v1011 = vmax.f32 %v1009, %v1010
      %v1012 = vsel %vm913, %v642, -inf
      %v1013 = vrot.slane %v1012, 4
      %v1014 = vmax.f32 %v1012, %v1013
      %v1015 = vrot.slane %v1014, 2
      %v1016 = vmax.f32 %v1014, %v1015
      %v1017 = vrot.slane %v1016, 1
      %v1018 = vmax.f32 %v1016, %v1017
      %v1019 = vsel %vm913, %v644, -inf
      %v1020 = vrot.slane %v1019, 4
      %v1021 = vmax.f32 %v1019, %v1020
      %v1022 = vrot.slane %v1021, 2
      %v1023 = vmax.f32 %v1021, %v1022
      %v1024 = vrot.slane %v1023, 1
      %v1025 = vmax.f32 %v1023, %v1024
      %v1026 = vsel %vm913, %v652, -inf
      %v1027 = vrot.slane %v1026, 4
      %v1028 = vmax.f32 %v1026, %v1027
      %v1029 = vrot.slane %v1028, 2
      %v1030 = vmax.f32 %v1028, %v1029
      %v1031 = vrot.slane %v1030, 1
      %v1032 = vmax.f32 %v1030, %v1031
      %v1033 = vsel %vm913, %v660, -inf
      %v1034 = vrot.slane %v1033, 4
      %v1035 = vmax.f32 %v1033, %v1034
      %v1036 = vrot.slane %v1035, 2
      %v1037 = vmax.f32 %v1035, %v1036
      %v1038 = vrot.slane %v1037, 1
      %v1039 = vmax.f32 %v1037, %v1038
      %v1040 = vsel %vm913, %v659, -inf
      %v1041 = vrot.slane %v1040, 4
      %v1042 = vmax.f32 %v1040, %v1041
      %v1043 = vrot.slane %v1042, 2
      %v1044 = vmax.f32 %v1042, %v1043
      %v1045 = vrot.slane %v1044, 1
      %v1046 = vmax.f32 %v1044, %v1045
      %v1047 = vsel %vm913, %v661, -inf
      %v1048 = vrot.slane %v1047, 4
      %v1049 = vmax.f32 %v1047, %v1048
      %v1050 = vrot.slane %v1049, 2
      %v1051 = vmax.f32 %v1049, %v1050
      %v1052 = vrot.slane %v1051, 1
      %v1053 = vmax.f32 %v1051, %v1052
      %v1054 = vsel %vm913, %v669, -inf
      %v1055 = vrot.slane %v1054, 4
      %v1056 = vmax.f32 %v1054, %v1055
      %v1057 = vrot.slane %v1056, 2
      %v1058 = vmax.f32 %v1056, %v1057
      %v1059 = vrot.slane %v1058, 1
      %v1060 = vmax.f32 %v1058, %v1059
      %v1061 = vsel %vm913, %v677, -inf
      %v1062 = vrot.slane %v1061, 4
      %v1063 = vmax.f32 %v1061, %v1062
      %v1064 = vrot.slane %v1063, 2
      %v1065 = vmax.f32 %v1063, %v1064
      %v1066 = vrot.slane %v1065, 1
      %v1067 = vmax.f32 %v1065, %v1066
      %v1068 = vsel %vm913, %v676, -inf
      %v1069 = vrot.slane %v1068, 4
      %v1070 = vmax.f32 %v1068, %v1069
      %v1071 = vrot.slane %v1070, 2
      %v1072 = vmax.f32 %v1070, %v1071
      %v1073 = vrot.slane %v1072, 1
      %v1074 = vmax.f32 %v1072, %v1073
      %v1075 = vsel %vm913, %v678, -inf
      %v1076 = vrot.slane %v1075, 4
      %v1077 = vmax.f32 %v1075, %v1076
      %v1078 = vrot.slane %v1077, 2
      %v1079 = vmax.f32 %v1077, %v1078
      %v1080 = vrot.slane %v1079, 1
      %v1081 = vmax.f32 %v1079, %v1080
      %v1082 = vsel %vm913, %v686, -inf
      %v1083 = vrot.slane %v1082, 4
      %v1084 = vmax.f32 %v1082, %v1083
      %v1085 = vrot.slane %v1084, 2
      %v1086 = vmax.f32 %v1084, %v1085
      %v1087 = vrot.slane %v1086, 1
      %v1088 = vmax.f32 %v1086, %v1087
      %v1089 = vsel %vm913, %v694, -inf
      %v1090 = vrot.slane %v1089, 4
      %v1091 = vmax.f32 %v1089, %v1090
      %v1092 = vrot.slane %v1091, 2
      %v1093 = vmax.f32 %v1091, %v1092
      %v1094 = vrot.slane %v1093, 1
      %v1095 = vmax.f32 %v1093, %v1094
      %v1096 = vsel %vm913, %v693, -inf
      %v1097 = vrot.slane %v1096, 4
      %v1098 = vmax.f32 %v1096, %v1097
      %v1099 = vrot.slane %v1098, 2
      %v1100 = vmax.f32 %v1098, %v1099
      %v1101 = vrot.slane %v1100, 1
      %v1102 = vmax.f32 %v1100, %v1101
      %v1103 = vsel %vm913, %v695, -inf
      %v1104 = vrot.slane %v1103, 4
      %v1105 = vmax.f32 %v1103, %v1104
      %v1106 = vrot.slane %v1105, 2
      %v1107 = vmax.f32 %v1105, %v1106
      %v1108 = vrot.slane %v1107, 1
      %v1109 = vmax.f32 %v1107, %v1108
      %v1110 = vsel %vm913, %v703, -inf
      %v1111 = vrot.slane %v1110, 4
      %v1112 = vmax.f32 %v1110, %v1111
      %v1113 = vrot.slane %v1112, 2
      %v1114 = vmax.f32 %v1112, %v1113
      %v1115 = vrot.slane %v1114, 1
      %v1116 = vmax.f32 %v1114, %v1115
      %v1117 = vsel %vm913, %v711, -inf
      %v1118 = vrot.slane %v1117, 4
      %v1119 = vmax.f32 %v1117, %v1118
      %v1120 = vrot.slane %v1119, 2
      %v1121 = vmax.f32 %v1119, %v1120
      %v1122 = vrot.slane %v1121, 1
      %v1123 = vmax.f32 %v1121, %v1122
      %v1124 = vsel %vm913, %v710, -inf
      %v1125 = vrot.slane %v1124, 4
      %v1126 = vmax.f32 %v1124, %v1125
      %v1127 = vrot.slane %v1126, 2
      %v1128 = vmax.f32 %v1126, %v1127
      %v1129 = vrot.slane %v1128, 1
      %v1130 = vmax.f32 %v1128, %v1129
      %v1131 = vsel %vm913, %v712, -inf
      %v1132 = vrot.slane %v1131, 4
      %v1133 = vmax.f32 %v1131, %v1132
      %v1134 = vrot.slane %v1133, 2
      %v1135 = vmax.f32 %v1133, %v1134
      %v1136 = vrot.slane %v1135, 1
      %v1137 = vmax.f32 %v1135, %v1136
      %v1138 = vsel %vm913, %v720, -inf
      %v1139 = vrot.slane %v1138, 4
      %v1140 = vmax.f32 %v1138, %v1139
      %v1141 = vrot.slane %v1140, 2
      %v1142 = vmax.f32 %v1140, %v1141
      %v1143 = vrot.slane %v1142, 1
      %v1144 = vmax.f32 %v1142, %v1143
      %v1145 = vsel %vm913, %v728, -inf
      %v1146 = vrot.slane %v1145, 4
      %v1147 = vmax.f32 %v1145, %v1146
      %v1148 = vrot.slane %v1147, 2
      %v1149 = vmax.f32 %v1147, %v1148
      %v1150 = vrot.slane %v1149, 1
      %v1151 = vmax.f32 %v1149, %v1150
      %v1152 = vsel %vm913, %v727, -inf
      %v1153 = vrot.slane %v1152, 4
      %v1154 = vmax.f32 %v1152, %v1153
      %v1155 = vrot.slane %v1154, 2
      %v1156 = vmax.f32 %v1154, %v1155
      %v1157 = vrot.slane %v1156, 1
      %v1158 = vmax.f32 %v1156, %v1157
      %v1159 = vsel %vm913, %v729, -inf
      %v1160 = vrot.slane %v1159, 4
      %v1161 = vmax.f32 %v1159, %v1160
      %v1162 = vrot.slane %v1161, 2
      %v1163 = vmax.f32 %v1161, %v1162
      %v1164 = vrot.slane %v1163, 1
      %v1165 = vmax.f32 %v1163, %v1164
      %v1166 = vsel %vm913, %v737, -inf
      %v1167 = vrot.slane %v1166, 4
      %v1168 = vmax.f32 %v1166, %v1167
      %v1169 = vrot.slane %v1168, 2
      %v1170 = vmax.f32 %v1168, %v1169
      %v1171 = vrot.slane %v1170, 1
      %v1172 = vmax.f32 %v1170, %v1171
      %v1173 = vsel %vm913, %v745, -inf
      %v1174 = vrot.slane %v1173, 4
      %v1175 = vmax.f32 %v1173, %v1174
      %v1176 = vrot.slane %v1175, 2
      %v1177 = vmax.f32 %v1175, %v1176
      %v1178 = vrot.slane %v1177, 1
      %v1179 = vmax.f32 %v1177, %v1178
      %v1180 = vsel %vm913, %v744, -inf
      %v1181 = vrot.slane %v1180, 4
      %v1182 = vmax.f32 %v1180, %v1181
      %v1183 = vrot.slane %v1182, 2
      %v1184 = vmax.f32 %v1182, %v1183
      %v1185 = vrot.slane %v1184, 1
      %v1186 = vmax.f32 %v1184, %v1185
      %v1187 = vsel %vm913, %v746, -inf
      %v1188 = vrot.slane %v1187, 4
      %v1189 = vmax.f32 %v1187, %v1188
      %v1190 = vrot.slane %v1189, 2
      %v1191 = vmax.f32 %v1189, %v1190
      %v1192 = vrot.slane %v1191, 1
      %v1193 = vmax.f32 %v1191, %v1192
      %v1194 = vsel %vm913, %v754, -inf
      %v1195 = vrot.slane %v1194, 4
      %v1196 = vmax.f32 %v1194, %v1195
      %v1197 = vrot.slane %v1196, 2
      %v1198 = vmax.f32 %v1196, %v1197
      %v1199 = vrot.slane %v1198, 1
      %v1200 = vmax.f32 %v1198, %v1199
      %v1201 = vsel %vm913, %v762, -inf
      %v1202 = vrot.slane %v1201, 4
      %v1203 = vmax.f32 %v1201, %v1202
      %v1204 = vrot.slane %v1203, 2
      %v1205 = vmax.f32 %v1203, %v1204
      %v1206 = vrot.slane %v1205, 1
      %v1207 = vmax.f32 %v1205, %v1206
      %v1208 = vsel %vm913, %v761, -inf
      %v1209 = vrot.slane %v1208, 4
      %v1210 = vmax.f32 %v1208, %v1209
      %v1211 = vrot.slane %v1210, 2
      %v1212 = vmax.f32 %v1210, %v1211
      %v1213 = vrot.slane %v1212, 1
      %v1214 = vmax.f32 %v1212, %v1213
      %v1215 = vsel %vm913, %v763, -inf
      %v1216 = vrot.slane %v1215, 4
      %v1217 = vmax.f32 %v1215, %v1216
      %v1218 = vrot.slane %v1217, 2
      %v1219 = vmax.f32 %v1217, %v1218
      %v1220 = vrot.slane %v1219, 1
      %v1221 = vmax.f32 %v1219, %v1220
      %v1222 = vsel %vm913, %v771, -inf
      %v1223 = vrot.slane %v1222, 4
      %v1224 = vmax.f32 %v1222, %v1223
      %v1225 = vrot.slane %v1224, 2
      %v1226 = vmax.f32 %v1224, %v1225
      %v1227 = vrot.slane %v1226, 1
      %v1228 = vmax.f32 %v1226, %v1227
      %v1229 = vsel %vm913, %v779, -inf
      %v1230 = vrot.slane %v1229, 4
      %v1231 = vmax.f32 %v1229, %v1230
      %v1232 = vrot.slane %v1231, 2
      %v1233 = vmax.f32 %v1231, %v1232
      %v1234 = vrot.slane %v1233, 1
      %v1235 = vmax.f32 %v1233, %v1234
      %v1236 = vsel %vm913, %v778, -inf
      %v1237 = vrot.slane %v1236, 4
      %v1238 = vmax.f32 %v1236, %v1237
      %v1239 = vrot.slane %v1238, 2
      %v1240 = vmax.f32 %v1238, %v1239
      %v1241 = vrot.slane %v1240, 1
      %v1242 = vmax.f32 %v1240, %v1241
      %v1243 = vsel %vm913, %v780, -inf
      %v1244 = vrot.slane %v1243, 4
      %v1245 = vmax.f32 %v1243, %v1244
      %v1246 = vrot.slane %v1245, 2
      %v1247 = vmax.f32 %v1245, %v1246
      %v1248 = vrot.slane %v1247, 1
      %v1249 = vmax.f32 %v1247, %v1248
      %v1250 = vsel %vm913, %v788, -inf
      %v1251 = vrot.slane %v1250, 4
      %v1252 = vmax.f32 %v1250, %v1251
      %v1253 = vrot.slane %v1252, 2
      %v1254 = vmax.f32 %v1252, %v1253
      %v1255 = vrot.slane %v1254, 1
      %v1256 = vmax.f32 %v1254, %v1255
      %v1257 = vsel %vm913, %v796, -inf
      %v1258 = vrot.slane %v1257, 4
      %v1259 = vmax.f32 %v1257, %v1258
      %v1260 = vrot.slane %v1259, 2
      %v1261 = vmax.f32 %v1259, %v1260
      %v1262 = vrot.slane %v1261, 1
      %v1263 = vmax.f32 %v1261, %v1262
      %v1264 = vsel %vm913, %v795, -inf
      %v1265 = vrot.slane %v1264, 4
      %v1266 = vmax.f32 %v1264, %v1265
      %v1267 = vrot.slane %v1266, 2
      %v1268 = vmax.f32 %v1266, %v1267
      %v1269 = vrot.slane %v1268, 1
      %v1270 = vmax.f32 %v1268, %v1269
      %v1271 = vsel %vm913, %v797, -inf
      %v1272 = vrot.slane %v1271, 4
      %v1273 = vmax.f32 %v1271, %v1272
      %v1274 = vrot.slane %v1273, 2
      %v1275 = vmax.f32 %v1273, %v1274
      %v1276 = vrot.slane %v1275, 1
      %v1277 = vmax.f32 %v1275, %v1276
      %v1278 = vsel %vm913, %v805, -inf
      %v1279 = vrot.slane %v1278, 4
      %v1280 = vmax.f32 %v1278, %v1279
      %v1281 = vrot.slane %v1280, 2
      %v1282 = vmax.f32 %v1280, %v1281
      %v1283 = vrot.slane %v1282, 1
      %v1284 = vmax.f32 %v1282, %v1283
      %v1285 = vsel %vm913, %v813, -inf
      %v1286 = vrot.slane %v1285, 4
      %v1287 = vmax.f32 %v1285, %v1286
      %v1288 = vrot.slane %v1287, 2
      %v1289 = vmax.f32 %v1287, %v1288
      %v1290 = vrot.slane %v1289, 1
      %v1291 = vmax.f32 %v1289, %v1290
      %v1292 = vsel %vm913, %v812, -inf
      %v1293 = vrot.slane %v1292, 4
      %v1294 = vmax.f32 %v1292, %v1293
      %v1295 = vrot.slane %v1294, 2
      %v1296 = vmax.f32 %v1294, %v1295
      %v1297 = vrot.slane %v1296, 1
      %v1298 = vmax.f32 %v1296, %v1297
      %v1299 = vsel %vm913, %v814, -inf
      %v1300 = vrot.slane %v1299, 4
      %v1301 = vmax.f32 %v1299, %v1300
      %v1302 = vrot.slane %v1301, 2
      %v1303 = vmax.f32 %v1301, %v1302
      %v1304 = vrot.slane %v1303, 1
      %v1305 = vmax.f32 %v1303, %v1304
      %v1306 = vsel %vm913, %v822, -inf
      %v1307 = vrot.slane %v1306, 4
      %v1308 = vmax.f32 %v1306, %v1307
      %v1309 = vrot.slane %v1308, 2
      %v1310 = vmax.f32 %v1308, %v1309
      %v1311 = vrot.slane %v1310, 1
      %v1312 = vmax.f32 %v1310, %v1311
      %v1313 = vsel %vm913, %v830, -inf
      %v1314 = vrot.slane %v1313, 4
      %v1315 = vmax.f32 %v1313, %v1314
      %v1316 = vrot.slane %v1315, 2
      %v1317 = vmax.f32 %v1315, %v1316
      %v1318 = vrot.slane %v1317, 1
      %v1319 = vmax.f32 %v1317, %v1318
      %v1320 = vsel %vm913, %v829, -inf
      %v1321 = vrot.slane %v1320, 4
      %v1322 = vmax.f32 %v1320, %v1321
      %v1323 = vrot.slane %v1322, 2
      %v1324 = vmax.f32 %v1322, %v1323
      %v1325 = vrot.slane %v1324, 1
      %v1326 = vmax.f32 %v1324, %v1325
      %v1327 = vsel %vm913, %v831, -inf
      %v1328 = vrot.slane %v1327, 4
      %v1329 = vmax.f32 %v1327, %v1328
      %v1330 = vrot.slane %v1329, 2
      %v1331 = vmax.f32 %v1329, %v1330
      %v1332 = vrot.slane %v1331, 1
      %v1333 = vmax.f32 %v1331, %v1332
      %v1334 = vsel %vm913, %v839, -inf
      %v1335 = vrot.slane %v1334, 4
      %v1336 = vmax.f32 %v1334, %v1335
      %v1337 = vrot.slane %v1336, 2
      %v1338 = vmax.f32 %v1336, %v1337
      %v1339 = vrot.slane %v1338, 1
      %v1340 = vmax.f32 %v1338, %v1339
      %v1341 = vsel %vm913, %v847, -inf
      %v1342 = vrot.slane %v1341, 4
      %v1343 = vmax.f32 %v1341, %v1342
      %v1344 = vrot.slane %v1343, 2
      %v1345 = vmax.f32 %v1343, %v1344
      %v1346 = vrot.slane %v1345, 1
      %v1347 = vmax.f32 %v1345, %v1346
      %v1348 = vsel %vm913, %v846, -inf
      %v1349 = vrot.slane %v1348, 4
      %v1350 = vmax.f32 %v1348, %v1349
      %v1351 = vrot.slane %v1350, 2
      %v1352 = vmax.f32 %v1350, %v1351
      %v1353 = vrot.slane %v1352, 1
      %v1354 = vmax.f32 %v1352, %v1353
      %v1355 = vsel %vm913, %v848, -inf
      %v1356 = vrot.slane %v1355, 4
      %v1357 = vmax.f32 %v1355, %v1356
      %v1358 = vrot.slane %v1357, 2
      %v1359 = vmax.f32 %v1357, %v1358
      %v1360 = vrot.slane %v1359, 1
      %v1361 = vmax.f32 %v1359, %v1360
      %v1362 = vpack.c.bf16 %v920, %v920
      %v1363 = vpack.c.bf16 %v927, %v927
      %v1364 = vpack.c.bf16 %v934, %v934
      %v1365 = vpack.c.bf16 %v941, %v941
      %v1366 = vpack.c.bf16 %v948, %v948
      %v1367 = vpack.c.bf16 %v955, %v955
      %v1368 = vpack.c.bf16 %v962, %v962
      %v1369 = vpack.c.bf16 %v969, %v969
      %v1370 = vpack.c.bf16 %v976, %v976
      %v1371 = vpack.c.bf16 %v983, %v983
      %v1372 = vpack.c.bf16 %v990, %v990
      %v1373 = vpack.c.bf16 %v997, %v997
      %v1374 = vpack.c.bf16 %v1004, %v1004
      %v1375 = vpack.c.bf16 %v1011, %v1011
      %v1376 = vpack.c.bf16 %v1018, %v1018
      %v1377 = vpack.c.bf16 %v1025, %v1025
      %v1378 = vpack.c.bf16 %v1032, %v1032
      %v1379 = vpack.c.bf16 %v1039, %v1039
      %v1380 = vpack.c.bf16 %v1046, %v1046
      %v1381 = vpack.c.bf16 %v1053, %v1053
      %v1382 = vpack.c.bf16 %v1060, %v1060
      %v1383 = vpack.c.bf16 %v1067, %v1067
      %v1384 = vpack.c.bf16 %v1074, %v1074
      %v1385 = vpack.c.bf16 %v1081, %v1081
      %v1386 = vpack.c.bf16 %v1088, %v1088
      %v1387 = vpack.c.bf16 %v1095, %v1095
      %v1388 = vpack.c.bf16 %v1102, %v1102
      %v1389 = vpack.c.bf16 %v1109, %v1109
      %v1390 = vpack.c.bf16 %v1116, %v1116
      %v1391 = vpack.c.bf16 %v1123, %v1123
      %v1392 = vpack.c.bf16 %v1130, %v1130
      %v1393 = vpack.c.bf16 %v1137, %v1137
      %v1394 = vpack.c.bf16 %v1144, %v1144
      %v1395 = vpack.c.bf16 %v1151, %v1151
      %v1396 = vpack.c.bf16 %v1158, %v1158
      %v1397 = vpack.c.bf16 %v1165, %v1165
      %v1398 = vpack.c.bf16 %v1172, %v1172
      %v1399 = vpack.c.bf16 %v1179, %v1179
      %v1400 = vpack.c.bf16 %v1186, %v1186
      %v1401 = vpack.c.bf16 %v1193, %v1193
      %v1402 = vpack.c.bf16 %v1200, %v1200
      %v1403 = vpack.c.bf16 %v1207, %v1207
      %v1404 = vpack.c.bf16 %v1214, %v1214
      %v1405 = vpack.c.bf16 %v1221, %v1221
      %v1406 = vpack.c.bf16 %v1228, %v1228
      %v1407 = vpack.c.bf16 %v1235, %v1235
      %v1408 = vpack.c.bf16 %v1242, %v1242
      %v1409 = vpack.c.bf16 %v1249, %v1249
      %v1410 = vpack.c.bf16 %v1256, %v1256
      %v1411 = vpack.c.bf16 %v1263, %v1263
      %v1412 = vpack.c.bf16 %v1270, %v1270
      %v1413 = vpack.c.bf16 %v1277, %v1277
      %v1414 = vpack.c.bf16 %v1284, %v1284
      %v1415 = vpack.c.bf16 %v1291, %v1291
      %v1416 = vpack.c.bf16 %v1298, %v1298
      %v1417 = vpack.c.bf16 %v1305, %v1305
      %v1418 = vpack.c.bf16 %v1312, %v1312
      %v1419 = vpack.c.bf16 %v1319, %v1319
      %v1420 = vpack.c.bf16 %v1326, %v1326
      %v1421 = vpack.c.bf16 %v1333, %v1333
      %v1422 = vpack.c.bf16 %v1340, %v1340
      %v1423 = vpack.c.bf16 %v1347, %v1347
      %v1424 = vpack.c.bf16 %v1354, %v1354
      %v1425 = vpack.c.bf16 %v1361, %v1361
      %v1490 = vunpack.c.l.b16 %v1362
      %v1491 = vunpack.c.l.b16 %v1363
      %v1492 = vunpack.c.l.b16 %v1364
      %v1493 = vunpack.c.l.b16 %v1365
      %v1494 = vunpack.c.l.b16 %v1366
      %v1495 = vunpack.c.l.b16 %v1367
      %v1496 = vunpack.c.l.b16 %v1368
      %v1497 = vunpack.c.l.b16 %v1369
      %v1498 = vunpack.c.l.b16 %v1370
      %v1499 = vunpack.c.l.b16 %v1371
      %v1500 = vunpack.c.l.b16 %v1372
      %v1501 = vunpack.c.l.b16 %v1373
      %v1502 = vunpack.c.l.b16 %v1374
      %v1503 = vunpack.c.l.b16 %v1375
      %v1504 = vunpack.c.l.b16 %v1376
      %v1505 = vunpack.c.l.b16 %v1377
      %v1506 = vunpack.c.l.b16 %v1378
      %v1507 = vunpack.c.l.b16 %v1379
      %v1508 = vunpack.c.l.b16 %v1380
      %v1509 = vunpack.c.l.b16 %v1381
      %v1510 = vunpack.c.l.b16 %v1382
      %v1511 = vunpack.c.l.b16 %v1383
      %v1512 = vunpack.c.l.b16 %v1384
      %v1513 = vunpack.c.l.b16 %v1385
      %v1514 = vunpack.c.l.b16 %v1386
      %v1515 = vunpack.c.l.b16 %v1387
      %v1516 = vunpack.c.l.b16 %v1388
      %v1517 = vunpack.c.l.b16 %v1389
      %v1518 = vunpack.c.l.b16 %v1390
      %v1519 = vunpack.c.l.b16 %v1391
      %v1520 = vunpack.c.l.b16 %v1392
      %v1521 = vunpack.c.l.b16 %v1393
      %v1522 = vunpack.c.l.b16 %v1394
      %v1523 = vunpack.c.l.b16 %v1395
      %v1524 = vunpack.c.l.b16 %v1396
      %v1525 = vunpack.c.l.b16 %v1397
      %v1526 = vunpack.c.l.b16 %v1398
      %v1527 = vunpack.c.l.b16 %v1399
      %v1528 = vunpack.c.l.b16 %v1400
      %v1529 = vunpack.c.l.b16 %v1401
      %v1530 = vunpack.c.l.b16 %v1402
      %v1531 = vunpack.c.l.b16 %v1403
      %v1532 = vunpack.c.l.b16 %v1404
      %v1533 = vunpack.c.l.b16 %v1405
      %v1534 = vunpack.c.l.b16 %v1406
      %v1535 = vunpack.c.l.b16 %v1407
      %v1536 = vunpack.c.l.b16 %v1408
      %v1537 = vunpack.c.l.b16 %v1409
      %v1538 = vunpack.c.l.b16 %v1410
      %v1539 = vunpack.c.l.b16 %v1411
      %v1540 = vunpack.c.l.b16 %v1412
      %v1541 = vunpack.c.l.b16 %v1413
      %v1542 = vunpack.c.l.b16 %v1414
      %v1543 = vunpack.c.l.b16 %v1415
      %v1544 = vunpack.c.l.b16 %v1416
      %v1545 = vunpack.c.l.b16 %v1417
      %v1546 = vunpack.c.l.b16 %v1418
      %v1547 = vunpack.c.l.b16 %v1419
      %v1548 = vunpack.c.l.b16 %v1420
      %v1549 = vunpack.c.l.b16 %v1421
      %v1550 = vunpack.c.l.b16 %v1422
      %v1551 = vunpack.c.l.b16 %v1423
      %v1552 = vunpack.c.l.b16 %v1424
      %v1553 = vunpack.c.l.b16 %v1425
      %v1554 = vpack.c.b16 %v1490, %v1490
      %v1555 = vpack.c.b16 %v1491, %v1491
      %v1556 = vpack.c.b16 %v1492, %v1492
      %v1557 = vpack.c.b16 %v1493, %v1493
      %v1558 = vpack.c.b16 %v1494, %v1494
      %v1559 = vpack.c.b16 %v1495, %v1495
      %v1560 = vpack.c.b16 %v1496, %v1496
      %v1561 = vpack.c.b16 %v1497, %v1497
      %v1562 = vpack.c.b16 %v1498, %v1498
      %v1563 = vpack.c.b16 %v1499, %v1499
      %v1564 = vpack.c.b16 %v1500, %v1500
      %v1565 = vpack.c.b16 %v1501, %v1501
      %v1566 = vpack.c.b16 %v1502, %v1502
      %v1567 = vpack.c.b16 %v1503, %v1503
      %v1568 = vpack.c.b16 %v1504, %v1504
      %v1569 = vpack.c.b16 %v1505, %v1505
      %v1570 = vpack.c.b16 %v1506, %v1506
      %v1571 = vpack.c.b16 %v1507, %v1507
      %v1572 = vpack.c.b16 %v1508, %v1508
      %v1573 = vpack.c.b16 %v1509, %v1509
      %v1574 = vpack.c.b16 %v1510, %v1510
      %v1575 = vpack.c.b16 %v1511, %v1511
      %v1576 = vpack.c.b16 %v1512, %v1512
      %v1577 = vpack.c.b16 %v1513, %v1513
      %v1578 = vpack.c.b16 %v1514, %v1514
      %v1579 = vpack.c.b16 %v1515, %v1515
      %v1580 = vpack.c.b16 %v1516, %v1516
      %v1581 = vpack.c.b16 %v1517, %v1517
      %v1582 = vpack.c.b16 %v1518, %v1518
      %v1583 = vpack.c.b16 %v1519, %v1519
      %v1584 = vpack.c.b16 %v1520, %v1520
      %v1585 = vpack.c.b16 %v1521, %v1521
      %v1586 = vpack.c.b16 %v1522, %v1522
      %v1587 = vpack.c.b16 %v1523, %v1523
      %v1588 = vpack.c.b16 %v1524, %v1524
      %v1589 = vpack.c.b16 %v1525, %v1525
      %v1590 = vpack.c.b16 %v1526, %v1526
      %v1591 = vpack.c.b16 %v1527, %v1527
      %v1592 = vpack.c.b16 %v1528, %v1528
      %v1593 = vpack.c.b16 %v1529, %v1529
      %v1594 = vpack.c.b16 %v1530, %v1530
      %v1595 = vpack.c.b16 %v1531, %v1531
      %v1596 = vpack.c.b16 %v1532, %v1532
      %v1597 = vpack.c.b16 %v1533, %v1533
      %v1598 = vpack.c.b16 %v1534, %v1534
      %v1599 = vpack.c.b16 %v1535, %v1535
      %v1600 = vpack.c.b16 %v1536, %v1536
      %v1601 = vpack.c.b16 %v1537, %v1537
      %v1602 = vpack.c.b16 %v1538, %v1538
      %v1603 = vpack.c.b16 %v1539, %v1539
      %v1604 = vpack.c.b16 %v1540, %v1540
      %v1605 = vpack.c.b16 %v1541, %v1541
      %v1606 = vpack.c.b16 %v1542, %v1542
      %v1607 = vpack.c.b16 %v1543, %v1543
      %v1608 = vpack.c.b16 %v1544, %v1544
      %v1609 = vpack.c.b16 %v1545, %v1545
      %v1610 = vpack.c.b16 %v1546, %v1546
      %v1611 = vpack.c.b16 %v1547, %v1547
      %v1612 = vpack.c.b16 %v1548, %v1548
      %v1613 = vpack.c.b16 %v1549, %v1549
      %v1614 = vpack.c.b16 %v1550, %v1550
      %v1615 = vpack.c.b16 %v1551, %v1551
      %v1616 = vpack.c.b16 %v1552, %v1552
      %v1617 = vpack.c.b16 %v1553, %v1553
      %v1618 = vunpack.c.l.b16 %v1554
      %v1619 = vunpack.c.l.b16 %v1555
      %v1620 = vunpack.c.l.b16 %v1556
      %v1621 = vunpack.c.l.b16 %v1557
      %v1622 = vunpack.c.l.b16 %v1558
      %v1623 = vunpack.c.l.b16 %v1559
      %v1624 = vunpack.c.l.b16 %v1560
      %v1625 = vunpack.c.l.b16 %v1561
      %v1626 = vunpack.c.l.b16 %v1562
      %v1627 = vunpack.c.l.b16 %v1563
      %v1628 = vunpack.c.l.b16 %v1564
      %v1629 = vunpack.c.l.b16 %v1565
      %v1630 = vunpack.c.l.b16 %v1566
      %v1631 = vunpack.c.l.b16 %v1567
      %v1632 = vunpack.c.l.b16 %v1568
      %v1633 = vunpack.c.l.b16 %v1569
      %v1634 = vunpack.c.l.b16 %v1570
      %v1635 = vunpack.c.l.b16 %v1571
      %v1636 = vunpack.c.l.b16 %v1572
      %v1637 = vunpack.c.l.b16 %v1573
      %v1638 = vunpack.c.l.b16 %v1574
      %v1639 = vunpack.c.l.b16 %v1575
      %v1640 = vunpack.c.l.b16 %v1576
      %v1641 = vunpack.c.l.b16 %v1577
      %v1642 = vunpack.c.l.b16 %v1578
      %v1643 = vunpack.c.l.b16 %v1579
      %v1644 = vunpack.c.l.b16 %v1580
      %v1645 = vunpack.c.l.b16 %v1581
      %v1646 = vunpack.c.l.b16 %v1582
      %v1647 = vunpack.c.l.b16 %v1583
      %v1648 = vunpack.c.l.b16 %v1584
      %v1649 = vunpack.c.l.b16 %v1585
      %v1650 = vunpack.c.l.b16 %v1586
      %v1651 = vunpack.c.l.b16 %v1587
      %v1652 = vunpack.c.l.b16 %v1588
      %v1653 = vunpack.c.l.b16 %v1589
      %v1654 = vunpack.c.l.b16 %v1590
      %v1655 = vunpack.c.l.b16 %v1591
      %v1656 = vunpack.c.l.b16 %v1592
      %v1657 = vunpack.c.l.b16 %v1593
      %v1658 = vunpack.c.l.b16 %v1594
      %v1659 = vunpack.c.l.b16 %v1595
      %v1660 = vunpack.c.l.b16 %v1596
      %v1661 = vunpack.c.l.b16 %v1597
      %v1662 = vunpack.c.l.b16 %v1598
      %v1663 = vunpack.c.l.b16 %v1599
      %v1664 = vunpack.c.l.b16 %v1600
      %v1665 = vunpack.c.l.b16 %v1601
      %v1666 = vunpack.c.l.b16 %v1602
      %v1667 = vunpack.c.l.b16 %v1603
      %v1668 = vunpack.c.l.b16 %v1604
      %v1669 = vunpack.c.l.b16 %v1605
      %v1670 = vunpack.c.l.b16 %v1606
      %v1671 = vunpack.c.l.b16 %v1607
      %v1672 = vunpack.c.l.b16 %v1608
      %v1673 = vunpack.c.l.b16 %v1609
      %v1674 = vunpack.c.l.b16 %v1610
      %v1675 = vunpack.c.l.b16 %v1611
      %v1676 = vunpack.c.l.b16 %v1612
      %v1677 = vunpack.c.l.b16 %v1613
      %v1678 = vunpack.c.l.b16 %v1614
      %v1679 = vunpack.c.l.b16 %v1615
      %v1680 = vunpack.c.l.b16 %v1616
      %v1681 = vunpack.c.l.b16 %v1617
      %vm1682 = vcmask 1041409
      %v1683 = vsel %vm1682, %v1619, %v1618
      %vm1684 = vcmask 1042434
      %v1685 = vsel %vm1684, %v1620, %v1683
      %vm1686 = vcmask 1043459
      %v1687 = vsel %vm1686, %v1621, %v1685
      %vm1688 = vcmask 1044484
      %v1689 = vsel %vm1688, %v1622, %v1687
      %vm1690 = vcmask 1045509
      %v1691 = vsel %vm1690, %v1623, %v1689
      %vm1692 = vcmask 1046534
      %v1693 = vsel %vm1692, %v1624, %v1691
      %vm1694 = vcmask 1047559
      %v1695 = vsel %vm1694, %v1625, %v1693
      %v1696 = vsel %vm1682, %v1627, %v1626
      %v1697 = vsel %vm1684, %v1628, %v1696
      %v1698 = vsel %vm1686, %v1629, %v1697
      %v1699 = vsel %vm1688, %v1630, %v1698
      %v1700 = vsel %vm1690, %v1631, %v1699
      %v1701 = vsel %vm1692, %v1632, %v1700
      %v1702 = vsel %vm1694, %v1633, %v1701
      %v1703 = vsel %vm1682, %v1635, %v1634
      %v1704 = vsel %vm1684, %v1636, %v1703
      %v1705 = vsel %vm1686, %v1637, %v1704
      %v1706 = vsel %vm1688, %v1638, %v1705
      %v1707 = vsel %vm1690, %v1639, %v1706
      %v1708 = vsel %vm1692, %v1640, %v1707
      %v1709 = vsel %vm1694, %v1641, %v1708
      %v1710 = vsel %vm1682, %v1643, %v1642
      %v1711 = vsel %vm1684, %v1644, %v1710
      %v1712 = vsel %vm1686, %v1645, %v1711
      %v1713 = vsel %vm1688, %v1646, %v1712
      %v1714 = vsel %vm1690, %v1647, %v1713
      %v1715 = vsel %vm1692, %v1648, %v1714
      %v1716 = vsel %vm1694, %v1649, %v1715
      %v1717 = vsel %vm1682, %v1651, %v1650
      %v1718 = vsel %vm1684, %v1652, %v1717
      %v1719 = vsel %vm1686, %v1653, %v1718
      %v1720 = vsel %vm1688, %v1654, %v1719
      %v1721 = vsel %vm1690, %v1655, %v1720
      %v1722 = vsel %vm1692, %v1656, %v1721
      %v1723 = vsel %vm1694, %v1657, %v1722
      %v1724 = vsel %vm1682, %v1659, %v1658
      %v1725 = vsel %vm1684, %v1660, %v1724
      %v1726 = vsel %vm1686, %v1661, %v1725
      %v1727 = vsel %vm1688, %v1662, %v1726
      %v1728 = vsel %vm1690, %v1663, %v1727
      %v1729 = vsel %vm1692, %v1664, %v1728
      %v1730 = vsel %vm1694, %v1665, %v1729
      %v1731 = vsel %vm1682, %v1667, %v1666
      %v1732 = vsel %vm1684, %v1668, %v1731
      %v1733 = vsel %vm1686, %v1669, %v1732
      %v1734 = vsel %vm1688, %v1670, %v1733
      %v1735 = vsel %vm1690, %v1671, %v1734
      %v1736 = vsel %vm1692, %v1672, %v1735
      %v1737 = vsel %vm1694, %v1673, %v1736
      %v1738 = vsel %vm1682, %v1675, %v1674
      %v1739 = vsel %vm1684, %v1676, %v1738
      %v1740 = vsel %vm1686, %v1677, %v1739
      %v1741 = vsel %vm1688, %v1678, %v1740
      %v1742 = vsel %vm1690, %v1679, %v1741
      %v1743 = vsel %vm1692, %v1680, %v1742
      %v1744 = vsel %vm1694, %v1681, %v1743
      %v1745 = vpack.c.b16 %v1695, %v1695
      %v1746 = vpack.c.b16 %v1702, %v1702
      %v1747 = vpack.c.b16 %v1709, %v1709
      %v1748 = vpack.c.b16 %v1716, %v1716
      %v1749 = vpack.c.b16 %v1723, %v1723
      %v1750 = vpack.c.b16 %v1730, %v1730
      %v1751 = vpack.c.b16 %v1737, %v1737
      %v1752 = vpack.c.b16 %v1744, %v1744
      %1761 = vst [vmem:[%s210] sm:$0xf] %v1745
      %1762 = vst [vmem:[%s210 + $0x4] sm:$0xf] %v1746
      %1763 = vst [vmem:[%s210 + $0x8] sm:$0xf] %v1747
      %1764 = vst [vmem:[%s210 + $0xc] sm:$0xf] %v1748
      %1765 = vst [vmem:[%s210 + $0x10] sm:$0xf] %v1749
      %1766 = vst [vmem:[%s210 + $0x14] sm:$0xf] %v1750
      %1767 = vst [vmem:[%s210 + $0x18] sm:$0xf] %v1751
      %1768 = vst [vmem:[%s210 + $0x1c] sm:$0xf] %v1752
      %p1769 = scmp.lt.s32.totalorder %s16, 1
      %s1770 = scalar_select %p1769, %s16, 1
      %s1771 = smul.addr %s1770, 32
      %s1772 = smul.addr %s1771, 4
      %s1773 = scalar_lea.vmem %s3, %s1772
      %p1774 = scmp.lt.s32.totalorder %s16, 1
      %s1775 = scalar_select %p1774, %s16, 1
      %s1776 = smul.addr %s1775, 8
      %s1777 = smul.addr %s1776, 4
      %s1778 = scalar_lea.vmem %s4, %s1777
      // Predicated region
      $region33: #{down_block.5} parent=31 // pred_check
        %p1779 = pneg %p102
      $region34: #{down_block.5} parent=31 // pred_check_branch
        %1781 = sbr.rel (%p1779) target = $region36
      $region35: #{down_block.5} parent=31 // pred_region
        _
      $region36: #{down_block.5} parent=31 // pred_fallthru
        _
      // Predicated region
      $region37: #{down_block.5} parent=31 // pred_check
        %p1782 = pneg %p128
      $region38: #{down_block.5} parent=31 // pred_check_branch
        %1784 = sbr.rel (%p1782) target = $region40
      $region39: #{down_block.5} parent=31 // pred_region
        _
      $region40: #{down_block.5} parent=31 // pred_fallthru
        _
    $region32: #{down_block.5} parent=5 // pred_fallthru
      _
    %p1785 = scmp.le.s32.totalorder 2, %s11
    // Predicated region
    $region41: #{down_block.5} parent=5 // pred_check
      %p1786 = pneg %p1785
    $region42: #{down_block.5} parent=5 // pred_check_branch
      %1788 = sbr.rel (%p1786) target = $region44
    $region43: #{down_block.5} parent=5 // pred_region
      %s1789 = ssub.s32 %s11, 2
      // Predicated region
      $region45: #{down_block.5} parent=43 // pred_check
        %p1790 = pneg %p108
      $region46: #{down_block.5} parent=43 // pred_check_branch
        %1792 = sbr.rel (%p1790) target = $region48
      $region47: #{down_block.5} parent=43 // pred_region
        %p1793 = scmp.lt.s32.totalorder %s17, 1
        %s1794 = scalar_select %p1793, %s17, 1
        %s1795 = smul.addr %s1794, 32
        %s1796 = smul.addr %s1795, 4
        %s1797 = scalar_lea.vmem %s3, %s1796
      $region48: #{down_block.5} parent=43 // pred_fallthru
        _
      // Predicated region
      $region49: #{down_block.5} parent=43 // pred_check
        %p1798 = pneg %p134
      $region50: #{down_block.5} parent=43 // pred_check_branch
        %1800 = sbr.rel (%p1798) target = $region52
      $region51: #{down_block.5} parent=43 // pred_region
        %p1801 = scmp.lt.s32.totalorder %s17, 1
        %s1802 = scalar_select %p1801, %s17, 1
        %s1803 = smul.addr %s1802, 8
        %s1804 = smul.addr %s1803, 4
        %s1805 = scalar_lea.vmem %s4, %s1804
      $region52: #{down_block.5} parent=43 // pred_fallthru
        _
    $region44: #{down_block.5} parent=5 // pred_fallthru
      _
  $region6: #{down_block.5} parent=0 // loop_footer
    %s15 = sadd.s32 1, %s11
  $region7: #{down_block.5} parent=0 // loop_footer_branch
    %10 = sbr.rel target = $region3
  $region8: #{down_block.5} parent=0 // loop_exit
    _

// kernel: down_block.4
$region0: #{down_block.4}
  #allocation0 [shape = 'u32[]', space=smem, size = 0x4, offset = 0x4, fixed_abs, tag = 'smem constant byte address 0x4 - core index']
  #allocation1 [shape = 'u32[144,128]{1,0:T(1,128)}', space=vmem, size = 0x12000, scoped, tag = 'internal scratch']
  #allocation2 [shape = 'bf16[18,25,256]{2,1,0:T(8,128)(2,1)}', space=vmem, size = 0x48000, scoped, tag = 'scratch operand']
  %s0 = inlined_call_operand.vmem [shape: bf16[2,16,16,128], index: 0, kind: input, shape index: {}]
  %s1 = inlined_call_operand.vmem [shape: f32[1,128], index: 1, kind: input, shape index: {}]
  %s2 = inlined_call_operand.vmem [shape: f32[1,128], index: 2, kind: input, shape index: {}]
  %s3 = inlined_call_operand.vmem [shape: bf16[3,256,128], index: 3, kind: input, shape index: {}]
  %s4 = inlined_call_operand.vmem [shape: bf16[3,128,128], index: 4, kind: input, shape index: {}]
  %s5 = inlined_call_operand.vmem [shape: f32[1,128], index: 5, kind: input, shape index: {}]
  %s6 = inlined_call_operand.vmem [shape: bf16[2,16,16,128], index: 6, kind: output, shape index: {0}]
  %s7 = inlined_call_operand.vmem [shape: f32[2,2,128], index: 7, kind: output, shape index: {1}]
  %8 = xla_tuple %s6, %s7
  %s9 = sld [smem:[#allocation0]]
  $region65: #{down_block.4} parent=0
    _
  %s11 = ssub.s32 1, %s9
  %s12 = scalar_select 0, %s11, %s9
  loop: start=0, step=1, limit=4
  $region2: #{down_block.4} parent=0 // loop_pre_header
    _
  $region3: #{down_block.4} parent=0 // loop_header
    %s14 = sphi 0, %s18
    %p15 = scmp.ge.s32.totalorder %s14, 4
    %s24 = sphi 0, %s26
    %s27 = sphi 0, %s24
    %s28 = sphi 0, %s27
    %s44 = sphi 0, %s28
    %s48 = sphi 0, %s48
    %s50 = sphi 0, %s48
    %s51 = sphi 0, %s50
    %s65 = sphi 0, %s51
    %s69 = sphi 0, %s69
    %s71 = sphi 0, %s69
    %s72 = sphi 0, %s71
    %s86 = sphi 0, %s72
    %s90 = sphi 0, %s90
    %s92 = sphi 0, %s90
    %s93 = sphi 0, %s92
    %s107 = sphi 0, %s93
    %s111 = sphi 0, %s111
    %s113 = sphi 0, %s111
    %s114 = sphi 0, %s113
    %s128 = sphi 0, %s114
    %s132 = sphi 0, %s132
    %s134 = sphi 0, %s132
    %s135 = sphi 0, %s134
    %s149 = sphi 0, %s135
    %s155 = sphi 0, %s157
    %s158 = sphi 0, %s155
    %s159 = sphi 0, %s158
    %s175 = sphi 0, %s159
    %s181 = sphi 0, %s183
    %s184 = sphi 0, %s181
    %s185 = sphi 0, %s184
    %s201 = sphi 0, %s185
  $region4: #{down_block.4} parent=0 // loop_header_branch
    %17 = sbr.rel (%p15) target = $region8
  $region5: #{down_block.4} parent=0 // loop_body
    %s19 = ssub.s32 %s14, 1
    %s20 = ssub.s32 %s14, 2
    %s21 = sadd.s32 %s14, 1
    %s22 = ssub.s32 %s14, %s21
    %p23 = scmp.eq.s32.totalorder %s22, 0
    %s25 = sadd.s32 %s24, 1
    %s26 = scalar_select %p23, %s24, %s25
    %p29 = pneg %p23
    %p30 = scmp.eq.s32.totalorder %s14, 1
    %p31 = por %p29, %p30
    %p32 = scmp.ne.s32.totalorder %s24, %s27
    %p33 = scmp.eq.s32.totalorder %s14, 0
    %p34 = por %p32, %p33
    %p35 = scmp.ne.s32.totalorder %s24, %s27
    %p36 = scmp.eq.s32.totalorder %s19, 1
    %p37 = por %p35, %p36
    %p38 = scmp.ne.s32.totalorder %s27, %s28
    %p39 = scmp.eq.s32.totalorder %s19, 0
    %p40 = por %p38, %p39
    %p41 = scmp.ne.s32.totalorder %s27, %s28
    %p42 = scmp.eq.s32.totalorder %s20, 1
    %p43 = por %p41, %p42
    %p45 = scmp.ne.s32.totalorder %s28, %s44
    %p46 = scmp.eq.s32.totalorder %s20, 0
    %p47 = por %p45, %p46
    %s49 = sadd.s32 %s48, 1
    %p52 = scmp.eq.s32.totalorder %s14, 1
    %p53 = scmp.ne.s32.totalorder %s48, %s50
    %p54 = scmp.eq.s32.totalorder %s14, 0
    %p55 = por %p53, %p54
    %p56 = scmp.ne.s32.totalorder %s48, %s50
    %p57 = scmp.eq.s32.totalorder %s19, 1
    %p58 = por %p56, %p57
    %p59 = scmp.ne.s32.totalorder %s50, %s51
    %p60 = scmp.eq.s32.totalorder %s19, 0
    %p61 = por %p59, %p60
    %p62 = scmp.ne.s32.totalorder %s50, %s51
    %p63 = scmp.eq.s32.totalorder %s20, 1
    %p64 = por %p62, %p63
    %p66 = scmp.ne.s32.totalorder %s51, %s65
    %p67 = scmp.eq.s32.totalorder %s20, 0
    %p68 = por %p66, %p67
    %s70 = sadd.s32 %s69, 1
    %p73 = scmp.eq.s32.totalorder %s14, 1
    %p74 = scmp.ne.s32.totalorder %s69, %s71
    %p75 = scmp.eq.s32.totalorder %s14, 0
    %p76 = por %p74, %p75
    %p77 = scmp.ne.s32.totalorder %s69, %s71
    %p78 = scmp.eq.s32.totalorder %s19, 1
    %p79 = por %p77, %p78
    %p80 = scmp.ne.s32.totalorder %s71, %s72
    %p81 = scmp.eq.s32.totalorder %s19, 0
    %p82 = por %p80, %p81
    %p83 = scmp.ne.s32.totalorder %s71, %s72
    %p84 = scmp.eq.s32.totalorder %s20, 1
    %p85 = por %p83, %p84
    %p87 = scmp.ne.s32.totalorder %s72, %s86
    %p88 = scmp.eq.s32.totalorder %s20, 0
    %p89 = por %p87, %p88
    %s91 = sadd.s32 %s90, 1
    %p94 = scmp.eq.s32.totalorder %s14, 1
    %p95 = scmp.ne.s32.totalorder %s90, %s92
    %p96 = scmp.eq.s32.totalorder %s14, 0
    %p97 = por %p95, %p96
    %p98 = scmp.ne.s32.totalorder %s90, %s92
    %p99 = scmp.eq.s32.totalorder %s19, 1
    %p100 = por %p98, %p99
    %p101 = scmp.ne.s32.totalorder %s92, %s93
    %p102 = scmp.eq.s32.totalorder %s19, 0
    %p103 = por %p101, %p102
    %p104 = scmp.ne.s32.totalorder %s92, %s93
    %p105 = scmp.eq.s32.totalorder %s20, 1
    %p106 = por %p104, %p105
    %p108 = scmp.ne.s32.totalorder %s93, %s107
    %p109 = scmp.eq.s32.totalorder %s20, 0
    %p110 = por %p108, %p109
    %s112 = sadd.s32 %s111, 1
    %p115 = scmp.eq.s32.totalorder %s14, 1
    %p116 = scmp.ne.s32.totalorder %s111, %s113
    %p117 = scmp.eq.s32.totalorder %s14, 0
    %p118 = por %p116, %p117
    %p119 = scmp.ne.s32.totalorder %s111, %s113
    %p120 = scmp.eq.s32.totalorder %s19, 1
    %p121 = por %p119, %p120
    %p122 = scmp.ne.s32.totalorder %s113, %s114
    %p123 = scmp.eq.s32.totalorder %s19, 0
    %p124 = por %p122, %p123
    %p125 = scmp.ne.s32.totalorder %s113, %s114
    %p126 = scmp.eq.s32.totalorder %s20, 1
    %p127 = por %p125, %p126
    %p129 = scmp.ne.s32.totalorder %s114, %s128
    %p130 = scmp.eq.s32.totalorder %s20, 0
    %p131 = por %p129, %p130
    %s133 = sadd.s32 %s132, 1
    %p136 = scmp.eq.s32.totalorder %s14, 1
    %p137 = scmp.ne.s32.totalorder %s132, %s134
    %p138 = scmp.eq.s32.totalorder %s14, 0
    %p139 = por %p137, %p138
    %p140 = scmp.ne.s32.totalorder %s132, %s134
    %p141 = scmp.eq.s32.totalorder %s19, 1
    %p142 = por %p140, %p141
    %p143 = scmp.ne.s32.totalorder %s134, %s135
    %p144 = scmp.eq.s32.totalorder %s19, 0
    %p145 = por %p143, %p144
    %p146 = scmp.ne.s32.totalorder %s134, %s135
    %p147 = scmp.eq.s32.totalorder %s20, 1
    %p148 = por %p146, %p147
    %p150 = scmp.ne.s32.totalorder %s135, %s149
    %p151 = scmp.eq.s32.totalorder %s20, 0
    %p152 = por %p150, %p151
    %s153 = ssub.s32 %s14, %s21
    %p154 = scmp.eq.s32.totalorder %s153, 0
    %s156 = sadd.s32 %s155, 1
    %s157 = scalar_select %p154, %s155, %s156
    %p160 = pneg %p154
    %p161 = scmp.eq.s32.totalorder %s14, 1
    %p162 = por %p160, %p161
    %p163 = scmp.ne.s32.totalorder %s155, %s158
    %p164 = scmp.eq.s32.totalorder %s14, 0
    %p165 = por %p163, %p164
    %p166 = scmp.ne.s32.totalorder %s155, %s158
    %p167 = scmp.eq.s32.totalorder %s19, 1
    %p168 = por %p166, %p167
    %p169 = scmp.ne.s32.totalorder %s158, %s159
    %p170 = scmp.eq.s32.totalorder %s19, 0
    %p171 = por %p169, %p170
    %p172 = scmp.ne.s32.totalorder %s158, %s159
    %p173 = scmp.eq.s32.totalorder %s20, 1
    %p174 = por %p172, %p173
    %p176 = scmp.ne.s32.totalorder %s159, %s175
    %p177 = scmp.eq.s32.totalorder %s20, 0
    %p178 = por %p176, %p177
    %s179 = ssub.s32 %s14, %s21
    %p180 = scmp.eq.s32.totalorder %s179, 0
    %s182 = sadd.s32 %s181, 1
    %s183 = scalar_select %p180, %s181, %s182
    %p186 = pneg %p180
    %p187 = scmp.eq.s32.totalorder %s14, 1
    %p188 = por %p186, %p187
    %p189 = scmp.ne.s32.totalorder %s181, %s184
    %p190 = scmp.eq.s32.totalorder %s14, 0
    %p191 = por %p189, %p190
    %p192 = scmp.ne.s32.totalorder %s181, %s184
    %p193 = scmp.eq.s32.totalorder %s19, 1
    %p194 = por %p192, %p193
    %p195 = scmp.ne.s32.totalorder %s184, %s185
    %p196 = scmp.eq.s32.totalorder %s19, 0
    %p197 = por %p195, %p196
    %p198 = scmp.ne.s32.totalorder %s184, %s185
    %p199 = scmp.eq.s32.totalorder %s20, 1
    %p200 = por %p198, %p199
    %p202 = scmp.ne.s32.totalorder %s185, %s201
    %p203 = scmp.eq.s32.totalorder %s20, 0
    %p204 = por %p202, %p203
    %p205 = scmp.le.s32.totalorder 1, %s14
    %p206 = scmp.lt.s32.totalorder %s14, 3
    %p207 = pnand %p205, %p206
    %p208 = pneg %p207
    // Predicated region
    $region9: #{down_block.4} parent=5 // pred_check
      _
    $region10: #{down_block.4} parent=5 // pred_check_branch
      %210 = sbr.rel (%p207) target = $region12
    $region11: #{down_block.4} parent=5 // pred_region
      %s211 = ssub.s32 %s14, 1
      // Predicated region
      $region13: #{down_block.4} parent=11 // pred_check
        %p212 = pneg %p61
      $region14: #{down_block.4} parent=11 // pred_check_branch
        %214 = sbr.rel (%p212) target = $region16
      $region15: #{down_block.4} parent=11 // pred_region
        _
      $region16: #{down_block.4} parent=11 // pred_fallthru
        _
      // Predicated region
      $region17: #{down_block.4} parent=11 // pred_check
        %p215 = pneg %p82
      $region18: #{down_block.4} parent=11 // pred_check_branch
        %217 = sbr.rel (%p215) target = $region20
      $region19: #{down_block.4} parent=11 // pred_region
        _
      $region20: #{down_block.4} parent=11 // pred_fallthru
        _
      // Predicated region
      $region21: #{down_block.4} parent=11 // pred_check
        %p218 = pneg %p103
      $region22: #{down_block.4} parent=11 // pred_check_branch
        %220 = sbr.rel (%p218) target = $region24
      $region23: #{down_block.4} parent=11 // pred_region
        _
      $region24: #{down_block.4} parent=11 // pred_fallthru
        _
      // Predicated region
      $region25: #{down_block.4} parent=11 // pred_check
        %p221 = pneg %p124
      $region26: #{down_block.4} parent=11 // pred_check_branch
        %223 = sbr.rel (%p221) target = $region28
      $region27: #{down_block.4} parent=11 // pred_region
        _
      $region28: #{down_block.4} parent=11 // pred_fallthru
        _
      // Predicated region
      $region29: #{down_block.4} parent=11 // pred_check
        %p224 = pneg %p145
      $region30: #{down_block.4} parent=11 // pred_check_branch
        %226 = sbr.rel (%p224) target = $region32
      $region31: #{down_block.4} parent=11 // pred_region
        _
      $region32: #{down_block.4} parent=11 // pred_fallthru
        _
    $region12: #{down_block.4} parent=5 // pred_fallthru
      _
    %p227 = scmp.lt.s32.totalorder %s14, 2
    // Predicated region
    $region33: #{down_block.4} parent=5 // pred_check
      %p228 = pneg %p227
    $region34: #{down_block.4} parent=5 // pred_check_branch
      %230 = sbr.rel (%p228) target = $region36
    $region35: #{down_block.4} parent=5 // pred_region
      // Predicated region
      $region37: #{down_block.4} parent=35 // pred_check
        %p231 = pneg %p34
      $region38: #{down_block.4} parent=35 // pred_check_branch
        %233 = sbr.rel (%p231) target = $region40
      $region39: #{down_block.4} parent=35 // pred_region
        %p234 = scmp.lt.s32.totalorder %s14, 1
        %s235 = scalar_select %p234, %s14, 1
        %s236 = smul.addr %s235, 32
        %s237 = smul.addr %s236, 4
        %s238 = scalar_lea.vmem %s0, %s237
      $region40: #{down_block.4} parent=35 // pred_fallthru
        _
    $region36: #{down_block.4} parent=5 // pred_fallthru
      _
    %p239 = scmp.le.s32.totalorder 1, %s14
    %p240 = scmp.lt.s32.totalorder %s14, 3
    %p241 = pnand %p239, %p240
    %p242 = pneg %p241
    // Predicated region
    $region41: #{down_block.4} parent=5 // pred_check
      _
    $region42: #{down_block.4} parent=5 // pred_check_branch
      %244 = sbr.rel (%p241) target = $region44
    $region43: #{down_block.4} parent=5 // pred_region
      %s245 = ssub.s32 %s14, 1
      %p246 = scmp.lt.s32.totalorder %s19, 1
      %s247 = scalar_select %p246, %s19, 1
      %s248 = smul.addr %s247, 32
      %s249 = smul.addr %s248, 4
      %s250 = scalar_lea.vmem %s0, %s249
      %p251 = pneg %p40
      %p252 = pneg %p37
      %p253 = pneg %p61
      %p254 = pneg %p58
      %p255 = pneg %p82
      %p256 = pneg %p79
      %p257 = pneg %p103
      %p258 = pneg %p100
      %p259 = pneg %p124
      %p260 = pneg %p121
      %p261 = pneg %p145
      %p262 = pneg %p142
      %p263 = pneg %p171
      %p264 = pneg %p168
      %p265 = scmp.lt.s32.totalorder %s19, 1
      %s266 = scalar_select %p265, %s19, 1
      %s267 = smul.addr %s266, 32
      %s268 = smul.addr %s267, 4
      %s269 = scalar_lea.vmem %s6, %s268
      %p270 = pneg %p197
      %p271 = pneg %p194
      %p272 = scmp.lt.s32.totalorder %s19, 1
      %s273 = scalar_select %p272, %s19, 1
      %s274 = smul.addr %s273, 2
      %s275 = scalar_lea.vmem %s7, %s274
      %p276 = scmp.lt.s32.totalorder %s19, 1
      %s277 = scalar_select %p276, %s19, 1
      %s278 = smul.addr %s277, 32
      %s279 = smul.addr %s278, 4
      %s280 = scalar_lea.vmem %s0, %s279
      %p281 = scmp.lt.s32.totalorder %s19, 1
      %s282 = scalar_select %p281, %s19, 1
      %s283 = smul.addr %s282, 32
      %s284 = smul.addr %s283, 4
      %s285 = scalar_lea.vmem %s6, %s284
      %p286 = scmp.lt.s32.totalorder %s19, 1
      %s287 = scalar_select %p286, %s19, 1
      %s288 = smul.addr %s287, 2
      %s289 = scalar_lea.vmem %s7, %s288
      %v291 = vld [vmem:[%s280] sm:$0xf]
      %v292 = vld [vmem:[%s280 + $0x4] sm:$0xf]
      %v293 = vld [vmem:[%s280 + $0x8] sm:$0xf]
      %v294 = vld [vmem:[%s280 + $0xc] sm:$0xf]
      %v295 = vld [vmem:[%s280 + $0x10] sm:$0xf]
      %v296 = vld [vmem:[%s280 + $0x14] sm:$0xf]
      %v297 = vld [vmem:[%s280 + $0x18] sm:$0xf]
      %v298 = vld [vmem:[%s280 + $0x1c] sm:$0xf]
      %v299 = vld [vmem:[%s280 + $0x20] sm:$0xf]
      %v300 = vld [vmem:[%s280 + $0x24] sm:$0xf]
      %v301 = vld [vmem:[%s280 + $0x28] sm:$0xf]
      %v302 = vld [vmem:[%s280 + $0x2c] sm:$0xf]
      %v303 = vld [vmem:[%s280 + $0x30] sm:$0xf]
      %v304 = vld [vmem:[%s280 + $0x34] sm:$0xf]
      %v305 = vld [vmem:[%s280 + $0x38] sm:$0xf]
      %v306 = vld [vmem:[%s280 + $0x3c] sm:$0xf]
      %v307 = vld [vmem:[%s280 + $0x40] sm:$0xf]
      %v308 = vld [vmem:[%s280 + $0x44] sm:$0xf]
      %v309 = vld [vmem:[%s280 + $0x48] sm:$0xf]
      %v310 = vld [vmem:[%s280 + $0x4c] sm:$0xf]
      %v311 = vld [vmem:[%s280 + $0x50] sm:$0xf]
      %v312 = vld [vmem:[%s280 + $0x54] sm:$0xf]
      %v313 = vld [vmem:[%s280 + $0x58] sm:$0xf]
      %v314 = vld [vmem:[%s280 + $0x5c] sm:$0xf]
      %v315 = vld [vmem:[%s280 + $0x60] sm:$0xf]
      %v316 = vld [vmem:[%s280 + $0x64] sm:$0xf]
      %v317 = vld [vmem:[%s280 + $0x68] sm:$0xf]
      %v318 = vld [vmem:[%s280 + $0x6c] sm:$0xf]
      %v319 = vld [vmem:[%s280 + $0x70] sm:$0xf]
      %v320 = vld [vmem:[%s280 + $0x74] sm:$0xf]
      %v321 = vld [vmem:[%s280 + $0x78] sm:$0xf]
      %v322 = vld [vmem:[%s280 + $0x7c] sm:$0xf]
      %v323 = vunpack.c.l.bf16 %v291
      %v324 = vunpack.c.l.bf16 %v292
      %v325 = vunpack.c.l.bf16 %v293
      %v326 = vunpack.c.l.bf16 %v294
      %v327 = vunpack.c.l.bf16 %v295
      %v328 = vunpack.c.l.bf16 %v296
      %v329 = vunpack.c.l.bf16 %v297
      %v330 = vunpack.c.l.bf16 %v298
      %v331 = vunpack.c.l.bf16 %v299
      %v332 = vunpack.c.l.bf16 %v300
      %v333 = vunpack.c.l.bf16 %v301
      %v334 = vunpack.c.l.bf16 %v302
      %v335 = vunpack.c.l.bf16 %v303
      %v336 = vunpack.c.l.bf16 %v304
      %v337 = vunpack.c.l.bf16 %v305
      %v338 = vunpack.c.l.bf16 %v306
      %v339 = vunpack.c.l.bf16 %v307
      %v340 = vunpack.c.l.bf16 %v308
      %v341 = vunpack.c.l.bf16 %v309
      %v342 = vunpack.c.l.bf16 %v310
      %v343 = vunpack.c.l.bf16 %v311
      %v344 = vunpack.c.l.bf16 %v312
      %v345 = vunpack.c.l.bf16 %v313
      %v346 = vunpack.c.l.bf16 %v314
      %v347 = vunpack.c.l.bf16 %v315
      %v348 = vunpack.c.l.bf16 %v316
      %v349 = vunpack.c.l.bf16 %v317
      %v350 = vunpack.c.l.bf16 %v318
      %v351 = vunpack.c.l.bf16 %v319
      %v352 = vunpack.c.l.bf16 %v320
      %v353 = vunpack.c.l.bf16 %v321
      %v354 = vunpack.c.l.bf16 %v322
      %v355 = vld [vmem:[%s1] sm:$0x1]
      %v357 = vlaneseq
      %v358 = vshrl.u32 %v357, 7
      %v359 = vsub.s32 0, %v358
      %v360 = vrot.slane %v355, %v359
      %v362 = vmul.f32 %v323, %v360
      %v363 = vmul.f32 %v324, %v360
      %v364 = vmul.f32 %v325, %v360
      %v365 = vmul.f32 %v326, %v360
      %v366 = vmul.f32 %v327, %v360
      %v367 = vmul.f32 %v328, %v360
      %v368 = vmul.f32 %v329, %v360
      %v369 = vmul.f32 %v330, %v360
      %v370 = vmul.f32 %v331, %v360
      %v371 = vmul.f32 %v332, %v360
      %v372 = vmul.f32 %v333, %v360
      %v373 = vmul.f32 %v334, %v360
      %v374 = vmul.f32 %v335, %v360
      %v375 = vmul.f32 %v336, %v360
      %v376 = vmul.f32 %v337, %v360
      %v377 = vmul.f32 %v338, %v360
      %v378 = vmul.f32 %v339, %v360
      %v379 = vmul.f32 %v340, %v360
      %v380 = vmul.f32 %v341, %v360
      %v381 = vmul.f32 %v342, %v360
      %v382 = vmul.f32 %v343, %v360
      %v383 = vmul.f32 %v344, %v360
      %v384 = vmul.f32 %v345, %v360
      %v385 = vmul.f32 %v346, %v360
      %v386 = vmul.f32 %v347, %v360
      %v387 = vmul.f32 %v348, %v360
      %v388 = vmul.f32 %v349, %v360
      %v389 = vmul.f32 %v350, %v360
      %v390 = vmul.f32 %v351, %v360
      %v391 = vmul.f32 %v352, %v360
      %v392 = vmul.f32 %v353, %v360
      %v393 = vmul.f32 %v354, %v360
      %v394 = vld [vmem:[%s2] sm:$0x1]
      %v396 = vlaneseq
      %v397 = vshrl.u32 %v396, 7
      %v398 = vsub.s32 0, %v397
      %v399 = vrot.slane %v394, %v398
      %v401 = vadd.f32 %v362, %v399
      %v402 = vadd.f32 %v363, %v399
      %v403 = vadd.f32 %v364, %v399
      %v404 = vadd.f32 %v365, %v399
      %v405 = vadd.f32 %v366, %v399
      %v406 = vadd.f32 %v367, %v399
      %v407 = vadd.f32 %v368, %v399
      %v408 = vadd.f32 %v369, %v399
      %v409 = vadd.f32 %v370, %v399
      %v410 = vadd.f32 %v371, %v399
      %v411 = vadd.f32 %v372, %v399
      %v412 = vadd.f32 %v373, %v399
      %v413 = vadd.f32 %v374, %v399
      %v414 = vadd.f32 %v375, %v399
      %v415 = vadd.f32 %v376, %v399
      %v416 = vadd.f32 %v377, %v399
      %v417 = vadd.f32 %v378, %v399
      %v418 = vadd.f32 %v379, %v399
      %v419 = vadd.f32 %v380, %v399
      %v420 = vadd.f32 %v381, %v399
      %v421 = vadd.f32 %v382, %v399
      %v422 = vadd.f32 %v383, %v399
      %v423 = vadd.f32 %v384, %v399
      %v424 = vadd.f32 %v385, %v399
      %v425 = vadd.f32 %v386, %v399
      %v426 = vadd.f32 %v387, %v399
      %v427 = vadd.f32 %v388, %v399
      %v428 = vadd.f32 %v389, %v399
      %v429 = vadd.f32 %v390, %v399
      %v430 = vadd.f32 %v391, %v399
      %v431 = vadd.f32 %v392, %v399
      %v432 = vadd.f32 %v393, %v399
      %v433 = vmax.f32 %v401, 0.0
      %v434 = vmax.f32 %v402, 0.0
      %v435 = vmax.f32 %v403, 0.0
      %v436 = vmax.f32 %v404, 0.0
      %v437 = vmax.f32 %v405, 0.0
      %v438 = vmax.f32 %v406, 0.0
      %v439 = vmax.f32 %v407, 0.0
      %v440 = vmax.f32 %v408, 0.0
      %v441 = vmax.f32 %v409, 0.0
      %v442 = vmax.f32 %v410, 0.0
      %v443 = vmax.f32 %v411, 0.0
      %v444 = vmax.f32 %v412, 0.0
      %v445 = vmax.f32 %v413, 0.0
      %v446 = vmax.f32 %v414, 0.0
      %v447 = vmax.f32 %v415, 0.0
      %v448 = vmax.f32 %v416, 0.0
      %v449 = vmax.f32 %v417, 0.0
      %v450 = vmax.f32 %v418, 0.0
      %v451 = vmax.f32 %v419, 0.0
      %v452 = vmax.f32 %v420, 0.0
      %v453 = vmax.f32 %v421, 0.0
      %v454 = vmax.f32 %v422, 0.0
      %v455 = vmax.f32 %v423, 0.0
      %v456 = vmax.f32 %v424, 0.0
      %v457 = vmax.f32 %v425, 0.0
      %v458 = vmax.f32 %v426, 0.0
      %v459 = vmax.f32 %v427, 0.0
      %v460 = vmax.f32 %v428, 0.0
      %v461 = vmax.f32 %v429, 0.0
      %v462 = vmax.f32 %v430, 0.0
      %v463 = vmax.f32 %v431, 0.0
      %v464 = vmax.f32 %v432, 0.0
      %v465 = vpack.c.bf16 %v434, %v433
      %v466 = vpack.c.bf16 %v436, %v435
      %v467 = vpack.c.bf16 %v438, %v437
      %v468 = vpack.c.bf16 %v440, %v439
      %v469 = vpack.c.bf16 %v442, %v441
      %v470 = vpack.c.bf16 %v444, %v443
      %v471 = vpack.c.bf16 %v446, %v445
      %v472 = vpack.c.bf16 %v448, %v447
      %v473 = vpack.c.bf16 %v450, %v449
      %v474 = vpack.c.bf16 %v452, %v451
      %v475 = vpack.c.bf16 %v454, %v453
      %v476 = vpack.c.bf16 %v456, %v455
      %v477 = vpack.c.bf16 %v458, %v457
      %v478 = vpack.c.bf16 %v460, %v459
      %v479 = vpack.c.bf16 %v462, %v461
      %v480 = vpack.c.bf16 %v464, %v463
      %481 = vst [vmem:[#allocation2] sm:$0xff] 0
      %482 = vst [vmem:[#allocation2 + $0x20] sm:$0xff] 0
      %483 = vst [vmem:[#allocation2 + $0x40] sm:$0xff] 0
      %484 = vst [vmem:[#allocation2 + $0x60] sm:$0xff] 0
      %485 = vst [vmem:[#allocation2 + $0x80] sm:$0xff] 0
      %486 = vst [vmem:[#allocation2 + $0xa0] sm:$0xff] 0
      %487 = vst [vmem:[#allocation2 + $0xc0] sm:$0xff] 0
      %488 = vst [vmem:[#allocation2 + $0xe0] sm:$0xff] 0
      %489 = vst [vmem:[#allocation2 + $0x100] sm:$0xff] 0
      %490 = vst [vmem:[#allocation2 + $0x120] sm:$0xff] 0
      %491 = vst [vmem:[#allocation2 + $0x140] sm:$0xff] 0
      %492 = vst [vmem:[#allocation2 + $0x160] sm:$0xff] 0
      %493 = vst [vmem:[#allocation2 + $0x180] sm:$0xff] 0
      %494 = vst [vmem:[#allocation2 + $0x1a0] sm:$0xff] 0
      %495 = vst [vmem:[#allocation2 + $0x1c0] sm:$0xff] 0
      %496 = vst [vmem:[#allocation2 + $0x1e0] sm:$0xff] 0
      %497 = vst [vmem:[#allocation2 + $0x200] sm:$0xff] 0
      %498 = vst [vmem:[#allocation2 + $0x220] sm:$0xff] 0
      %vm499 = vcmask 1040384
      %vm500 = vsmask.f32 256
      %vm501 = vmand %vm499, %vm500
      %vm502 = vcmask 1044484
      %vm503 = vsmask.f32 4352
      %vm504 = vmand %vm502, %vm503
      %vm505 = vmor %vm504, %vm501
      %v506 = vld [vmem:[#allocation2 + $0x18] sm:$0x11]
      %v507 = vsel %vm505, 0, %v506
      %508 = vst [vmem:[#allocation2 + $0x18] sm:$0x11] %v507
      %v509 = vld [vmem:[#allocation2 + $0x38] sm:$0x11]
      %v510 = vsel %vm505, 0, %v509
      %511 = vst [vmem:[#allocation2 + $0x38] sm:$0x11] %v510
      %v512 = vld [vmem:[#allocation2 + $0x58] sm:$0x11]
      %v513 = vsel %vm505, 0, %v512
      %514 = vst [vmem:[#allocation2 + $0x58] sm:$0x11] %v513
      %v515 = vld [vmem:[#allocation2 + $0x78] sm:$0x11]
      %v516 = vsel %vm505, 0, %v515
      %517 = vst [vmem:[#allocation2 + $0x78] sm:$0x11] %v516
      %v518 = vld [vmem:[#allocation2 + $0x98] sm:$0x11]
      %v519 = vsel %vm505, 0, %v518
      %520 = vst [vmem:[#allocation2 + $0x98] sm:$0x11] %v519
      %v521 = vld [vmem:[#allocation2 + $0xb8] sm:$0x11]
      %v522 = vsel %vm505, 0, %v521
      %523 = vst [vmem:[#allocation2 + $0xb8] sm:$0x11] %v522
      %v524 = vld [vmem:[#allocation2 + $0xd8] sm:$0x11]
      %v525 = vsel %vm505, 0, %v524
      %526 = vst [vmem:[#allocation2 + $0xd8] sm:$0x11] %v525
      %v527 = vld [vmem:[#allocation2 + $0xf8] sm:$0x11]
      %v528 = vsel %vm505, 0, %v527
      %529 = vst [vmem:[#allocation2 + $0xf8] sm:$0x11] %v528
      %v530 = vld [vmem:[#allocation2 + $0x118] sm:$0x11]
      %v531 = vsel %vm505, 0, %v530
      %532 = vst [vmem:[#allocation2 + $0x118] sm:$0x11] %v531
      %v533 = vld [vmem:[#allocation2 + $0x138] sm:$0x11]
      %v534 = vsel %vm505, 0, %v533
      %535 = vst [vmem:[#allocation2 + $0x138] sm:$0x11] %v534
      %v536 = vld [vmem:[#allocation2 + $0x158] sm:$0x11]
      %v537 = vsel %vm505, 0, %v536
      %538 = vst [vmem:[#allocation2 + $0x158] sm:$0x11] %v537
      %v539 = vld [vmem:[#allocation2 + $0x178] sm:$0x11]
      %v540 = vsel %vm505, 0, %v539
      %541 = vst [vmem:[#allocation2 + $0x178] sm:$0x11] %v540
      %v542 = vld [vmem:[#allocation2 + $0x198] sm:$0x11]
      %v543 = vsel %vm505, 0, %v542
      %544 = vst [vmem:[#allocation2 + $0x198] sm:$0x11] %v543
      %v545 = vld [vmem:[#allocation2 + $0x1b8] sm:$0x11]
      %v546 = vsel %vm505, 0, %v545
      %547 = vst [vmem:[#allocation2 + $0x1b8] sm:$0x11] %v546
      %v548 = vld [vmem:[#allocation2 + $0x1d8] sm:$0x11]
      %v549 = vsel %vm505, 0, %v548
      %550 = vst [vmem:[#allocation2 + $0x1d8] sm:$0x11] %v549
      %v551 = vld [vmem:[#allocation2 + $0x1f8] sm:$0x11]
      %v552 = vsel %vm505, 0, %v551
      %553 = vst [vmem:[#allocation2 + $0x1f8] sm:$0x11] %v552
      %v554 = vld [vmem:[#allocation2 + $0x218] sm:$0x11]
      %v555 = vsel %vm505, 0, %v554
      %556 = vst [vmem:[#allocation2 + $0x218] sm:$0x11] %v555
      %v557 = vld [vmem:[#allocation2 + $0x238] sm:$0x11]
      %v558 = vsel %vm505, 0, %v557
      %559 = vst [vmem:[#allocation2 + $0x238] sm:$0x11] %v558
      %560 = vst [vmem:[#allocation2] sm:$0xf] 0
      %561 = vst [vmem:[#allocation2 + $0x8] sm:$0xf] 0
      %562 = vst [vmem:[#allocation2 + $0x10] sm:$0xf] 0
      %v563 = vld [vmem:[#allocation2 + $0x18] sm:$0x1]
      %v564 = vsel %vm501, 0, %v563
      %565 = vst [vmem:[#allocation2 + $0x18] sm:$0x1] %v564
      %s566 = scalar_lea.vmem [#allocation2], 544
      %567 = vst [vmem:[%s566] sm:$0xf] 0
      %568 = vst [vmem:[%s566 + $0x8] sm:$0xf] 0
      %569 = vst [vmem:[%s566 + $0x10] sm:$0xf] 0
      %v570 = vld [vmem:[%s566 + $0x18] sm:$0x1]
      %v571 = vsel %vm501, 0, %v570
      %572 = vst [vmem:[%s566 + $0x18] sm:$0x1] %v571
      %v589 = vunpack.c.l.b16 %v465
      %v590 = vunpack.c.h.b16 %v465
      %v591 = vunpack.c.l.b16 %v466
      %v592 = vunpack.c.h.b16 %v466
      %v593 = vunpack.c.l.b16 %v467
      %v594 = vunpack.c.h.b16 %v467
      %v595 = vunpack.c.l.b16 %v468
      %v596 = vunpack.c.h.b16 %v468
      %v597 = vunpack.c.l.b16 %v469
      %v598 = vunpack.c.h.b16 %v469
      %v599 = vunpack.c.l.b16 %v470
      %v600 = vunpack.c.h.b16 %v470
      %v601 = vunpack.c.l.b16 %v471
      %v602 = vunpack.c.h.b16 %v471
      %v603 = vunpack.c.l.b16 %v472
      %v604 = vunpack.c.h.b16 %v472
      %v605 = vunpack.c.l.b16 %v473
      %v606 = vunpack.c.h.b16 %v473
      %v607 = vunpack.c.l.b16 %v474
      %v608 = vunpack.c.h.b16 %v474
      %v609 = vunpack.c.l.b16 %v475
      %v610 = vunpack.c.h.b16 %v475
      %v611 = vunpack.c.l.b16 %v476
      %v612 = vunpack.c.h.b16 %v476
      %v613 = vunpack.c.l.b16 %v477
      %v614 = vunpack.c.h.b16 %v477
      %v615 = vunpack.c.l.b16 %v478
      %v616 = vunpack.c.h.b16 %v478
      %v617 = vunpack.c.l.b16 %v479
      %v618 = vunpack.c.h.b16 %v479
      %v619 = vunpack.c.l.b16 %v480
      %v620 = vunpack.c.h.b16 %v480
      %v621 = vpack.c.b16 %v589, %v589
      %v622 = vpack.c.b16 %v590, %v590
      %v623 = vpack.c.b16 %v591, %v591
      %v624 = vpack.c.b16 %v592, %v592
      %v625 = vpack.c.b16 %v593, %v593
      %v626 = vpack.c.b16 %v594, %v594
      %v627 = vpack.c.b16 %v595, %v595
      %v628 = vpack.c.b16 %v596, %v596
      %v629 = vpack.c.b16 %v597, %v597
      %v630 = vpack.c.b16 %v598, %v598
      %v631 = vpack.c.b16 %v599, %v599
      %v632 = vpack.c.b16 %v600, %v600
      %v633 = vpack.c.b16 %v601, %v601
      %v634 = vpack.c.b16 %v602, %v602
      %v635 = vpack.c.b16 %v603, %v603
      %v636 = vpack.c.b16 %v604, %v604
      %v637 = vpack.c.b16 %v605, %v605
      %v638 = vpack.c.b16 %v606, %v606
      %v639 = vpack.c.b16 %v607, %v607
      %v640 = vpack.c.b16 %v608, %v608
      %v641 = vpack.c.b16 %v609, %v609
      %v642 = vpack.c.b16 %v610, %v610
      %v643 = vpack.c.b16 %v611, %v611
      %v644 = vpack.c.b16 %v612, %v612
      %v645 = vpack.c.b16 %v613, %v613
      %v646 = vpack.c.b16 %v614, %v614
      %v647 = vpack.c.b16 %v615, %v615
      %v648 = vpack.c.b16 %v616, %v616
      %v649 = vpack.c.b16 %v617, %v617
      %v650 = vpack.c.b16 %v618, %v618
      %v651 = vpack.c.b16 %v619, %v619
      %v652 = vpack.c.b16 %v620, %v620
      %s685 = scalar_lea.vmem [#allocation2], 32
      %686 = vst [vmem:[%s685 + $0x8] sm:$0xf] %v621
      %687 = vst [vmem:[%s685 + $0x10] sm:$0xf] %v622
      %688 = vst [vmem:[%s685 + $0x28] sm:$0xf] %v623
      %689 = vst [vmem:[%s685 + $0x30] sm:$0xf] %v624
      %690 = vst [vmem:[%s685 + $0x48] sm:$0xf] %v625
      %691 = vst [vmem:[%s685 + $0x50] sm:$0xf] %v626
      %692 = vst [vmem:[%s685 + $0x68] sm:$0xf] %v627
      %693 = vst [vmem:[%s685 + $0x70] sm:$0xf] %v628
      %694 = vst [vmem:[%s685 + $0x88] sm:$0xf] %v629
      %695 = vst [vmem:[%s685 + $0x90] sm:$0xf] %v630
      %696 = vst [vmem:[%s685 + $0xa8] sm:$0xf] %v631
      %697 = vst [vmem:[%s685 + $0xb0] sm:$0xf] %v632
      %698 = vst [vmem:[%s685 + $0xc8] sm:$0xf] %v633
      %699 = vst [vmem:[%s685 + $0xd0] sm:$0xf] %v634
      %700 = vst [vmem:[%s685 + $0xe8] sm:$0xf] %v635
      %701 = vst [vmem:[%s685 + $0xf0] sm:$0xf] %v636
      %702 = vst [vmem:[%s685 + $0x108] sm:$0xf] %v637
      %703 = vst [vmem:[%s685 + $0x110] sm:$0xf] %v638
      %704 = vst [vmem:[%s685 + $0x128] sm:$0xf] %v639
      %705 = vst [vmem:[%s685 + $0x130] sm:$0xf] %v640
      %706 = vst [vmem:[%s685 + $0x148] sm:$0xf] %v641
      %707 = vst [vmem:[%s685 + $0x150] sm:$0xf] %v642
      %708 = vst [vmem:[%s685 + $0x168] sm:$0xf] %v643
      %709 = vst [vmem:[%s685 + $0x170] sm:$0xf] %v644
      %710 = vst [vmem:[%s685 + $0x188] sm:$0xf] %v645
      %711 = vst [vmem:[%s685 + $0x190] sm:$0xf] %v646
      %712 = vst [vmem:[%s685 + $0x1a8] sm:$0xf] %v647
      %713 = vst [vmem:[%s685 + $0x1b0] sm:$0xf] %v648
      %714 = vst [vmem:[%s685 + $0x1c8] sm:$0xf] %v649
      %715 = vst [vmem:[%s685 + $0x1d0] sm:$0xf] %v650
      %716 = vst [vmem:[%s685 + $0x1e8] sm:$0xf] %v651
      %717 = vst [vmem:[%s685 + $0x1f0] sm:$0xf] %v652
      %718 = vst [vmem:[#allocation2 + $0xc] sm:$0xf] %v621
      %719 = vst [vmem:[#allocation2 + $0x14] sm:$0xf] %v622
      %720 = vst [vmem:[#allocation2 + $0x2c] sm:$0xf] %v623
      %721 = vst [vmem:[#allocation2 + $0x34] sm:$0xf] %v624
      %722 = vst [vmem:[#allocation2 + $0x4c] sm:$0xf] %v625
      %723 = vst [vmem:[#allocation2 + $0x54] sm:$0xf] %v626
      %724 = vst [vmem:[#allocation2 + $0x6c] sm:$0xf] %v627
      %725 = vst [vmem:[#allocation2 + $0x74] sm:$0xf] %v628
      %726 = vst [vmem:[#allocation2 + $0x8c] sm:$0xf] %v629
      %727 = vst [vmem:[#allocation2 + $0x94] sm:$0xf] %v630
      %728 = vst [vmem:[#allocation2 + $0xac] sm:$0xf] %v631
      %729 = vst [vmem:[#allocation2 + $0xb4] sm:$0xf] %v632
      %730 = vst [vmem:[#allocation2 + $0xcc] sm:$0xf] %v633
      %731 = vst [vmem:[#allocation2 + $0xd4] sm:$0xf] %v634
      %732 = vst [vmem:[#allocation2 + $0xec] sm:$0xf] %v635
      %733 = vst [vmem:[#allocation2 + $0xf4] sm:$0xf] %v636
      %734 = vst [vmem:[#allocation2 + $0x10c] sm:$0xf] %v637
      %735 = vst [vmem:[#allocation2 + $0x114] sm:$0xf] %v638
      %736 = vst [vmem:[#allocation2 + $0x12c] sm:$0xf] %v639
      %737 = vst [vmem:[#allocation2 + $0x134] sm:$0xf] %v640
      %738 = vst [vmem:[#allocation2 + $0x14c] sm:$0xf] %v641
      %739 = vst [vmem:[#allocation2 + $0x154] sm:$0xf] %v642
      %740 = vst [vmem:[#allocation2 + $0x16c] sm:$0xf] %v643
      %741 = vst [vmem:[#allocation2 + $0x174] sm:$0xf] %v644
      %742 = vst [vmem:[#allocation2 + $0x18c] sm:$0xf] %v645
      %743 = vst [vmem:[#allocation2 + $0x194] sm:$0xf] %v646
      %744 = vst [vmem:[#allocation2 + $0x1ac] sm:$0xf] %v647
      %745 = vst [vmem:[#allocation2 + $0x1b4] sm:$0xf] %v648
      %746 = vst [vmem:[#allocation2 + $0x1cc] sm:$0xf] %v649
      %747 = vst [vmem:[#allocation2 + $0x1d4] sm:$0xf] %v650
      %748 = vst [vmem:[#allocation2 + $0x1ec] sm:$0xf] %v651
      %749 = vst [vmem:[#allocation2 + $0x1f4] sm:$0xf] %v652
      %v750 = vld [vmem:[#allocation2] sm:$0x88]
      %v751 = vld [vmem:[#allocation2 + $0x8] sm:$0xff]
      %v752 = vld [vmem:[#allocation2 + $0x10] sm:$0xff]
      %v753 = vld [vmem:[#allocation2 + $0x20] sm:$0x88]
      %v754 = vld [vmem:[#allocation2 + $0x28] sm:$0xff]
      %v755 = vld [vmem:[#allocation2 + $0x30] sm:$0xff]
      %v756 = vld [vmem:[#allocation2 + $0x40] sm:$0x88]
      %v757 = vld [vmem:[#allocation2 + $0x48] sm:$0xff]
      %v758 = vld [vmem:[#allocation2 + $0x50] sm:$0xff]
      %v759 = vld [vmem:[#allocation2 + $0x60] sm:$0x88]
      %v760 = vld [vmem:[#allocation2 + $0x68] sm:$0xff]
      %v761 = vld [vmem:[#allocation2 + $0x70] sm:$0xff]
      %v762 = vld [vmem:[#allocation2 + $0x80] sm:$0x88]
      %v763 = vld [vmem:[#allocation2 + $0x88] sm:$0xff]
      %v764 = vld [vmem:[#allocation2 + $0x90] sm:$0xff]
      %v765 = vld [vmem:[#allocation2 + $0xa0] sm:$0x88]
      %v766 = vld [vmem:[#allocation2 + $0xa8] sm:$0xff]
      %v767 = vld [vmem:[#allocation2 + $0xb0] sm:$0xff]
      %v768 = vld [vmem:[#allocation2 + $0xc0] sm:$0x88]
      %v769 = vld [vmem:[#allocation2 + $0xc8] sm:$0xff]
      %v770 = vld [vmem:[#allocation2 + $0xd0] sm:$0xff]
      %v771 = vld [vmem:[#allocation2 + $0xe0] sm:$0x88]
      %v772 = vld [vmem:[#allocation2 + $0xe8] sm:$0xff]
      %v773 = vld [vmem:[#allocation2 + $0xf0] sm:$0xff]
      %v774 = vld [vmem:[#allocation2 + $0x100] sm:$0x88]
      %v775 = vld [vmem:[#allocation2 + $0x108] sm:$0xff]
      %v776 = vld [vmem:[#allocation2 + $0x110] sm:$0xff]
      %v777 = vld [vmem:[#allocation2 + $0x120] sm:$0x88]
      %v778 = vld [vmem:[#allocation2 + $0x128] sm:$0xff]
      %v779 = vld [vmem:[#allocation2 + $0x130] sm:$0xff]
      %v780 = vld [vmem:[#allocation2 + $0x140] sm:$0x88]
      %v781 = vld [vmem:[#allocation2 + $0x148] sm:$0xff]
      %v782 = vld [vmem:[#allocation2 + $0x150] sm:$0xff]
      %v783 = vld [vmem:[#allocation2 + $0x160] sm:$0x88]
      %v784 = vld [vmem:[#allocation2 + $0x168] sm:$0xff]
      %v785 = vld [vmem:[#allocation2 + $0x170] sm:$0xff]
      %v786 = vld [vmem:[#allocation2 + $0x180] sm:$0x88]
      %v787 = vld [vmem:[#allocation2 + $0x188] sm:$0xff]
      %v788 = vld [vmem:[#allocation2 + $0x190] sm:$0xff]
      %v789 = vld [vmem:[#allocation2 + $0x1a0] sm:$0x88]
      %v790 = vld [vmem:[#allocation2 + $0x1a8] sm:$0xff]
      %v791 = vld [vmem:[#allocation2 + $0x1b0] sm:$0xff]
      %v792 = vld [vmem:[#allocation2 + $0x1c0] sm:$0x88]
      %v793 = vld [vmem:[#allocation2 + $0x1c8] sm:$0xff]
      %v794 = vld [vmem:[#allocation2 + $0x1d0] sm:$0xff]
      %v795 = vld [vmem:[#allocation2 + $0x1e0] sm:$0x88]
      %v796 = vld [vmem:[#allocation2 + $0x1e8] sm:$0xff]
      %v797 = vld [vmem:[#allocation2 + $0x1f0] sm:$0xff]
      %vm798 = vsmask.f32 4368
      %vm799 = vmor %vm500, %vm798
      %v801 = vshrl.u32 %v750, 16
      %v803 = vrot.slane %v801, 7
      %v804 = vrot.slane %v803, 4
      %v806 = vshrl.u32 %v751, 16
      %v808 = vrot.slane %v806, 7
      %v809 = vshll.u32 %v751, 16
      %v811 = vor.u32 %v808, %v809
      %v812 = vsel %vm799, %v804, %v811
      %v813 = vrot.slane %v808, 4
      %v815 = vshrl.u32 %v752, 16
      %v817 = vrot.slane %v815, 7
      %v818 = vshll.u32 %v752, 16
      %v820 = vor.u32 %v817, %v818
      %v821 = vsel %vm799, %v813, %v820
      %v823 = vshrl.u32 %v753, 16
      %v825 = vrot.slane %v823, 7
      %v826 = vrot.slane %v825, 4
      %v828 = vshrl.u32 %v754, 16
      %v830 = vrot.slane %v828, 7
      %v831 = vshll.u32 %v754, 16
      %v833 = vor.u32 %v830, %v831
      %v834 = vsel %vm799, %v826, %v833
      %v835 = vrot.slane %v830, 4
      %v837 = vshrl.u32 %v755, 16
      %v839 = vrot.slane %v837, 7
      %v840 = vshll.u32 %v755, 16
      %v842 = vor.u32 %v839, %v840
      %v843 = vsel %vm799, %v835, %v842
      %v845 = vshrl.u32 %v756, 16
      %v847 = vrot.slane %v845, 7
      %v848 = vrot.slane %v847, 4
      %v850 = vshrl.u32 %v757, 16
      %v852 = vrot.slane %v850, 7
      %v853 = vshll.u32 %v757, 16
      %v855 = vor.u32 %v852, %v853
      %v856 = vsel %vm799, %v848, %v855
      %v857 = vrot.slane %v852, 4
      %v859 = vshrl.u32 %v758, 16
      %v861 = vrot.slane %v859, 7
      %v862 = vshll.u32 %v758, 16
      %v864 = vor.u32 %v861, %v862
      %v865 = vsel %vm799, %v857, %v864
      %v867 = vshrl.u32 %v759, 16
      %v869 = vrot.slane %v867, 7
      %v870 = vrot.slane %v869, 4
      %v872 = vshrl.u32 %v760, 16
      %v874 = vrot.slane %v872, 7
      %v875 = vshll.u32 %v760, 16
      %v877 = vor.u32 %v874, %v875
      %v878 = vsel %vm799, %v870, %v877
      %v879 = vrot.slane %v874, 4
      %v881 = vshrl.u32 %v761, 16
      %v883 = vrot.slane %v881, 7
      %v884 = vshll.u32 %v761, 16
      %v886 = vor.u32 %v883, %v884
      %v887 = vsel %vm799, %v879, %v886
      %v889 = vshrl.u32 %v762, 16
      %v891 = vrot.slane %v889, 7
      %v892 = vrot.slane %v891, 4
      %v894 = vshrl.u32 %v763, 16
      %v896 = vrot.slane %v894, 7
      %v897 = vshll.u32 %v763, 16
      %v899 = vor.u32 %v896, %v897
      %v900 = vsel %vm799, %v892, %v899
      %v901 = vrot.slane %v896, 4
      %v903 = vshrl.u32 %v764, 16
      %v905 = vrot.slane %v903, 7
      %v906 = vshll.u32 %v764, 16
      %v908 = vor.u32 %v905, %v906
      %v909 = vsel %vm799, %v901, %v908
      %v911 = vshrl.u32 %v765, 16
      %v913 = vrot.slane %v911, 7
      %v914 = vrot.slane %v913, 4
      %v916 = vshrl.u32 %v766, 16
      %v918 = vrot.slane %v916, 7
      %v919 = vshll.u32 %v766, 16
      %v921 = vor.u32 %v918, %v919
      %v922 = vsel %vm799, %v914, %v921
      %v923 = vrot.slane %v918, 4
      %v925 = vshrl.u32 %v767, 16
      %v927 = vrot.slane %v925, 7
      %v928 = vshll.u32 %v767, 16
      %v930 = vor.u32 %v927, %v928
      %v931 = vsel %vm799, %v923, %v930
      %v933 = vshrl.u32 %v768, 16
      %v935 = vrot.slane %v933, 7
      %v936 = vrot.slane %v935, 4
      %v938 = vshrl.u32 %v769, 16
      %v940 = vrot.slane %v938, 7
      %v941 = vshll.u32 %v769, 16
      %v943 = vor.u32 %v940, %v941
      %v944 = vsel %vm799, %v936, %v943
      %v945 = vrot.slane %v940, 4
      %v947 = vshrl.u32 %v770, 16
      %v949 = vrot.slane %v947, 7
      %v950 = vshll.u32 %v770, 16
      %v952 = vor.u32 %v949, %v950
      %v953 = vsel %vm799, %v945, %v952
      %v955 = vshrl.u32 %v771, 16
      %v957 = vrot.slane %v955, 7
      %v958 = vrot.slane %v957, 4
      %v960 = vshrl.u32 %v772, 16
      %v962 = vrot.slane %v960, 7
      %v963 = vshll.u32 %v772, 16
      %v965 = vor.u32 %v962, %v963
      %v966 = vsel %vm799, %v958, %v965
      %v967 = vrot.slane %v962, 4
      %v969 = vshrl.u32 %v773, 16
      %v971 = vrot.slane %v969, 7
      %v972 = vshll.u32 %v773, 16
      %v974 = vor.u32 %v971, %v972
      %v975 = vsel %vm799, %v967, %v974
      %v977 = vshrl.u32 %v774, 16
      %v979 = vrot.slane %v977, 7
      %v980 = vrot.slane %v979, 4
      %v982 = vshrl.u32 %v775, 16
      %v984 = vrot.slane %v982, 7
      %v985 = vshll.u32 %v775, 16
      %v987 = vor.u32 %v984, %v985
      %v988 = vsel %vm799, %v980, %v987
      %v989 = vrot.slane %v984, 4
      %v991 = vshrl.u32 %v776, 16
      %v993 = vrot.slane %v991, 7
      %v994 = vshll.u32 %v776, 16
      %v996 = vor.u32 %v993, %v994
      %v997 = vsel %vm799, %v989, %v996
      %v999 = vshrl.u32 %v777, 16
      %v1001 = vrot.slane %v999, 7
      %v1002 = vrot.slane %v1001, 4
      %v1004 = vshrl.u32 %v778, 16
      %v1006 = vrot.slane %v1004, 7
      %v1007 = vshll.u32 %v778, 16
      %v1009 = vor.u32 %v1006, %v1007
      %v1010 = vsel %vm799, %v1002, %v1009
      %v1011 = vrot.slane %v1006, 4
      %v1013 = vshrl.u32 %v779, 16
      %v1015 = vrot.slane %v1013, 7
      %v1016 = vshll.u32 %v779, 16
      %v1018 = vor.u32 %v1015, %v1016
      %v1019 = vsel %vm799, %v1011, %v1018
      %v1021 = vshrl.u32 %v780, 16
      %v1023 = vrot.slane %v1021, 7
      %v1024 = vrot.slane %v1023, 4
      %v1026 = vshrl.u32 %v781, 16
      %v1028 = vrot.slane %v1026, 7
      %v1029 = vshll.u32 %v781, 16
      %v1031 = vor.u32 %v1028, %v1029
      %v1032 = vsel %vm799, %v1024, %v1031
      %v1033 = vrot.slane %v1028, 4
      %v1035 = vshrl.u32 %v782, 16
      %v1037 = vrot.slane %v1035, 7
      %v1038 = vshll.u32 %v782, 16
      %v1040 = vor.u32 %v1037, %v1038
      %v1041 = vsel %vm799, %v1033, %v1040
      %v1043 = vshrl.u32 %v783, 16
      %v1045 = vrot.slane %v1043, 7
      %v1046 = vrot.slane %v1045, 4
      %v1048 = vshrl.u32 %v784, 16
      %v1050 = vrot.slane %v1048, 7
      %v1051 = vshll.u32 %v784, 16
      %v1053 = vor.u32 %v1050, %v1051
      %v1054 = vsel %vm799, %v1046, %v1053
      %v1055 = vrot.slane %v1050, 4
      %v1057 = vshrl.u32 %v785, 16
      %v1059 = vrot.slane %v1057, 7
      %v1060 = vshll.u32 %v785, 16
      %v1062 = vor.u32 %v1059, %v1060
      %v1063 = vsel %vm799, %v1055, %v1062
      %v1065 = vshrl.u32 %v786, 16
      %v1067 = vrot.slane %v1065, 7
      %v1068 = vrot.slane %v1067, 4
      %v1070 = vshrl.u32 %v787, 16
      %v1072 = vrot.slane %v1070, 7
      %v1073 = vshll.u32 %v787, 16
      %v1075 = vor.u32 %v1072, %v1073
      %v1076 = vsel %vm799, %v1068, %v1075
      %v1077 = vrot.slane %v1072, 4
      %v1079 = vshrl.u32 %v788, 16
      %v1081 = vrot.slane %v1079, 7
      %v1082 = vshll.u32 %v788, 16
      %v1084 = vor.u32 %v1081, %v1082
      %v1085 = vsel %vm799, %v1077, %v1084
      %v1087 = vshrl.u32 %v789, 16
      %v1089 = vrot.slane %v1087, 7
      %v1090 = vrot.slane %v1089, 4
      %v1092 = vshrl.u32 %v790, 16
      %v1094 = vrot.slane %v1092, 7
      %v1095 = vshll.u32 %v790, 16
      %v1097 = vor.u32 %v1094, %v1095
      %v1098 = vsel %vm799, %v1090, %v1097
      %v1099 = vrot.slane %v1094, 4
      %v1101 = vshrl.u32 %v791, 16
      %v1103 = vrot.slane %v1101, 7
      %v1104 = vshll.u32 %v791, 16
      %v1106 = vor.u32 %v1103, %v1104
      %v1107 = vsel %vm799, %v1099, %v1106
      %v1109 = vshrl.u32 %v792, 16
      %v1111 = vrot.slane %v1109, 7
      %v1112 = vrot.slane %v1111, 4
      %v1114 = vshrl.u32 %v793, 16
      %v1116 = vrot.slane %v1114, 7
      %v1117 = vshll.u32 %v793, 16
      %v1119 = vor.u32 %v1116, %v1117
      %v1120 = vsel %vm799, %v1112, %v1119
      %v1121 = vrot.slane %v1116, 4
      %v1123 = vshrl.u32 %v794, 16
      %v1125 = vrot.slane %v1123, 7
      %v1126 = vshll.u32 %v794, 16
      %v1128 = vor.u32 %v1125, %v1126
      %v1129 = vsel %vm799, %v1121, %v1128
      %v1131 = vshrl.u32 %v795, 16
      %v1133 = vrot.slane %v1131, 7
      %v1134 = vrot.slane %v1133, 4
      %v1136 = vshrl.u32 %v796, 16
      %v1138 = vrot.slane %v1136, 7
      %v1139 = vshll.u32 %v796, 16
      %v1141 = vor.u32 %v1138, %v1139
      %v1142 = vsel %vm799, %v1134, %v1141
      %v1143 = vrot.slane %v1138, 4
      %v1145 = vshrl.u32 %v797, 16
      %v1147 = vrot.slane %v1145, 7
      %v1148 = vshll.u32 %v797, 16
      %v1150 = vor.u32 %v1147, %v1148
      %v1151 = vsel %vm799, %v1143, %v1150
      %v1152 = vld [vmem:[%s3] sm:$0xf]
      %v1153 = vld [vmem:[%s3 + $0x4] sm:$0xf]
      %v1154 = vld [vmem:[%s3 + $0x8] sm:$0xf]
      %v1155 = vld [vmem:[%s3 + $0xc] sm:$0xf]
      %v1156 = vld [vmem:[%s3 + $0x10] sm:$0xf]
      %v1157 = vld [vmem:[%s3 + $0x14] sm:$0xf]
      %v1158 = vld [vmem:[%s3 + $0x18] sm:$0xf]
      %v1159 = vld [vmem:[%s3 + $0x1c] sm:$0xf]
      %v1160 = vld [vmem:[%s3 + $0x20] sm:$0xf]
      %v1161 = vld [vmem:[%s3 + $0x24] sm:$0xf]
      %v1162 = vld [vmem:[%s3 + $0x28] sm:$0xf]
      %v1163 = vld [vmem:[%s3 + $0x2c] sm:$0xf]
      %v1164 = vld [vmem:[%s3 + $0x30] sm:$0xf]
      %v1165 = vld [vmem:[%s3 + $0x34] sm:$0xf]
      %v1166 = vld [vmem:[%s3 + $0x38] sm:$0xf]
      %v1167 = vld [vmem:[%s3 + $0x3c] sm:$0xf]
      %v1168 = vld [vmem:[%s3 + $0x40] sm:$0xf]
      %v1169 = vld [vmem:[%s3 + $0x44] sm:$0xf]
      %v1170 = vld [vmem:[%s3 + $0x48] sm:$0xf]
      %v1171 = vld [vmem:[%s3 + $0x4c] sm:$0xf]
      %v1172 = vld [vmem:[%s3 + $0x50] sm:$0xf]
      %v1173 = vld [vmem:[%s3 + $0x54] sm:$0xf]
      %v1174 = vld [vmem:[%s3 + $0x58] sm:$0xf]
      %v1175 = vld [vmem:[%s3 + $0x5c] sm:$0xf]
      %v1176 = vld [vmem:[%s3 + $0x60] sm:$0xf]
      %v1177 = vld [vmem:[%s3 + $0x64] sm:$0xf]
      %v1178 = vld [vmem:[%s3 + $0x68] sm:$0xf]
      %v1179 = vld [vmem:[%s3 + $0x6c] sm:$0xf]
      %v1180 = vld [vmem:[%s3 + $0x70] sm:$0xf]
      %v1181 = vld [vmem:[%s3 + $0x74] sm:$0xf]
      %v1182 = vld [vmem:[%s3 + $0x78] sm:$0xf]
      %v1183 = vld [vmem:[%s3 + $0x7c] sm:$0xf]
      %s1184 = scalar_lea.vmem [#allocation2], 64
      %v1185 = vld [vmem:[%s1184] sm:$0x8]
      %v1186 = vld [vmem:[%s1184 + $0x8] sm:$0xf]
      %v1187 = vld [vmem:[%s1184 + $0x10] sm:$0xf]
      %v1188 = vld [vmem:[%s1184 + $0x20] sm:$0x8]
      %v1189 = vld [vmem:[%s1184 + $0x28] sm:$0xf]
      %v1190 = vld [vmem:[%s1184 + $0x30] sm:$0xf]
      %v1191 = vld [vmem:[%s1184 + $0x40] sm:$0x8]
      %v1192 = vld [vmem:[%s1184 + $0x48] sm:$0xf]
      %v1193 = vld [vmem:[%s1184 + $0x50] sm:$0xf]
      %v1194 = vld [vmem:[%s1184 + $0x60] sm:$0x8]
      %v1195 = vld [vmem:[%s1184 + $0x68] sm:$0xf]
      %v1196 = vld [vmem:[%s1184 + $0x70] sm:$0xf]
      %v1197 = vld [vmem:[%s1184 + $0x80] sm:$0x8]
      %v1198 = vld [vmem:[%s1184 + $0x88] sm:$0xf]
      %v1199 = vld [vmem:[%s1184 + $0x90] sm:$0xf]
      %v1200 = vld [vmem:[%s1184 + $0xa0] sm:$0x8]
      %v1201 = vld [vmem:[%s1184 + $0xa8] sm:$0xf]
      %v1202 = vld [vmem:[%s1184 + $0xb0] sm:$0xf]
      %v1203 = vld [vmem:[%s1184 + $0xc0] sm:$0x8]
      %v1204 = vld [vmem:[%s1184 + $0xc8] sm:$0xf]
      %v1205 = vld [vmem:[%s1184 + $0xd0] sm:$0xf]
      %v1206 = vld [vmem:[%s1184 + $0xe0] sm:$0x8]
      %v1207 = vld [vmem:[%s1184 + $0xe8] sm:$0xf]
      %v1208 = vld [vmem:[%s1184 + $0xf0] sm:$0xf]
      %v1209 = vld [vmem:[%s1184 + $0x100] sm:$0x8]
      %v1210 = vld [vmem:[%s1184 + $0x108] sm:$0xf]
      %v1211 = vld [vmem:[%s1184 + $0x110] sm:$0xf]
      %v1212 = vld [vmem:[%s1184 + $0x120] sm:$0x8]
      %v1213 = vld [vmem:[%s1184 + $0x128] sm:$0xf]
      %v1214 = vld [vmem:[%s1184 + $0x130] sm:$0xf]
      %v1215 = vld [vmem:[%s1184 + $0x140] sm:$0x8]
      %v1216 = vld [vmem:[%s1184 + $0x148] sm:$0xf]
      %v1217 = vld [vmem:[%s1184 + $0x150] sm:$0xf]
      %v1218 = vld [vmem:[%s1184 + $0x160] sm:$0x8]
      %v1219 = vld [vmem:[%s1184 + $0x168] sm:$0xf]
      %v1220 = vld [vmem:[%s1184 + $0x170] sm:$0xf]
      %v1221 = vld [vmem:[%s1184 + $0x180] sm:$0x8]
      %v1222 = vld [vmem:[%s1184 + $0x188] sm:$0xf]
      %v1223 = vld [vmem:[%s1184 + $0x190] sm:$0xf]
      %v1224 = vld [vmem:[%s1184 + $0x1a0] sm:$0x8]
      %v1225 = vld [vmem:[%s1184 + $0x1a8] sm:$0xf]
      %v1226 = vld [vmem:[%s1184 + $0x1b0] sm:$0xf]
      %v1227 = vld [vmem:[%s1184 + $0x1c0] sm:$0x8]
      %v1228 = vld [vmem:[%s1184 + $0x1c8] sm:$0xf]
      %v1229 = vld [vmem:[%s1184 + $0x1d0] sm:$0xf]
      %v1230 = vld [vmem:[%s1184 + $0x1e0] sm:$0x8]
      %v1231 = vld [vmem:[%s1184 + $0x1e8] sm:$0xf]
      %v1232 = vld [vmem:[%s1184 + $0x1f0] sm:$0xf]
      %v1234 = vshrl.u32 %v1185, 16
      %v1236 = vrot.slane %v1234, 7
      %v1237 = vrot.slane %v1236, 4
      %v1239 = vshrl.u32 %v1186, 16
      %v1241 = vrot.slane %v1239, 7
      %v1242 = vshll.u32 %v1186, 16
      %v1244 = vor.u32 %v1241, %v1242
      %v1245 = vsel %vm799, %v1237, %v1244
      %v1246 = vrot.slane %v1241, 4
      %v1248 = vshrl.u32 %v1187, 16
      %v1250 = vrot.slane %v1248, 7
      %v1251 = vshll.u32 %v1187, 16
      %v1253 = vor.u32 %v1250, %v1251
      %v1254 = vsel %vm799, %v1246, %v1253
      %v1256 = vshrl.u32 %v1188, 16
      %v1258 = vrot.slane %v1256, 7
      %v1259 = vrot.slane %v1258, 4
      %v1261 = vshrl.u32 %v1189, 16
      %v1263 = vrot.slane %v1261, 7
      %v1264 = vshll.u32 %v1189, 16
      %v1266 = vor.u32 %v1263, %v1264
      %v1267 = vsel %vm799, %v1259, %v1266
      %v1268 = vrot.slane %v1263, 4
      %v1270 = vshrl.u32 %v1190, 16
      %v1272 = vrot.slane %v1270, 7
      %v1273 = vshll.u32 %v1190, 16
      %v1275 = vor.u32 %v1272, %v1273
      %v1276 = vsel %vm799, %v1268, %v1275
      %v1278 = vshrl.u32 %v1191, 16
      %v1280 = vrot.slane %v1278, 7
      %v1281 = vrot.slane %v1280, 4
      %v1283 = vshrl.u32 %v1192, 16
      %v1285 = vrot.slane %v1283, 7
      %v1286 = vshll.u32 %v1192, 16
      %v1288 = vor.u32 %v1285, %v1286
      %v1289 = vsel %vm799, %v1281, %v1288
      %v1290 = vrot.slane %v1285, 4
      %v1292 = vshrl.u32 %v1193, 16
      %v1294 = vrot.slane %v1292, 7
      %v1295 = vshll.u32 %v1193, 16
      %v1297 = vor.u32 %v1294, %v1295
      %v1298 = vsel %vm799, %v1290, %v1297
      %v1300 = vshrl.u32 %v1194, 16
      %v1302 = vrot.slane %v1300, 7
      %v1303 = vrot.slane %v1302, 4
      %v1305 = vshrl.u32 %v1195, 16
      %v1307 = vrot.slane %v1305, 7
      %v1308 = vshll.u32 %v1195, 16
      %v1310 = vor.u32 %v1307, %v1308
      %v1311 = vsel %vm799, %v1303, %v1310
      %v1312 = vrot.slane %v1307, 4
      %v1314 = vshrl.u32 %v1196, 16
      %v1316 = vrot.slane %v1314, 7
      %v1317 = vshll.u32 %v1196, 16
      %v1319 = vor.u32 %v1316, %v1317
      %v1320 = vsel %vm799, %v1312, %v1319
      %v1322 = vshrl.u32 %v1197, 16
      %v1324 = vrot.slane %v1322, 7
      %v1325 = vrot.slane %v1324, 4
      %v1327 = vshrl.u32 %v1198, 16
      %v1329 = vrot.slane %v1327, 7
      %v1330 = vshll.u32 %v1198, 16
      %v1332 = vor.u32 %v1329, %v1330
      %v1333 = vsel %vm799, %v1325, %v1332
      %v1334 = vrot.slane %v1329, 4
      %v1336 = vshrl.u32 %v1199, 16
      %v1338 = vrot.slane %v1336, 7
      %v1339 = vshll.u32 %v1199, 16
      %v1341 = vor.u32 %v1338, %v1339
      %v1342 = vsel %vm799, %v1334, %v1341
      %v1344 = vshrl.u32 %v1200, 16
      %v1346 = vrot.slane %v1344, 7
      %v1347 = vrot.slane %v1346, 4
      %v1349 = vshrl.u32 %v1201, 16
      %v1351 = vrot.slane %v1349, 7
      %v1352 = vshll.u32 %v1201, 16
      %v1354 = vor.u32 %v1351, %v1352
      %v1355 = vsel %vm799, %v1347, %v1354
      %v1356 = vrot.slane %v1351, 4
      %v1358 = vshrl.u32 %v1202, 16
      %v1360 = vrot.slane %v1358, 7
      %v1361 = vshll.u32 %v1202, 16
      %v1363 = vor.u32 %v1360, %v1361
      %v1364 = vsel %vm799, %v1356, %v1363
      %v1366 = vshrl.u32 %v1203, 16
      %v1368 = vrot.slane %v1366, 7
      %v1369 = vrot.slane %v1368, 4
      %v1371 = vshrl.u32 %v1204, 16
      %v1373 = vrot.slane %v1371, 7
      %v1374 = vshll.u32 %v1204, 16
      %v1376 = vor.u32 %v1373, %v1374
      %v1377 = vsel %vm799, %v1369, %v1376
      %v1378 = vrot.slane %v1373, 4
      %v1380 = vshrl.u32 %v1205, 16
      %v1382 = vrot.slane %v1380, 7
      %v1383 = vshll.u32 %v1205, 16
      %v1385 = vor.u32 %v1382, %v1383
      %v1386 = vsel %vm799, %v1378, %v1385
      %v1388 = vshrl.u32 %v1206, 16
      %v1390 = vrot.slane %v1388, 7
      %v1391 = vrot.slane %v1390, 4
      %v1393 = vshrl.u32 %v1207, 16
      %v1395 = vrot.slane %v1393, 7
      %v1396 = vshll.u32 %v1207, 16
      %v1398 = vor.u32 %v1395, %v1396
      %v1399 = vsel %vm799, %v1391, %v1398
      %v1400 = vrot.slane %v1395, 4
      %v1402 = vshrl.u32 %v1208, 16
      %v1404 = vrot.slane %v1402, 7
      %v1405 = vshll.u32 %v1208, 16
      %v1407 = vor.u32 %v1404, %v1405
      %v1408 = vsel %vm799, %v1400, %v1407
      %v1410 = vshrl.u32 %v1209, 16
      %v1412 = vrot.slane %v1410, 7
      %v1413 = vrot.slane %v1412, 4
      %v1415 = vshrl.u32 %v1210, 16
      %v1417 = vrot.slane %v1415, 7
      %v1418 = vshll.u32 %v1210, 16
      %v1420 = vor.u32 %v1417, %v1418
      %v1421 = vsel %vm799, %v1413, %v1420
      %v1422 = vrot.slane %v1417, 4
      %v1424 = vshrl.u32 %v1211, 16
      %v1426 = vrot.slane %v1424, 7
      %v1427 = vshll.u32 %v1211, 16
      %v1429 = vor.u32 %v1426, %v1427
      %v1430 = vsel %vm799, %v1422, %v1429
      %v1432 = vshrl.u32 %v1212, 16
      %v1434 = vrot.slane %v1432, 7
      %v1435 = vrot.slane %v1434, 4
      %v1437 = vshrl.u32 %v1213, 16
      %v1439 = vrot.slane %v1437, 7
      %v1440 = vshll.u32 %v1213, 16
      %v1442 = vor.u32 %v1439, %v1440
      %v1443 = vsel %vm799, %v1435, %v1442
      %v1444 = vrot.slane %v1439, 4
      %v1446 = vshrl.u32 %v1214, 16
      %v1448 = vrot.slane %v1446, 7
      %v1449 = vshll.u32 %v1214, 16
      %v1451 = vor.u32 %v1448, %v1449
      %v1452 = vsel %vm799, %v1444, %v1451
      %v1454 = vshrl.u32 %v1215, 16
      %v1456 = vrot.slane %v1454, 7
      %v1457 = vrot.slane %v1456, 4
      %v1459 = vshrl.u32 %v1216, 16
      %v1461 = vrot.slane %v1459, 7
      %v1462 = vshll.u32 %v1216, 16
      %v1464 = vor.u32 %v1461, %v1462
      %v1465 = vsel %vm799, %v1457, %v1464
      %v1466 = vrot.slane %v1461, 4
      %v1468 = vshrl.u32 %v1217, 16
      %v1470 = vrot.slane %v1468, 7
      %v1471 = vshll.u32 %v1217, 16
      %v1473 = vor.u32 %v1470, %v1471
      %v1474 = vsel %vm799, %v1466, %v1473
      %v1476 = vshrl.u32 %v1218, 16
      %v1478 = vrot.slane %v1476, 7
      %v1479 = vrot.slane %v1478, 4
      %v1481 = vshrl.u32 %v1219, 16
      %v1483 = vrot.slane %v1481, 7
      %v1484 = vshll.u32 %v1219, 16
      %v1486 = vor.u32 %v1483, %v1484
      %v1487 = vsel %vm799, %v1479, %v1486
      %v1488 = vrot.slane %v1483, 4
      %v1490 = vshrl.u32 %v1220, 16
      %v1492 = vrot.slane %v1490, 7
      %v1493 = vshll.u32 %v1220, 16
      %v1495 = vor.u32 %v1492, %v1493
      %v1496 = vsel %vm799, %v1488, %v1495
      %v1498 = vshrl.u32 %v1221, 16
      %v1500 = vrot.slane %v1498, 7
      %v1501 = vrot.slane %v1500, 4
      %v1503 = vshrl.u32 %v1222, 16
      %v1505 = vrot.slane %v1503, 7
      %v1506 = vshll.u32 %v1222, 16
      %v1508 = vor.u32 %v1505, %v1506
      %v1509 = vsel %vm799, %v1501, %v1508
      %v1510 = vrot.slane %v1505, 4
      %v1512 = vshrl.u32 %v1223, 16
      %v1514 = vrot.slane %v1512, 7
      %v1515 = vshll.u32 %v1223, 16
      %v1517 = vor.u32 %v1514, %v1515
      %v1518 = vsel %vm799, %v1510, %v1517
      %v1520 = vshrl.u32 %v1224, 16
      %v1522 = vrot.slane %v1520, 7
      %v1523 = vrot.slane %v1522, 4
      %v1525 = vshrl.u32 %v1225, 16
      %v1527 = vrot.slane %v1525, 7
      %v1528 = vshll.u32 %v1225, 16
      %v1530 = vor.u32 %v1527, %v1528
      %v1531 = vsel %vm799, %v1523, %v1530
      %v1532 = vrot.slane %v1527, 4
      %v1534 = vshrl.u32 %v1226, 16
      %v1536 = vrot.slane %v1534, 7
      %v1537 = vshll.u32 %v1226, 16
      %v1539 = vor.u32 %v1536, %v1537
      %v1540 = vsel %vm799, %v1532, %v1539
      %v1542 = vshrl.u32 %v1227, 16
      %v1544 = vrot.slane %v1542, 7
      %v1545 = vrot.slane %v1544, 4
      %v1547 = vshrl.u32 %v1228, 16
      %v1549 = vrot.slane %v1547, 7
      %v1550 = vshll.u32 %v1228, 16
      %v1552 = vor.u32 %v1549, %v1550
      %v1553 = vsel %vm799, %v1545, %v1552
      %v1554 = vrot.slane %v1549, 4
      %v1556 = vshrl.u32 %v1229, 16
      %v1558 = vrot.slane %v1556, 7
      %v1559 = vshll.u32 %v1229, 16
      %v1561 = vor.u32 %v1558, %v1559
      %v1562 = vsel %vm799, %v1554, %v1561
      %v1564 = vshrl.u32 %v1230, 16
      %v1566 = vrot.slane %v1564, 7
      %v1567 = vrot.slane %v1566, 4
      %v1569 = vshrl.u32 %v1231, 16
      %v1571 = vrot.slane %v1569, 7
      %v1572 = vshll.u32 %v1231, 16
      %v1574 = vor.u32 %v1571, %v1572
      %v1575 = vsel %vm799, %v1567, %v1574
      %v1576 = vrot.slane %v1571, 4
      %v1578 = vshrl.u32 %v1232, 16
      %v1580 = vrot.slane %v1578, 7
      %v1581 = vshll.u32 %v1232, 16
      %v1583 = vor.u32 %v1580, %v1581
      %v1584 = vsel %vm799, %v1576, %v1583
      %v1585 = vld [vmem:[%s4] sm:$0xf]
      %v1586 = vld [vmem:[%s4 + $0x4] sm:$0xf]
      %v1587 = vld [vmem:[%s4 + $0x8] sm:$0xf]
      %v1588 = vld [vmem:[%s4 + $0xc] sm:$0xf]
      %v1589 = vld [vmem:[%s4 + $0x10] sm:$0xf]
      %v1590 = vld [vmem:[%s4 + $0x14] sm:$0xf]
      %v1591 = vld [vmem:[%s4 + $0x18] sm:$0xf]
      %v1592 = vld [vmem:[%s4 + $0x1c] sm:$0xf]
      %v1593 = vld [vmem:[%s4 + $0x20] sm:$0xf]
      %v1594 = vld [vmem:[%s4 + $0x24] sm:$0xf]
      %v1595 = vld [vmem:[%s4 + $0x28] sm:$0xf]
      %v1596 = vld [vmem:[%s4 + $0x2c] sm:$0xf]
      %v1597 = vld [vmem:[%s4 + $0x30] sm:$0xf]
      %v1598 = vld [vmem:[%s4 + $0x34] sm:$0xf]
      %v1599 = vld [vmem:[%s4 + $0x38] sm:$0xf]
      %v1600 = vld [vmem:[%s4 + $0x3c] sm:$0xf]
      %v1601 = vunpack.c.l.b16 %v1245
      %v1602 = vunpack.c.l.b16 %v1254
      %v1603 = vunpack.c.l.b16 %v1267
      %v1604 = vunpack.c.l.b16 %v1276
      %v1605 = vunpack.c.l.b16 %v1289
      %v1606 = vunpack.c.l.b16 %v1298
      %v1607 = vunpack.c.l.b16 %v1311
      %v1608 = vunpack.c.l.b16 %v1320
      %v1609 = vunpack.c.l.b16 %v1333
      %v1610 = vunpack.c.l.b16 %v1342
      %v1611 = vunpack.c.l.b16 %v1355
      %v1612 = vunpack.c.l.b16 %v1364
      %v1613 = vunpack.c.l.b16 %v1377
      %v1614 = vunpack.c.l.b16 %v1386
      %v1615 = vunpack.c.l.b16 %v1399
      %v1616 = vunpack.c.l.b16 %v1408
      %v1617 = vunpack.c.l.b16 %v1421
      %v1618 = vunpack.c.l.b16 %v1430
      %v1619 = vunpack.c.l.b16 %v1443
      %v1620 = vunpack.c.l.b16 %v1452
      %v1621 = vunpack.c.l.b16 %v1465
      %v1622 = vunpack.c.l.b16 %v1474
      %v1623 = vunpack.c.l.b16 %v1487
      %v1624 = vunpack.c.l.b16 %v1496
      %v1625 = vunpack.c.l.b16 %v1509
      %v1626 = vunpack.c.l.b16 %v1518
      %v1627 = vunpack.c.l.b16 %v1531
      %v1628 = vunpack.c.l.b16 %v1540
      %v1629 = vunpack.c.l.b16 %v1553
      %v1630 = vunpack.c.l.b16 %v1562
      %v1631 = vunpack.c.l.b16 %v1575
      %v1632 = vunpack.c.l.b16 %v1584
      %v1633 = vpack.c.b16 %v1602, %v1601
      %v1634 = vpack.c.b16 %v1604, %v1603
      %v1635 = vpack.c.b16 %v1606, %v1605
      %v1636 = vpack.c.b16 %v1608, %v1607
      %v1637 = vpack.c.b16 %v1610, %v1609
      %v1638 = vpack.c.b16 %v1612, %v1611
      %v1639 = vpack.c.b16 %v1614, %v1613
      %v1640 = vpack.c.b16 %v1616, %v1615
      %v1641 = vpack.c.b16 %v1618, %v1617
      %v1642 = vpack.c.b16 %v1620, %v1619
      %v1643 = vpack.c.b16 %v1622, %v1621
      %v1644 = vpack.c.b16 %v1624, %v1623
      %v1645 = vpack.c.b16 %v1626, %v1625
      %v1646 = vpack.c.b16 %v1628, %v1627
      %v1647 = vpack.c.b16 %v1630, %v1629
      %v1648 = vpack.c.b16 %v1632, %v1631
      %v1681 = vunpack.c.l.b16 %v1585
      %v1682 = vunpack.c.l.b16 %v1586
      %v1683 = vunpack.c.l.b16 %v1587
      %v1684 = vunpack.c.l.b16 %v1588
      %v1685 = vunpack.c.l.b16 %v1589
      %v1686 = vunpack.c.l.b16 %v1590
      %v1687 = vunpack.c.l.b16 %v1591
      %v1688 = vunpack.c.l.b16 %v1592
      %v1689 = vunpack.c.l.b16 %v1593
      %v1690 = vunpack.c.l.b16 %v1594
      %v1691 = vunpack.c.l.b16 %v1595
      %v1692 = vunpack.c.l.b16 %v1596
      %v1693 = vunpack.c.l.b16 %v1597
      %v1694 = vunpack.c.l.b16 %v1598
      %v1695 = vunpack.c.l.b16 %v1599
      %v1696 = vunpack.c.l.b16 %v1600
      %v1697 = vpack.c.b16 %v1682, %v1681
      %v1698 = vpack.c.b16 %v1684, %v1683
      %v1699 = vpack.c.b16 %v1686, %v1685
      %v1700 = vpack.c.b16 %v1688, %v1687
      %v1701 = vpack.c.b16 %v1690, %v1689
      %v1702 = vpack.c.b16 %v1692, %v1691
      %v1703 = vpack.c.b16 %v1694, %v1693
      %v1704 = vpack.c.b16 %v1696, %v1695
      %1713 = vmatprep.subr.bf16.mxu0 0
      %1714 = vmatpush1.bf16.msra.mxu0 %v1697
      %1715 = vmatprep.subr.bf16.mxu0 0
      %1716 = vmatpush1.bf16.msra.mxu0 %v1698
      %1717 = vmatprep.subr.bf16.mxu0 0
      %1718 = vmatpush1.bf16.msra.mxu0 %v1699
      %1719 = vmatprep.subr.bf16.mxu0 0
      %1720 = vmatpush1.bf16.msra.mxu0 %v1700
      %1721 = vmatprep.subr.bf16.mxu0 0
      %1722 = vmatpush1.bf16.msra.mxu0 %v1701
      %1723 = vmatprep.subr.bf16.mxu0 0
      %1724 = vmatpush1.bf16.msra.mxu0 %v1702
      %1725 = vmatprep.subr.bf16.mxu0 0
      %1726 = vmatpush1.bf16.msra.mxu0 %v1703
      %1727 = vmatprep.subr.bf16.mxu0 0
      %1728 = vmatpush1.bf16.msra.mxu0 %v1704
      %1729 = vmatprep.subr.bf16.mxu0 0
      %1730 = vmatpush1.bf16.msra.mxu0 0
      %1731 = vmatprep.subr.bf16.mxu0 0
      %1732 = vmatpush1.bf16.msra.mxu0 0
      %1733 = vmatprep.subr.bf16.mxu0 0
      %1734 = vmatpush1.bf16.msra.mxu0 0
      %1735 = vmatprep.subr.bf16.mxu0 0
      %1736 = vmatpush1.bf16.msra.mxu0 0
      %1737 = vmatprep.subr.bf16.mxu0 0
      %1738 = vmatpush1.bf16.msra.mxu0 0
      %1739 = vmatprep.subr.bf16.mxu0 0
      %1740 = vmatpush1.bf16.msra.mxu0 0
      %1741 = vmatprep.subr.bf16.mxu0 0
      %1742 = vmatpush1.bf16.msra.mxu0 0
      %1743 = vmatprep.subr.bf16.mxu0 0
      %1744 = vmatpush1.bf16.msra.mxu0 0
      %1745 = vmatprep.mubr.bf16.mxu0 0
      %1746 = vmatmul.mubr.bf16.gmra.mrb[0].mxu0 %v1633
      %v1747 = vpop.f32.mrb[0].mxu0
      %v1748 = vadd.f32 0.0, %v1747
      %v1749 = vpop.f32.mrb[0].mxu0
      %v1750 = vpop.f32.mrb[0].mxu0
      %v1751 = vadd.f32 0.0, %v1750
      %v1752 = vpop.f32.mrb[0].mxu0
      %1753 = vmatprep.mubr.bf16.mxu0 0
      %1754 = vmatmul.mubr.bf16.gmra.mrb[0].mxu0 %v1634
      %v1755 = vpop.f32.mrb[0].mxu0
      %v1756 = vadd.f32 0.0, %v1755
      %v1757 = vpop.f32.mrb[0].mxu0
      %v1758 = vpop.f32.mrb[0].mxu0
      %v1759 = vadd.f32 0.0, %v1758
      %v1760 = vpop.f32.mrb[0].mxu0
      %1761 = vmatprep.mubr.bf16.mxu0 0
      %1762 = vmatmul.mubr.bf16.gmra.mrb[0].mxu0 %v1635
      %v1763 = vpop.f32.mrb[0].mxu0
      %v1764 = vadd.f32 0.0, %v1763
      %v1765 = vpop.f32.mrb[0].mxu0
      %v1766 = vpop.f32.mrb[0].mxu0
      %v1767 = vadd.f32 0.0, %v1766
      %v1768 = vpop.f32.mrb[0].mxu0
      %1769 = vmatprep.mubr.bf16.mxu0 0
      %1770 = vmatmul.mubr.bf16.gmra.mrb[0].mxu0 %v1636
      %v1771 = vpop.f32.mrb[0].mxu0
      %v1772 = vadd.f32 0.0, %v1771
      %v1773 = vpop.f32.mrb[0].mxu0
      %v1774 = vpop.f32.mrb[0].mxu0
      %v1775 = vadd.f32 0.0, %v1774
      %v1776 = vpop.f32.mrb[0].mxu0
      %1777 = vmatprep.mubr.bf16.mxu0 0
      %1778 = vmatmul.mubr.bf16.gmra.mrb[0].mxu0 %v1637
      %v1779 = vpop.f32.mrb[0].mxu0
      %v1780 = vadd.f32 0.0, %v1779
      %v1781 = vpop.f32.mrb[0].mxu0
      %v1782 = vpop.f32.mrb[0].mxu0
      %v1783 = vadd.f32 0.0, %v1782
      %v1784 = vpop.f32.mrb[0].mxu0
      %1785 = vmatprep.mubr.bf16.mxu0 0
      %1786 = vmatmul.mubr.bf16.gmra.mrb[0].mxu0 %v1638
      %v1787 = vpop.f32.mrb[0].mxu0
      %v1788 = vadd.f32 0.0, %v1787
      %v1789 = vpop.f32.mrb[0].mxu0
      %v1790 = vpop.f32.mrb[0].mxu0
      %v1791 = vadd.f32 0.0, %v1790
      %v1792 = vpop.f32.mrb[0].mxu0
      %1793 = vmatprep.mubr.bf16.mxu0 0
      %1794 = vmatmul.mubr.bf16.gmra.mrb[0].mxu0 %v1639
      %v1795 = vpop.f32.mrb[0].mxu0
      %v1796 = vadd.f32 0.0, %v1795
      %v1797 = vpop.f32.mrb[0].mxu0
      %v1798 = vpop.f32.mrb[0].mxu0
      %v1799 = vadd.f32 0.0, %v1798
      %v1800 = vpop.f32.mrb[0].mxu0
      %1801 = vmatprep.mubr.bf16.mxu0 0
      %1802 = vmatmul.mubr.bf16.gmra.mrb[0].mxu0 %v1640
      %v1803 = vpop.f32.mrb[0].mxu0
      %v1804 = vadd.f32 0.0, %v1803
      %v1805 = vpop.f32.mrb[0].mxu0
      %v1806 = vpop.f32.mrb[0].mxu0
      %v1807 = vadd.f32 0.0, %v1806
      %v1808 = vpop.f32.mrb[0].mxu0
      %1809 = vmatprep.mubr.bf16.mxu0 0
      %1810 = vmatmul.mubr.bf16.gmra.mrb[0].mxu0 %v1641
      %v1811 = vpop.f32.mrb[0].mxu0
      %v1812 = vadd.f32 0.0, %v1811
      %v1813 = vpop.f32.mrb[0].mxu0
      %v1814 = vpop.f32.mrb[0].mxu0
      %v1815 = vadd.f32 0.0, %v1814
      %v1816 = vpop.f32.mrb[0].mxu0
      %1817 = vmatprep.mubr.bf16.mxu0 0
      %1818 = vmatmul.mubr.bf16.gmra.mrb[0].mxu0 %v1642
      %v1819 = vpop.f32.mrb[0].mxu0
      %v1820 = vadd.f32 0.0, %v1819
      %v1821 = vpop.f32.mrb[0].mxu0
      %v1822 = vpop.f32.mrb[0].mxu0
      %v1823 = vadd.f32 0.0, %v1822
      %v1824 = vpop.f32.mrb[0].mxu0
      %1825 = vmatprep.mubr.bf16.mxu0 0
      %1826 = vmatmul.mubr.bf16.gmra.mrb[0].mxu0 %v1643
      %v1827 = vpop.f32.mrb[0].mxu0
      %v1828 = vadd.f32 0.0, %v1827
      %v1829 = vpop.f32.mrb[0].mxu0
      %v1830 = vpop.f32.mrb[0].mxu0
      %v1831 = vadd.f32 0.0, %v1830
      %v1832 = vpop.f32.mrb[0].mxu0
      %1833 = vmatprep.mubr.bf16.mxu0 0
      %1834 = vmatmul.mubr.bf16.gmra.mrb[0].mxu0 %v1644
      %v1835 = vpop.f32.mrb[0].mxu0
      %v1836 = vadd.f32 0.0, %v1835
      %v1837 = vpop.f32.mrb[0].mxu0
      %v1838 = vpop.f32.mrb[0].mxu0
      %v1839 = vadd.f32 0.0, %v1838
      %v1840 = vpop.f32.mrb[0].mxu0
      %1841 = vmatprep.mubr.bf16.mxu0 0
      %1842 = vmatmul.mubr.bf16.gmra.mrb[0].mxu0 %v1645
      %v1843 = vpop.f32.mrb[0].mxu0
      %v1844 = vadd.f32 0.0, %v1843
      %v1845 = vpop.f32.mrb[0].mxu0
      %v1846 = vpop.f32.mrb[0].mxu0
      %v1847 = vadd.f32 0.0, %v1846
      %v1848 = vpop.f32.mrb[0].mxu0
      %1849 = vmatprep.mubr.bf16.mxu0 0
      %1850 = vmatmul.mubr.bf16.gmra.mrb[0].mxu0 %v1646
      %v1851 = vpop.f32.mrb[0].mxu0
      %v1852 = vadd.f32 0.0, %v1851
      %v1853 = vpop.f32.mrb[0].mxu0
      %v1854 = vpop.f32.mrb[0].mxu0
      %v1855 = vadd.f32 0.0, %v1854
      %v1856 = vpop.f32.mrb[0].mxu0
      %1857 = vmatprep.mubr.bf16.mxu0 0
      %1858 = vmatmul.mubr.bf16.gmra.mrb[0].mxu0 %v1647
      %v1859 = vpop.f32.mrb[0].mxu0
      %v1860 = vadd.f32 0.0, %v1859
      %v1861 = vpop.f32.mrb[0].mxu0
      %v1862 = vpop.f32.mrb[0].mxu0
      %v1863 = vadd.f32 0.0, %v1862
      %v1864 = vpop.f32.mrb[0].mxu0
      %1865 = vmatprep.mubr.bf16.mxu0 0
      %1866 = vmatmul.mubr.bf16.gmra.mrb[0].mxu0 %v1648
      %v1867 = vpop.f32.mrb[0].mxu0
      %v1868 = vadd.f32 0.0, %v1867
      %v1869 = vpop.f32.mrb[0].mxu0
      %v1870 = vpop.f32.mrb[0].mxu0
      %v1871 = vadd.f32 0.0, %v1870
      %v1872 = vpop.f32.mrb[0].mxu0
      %1873 = vdwg.mxu0
      %v1874 = vunpack.c.l.b16 %v812
      %v1875 = vunpack.c.h.b16 %v812
      %v1876 = vunpack.c.l.b16 %v821
      %v1877 = vunpack.c.h.b16 %v821
      %v1878 = vunpack.c.l.b16 %v834
      %v1879 = vunpack.c.h.b16 %v834
      %v1880 = vunpack.c.l.b16 %v843
      %v1881 = vunpack.c.h.b16 %v843
      %v1882 = vunpack.c.l.b16 %v856
      %v1883 = vunpack.c.h.b16 %v856
      %v1884 = vunpack.c.l.b16 %v865
      %v1885 = vunpack.c.h.b16 %v865
      %v1886 = vunpack.c.l.b16 %v878
      %v1887 = vunpack.c.h.b16 %v878
      %v1888 = vunpack.c.l.b16 %v887
      %v1889 = vunpack.c.h.b16 %v887
      %v1890 = vunpack.c.l.b16 %v900
      %v1891 = vunpack.c.h.b16 %v900
      %v1892 = vunpack.c.l.b16 %v909
      %v1893 = vunpack.c.h.b16 %v909
      %v1894 = vunpack.c.l.b16 %v922
      %v1895 = vunpack.c.h.b16 %v922
      %v1896 = vunpack.c.l.b16 %v931
      %v1897 = vunpack.c.h.b16 %v931
      %v1898 = vunpack.c.l.b16 %v944
      %v1899 = vunpack.c.h.b16 %v944
      %v1900 = vunpack.c.l.b16 %v953
      %v1901 = vunpack.c.h.b16 %v953
      %v1902 = vunpack.c.l.b16 %v966
      %v1903 = vunpack.c.h.b16 %v966
      %v1904 = vunpack.c.l.b16 %v975
      %v1905 = vunpack.c.h.b16 %v975
      %v1906 = vunpack.c.l.b16 %v988
      %v1907 = vunpack.c.h.b16 %v988
      %v1908 = vunpack.c.l.b16 %v997
      %v1909 = vunpack.c.h.b16 %v997
      %v1910 = vunpack.c.l.b16 %v1010
      %v1911 = vunpack.c.h.b16 %v1010
      %v1912 = vunpack.c.l.b16 %v1019
      %v1913 = vunpack.c.h.b16 %v1019
      %v1914 = vunpack.c.l.b16 %v1032
      %v1915 = vunpack.c.h.b16 %v1032
      %v1916 = vunpack.c.l.b16 %v1041
      %v1917 = vunpack.c.h.b16 %v1041
      %v1918 = vunpack.c.l.b16 %v1054
      %v1919 = vunpack.c.h.b16 %v1054
      %v1920 = vunpack.c.l.b16 %v1063
      %v1921 = vunpack.c.h.b16 %v1063
      %v1922 = vunpack.c.l.b16 %v1076
      %v1923 = vunpack.c.h.b16 %v1076
      %v1924 = vunpack.c.l.b16 %v1085
      %v1925 = vunpack.c.h.b16 %v1085
      %v1926 = vunpack.c.l.b16 %v1098
      %v1927 = vunpack.c.h.b16 %v1098
      %v1928 = vunpack.c.l.b16 %v1107
      %v1929 = vunpack.c.h.b16 %v1107
      %v1930 = vunpack.c.l.b16 %v1120
      %v1931 = vunpack.c.h.b16 %v1120
      %v1932 = vunpack.c.l.b16 %v1129
      %v1933 = vunpack.c.h.b16 %v1129
      %v1934 = vunpack.c.l.b16 %v1142
      %v1935 = vunpack.c.h.b16 %v1142
      %v1936 = vunpack.c.l.b16 %v1151
      %v1937 = vunpack.c.h.b16 %v1151
      %v1938 = vpack.c.b16 %v1876, %v1874
      %v1939 = vpack.c.b16 %v1877, %v1875
      %v1940 = vpack.c.b16 %v1880, %v1878
      %v1941 = vpack.c.b16 %v1881, %v1879
      %v1942 = vpack.c.b16 %v1884, %v1882
      %v1943 = vpack.c.b16 %v1885, %v1883
      %v1944 = vpack.c.b16 %v1888, %v1886
      %v1945 = vpack.c.b16 %v1889, %v1887
      %v1946 = vpack.c.b16 %v1892, %v1890
      %v1947 = vpack.c.b16 %v1893, %v1891
      %v1948 = vpack.c.b16 %v1896, %v1894
      %v1949 = vpack.c.b16 %v1897, %v1895
      %v1950 = vpack.c.b16 %v1900, %v1898
      %v1951 = vpack.c.b16 %v1901, %v1899
      %v1952 = vpack.c.b16 %v1904, %v1902
      %v1953 = vpack.c.b16 %v1905, %v1903
      %v1954 = vpack.c.b16 %v1908, %v1906
      %v1955 = vpack.c.b16 %v1909, %v1907
      %v1956 = vpack.c.b16 %v1912, %v1910
      %v1957 = vpack.c.b16 %v1913, %v1911
      %v1958 = vpack.c.b16 %v1916, %v1914
      %v1959 = vpack.c.b16 %v1917, %v1915
      %v1960 = vpack.c.b16 %v1920, %v1918
      %v1961 = vpack.c.b16 %v1921, %v1919
      %v1962 = vpack.c.b16 %v1924, %v1922
      %v1963 = vpack.c.b16 %v1925, %v1923
      %v1964 = vpack.c.b16 %v1928, %v1926
      %v1965 = vpack.c.b16 %v1929, %v1927
      %v1966 = vpack.c.b16 %v1932, %v1930
      %v1967 = vpack.c.b16 %v1933, %v1931
      %v1968 = vpack.c.b16 %v1936, %v1934
      %v1969 = vpack.c.b16 %v1937, %v1935
      %v2034 = vunpack.c.l.b16 %v1152
      %v2035 = vunpack.c.l.b16 %v1153
      %v2036 = vunpack.c.l.b16 %v1154
      %v2037 = vunpack.c.l.b16 %v1155
      %v2038 = vunpack.c.l.b16 %v1156
      %v2039 = vunpack.c.l.b16 %v1157
      %v2040 = vunpack.c.l.b16 %v1158
      %v2041 = vunpack.c.l.b16 %v1159
      %v2042 = vunpack.c.l.b16 %v1160
      %v2043 = vunpack.c.l.b16 %v1161
      %v2044 = vunpack.c.l.b16 %v1162
      %v2045 = vunpack.c.l.b16 %v1163
      %v2046 = vunpack.c.l.b16 %v1164
      %v2047 = vunpack.c.l.b16 %v1165
      %v2048 = vunpack.c.l.b16 %v1166
      %v2049 = vunpack.c.l.b16 %v1167
      %v2050 = vunpack.c.l.b16 %v1168
      %v2051 = vunpack.c.l.b16 %v1169
      %v2052 = vunpack.c.l.b16 %v1170
      %v2053 = vunpack.c.l.b16 %v1171
      %v2054 = vunpack.c.l.b16 %v1172
      %v2055 = vunpack.c.l.b16 %v1173
      %v2056 = vunpack.c.l.b16 %v1174
      %v2057 = vunpack.c.l.b16 %v1175
      %v2058 = vunpack.c.l.b16 %v1176
      %v2059 = vunpack.c.l.b16 %v1177
      %v2060 = vunpack.c.l.b16 %v1178
      %v2061 = vunpack.c.l.b16 %v1179
      %v2062 = vunpack.c.l.b16 %v1180
      %v2063 = vunpack.c.l.b16 %v1181
      %v2064 = vunpack.c.l.b16 %v1182
      %v2065 = vunpack.c.l.b16 %v1183
      %v2066 = vpack.c.b16 %v2035, %v2034
      %v2067 = vpack.c.b16 %v2037, %v2036
      %v2068 = vpack.c.b16 %v2039, %v2038
      %v2069 = vpack.c.b16 %v2041, %v2040
      %v2070 = vpack.c.b16 %v2043, %v2042
      %v2071 = vpack.c.b16 %v2045, %v2044
      %v2072 = vpack.c.b16 %v2047, %v2046
      %v2073 = vpack.c.b16 %v2049, %v2048
      %v2074 = vpack.c.b16 %v2051, %v2050
      %v2075 = vpack.c.b16 %v2053, %v2052
      %v2076 = vpack.c.b16 %v2055, %v2054
      %v2077 = vpack.c.b16 %v2057, %v2056
      %v2078 = vpack.c.b16 %v2059, %v2058
      %v2079 = vpack.c.b16 %v2061, %v2060
      %v2080 = vpack.c.b16 %v2063, %v2062
      %v2081 = vpack.c.b16 %v2065, %v2064
      %2098 = vmatprep.subr.bf16.mxu0 0
      %2099 = vmatpush1.bf16.msra.mxu0 %v2066
      %2100 = vmatprep.subr.bf16.mxu0 0
      %2101 = vmatpush1.bf16.msra.mxu0 %v2067
      %2102 = vmatprep.subr.bf16.mxu0 0
      %2103 = vmatpush1.bf16.msra.mxu0 %v2068
      %2104 = vmatprep.subr.bf16.mxu0 0
      %2105 = vmatpush1.bf16.msra.mxu0 %v2069
      %2106 = vmatprep.subr.bf16.mxu0 0
      %2107 = vmatpush1.bf16.msra.mxu0 %v2070
      %2108 = vmatprep.subr.bf16.mxu0 0
      %2109 = vmatpush1.bf16.msra.mxu0 %v2071
      %2110 = vmatprep.subr.bf16.mxu0 0
      %2111 = vmatpush1.bf16.msra.mxu0 %v2072
      %2112 = vmatprep.subr.bf16.mxu0 0
      %2113 = vmatpush1.bf16.msra.mxu0 %v2073
      %2114 = vmatprep.subr.bf16.mxu0 0
      %2115 = vmatpush1.bf16.msra.mxu0 %v2074
      %2116 = vmatprep.subr.bf16.mxu0 0
      %2117 = vmatpush1.bf16.msra.mxu0 %v2075
      %2118 = vmatprep.subr.bf16.mxu0 0
      %2119 = vmatpush1.bf16.msra.mxu0 %v2076
      %2120 = vmatprep.subr.bf16.mxu0 0
      %2121 = vmatpush1.bf16.msra.mxu0 %v2077
      %2122 = vmatprep.subr.bf16.mxu0 0
      %2123 = vmatpush1.bf16.msra.mxu0 %v2078
      %2124 = vmatprep.subr.bf16.mxu0 0
      %2125 = vmatpush1.bf16.msra.mxu0 %v2079
      %2126 = vmatprep.subr.bf16.mxu0 0
      %2127 = vmatpush1.bf16.msra.mxu0 %v2080
      %2128 = vmatprep.subr.bf16.mxu0 0
      %2129 = vmatpush1.bf16.msra.mxu0 %v2081
      %2130 = vmatprep.mubr.bf16.mxu0 %v1939
      %2131 = vmatmul.mubr.bf16.gmra.mrb[0].mxu0 %v1938
      %v2132 = vpop.f32.mrb[0].mxu0
      %v2133 = vadd.f32 %v1748, %v2132
      %v2134 = vpop.f32.mrb[0].mxu0
      %v2135 = vpop.f32.mrb[0].mxu0
      %v2136 = vadd.f32 %v1751, %v2135
      %v2137 = vpop.f32.mrb[0].mxu0
      %2138 = vmatprep.mubr.bf16.mxu0 %v1941
      %2139 = vmatmul.mubr.bf16.gmra.mrb[0].mxu0 %v1940
      %v2140 = vpop.f32.mrb[0].mxu0
      %v2141 = vadd.f32 %v1756, %v2140
      %v2142 = vpop.f32.mrb[0].mxu0
      %v2143 = vpop.f32.mrb[0].mxu0
      %v2144 = vadd.f32 %v1759, %v2143
      %v2145 = vpop.f32.mrb[0].mxu0
      %2146 = vmatprep.mubr.bf16.mxu0 %v1943
      %2147 = vmatmul.mubr.bf16.gmra.mrb[0].mxu0 %v1942
      %v2148 = vpop.f32.mrb[0].mxu0
      %v2149 = vadd.f32 %v1764, %v2148
      %v2150 = vpop.f32.mrb[0].mxu0
      %v2151 = vpop.f32.mrb[0].mxu0
      %v2152 = vadd.f32 %v1767, %v2151
      %v2153 = vpop.f32.mrb[0].mxu0
      %2154 = vmatprep.mubr.bf16.mxu0 %v1945
      %2155 = vmatmul.mubr.bf16.gmra.mrb[0].mxu0 %v1944
      %v2156 = vpop.f32.mrb[0].mxu0
      %v2157 = vadd.f32 %v1772, %v2156
      %v2158 = vpop.f32.mrb[0].mxu0
      %v2159 = vpop.f32.mrb[0].mxu0
      %v2160 = vadd.f32 %v1775, %v2159
      %v2161 = vpop.f32.mrb[0].mxu0
      %2162 = vmatprep.mubr.bf16.mxu0 %v1947
      %2163 = vmatmul.mubr.bf16.gmra.mrb[0].mxu0 %v1946
      %v2164 = vpop.f32.mrb[0].mxu0
      %v2165 = vadd.f32 %v1780, %v2164
      %v2166 = vpop.f32.mrb[0].mxu0
      %v2167 = vpop.f32.mrb[0].mxu0
      %v2168 = vadd.f32 %v1783, %v2167
      %v2169 = vpop.f32.mrb[0].mxu0
      %2170 = vmatprep.mubr.bf16.mxu0 %v1949
      %2171 = vmatmul.mubr.bf16.gmra.mrb[0].mxu0 %v1948
      %v2172 = vpop.f32.mrb[0].mxu0
      %v2173 = vadd.f32 %v1788, %v2172
      %v2174 = vpop.f32.mrb[0].mxu0
      %v2175 = vpop.f32.mrb[0].mxu0
      %v2176 = vadd.f32 %v1791, %v2175
      %v2177 = vpop.f32.mrb[0].mxu0
      %2178 = vmatprep.mubr.bf16.mxu0 %v1951
      %2179 = vmatmul.mubr.bf16.gmra.mrb[0].mxu0 %v1950
      %v2180 = vpop.f32.mrb[0].mxu0
      %v2181 = vadd.f32 %v1796, %v2180
      %v2182 = vpop.f32.mrb[0].mxu0
      %v2183 = vpop.f32.mrb[0].mxu0
      %v2184 = vadd.f32 %v1799, %v2183
      %v2185 = vpop.f32.mrb[0].mxu0
      %2186 = vmatprep.mubr.bf16.mxu0 %v1953
      %2187 = vmatmul.mubr.bf16.gmra.mrb[0].mxu0 %v1952
      %v2188 = vpop.f32.mrb[0].mxu0
      %v2189 = vadd.f32 %v1804, %v2188
      %v2190 = vpop.f32.mrb[0].mxu0
      %v2191 = vpop.f32.mrb[0].mxu0
      %v2192 = vadd.f32 %v1807, %v2191
      %v2193 = vpop.f32.mrb[0].mxu0
      %2194 = vmatprep.mubr.bf16.mxu0 %v1955
      %2195 = vmatmul.mubr.bf16.gmra.mrb[0].mxu0 %v1954
      %v2196 = vpop.f32.mrb[0].mxu0
      %v2197 = vadd.f32 %v1812, %v2196
      %v2198 = vpop.f32.mrb[0].mxu0
      %v2199 = vpop.f32.mrb[0].mxu0
      %v2200 = vadd.f32 %v1815, %v2199
      %v2201 = vpop.f32.mrb[0].mxu0
      %2202 = vmatprep.mubr.bf16.mxu0 %v1957
      %2203 = vmatmul.mubr.bf16.gmra.mrb[0].mxu0 %v1956
      %v2204 = vpop.f32.mrb[0].mxu0
      %v2205 = vadd.f32 %v1820, %v2204
      %v2206 = vpop.f32.mrb[0].mxu0
      %v2207 = vpop.f32.mrb[0].mxu0
      %v2208 = vadd.f32 %v1823, %v2207
      %v2209 = vpop.f32.mrb[0].mxu0
      %2210 = vmatprep.mubr.bf16.mxu0 %v1959
      %2211 = vmatmul.mubr.bf16.gmra.mrb[0].mxu0 %v1958
      %v2212 = vpop.f32.mrb[0].mxu0
      %v2213 = vadd.f32 %v1828, %v2212
      %v2214 = vpop.f32.mrb[0].mxu0
      %v2215 = vpop.f32.mrb[0].mxu0
      %v2216 = vadd.f32 %v1831, %v2215
      %v2217 = vpop.f32.mrb[0].mxu0
      %2218 = vmatprep.mubr.bf16.mxu0 %v1961
      %2219 = vmatmul.mubr.bf16.gmra.mrb[0].mxu0 %v1960
      %v2220 = vpop.f32.mrb[0].mxu0
      %v2221 = vadd.f32 %v1836, %v2220
      %v2222 = vpop.f32.mrb[0].mxu0
      %v2223 = vpop.f32.mrb[0].mxu0
      %v2224 = vadd.f32 %v1839, %v2223
      %v2225 = vpop.f32.mrb[0].mxu0
      %2226 = vmatprep.mubr.bf16.mxu0 %v1963
      %2227 = vmatmul.mubr.bf16.gmra.mrb[0].mxu0 %v1962
      %v2228 = vpop.f32.mrb[0].mxu0
      %v2229 = vadd.f32 %v1844, %v2228
      %v2230 = vpop.f32.mrb[0].mxu0
      %v2231 = vpop.f32.mrb[0].mxu0
      %v2232 = vadd.f32 %v1847, %v2231
      %v2233 = vpop.f32.mrb[0].mxu0
      %2234 = vmatprep.mubr.bf16.mxu0 %v1965
      %2235 = vmatmul.mubr.bf16.gmra.mrb[0].mxu0 %v1964
      %v2236 = vpop.f32.mrb[0].mxu0
      %v2237 = vadd.f32 %v1852, %v2236
      %v2238 = vpop.f32.mrb[0].mxu0
      %v2239 = vpop.f32.mrb[0].mxu0
      %v2240 = vadd.f32 %v1855, %v2239
      %v2241 = vpop.f32.mrb[0].mxu0
      %2242 = vmatprep.mubr.bf16.mxu0 %v1967
      %2243 = vmatmul.mubr.bf16.gmra.mrb[0].mxu0 %v1966
      %v2244 = vpop.f32.mrb[0].mxu0
      %v2245 = vadd.f32 %v1860, %v2244
      %v2246 = vpop.f32.mrb[0].mxu0
      %v2247 = vpop.f32.mrb[0].mxu0
      %v2248 = vadd.f32 %v1863, %v2247
      %v2249 = vpop.f32.mrb[0].mxu0
      %2250 = vmatprep.mubr.bf16.mxu0 %v1969
      %2251 = vmatmul.mubr.bf16.gmra.mrb[0].mxu0 %v1968
      %v2252 = vpop.f32.mrb[0].mxu0
      %v2253 = vadd.f32 %v1868, %v2252
      %v2254 = vpop.f32.mrb[0].mxu0
      %v2255 = vpop.f32.mrb[0].mxu0
      %v2256 = vadd.f32 %v1871, %v2255
      %v2257 = vpop.f32.mrb[0].mxu0
      %2258 = vdwg.mxu0
      %s2259 = scalar_lea.vmem %s3, 128
      %v2260 = vld [vmem:[%s2259] sm:$0xf]
      %v2261 = vld [vmem:[%s2259 + $0x4] sm:$0xf]
      %v2262 = vld [vmem:[%s2259 + $0x8] sm:$0xf]
      %v2263 = vld [vmem:[%s2259 + $0xc] sm:$0xf]
      %v2264 = vld [vmem:[%s2259 + $0x10] sm:$0xf]
      %v2265 = vld [vmem:[%s2259 + $0x14] sm:$0xf]
      %v2266 = vld [vmem:[%s2259 + $0x18] sm:$0xf]
      %v2267 = vld [vmem:[%s2259 + $0x1c] sm:$0xf]
      %v2268 = vld [vmem:[%s2259 + $0x20] sm:$0xf]
      %v2269 = vld [vmem:[%s2259 + $0x24] sm:$0xf]
      %v2270 = vld [vmem:[%s2259 + $0x28] sm:$0xf]
      %v2271 = vld [vmem:[%s2259 + $0x2c] sm:$0xf]
      %v2272 = vld [vmem:[%s2259 + $0x30] sm:$0xf]
      %v2273 = vld [vmem:[%s2259 + $0x34] sm:$0xf]
      %v2274 = vld [vmem:[%s2259 + $0x38] sm:$0xf]
      %v2275 = vld [vmem:[%s2259 + $0x3c] sm:$0xf]
      %v2276 = vld [vmem:[%s2259 + $0x40] sm:$0xf]
      %v2277 = vld [vmem:[%s2259 + $0x44] sm:$0xf]
      %v2278 = vld [vmem:[%s2259 + $0x48] sm:$0xf]
      %v2279 = vld [vmem:[%s2259 + $0x4c] sm:$0xf]
      %v2280 = vld [vmem:[%s2259 + $0x50] sm:$0xf]
      %v2281 = vld [vmem:[%s2259 + $0x54] sm:$0xf]
      %v2282 = vld [vmem:[%s2259 + $0x58] sm:$0xf]
      %v2283 = vld [vmem:[%s2259 + $0x5c] sm:$0xf]
      %v2284 = vld [vmem:[%s2259 + $0x60] sm:$0xf]
      %v2285 = vld [vmem:[%s2259 + $0x64] sm:$0xf]
      %v2286 = vld [vmem:[%s2259 + $0x68] sm:$0xf]
      %v2287 = vld [vmem:[%s2259 + $0x6c] sm:$0xf]
      %v2288 = vld [vmem:[%s2259 + $0x70] sm:$0xf]
      %v2289 = vld [vmem:[%s2259 + $0x74] sm:$0xf]
      %v2290 = vld [vmem:[%s2259 + $0x78] sm:$0xf]
      %v2291 = vld [vmem:[%s2259 + $0x7c] sm:$0xf]
      %v2324 = vunpack.c.l.b16 %v751
      %v2325 = vunpack.c.h.b16 %v751
      %v2326 = vunpack.c.l.b16 %v752
      %v2327 = vunpack.c.h.b16 %v752
      %v2328 = vunpack.c.l.b16 %v754
      %v2329 = vunpack.c.h.b16 %v754
      %v2330 = vunpack.c.l.b16 %v755
      %v2331 = vunpack.c.h.b16 %v755
      %v2332 = vunpack.c.l.b16 %v757
      %v2333 = vunpack.c.h.b16 %v757
      %v2334 = vunpack.c.l.b16 %v758
      %v2335 = vunpack.c.h.b16 %v758
      %v2336 = vunpack.c.l.b16 %v760
      %v2337 = vunpack.c.h.b16 %v760
      %v2338 = vunpack.c.l.b16 %v761
      %v2339 = vunpack.c.h.b16 %v761
      %v2340 = vunpack.c.l.b16 %v763
      %v2341 = vunpack.c.h.b16 %v763
      %v2342 = vunpack.c.l.b16 %v764
      %v2343 = vunpack.c.h.b16 %v764
      %v2344 = vunpack.c.l.b16 %v766
      %v2345 = vunpack.c.h.b16 %v766
      %v2346 = vunpack.c.l.b16 %v767
      %v2347 = vunpack.c.h.b16 %v767
      %v2348 = vunpack.c.l.b16 %v769
      %v2349 = vunpack.c.h.b16 %v769
      %v2350 = vunpack.c.l.b16 %v770
      %v2351 = vunpack.c.h.b16 %v770
      %v2352 = vunpack.c.l.b16 %v772
      %v2353 = vunpack.c.h.b16 %v772
      %v2354 = vunpack.c.l.b16 %v773
      %v2355 = vunpack.c.h.b16 %v773
      %v2356 = vunpack.c.l.b16 %v775
      %v2357 = vunpack.c.h.b16 %v775
      %v2358 = vunpack.c.l.b16 %v776
      %v2359 = vunpack.c.h.b16 %v776
      %v2360 = vunpack.c.l.b16 %v778
      %v2361 = vunpack.c.h.b16 %v778
      %v2362 = vunpack.c.l.b16 %v779
      %v2363 = vunpack.c.h.b16 %v779
      %v2364 = vunpack.c.l.b16 %v781
      %v2365 = vunpack.c.h.b16 %v781
      %v2366 = vunpack.c.l.b16 %v782
      %v2367 = vunpack.c.h.b16 %v782
      %v2368 = vunpack.c.l.b16 %v784
      %v2369 = vunpack.c.h.b16 %v784
      %v2370 = vunpack.c.l.b16 %v785
      %v2371 = vunpack.c.h.b16 %v785
      %v2372 = vunpack.c.l.b16 %v787
      %v2373 = vunpack.c.h.b16 %v787
      %v2374 = vunpack.c.l.b16 %v788
      %v2375 = vunpack.c.h.b16 %v788
      %v2376 = vunpack.c.l.b16 %v790
      %v2377 = vunpack.c.h.b16 %v790
      %v2378 = vunpack.c.l.b16 %v791
      %v2379 = vunpack.c.h.b16 %v791
      %v2380 = vunpack.c.l.b16 %v793
      %v2381 = vunpack.c.h.b16 %v793
      %v2382 = vunpack.c.l.b16 %v794
      %v2383 = vunpack.c.h.b16 %v794
      %v2384 = vunpack.c.l.b16 %v796
      %v2385 = vunpack.c.h.b16 %v796
      %v2386 = vunpack.c.l.b16 %v797
      %v2387 = vunpack.c.h.b16 %v797
      %v2388 = vpack.c.b16 %v2326, %v2324
      %v2389 = vpack.c.b16 %v2327, %v2325
      %v2390 = vpack.c.b16 %v2330, %v2328
      %v2391 = vpack.c.b16 %v2331, %v2329
      %v2392 = vpack.c.b16 %v2334, %v2332
      %v2393 = vpack.c.b16 %v2335, %v2333
      %v2394 = vpack.c.b16 %v2338, %v2336
      %v2395 = vpack.c.b16 %v2339, %v2337
      %v2396 = vpack.c.b16 %v2342, %v2340
      %v2397 = vpack.c.b16 %v2343, %v2341
      %v2398 = vpack.c.b16 %v2346, %v2344
      %v2399 = vpack.c.b16 %v2347, %v2345
      %v2400 = vpack.c.b16 %v2350, %v2348
      %v2401 = vpack.c.b16 %v2351, %v2349
      %v2402 = vpack.c.b16 %v2354, %v2352
      %v2403 = vpack.c.b16 %v2355, %v2353
      %v2404 = vpack.c.b16 %v2358, %v2356
      %v2405 = vpack.c.b16 %v2359, %v2357
      %v2406 = vpack.c.b16 %v2362, %v2360
      %v2407 = vpack.c.b16 %v2363, %v2361
      %v2408 = vpack.c.b16 %v2366, %v2364
      %v2409 = vpack.c.b16 %v2367, %v2365
      %v2410 = vpack.c.b16 %v2370, %v2368
      %v2411 = vpack.c.b16 %v2371, %v2369
      %v2412 = vpack.c.b16 %v2374, %v2372
      %v2413 = vpack.c.b16 %v2375, %v2373
      %v2414 = vpack.c.b16 %v2378, %v2376
      %v2415 = vpack.c.b16 %v2379, %v2377
      %v2416 = vpack.c.b16 %v2382, %v2380
      %v2417 = vpack.c.b16 %v2383, %v2381
      %v2418 = vpack.c.b16 %v2386, %v2384
      %v2419 = vpack.c.b16 %v2387, %v2385
      %v2484 = vunpack.c.l.b16 %v2260
      %v2485 = vunpack.c.l.b16 %v2261
      %v2486 = vunpack.c.l.b16 %v2262
      %v2487 = vunpack.c.l.b16 %v2263
      %v2488 = vunpack.c.l.b16 %v2264
      %v2489 = vunpack.c.l.b16 %v2265
      %v2490 = vunpack.c.l.b16 %v2266
      %v2491 = vunpack.c.l.b16 %v2267
      %v2492 = vunpack.c.l.b16 %v2268
      %v2493 = vunpack.c.l.b16 %v2269
      %v2494 = vunpack.c.l.b16 %v2270
      %v2495 = vunpack.c.l.b16 %v2271
      %v2496 = vunpack.c.l.b16 %v2272
      %v2497 = vunpack.c.l.b16 %v2273
      %v2498 = vunpack.c.l.b16 %v2274
      %v2499 = vunpack.c.l.b16 %v2275
      %v2500 = vunpack.c.l.b16 %v2276
      %v2501 = vunpack.c.l.b16 %v2277
      %v2502 = vunpack.c.l.b16 %v2278
      %v2503 = vunpack.c.l.b16 %v2279
      %v2504 = vunpack.c.l.b16 %v2280
      %v2505 = vunpack.c.l.b16 %v2281
      %v2506 = vunpack.c.l.b16 %v2282
      %v2507 = vunpack.c.l.b16 %v2283
      %v2508 = vunpack.c.l.b16 %v2284
      %v2509 = vunpack.c.l.b16 %v2285
      %v2510 = vunpack.c.l.b16 %v2286
      %v2511 = vunpack.c.l.b16 %v2287
      %v2512 = vunpack.c.l.b16 %v2288
      %v2513 = vunpack.c.l.b16 %v2289
      %v2514 = vunpack.c.l.b16 %v2290
      %v2515 = vunpack.c.l.b16 %v2291
      %v2516 = vpack.c.b16 %v2485, %v2484
      %v2517 = vpack.c.b16 %v2487, %v2486
      %v2518 = vpack.c.b16 %v2489, %v2488
      %v2519 = vpack.c.b16 %v2491, %v2490
      %v2520 = vpack.c.b16 %v2493, %v2492
      %v2521 = vpack.c.b16 %v2495, %v2494
      %v2522 = vpack.c.b16 %v2497, %v2496
      %v2523 = vpack.c.b16 %v2499, %v2498
      %v2524 = vpack.c.b16 %v2501, %v2500
      %v2525 = vpack.c.b16 %v2503, %v2502
      %v2526 = vpack.c.b16 %v2505, %v2504
      %v2527 = vpack.c.b16 %v2507, %v2506
      %v2528 = vpack.c.b16 %v2509, %v2508
      %v2529 = vpack.c.b16 %v2511, %v2510
      %v2530 = vpack.c.b16 %v2513, %v2512
      %v2531 = vpack.c.b16 %v2515, %v2514
      %2548 = vmatprep.subr.bf16.mxu0 0
      %2549 = vmatpush1.bf16.msra.mxu0 %v2516
      %2550 = vmatprep.subr.bf16.mxu0 0
      %2551 = vmatpush1.bf16.msra.mxu0 %v2517
      %2552 = vmatprep.subr.bf16.mxu0 0
      %2553 = vmatpush1.bf16.msra.mxu0 %v2518
      %2554 = vmatprep.subr.bf16.mxu0 0
      %2555 = vmatpush1.bf16.msra.mxu0 %v2519
      %2556 = vmatprep.subr.bf16.mxu0 0
      %2557 = vmatpush1.bf16.msra.mxu0 %v2520
      %2558 = vmatprep.subr.bf16.mxu0 0
      %2559 = vmatpush1.bf16.msra.mxu0 %v2521
      %2560 = vmatprep.subr.bf16.mxu0 0
      %2561 = vmatpush1.bf16.msra.mxu0 %v2522
      %2562 = vmatprep.subr.bf16.mxu0 0
      %2563 = vmatpush1.bf16.msra.mxu0 %v2523
      %2564 = vmatprep.subr.bf16.mxu0 0
      %2565 = vmatpush1.bf16.msra.mxu0 %v2524
      %2566 = vmatprep.subr.bf16.mxu0 0
      %2567 = vmatpush1.bf16.msra.mxu0 %v2525
      %2568 = vmatprep.subr.bf16.mxu0 0
      %2569 = vmatpush1.bf16.msra.mxu0 %v2526
      %2570 = vmatprep.subr.bf16.mxu0 0
      %2571 = vmatpush1.bf16.msra.mxu0 %v2527
      %2572 = vmatprep.subr.bf16.mxu0 0
      %2573 = vmatpush1.bf16.msra.mxu0 %v2528
      %2574 = vmatprep.subr.bf16.mxu0 0
      %2575 = vmatpush1.bf16.msra.mxu0 %v2529
      %2576 = vmatprep.subr.bf16.mxu0 0
      %2577 = vmatpush1.bf16.msra.mxu0 %v2530
      %2578 = vmatprep.subr.bf16.mxu0 0
      %2579 = vmatpush1.bf16.msra.mxu0 %v2531
      %2580 = vmatprep.mubr.bf16.mxu0 %v2389
      %2581 = vmatmul.mubr.bf16.gmra.mrb[0].mxu0 %v2388
      %v2582 = vpop.f32.mrb[0].mxu0
      %v2583 = vadd.f32 0.0, %v2582
      %v2584 = vpop.f32.mrb[0].mxu0
      %v2585 = vpop.f32.mrb[0].mxu0
      %v2586 = vadd.f32 0.0, %v2585
      %v2587 = vpop.f32.mrb[0].mxu0
      %2588 = vmatprep.mubr.bf16.mxu0 %v2391
      %2589 = vmatmul.mubr.bf16.gmra.mrb[0].mxu0 %v2390
      %v2590 = vpop.f32.mrb[0].mxu0
      %v2591 = vadd.f32 0.0, %v2590
      %v2592 = vpop.f32.mrb[0].mxu0
      %v2593 = vpop.f32.mrb[0].mxu0
      %v2594 = vadd.f32 0.0, %v2593
      %v2595 = vpop.f32.mrb[0].mxu0
      %2596 = vmatprep.mubr.bf16.mxu0 %v2393
      %2597 = vmatmul.mubr.bf16.gmra.mrb[0].mxu0 %v2392
      %v2598 = vpop.f32.mrb[0].mxu0
      %v2599 = vadd.f32 0.0, %v2598
      %v2600 = vpop.f32.mrb[0].mxu0
      %v2601 = vpop.f32.mrb[0].mxu0
      %v2602 = vadd.f32 0.0, %v2601
      %v2603 = vpop.f32.mrb[0].mxu0
      %2604 = vmatprep.mubr.bf16.mxu0 %v2395
      %2605 = vmatmul.mubr.bf16.gmra.mrb[0].mxu0 %v2394
      %v2606 = vpop.f32.mrb[0].mxu0
      %v2607 = vadd.f32 0.0, %v2606
      %v2608 = vpop.f32.mrb[0].mxu0
      %v2609 = vpop.f32.mrb[0].mxu0
      %v2610 = vadd.f32 0.0, %v2609
      %v2611 = vpop.f32.mrb[0].mxu0
      %2612 = vmatprep.mubr.bf16.mxu0 %v2397
      %2613 = vmatmul.mubr.bf16.gmra.mrb[0].mxu0 %v2396
      %v2614 = vpop.f32.mrb[0].mxu0
      %v2615 = vadd.f32 0.0, %v2614
      %v2616 = vpop.f32.mrb[0].mxu0
      %v2617 = vpop.f32.mrb[0].mxu0
      %v2618 = vadd.f32 0.0, %v2617
      %v2619 = vpop.f32.mrb[0].mxu0
      %2620 = vmatprep.mubr.bf16.mxu0 %v2399
      %2621 = vmatmul.mubr.bf16.gmra.mrb[0].mxu0 %v2398
      %v2622 = vpop.f32.mrb[0].mxu0
      %v2623 = vadd.f32 0.0, %v2622
      %v2624 = vpop.f32.mrb[0].mxu0
      %v2625 = vpop.f32.mrb[0].mxu0
      %v2626 = vadd.f32 0.0, %v2625
      %v2627 = vpop.f32.mrb[0].mxu0
      %2628 = vmatprep.mubr.bf16.mxu0 %v2401
      %2629 = vmatmul.mubr.bf16.gmra.mrb[0].mxu0 %v2400
      %v2630 = vpop.f32.mrb[0].mxu0
      %v2631 = vadd.f32 0.0, %v2630
      %v2632 = vpop.f32.mrb[0].mxu0
      %v2633 = vpop.f32.mrb[0].mxu0
      %v2634 = vadd.f32 0.0, %v2633
      %v2635 = vpop.f32.mrb[0].mxu0
      %2636 = vmatprep.mubr.bf16.mxu0 %v2403
      %2637 = vmatmul.mubr.bf16.gmra.mrb[0].mxu0 %v2402
      %v2638 = vpop.f32.mrb[0].mxu0
      %v2639 = vadd.f32 0.0, %v2638
      %v2640 = vpop.f32.mrb[0].mxu0
      %v2641 = vpop.f32.mrb[0].mxu0
      %v2642 = vadd.f32 0.0, %v2641
      %v2643 = vpop.f32.mrb[0].mxu0
      %2644 = vmatprep.mubr.bf16.mxu0 %v2405
      %2645 = vmatmul.mubr.bf16.gmra.mrb[0].mxu0 %v2404
      %v2646 = vpop.f32.mrb[0].mxu0
      %v2647 = vadd.f32 0.0, %v2646
      %v2648 = vpop.f32.mrb[0].mxu0
      %v2649 = vpop.f32.mrb[0].mxu0
      %v2650 = vadd.f32 0.0, %v2649
      %v2651 = vpop.f32.mrb[0].mxu0
      %2652 = vmatprep.mubr.bf16.mxu0 %v2407
      %2653 = vmatmul.mubr.bf16.gmra.mrb[0].mxu0 %v2406
      %v2654 = vpop.f32.mrb[0].mxu0
      %v2655 = vadd.f32 0.0, %v2654
      %v2656 = vpop.f32.mrb[0].mxu0
      %v2657 = vpop.f32.mrb[0].mxu0
      %v2658 = vadd.f32 0.0, %v2657
      %v2659 = vpop.f32.mrb[0].mxu0
      %2660 = vmatprep.mubr.bf16.mxu0 %v2409
      %2661 = vmatmul.mubr.bf16.gmra.mrb[0].mxu0 %v2408
      %v2662 = vpop.f32.mrb[0].mxu0
      %v2663 = vadd.f32 0.0, %v2662
      %v2664 = vpop.f32.mrb[0].mxu0
      %v2665 = vpop.f32.mrb[0].mxu0
      %v2666 = vadd.f32 0.0, %v2665
      %v2667 = vpop.f32.mrb[0].mxu0
      %2668 = vmatprep.mubr.bf16.mxu0 %v2411
      %2669 = vmatmul.mubr.bf16.gmra.mrb[0].mxu0 %v2410
      %v2670 = vpop.f32.mrb[0].mxu0
      %v2671 = vadd.f32 0.0, %v2670
      %v2672 = vpop.f32.mrb[0].mxu0
      %v2673 = vpop.f32.mrb[0].mxu0
      %v2674 = vadd.f32 0.0, %v2673
      %v2675 = vpop.f32.mrb[0].mxu0
      %2676 = vmatprep.mubr.bf16.mxu0 %v2413
      %2677 = vmatmul.mubr.bf16.gmra.mrb[0].mxu0 %v2412
      %v2678 = vpop.f32.mrb[0].mxu0
      %v2679 = vadd.f32 0.0, %v2678
      %v2680 = vpop.f32.mrb[0].mxu0
      %v2681 = vpop.f32.mrb[0].mxu0
      %v2682 = vadd.f32 0.0, %v2681
      %v2683 = vpop.f32.mrb[0].mxu0
      %2684 = vmatprep.mubr.bf16.mxu0 %v2415
      %2685 = vmatmul.mubr.bf16.gmra.mrb[0].mxu0 %v2414
      %v2686 = vpop.f32.mrb[0].mxu0
      %v2687 = vadd.f32 0.0, %v2686
      %v2688 = vpop.f32.mrb[0].mxu0
      %v2689 = vpop.f32.mrb[0].mxu0
      %v2690 = vadd.f32 0.0, %v2689
      %v2691 = vpop.f32.mrb[0].mxu0
      %2692 = vmatprep.mubr.bf16.mxu0 %v2417
      %2693 = vmatmul.mubr.bf16.gmra.mrb[0].mxu0 %v2416
      %v2694 = vpop.f32.mrb[0].mxu0
      %v2695 = vadd.f32 0.0, %v2694
      %v2696 = vpop.f32.mrb[0].mxu0
      %v2697 = vpop.f32.mrb[0].mxu0
      %v2698 = vadd.f32 0.0, %v2697
      %v2699 = vpop.f32.mrb[0].mxu0
      %2700 = vmatprep.mubr.bf16.mxu0 %v2419
      %2701 = vmatmul.mubr.bf16.gmra.mrb[0].mxu0 %v2418
      %v2702 = vpop.f32.mrb[0].mxu0
      %v2703 = vadd.f32 0.0, %v2702
      %v2704 = vpop.f32.mrb[0].mxu0
      %v2705 = vpop.f32.mrb[0].mxu0
      %v2706 = vadd.f32 0.0, %v2705
      %v2707 = vpop.f32.mrb[0].mxu0
      %2708 = vdwg.mxu0
      %v2709 = vadd.f32 %v2133, %v2583
      %v2710 = vadd.f32 %v2136, %v2586
      %v2711 = vadd.f32 %v2141, %v2591
      %v2712 = vadd.f32 %v2144, %v2594
      %v2713 = vadd.f32 %v2149, %v2599
      %v2714 = vadd.f32 %v2152, %v2602
      %v2715 = vadd.f32 %v2157, %v2607
      %v2716 = vadd.f32 %v2160, %v2610
      %v2717 = vadd.f32 %v2165, %v2615
      %v2718 = vadd.f32 %v2168, %v2618
      %v2719 = vadd.f32 %v2173, %v2623
      %v2720 = vadd.f32 %v2176, %v2626
      %v2721 = vadd.f32 %v2181, %v2631
      %v2722 = vadd.f32 %v2184, %v2634
      %v2723 = vadd.f32 %v2189, %v2639
      %v2724 = vadd.f32 %v2192, %v2642
      %v2725 = vadd.f32 %v2197, %v2647
      %v2726 = vadd.f32 %v2200, %v2650
      %v2727 = vadd.f32 %v2205, %v2655
      %v2728 = vadd.f32 %v2208, %v2658
      %v2729 = vadd.f32 %v2213, %v2663
      %v2730 = vadd.f32 %v2216, %v2666
      %v2731 = vadd.f32 %v2221, %v2671
      %v2732 = vadd.f32 %v2224, %v2674
      %v2733 = vadd.f32 %v2229, %v2679
      %v2734 = vadd.f32 %v2232, %v2682
      %v2735 = vadd.f32 %v2237, %v2687
      %v2736 = vadd.f32 %v2240, %v2690
      %v2737 = vadd.f32 %v2245, %v2695
      %v2738 = vadd.f32 %v2248, %v2698
      %v2739 = vadd.f32 %v2253, %v2703
      %v2740 = vadd.f32 %v2256, %v2706
      %s2741 = scalar_lea.vmem %s4, 64
      %v2742 = vld [vmem:[%s2741] sm:$0xf]
      %v2743 = vld [vmem:[%s2741 + $0x4] sm:$0xf]
      %v2744 = vld [vmem:[%s2741 + $0x8] sm:$0xf]
      %v2745 = vld [vmem:[%s2741 + $0xc] sm:$0xf]
      %v2746 = vld [vmem:[%s2741 + $0x10] sm:$0xf]
      %v2747 = vld [vmem:[%s2741 + $0x14] sm:$0xf]
      %v2748 = vld [vmem:[%s2741 + $0x18] sm:$0xf]
      %v2749 = vld [vmem:[%s2741 + $0x1c] sm:$0xf]
      %v2750 = vld [vmem:[%s2741 + $0x20] sm:$0xf]
      %v2751 = vld [vmem:[%s2741 + $0x24] sm:$0xf]
      %v2752 = vld [vmem:[%s2741 + $0x28] sm:$0xf]
      %v2753 = vld [vmem:[%s2741 + $0x2c] sm:$0xf]
      %v2754 = vld [vmem:[%s2741 + $0x30] sm:$0xf]
      %v2755 = vld [vmem:[%s2741 + $0x34] sm:$0xf]
      %v2756 = vld [vmem:[%s2741 + $0x38] sm:$0xf]
      %v2757 = vld [vmem:[%s2741 + $0x3c] sm:$0xf]
      %v2790 = vunpack.c.l.b16 %v1186
      %v2791 = vunpack.c.l.b16 %v1187
      %v2792 = vunpack.c.l.b16 %v1189
      %v2793 = vunpack.c.l.b16 %v1190
      %v2794 = vunpack.c.l.b16 %v1192
      %v2795 = vunpack.c.l.b16 %v1193
      %v2796 = vunpack.c.l.b16 %v1195
      %v2797 = vunpack.c.l.b16 %v1196
      %v2798 = vunpack.c.l.b16 %v1198
      %v2799 = vunpack.c.l.b16 %v1199
      %v2800 = vunpack.c.l.b16 %v1201
      %v2801 = vunpack.c.l.b16 %v1202
      %v2802 = vunpack.c.l.b16 %v1204
      %v2803 = vunpack.c.l.b16 %v1205
      %v2804 = vunpack.c.l.b16 %v1207
      %v2805 = vunpack.c.l.b16 %v1208
      %v2806 = vunpack.c.l.b16 %v1210
      %v2807 = vunpack.c.l.b16 %v1211
      %v2808 = vunpack.c.l.b16 %v1213
      %v2809 = vunpack.c.l.b16 %v1214
      %v2810 = vunpack.c.l.b16 %v1216
      %v2811 = vunpack.c.l.b16 %v1217
      %v2812 = vunpack.c.l.b16 %v1219
      %v2813 = vunpack.c.l.b16 %v1220
      %v2814 = vunpack.c.l.b16 %v1222
      %v2815 = vunpack.c.l.b16 %v1223
      %v2816 = vunpack.c.l.b16 %v1225
      %v2817 = vunpack.c.l.b16 %v1226
      %v2818 = vunpack.c.l.b16 %v1228
      %v2819 = vunpack.c.l.b16 %v1229
      %v2820 = vunpack.c.l.b16 %v1231
      %v2821 = vunpack.c.l.b16 %v1232
      %v2822 = vpack.c.b16 %v2791, %v2790
      %v2823 = vpack.c.b16 %v2793, %v2792
      %v2824 = vpack.c.b16 %v2795, %v2794
      %v2825 = vpack.c.b16 %v2797, %v2796
      %v2826 = vpack.c.b16 %v2799, %v2798
      %v2827 = vpack.c.b16 %v2801, %v2800
      %v2828 = vpack.c.b16 %v2803, %v2802
      %v2829 = vpack.c.b16 %v2805, %v2804
      %v2830 = vpack.c.b16 %v2807, %v2806
      %v2831 = vpack.c.b16 %v2809, %v2808
      %v2832 = vpack.c.b16 %v2811, %v2810
      %v2833 = vpack.c.b16 %v2813, %v2812
      %v2834 = vpack.c.b16 %v2815, %v2814
      %v2835 = vpack.c.b16 %v2817, %v2816
      %v2836 = vpack.c.b16 %v2819, %v2818
      %v2837 = vpack.c.b16 %v2821, %v2820
      %v2870 = vunpack.c.l.b16 %v2742
      %v2871 = vunpack.c.l.b16 %v2743
      %v2872 = vunpack.c.l.b16 %v2744
      %v2873 = vunpack.c.l.b16 %v2745
      %v2874 = vunpack.c.l.b16 %v2746
      %v2875 = vunpack.c.l.b16 %v2747
      %v2876 = vunpack.c.l.b16 %v2748
      %v2877 = vunpack.c.l.b16 %v2749
      %v2878 = vunpack.c.l.b16 %v2750
      %v2879 = vunpack.c.l.b16 %v2751
      %v2880 = vunpack.c.l.b16 %v2752
      %v2881 = vunpack.c.l.b16 %v2753
      %v2882 = vunpack.c.l.b16 %v2754
      %v2883 = vunpack.c.l.b16 %v2755
      %v2884 = vunpack.c.l.b16 %v2756
      %v2885 = vunpack.c.l.b16 %v2757
      %v2886 = vpack.c.b16 %v2871, %v2870
      %v2887 = vpack.c.b16 %v2873, %v2872
      %v2888 = vpack.c.b16 %v2875, %v2874
      %v2889 = vpack.c.b16 %v2877, %v2876
      %v2890 = vpack.c.b16 %v2879, %v2878
      %v2891 = vpack.c.b16 %v2881, %v2880
      %v2892 = vpack.c.b16 %v2883, %v2882
      %v2893 = vpack.c.b16 %v2885, %v2884
      %2902 = vmatprep.subr.bf16.mxu0 0
      %2903 = vmatpush1.bf16.msra.mxu0 %v2886
      %2904 = vmatprep.subr.bf16.mxu0 0
      %2905 = vmatpush1.bf16.msra.mxu0 %v2887
      %2906 = vmatprep.subr.bf16.mxu0 0
      %2907 = vmatpush1.bf16.msra.mxu0 %v2888
      %2908 = vmatprep.subr.bf16.mxu0 0
      %2909 = vmatpush1.bf16.msra.mxu0 %v2889
      %2910 = vmatprep.subr.bf16.mxu0 0
      %2911 = vmatpush1.bf16.msra.mxu0 %v2890
      %2912 = vmatprep.subr.bf16.mxu0 0
      %2913 = vmatpush1.bf16.msra.mxu0 %v2891
      %2914 = vmatprep.subr.bf16.mxu0 0
      %2915 = vmatpush1.bf16.msra.mxu0 %v2892
      %2916 = vmatprep.subr.bf16.mxu0 0
      %2917 = vmatpush1.bf16.msra.mxu0 %v2893
      %2918 = vmatprep.subr.bf16.mxu0 0
      %2919 = vmatpush1.bf16.msra.mxu0 0
      %2920 = vmatprep.subr.bf16.mxu0 0
      %2921 = vmatpush1.bf16.msra.mxu0 0
      %2922 = vmatprep.subr.bf16.mxu0 0
      %2923 = vmatpush1.bf16.msra.mxu0 0
      %2924 = vmatprep.subr.bf16.mxu0 0
      %2925 = vmatpush1.bf16.msra.mxu0 0
      %2926 = vmatprep.subr.bf16.mxu0 0
      %2927 = vmatpush1.bf16.msra.mxu0 0
      %2928 = vmatprep.subr.bf16.mxu0 0
      %2929 = vmatpush1.bf16.msra.mxu0 0
      %2930 = vmatprep.subr.bf16.mxu0 0
      %2931 = vmatpush1.bf16.msra.mxu0 0
      %2932 = vmatprep.subr.bf16.mxu0 0
      %2933 = vmatpush1.bf16.msra.mxu0 0
      %2934 = vmatprep.mubr.bf16.mxu0 0
      %2935 = vmatmul.mubr.bf16.gmra.mrb[0].mxu0 %v2822
      %v2936 = vpop.f32.mrb[0].mxu0
      %v2937 = vadd.f32 0.0, %v2936
      %v2938 = vpop.f32.mrb[0].mxu0
      %v2939 = vpop.f32.mrb[0].mxu0
      %v2940 = vadd.f32 0.0, %v2939
      %v2941 = vpop.f32.mrb[0].mxu0
      %2942 = vmatprep.mubr.bf16.mxu0 0
      %2943 = vmatmul.mubr.bf16.gmra.mrb[0].mxu0 %v2823
      %v2944 = vpop.f32.mrb[0].mxu0
      %v2945 = vadd.f32 0.0, %v2944
      %v2946 = vpop.f32.mrb[0].mxu0
      %v2947 = vpop.f32.mrb[0].mxu0
      %v2948 = vadd.f32 0.0, %v2947
      %v2949 = vpop.f32.mrb[0].mxu0
      %2950 = vmatprep.mubr.bf16.mxu0 0
      %2951 = vmatmul.mubr.bf16.gmra.mrb[0].mxu0 %v2824
      %v2952 = vpop.f32.mrb[0].mxu0
      %v2953 = vadd.f32 0.0, %v2952
      %v2954 = vpop.f32.mrb[0].mxu0
      %v2955 = vpop.f32.mrb[0].mxu0
      %v2956 = vadd.f32 0.0, %v2955
      %v2957 = vpop.f32.mrb[0].mxu0
      %2958 = vmatprep.mubr.bf16.mxu0 0
      %2959 = vmatmul.mubr.bf16.gmra.mrb[0].mxu0 %v2825
      %v2960 = vpop.f32.mrb[0].mxu0
      %v2961 = vadd.f32 0.0, %v2960
      %v2962 = vpop.f32.mrb[0].mxu0
      %v2963 = vpop.f32.mrb[0].mxu0
      %v2964 = vadd.f32 0.0, %v2963
      %v2965 = vpop.f32.mrb[0].mxu0
      %2966 = vmatprep.mubr.bf16.mxu0 0
      %2967 = vmatmul.mubr.bf16.gmra.mrb[0].mxu0 %v2826
      %v2968 = vpop.f32.mrb[0].mxu0
      %v2969 = vadd.f32 0.0, %v2968
      %v2970 = vpop.f32.mrb[0].mxu0
      %v2971 = vpop.f32.mrb[0].mxu0
      %v2972 = vadd.f32 0.0, %v2971
      %v2973 = vpop.f32.mrb[0].mxu0
      %2974 = vmatprep.mubr.bf16.mxu0 0
      %2975 = vmatmul.mubr.bf16.gmra.mrb[0].mxu0 %v2827
      %v2976 = vpop.f32.mrb[0].mxu0
      %v2977 = vadd.f32 0.0, %v2976
      %v2978 = vpop.f32.mrb[0].mxu0
      %v2979 = vpop.f32.mrb[0].mxu0
      %v2980 = vadd.f32 0.0, %v2979
      %v2981 = vpop.f32.mrb[0].mxu0
      %2982 = vmatprep.mubr.bf16.mxu0 0
      %2983 = vmatmul.mubr.bf16.gmra.mrb[0].mxu0 %v2828
      %v2984 = vpop.f32.mrb[0].mxu0
      %v2985 = vadd.f32 0.0, %v2984
      %v2986 = vpop.f32.mrb[0].mxu0
      %v2987 = vpop.f32.mrb[0].mxu0
      %v2988 = vadd.f32 0.0, %v2987
      %v2989 = vpop.f32.mrb[0].mxu0
      %2990 = vmatprep.mubr.bf16.mxu0 0
      %2991 = vmatmul.mubr.bf16.gmra.mrb[0].mxu0 %v2829
      %v2992 = vpop.f32.mrb[0].mxu0
      %v2993 = vadd.f32 0.0, %v2992
      %v2994 = vpop.f32.mrb[0].mxu0
      %v2995 = vpop.f32.mrb[0].mxu0
      %v2996 = vadd.f32 0.0, %v2995
      %v2997 = vpop.f32.mrb[0].mxu0
      %2998 = vmatprep.mubr.bf16.mxu0 0
      %2999 = vmatmul.mubr.bf16.gmra.mrb[0].mxu0 %v2830
      %v3000 = vpop.f32.mrb[0].mxu0
      %v3001 = vadd.f32 0.0, %v3000
      %v3002 = vpop.f32.mrb[0].mxu0
      %v3003 = vpop.f32.mrb[0].mxu0
      %v3004 = vadd.f32 0.0, %v3003
      %v3005 = vpop.f32.mrb[0].mxu0
      %3006 = vmatprep.mubr.bf16.mxu0 0
      %3007 = vmatmul.mubr.bf16.gmra.mrb[0].mxu0 %v2831
      %v3008 = vpop.f32.mrb[0].mxu0
      %v3009 = vadd.f32 0.0, %v3008
      %v3010 = vpop.f32.mrb[0].mxu0
      %v3011 = vpop.f32.mrb[0].mxu0
      %v3012 = vadd.f32 0.0, %v3011
      %v3013 = vpop.f32.mrb[0].mxu0
      %3014 = vmatprep.mubr.bf16.mxu0 0
      %3015 = vmatmul.mubr.bf16.gmra.mrb[0].mxu0 %v2832
      %v3016 = vpop.f32.mrb[0].mxu0
      %v3017 = vadd.f32 0.0, %v3016
      %v3018 = vpop.f32.mrb[0].mxu0
      %v3019 = vpop.f32.mrb[0].mxu0
      %v3020 = vadd.f32 0.0, %v3019
      %v3021 = vpop.f32.mrb[0].mxu0
      %3022 = vmatprep.mubr.bf16.mxu0 0
      %3023 = vmatmul.mubr.bf16.gmra.mrb[0].mxu0 %v2833
      %v3024 = vpop.f32.mrb[0].mxu0
      %v3025 = vadd.f32 0.0, %v3024
      %v3026 = vpop.f32.mrb[0].mxu0
      %v3027 = vpop.f32.mrb[0].mxu0
      %v3028 = vadd.f32 0.0, %v3027
      %v3029 = vpop.f32.mrb[0].mxu0
      %3030 = vmatprep.mubr.bf16.mxu0 0
      %3031 = vmatmul.mubr.bf16.gmra.mrb[0].mxu0 %v2834
      %v3032 = vpop.f32.mrb[0].mxu0
      %v3033 = vadd.f32 0.0, %v3032
      %v3034 = vpop.f32.mrb[0].mxu0
      %v3035 = vpop.f32.mrb[0].mxu0
      %v3036 = vadd.f32 0.0, %v3035
      %v3037 = vpop.f32.mrb[0].mxu0
      %3038 = vmatprep.mubr.bf16.mxu0 0
      %3039 = vmatmul.mubr.bf16.gmra.mrb[0].mxu0 %v2835
      %v3040 = vpop.f32.mrb[0].mxu0
      %v3041 = vadd.f32 0.0, %v3040
      %v3042 = vpop.f32.mrb[0].mxu0
      %v3043 = vpop.f32.mrb[0].mxu0
      %v3044 = vadd.f32 0.0, %v3043
      %v3045 = vpop.f32.mrb[0].mxu0
      %3046 = vmatprep.mubr.bf16.mxu0 0
      %3047 = vmatmul.mubr.bf16.gmra.mrb[0].mxu0 %v2836
      %v3048 = vpop.f32.mrb[0].mxu0
      %v3049 = vadd.f32 0.0, %v3048
      %v3050 = vpop.f32.mrb[0].mxu0
      %v3051 = vpop.f32.mrb[0].mxu0
      %v3052 = vadd.f32 0.0, %v3051
      %v3053 = vpop.f32.mrb[0].mxu0
      %3054 = vmatprep.mubr.bf16.mxu0 0
      %3055 = vmatmul.mubr.bf16.gmra.mrb[0].mxu0 %v2837
      %v3056 = vpop.f32.mrb[0].mxu0
      %v3057 = vadd.f32 0.0, %v3056
      %v3058 = vpop.f32.mrb[0].mxu0
      %v3059 = vpop.f32.mrb[0].mxu0
      %v3060 = vadd.f32 0.0, %v3059
      %v3061 = vpop.f32.mrb[0].mxu0
      %3062 = vdwg.mxu0
      %v3063 = vadd.f32 %v2709, %v2937
      %v3064 = vadd.f32 %v2710, %v2940
      %v3065 = vadd.f32 %v2711, %v2945
      %v3066 = vadd.f32 %v2712, %v2948
      %v3067 = vadd.f32 %v2713, %v2953
      %v3068 = vadd.f32 %v2714, %v2956
      %v3069 = vadd.f32 %v2715, %v2961
      %v3070 = vadd.f32 %v2716, %v2964
      %v3071 = vadd.f32 %v2717, %v2969
      %v3072 = vadd.f32 %v2718, %v2972
      %v3073 = vadd.f32 %v2719, %v2977
      %v3074 = vadd.f32 %v2720, %v2980
      %v3075 = vadd.f32 %v2721, %v2985
      %v3076 = vadd.f32 %v2722, %v2988
      %v3077 = vadd.f32 %v2723, %v2993
      %v3078 = vadd.f32 %v2724, %v2996
      %v3079 = vadd.f32 %v2725, %v3001
      %v3080 = vadd.f32 %v2726, %v3004
      %v3081 = vadd.f32 %v2727, %v3009
      %v3082 = vadd.f32 %v2728, %v3012
      %v3083 = vadd.f32 %v2729, %v3017
      %v3084 = vadd.f32 %v2730, %v3020
      %v3085 = vadd.f32 %v2731, %v3025
      %v3086 = vadd.f32 %v2732, %v3028
      %v3087 = vadd.f32 %v2733, %v3033
      %v3088 = vadd.f32 %v2734, %v3036
      %v3089 = vadd.f32 %v2735, %v3041
      %v3090 = vadd.f32 %v2736, %v3044
      %v3091 = vadd.f32 %v2737, %v3049
      %v3092 = vadd.f32 %v2738, %v3052
      %v3093 = vadd.f32 %v2739, %v3057
      %v3094 = vadd.f32 %v2740, %v3060
      %v3095 = vld [vmem:[#allocation2 + $0x8] sm:$0xff]
      %v3096 = vld [vmem:[#allocation2 + $0x10] sm:$0xff]
      %v3097 = vld [vmem:[#allocation2 + $0x18] sm:$0x11]
      %v3098 = vld [vmem:[#allocation2 + $0x28] sm:$0xff]
      %v3099 = vld [vmem:[#allocation2 + $0x30] sm:$0xff]
      %v3100 = vld [vmem:[#allocation2 + $0x38] sm:$0x11]
      %v3101 = vld [vmem:[#allocation2 + $0x48] sm:$0xff]
      %v3102 = vld [vmem:[#allocation2 + $0x50] sm:$0xff]
      %v3103 = vld [vmem:[#allocation2 + $0x58] sm:$0x11]
      %v3104 = vld [vmem:[#allocation2 + $0x68] sm:$0xff]
      %v3105 = vld [vmem:[#allocation2 + $0x70] sm:$0xff]
      %v3106 = vld [vmem:[#allocation2 + $0x78] sm:$0x11]
      %v3107 = vld [vmem:[#allocation2 + $0x88] sm:$0xff]
      %v3108 = vld [vmem:[#allocation2 + $0x90] sm:$0xff]
      %v3109 = vld [vmem:[#allocation2 + $0x98] sm:$0x11]
      %v3110 = vld [vmem:[#allocation2 + $0xa8] sm:$0xff]
      %v3111 = vld [vmem:[#allocation2 + $0xb0] sm:$0xff]
      %v3112 = vld [vmem:[#allocation2 + $0xb8] sm:$0x11]
      %v3113 = vld [vmem:[#allocation2 + $0xc8] sm:$0xff]
      %v3114 = vld [vmem:[#allocation2 + $0xd0] sm:$0xff]
      %v3115 = vld [vmem:[#allocation2 + $0xd8] sm:$0x11]
      %v3116 = vld [vmem:[#allocation2 + $0xe8] sm:$0xff]
      %v3117 = vld [vmem:[#allocation2 + $0xf0] sm:$0xff]
      %v3118 = vld [vmem:[#allocation2 + $0xf8] sm:$0x11]
      %v3119 = vld [vmem:[#allocation2 + $0x108] sm:$0xff]
      %v3120 = vld [vmem:[#allocation2 + $0x110] sm:$0xff]
      %v3121 = vld [vmem:[#allocation2 + $0x118] sm:$0x11]
      %v3122 = vld [vmem:[#allocation2 + $0x128] sm:$0xff]
      %v3123 = vld [vmem:[#allocation2 + $0x130] sm:$0xff]
      %v3124 = vld [vmem:[#allocation2 + $0x138] sm:$0x11]
      %v3125 = vld [vmem:[#allocation2 + $0x148] sm:$0xff]
      %v3126 = vld [vmem:[#allocation2 + $0x150] sm:$0xff]
      %v3127 = vld [vmem:[#allocation2 + $0x158] sm:$0x11]
      %v3128 = vld [vmem:[#allocation2 + $0x168] sm:$0xff]
      %v3129 = vld [vmem:[#allocation2 + $0x170] sm:$0xff]
      %v3130 = vld [vmem:[#allocation2 + $0x178] sm:$0x11]
      %v3131 = vld [vmem:[#allocation2 + $0x188] sm:$0xff]
      %v3132 = vld [vmem:[#allocation2 + $0x190] sm:$0xff]
      %v3133 = vld [vmem:[#allocation2 + $0x198] sm:$0x11]
      %v3134 = vld [vmem:[#allocation2 + $0x1a8] sm:$0xff]
      %v3135 = vld [vmem:[#allocation2 + $0x1b0] sm:$0xff]
      %v3136 = vld [vmem:[#allocation2 + $0x1b8] sm:$0x11]
      %v3137 = vld [vmem:[#allocation2 + $0x1c8] sm:$0xff]
      %v3138 = vld [vmem:[#allocation2 + $0x1d0] sm:$0xff]
      %v3139 = vld [vmem:[#allocation2 + $0x1d8] sm:$0x11]
      %v3140 = vld [vmem:[#allocation2 + $0x1e8] sm:$0xff]
      %v3141 = vld [vmem:[#allocation2 + $0x1f0] sm:$0xff]
      %v3142 = vld [vmem:[#allocation2 + $0x1f8] sm:$0x11]
      %vm3143 = vsmask.f32 3328
      %vm3144 = vsmask.f32 7440
      %vm3145 = vmor %vm3143, %vm3144
      %v3147 = vshrl.u32 %v3095, 16
      %v3149 = vrot.slane %v3147, 4
      %v3150 = vshll.u32 %v3095, 16
      %v3152 = vrot.slane %v3150, 5
      %v3153 = vor.u32 %v3149, %v3152
      %v3154 = vrot.slane %v3153, 4
      %v3156 = vshll.u32 %v3096, 16
      %v3158 = vrot.slane %v3156, 5
      %v3159 = vsel %vm3145, %v3154, %v3158
      %v3160 = vshrl.u32 %v3096, 16
      %v3162 = vrot.slane %v3160, 4
      %v3163 = vor.u32 %v3162, %v3158
      %v3164 = vrot.slane %v3163, 4
      %v3166 = vshll.u32 %v3097, 16
      %v3168 = vrot.slane %v3166, 5
      %v3169 = vsel %vm3145, %v3164, %v3168
      %v3171 = vshrl.u32 %v3098, 16
      %v3173 = vrot.slane %v3171, 4
      %v3174 = vshll.u32 %v3098, 16
      %v3176 = vrot.slane %v3174, 5
      %v3177 = vor.u32 %v3173, %v3176
      %v3178 = vrot.slane %v3177, 4
      %v3180 = vshll.u32 %v3099, 16
      %v3182 = vrot.slane %v3180, 5
      %v3183 = vsel %vm3145, %v3178, %v3182
      %v3184 = vshrl.u32 %v3099, 16
      %v3186 = vrot.slane %v3184, 4
      %v3187 = vor.u32 %v3186, %v3182
      %v3188 = vrot.slane %v3187, 4
      %v3190 = vshll.u32 %v3100, 16
      %v3192 = vrot.slane %v3190, 5
      %v3193 = vsel %vm3145, %v3188, %v3192
      %v3195 = vshrl.u32 %v3101, 16
      %v3197 = vrot.slane %v3195, 4
      %v3198 = vshll.u32 %v3101, 16
      %v3200 = vrot.slane %v3198, 5
      %v3201 = vor.u32 %v3197, %v3200
      %v3202 = vrot.slane %v3201, 4
      %v3204 = vshll.u32 %v3102, 16
      %v3206 = vrot.slane %v3204, 5
      %v3207 = vsel %vm3145, %v3202, %v3206
      %v3208 = vshrl.u32 %v3102, 16
      %v3210 = vrot.slane %v3208, 4
      %v3211 = vor.u32 %v3210, %v3206
      %v3212 = vrot.slane %v3211, 4
      %v3214 = vshll.u32 %v3103, 16
      %v3216 = vrot.slane %v3214, 5
      %v3217 = vsel %vm3145, %v3212, %v3216
      %v3219 = vshrl.u32 %v3104, 16
      %v3221 = vrot.slane %v3219, 4
      %v3222 = vshll.u32 %v3104, 16
      %v3224 = vrot.slane %v3222, 5
      %v3225 = vor.u32 %v3221, %v3224
      %v3226 = vrot.slane %v3225, 4
      %v3228 = vshll.u32 %v3105, 16
      %v3230 = vrot.slane %v3228, 5
      %v3231 = vsel %vm3145, %v3226, %v3230
      %v3232 = vshrl.u32 %v3105, 16
      %v3234 = vrot.slane %v3232, 4
      %v3235 = vor.u32 %v3234, %v3230
      %v3236 = vrot.slane %v3235, 4
      %v3238 = vshll.u32 %v3106, 16
      %v3240 = vrot.slane %v3238, 5
      %v3241 = vsel %vm3145, %v3236, %v3240
      %v3243 = vshrl.u32 %v3107, 16
      %v3245 = vrot.slane %v3243, 4
      %v3246 = vshll.u32 %v3107, 16
      %v3248 = vrot.slane %v3246, 5
      %v3249 = vor.u32 %v3245, %v3248
      %v3250 = vrot.slane %v3249, 4
      %v3252 = vshll.u32 %v3108, 16
      %v3254 = vrot.slane %v3252, 5
      %v3255 = vsel %vm3145, %v3250, %v3254
      %v3256 = vshrl.u32 %v3108, 16
      %v3258 = vrot.slane %v3256, 4
      %v3259 = vor.u32 %v3258, %v3254
      %v3260 = vrot.slane %v3259, 4
      %v3262 = vshll.u32 %v3109, 16
      %v3264 = vrot.slane %v3262, 5
      %v3265 = vsel %vm3145, %v3260, %v3264
      %v3267 = vshrl.u32 %v3110, 16
      %v3269 = vrot.slane %v3267, 4
      %v3270 = vshll.u32 %v3110, 16
      %v3272 = vrot.slane %v3270, 5
      %v3273 = vor.u32 %v3269, %v3272
      %v3274 = vrot.slane %v3273, 4
      %v3276 = vshll.u32 %v3111, 16
      %v3278 = vrot.slane %v3276, 5
      %v3279 = vsel %vm3145, %v3274, %v3278
      %v3280 = vshrl.u32 %v3111, 16
      %v3282 = vrot.slane %v3280, 4
      %v3283 = vor.u32 %v3282, %v3278
      %v3284 = vrot.slane %v3283, 4
      %v3286 = vshll.u32 %v3112, 16
      %v3288 = vrot.slane %v3286, 5
      %v3289 = vsel %vm3145, %v3284, %v3288
      %v3291 = vshrl.u32 %v3113, 16
      %v3293 = vrot.slane %v3291, 4
      %v3294 = vshll.u32 %v3113, 16
      %v3296 = vrot.slane %v3294, 5
      %v3297 = vor.u32 %v3293, %v3296
      %v3298 = vrot.slane %v3297, 4
      %v3300 = vshll.u32 %v3114, 16
      %v3302 = vrot.slane %v3300, 5
      %v3303 = vsel %vm3145, %v3298, %v3302
      %v3304 = vshrl.u32 %v3114, 16
      %v3306 = vrot.slane %v3304, 4
      %v3307 = vor.u32 %v3306, %v3302
      %v3308 = vrot.slane %v3307, 4
      %v3310 = vshll.u32 %v3115, 16
      %v3312 = vrot.slane %v3310, 5
      %v3313 = vsel %vm3145, %v3308, %v3312
      %v3315 = vshrl.u32 %v3116, 16
      %v3317 = vrot.slane %v3315, 4
      %v3318 = vshll.u32 %v3116, 16
      %v3320 = vrot.slane %v3318, 5
      %v3321 = vor.u32 %v3317, %v3320
      %v3322 = vrot.slane %v3321, 4
      %v3324 = vshll.u32 %v3117, 16
      %v3326 = vrot.slane %v3324, 5
      %v3327 = vsel %vm3145, %v3322, %v3326
      %v3328 = vshrl.u32 %v3117, 16
      %v3330 = vrot.slane %v3328, 4
      %v3331 = vor.u32 %v3330, %v3326
      %v3332 = vrot.slane %v3331, 4
      %v3334 = vshll.u32 %v3118, 16
      %v3336 = vrot.slane %v3334, 5
      %v3337 = vsel %vm3145, %v3332, %v3336
      %v3339 = vshrl.u32 %v3119, 16
      %v3341 = vrot.slane %v3339, 4
      %v3342 = vshll.u32 %v3119, 16
      %v3344 = vrot.slane %v3342, 5
      %v3345 = vor.u32 %v3341, %v3344
      %v3346 = vrot.slane %v3345, 4
      %v3348 = vshll.u32 %v3120, 16
      %v3350 = vrot.slane %v3348, 5
      %v3351 = vsel %vm3145, %v3346, %v3350
      %v3352 = vshrl.u32 %v3120, 16
      %v3354 = vrot.slane %v3352, 4
      %v3355 = vor.u32 %v3354, %v3350
      %v3356 = vrot.slane %v3355, 4
      %v3358 = vshll.u32 %v3121, 16
      %v3360 = vrot.slane %v3358, 5
      %v3361 = vsel %vm3145, %v3356, %v3360
      %v3363 = vshrl.u32 %v3122, 16
      %v3365 = vrot.slane %v3363, 4
      %v3366 = vshll.u32 %v3122, 16
      %v3368 = vrot.slane %v3366, 5
      %v3369 = vor.u32 %v3365, %v3368
      %v3370 = vrot.slane %v3369, 4
      %v3372 = vshll.u32 %v3123, 16
      %v3374 = vrot.slane %v3372, 5
      %v3375 = vsel %vm3145, %v3370, %v3374
      %v3376 = vshrl.u32 %v3123, 16
      %v3378 = vrot.slane %v3376, 4
      %v3379 = vor.u32 %v3378, %v3374
      %v3380 = vrot.slane %v3379, 4
      %v3382 = vshll.u32 %v3124, 16
      %v3384 = vrot.slane %v3382, 5
      %v3385 = vsel %vm3145, %v3380, %v3384
      %v3387 = vshrl.u32 %v3125, 16
      %v3389 = vrot.slane %v3387, 4
      %v3390 = vshll.u32 %v3125, 16
      %v3392 = vrot.slane %v3390, 5
      %v3393 = vor.u32 %v3389, %v3392
      %v3394 = vrot.slane %v3393, 4
      %v3396 = vshll.u32 %v3126, 16
      %v3398 = vrot.slane %v3396, 5
      %v3399 = vsel %vm3145, %v3394, %v3398
      %v3400 = vshrl.u32 %v3126, 16
      %v3402 = vrot.slane %v3400, 4
      %v3403 = vor.u32 %v3402, %v3398
      %v3404 = vrot.slane %v3403, 4
      %v3406 = vshll.u32 %v3127, 16
      %v3408 = vrot.slane %v3406, 5
      %v3409 = vsel %vm3145, %v3404, %v3408
      %v3411 = vshrl.u32 %v3128, 16
      %v3413 = vrot.slane %v3411, 4
      %v3414 = vshll.u32 %v3128, 16
      %v3416 = vrot.slane %v3414, 5
      %v3417 = vor.u32 %v3413, %v3416
      %v3418 = vrot.slane %v3417, 4
      %v3420 = vshll.u32 %v3129, 16
      %v3422 = vrot.slane %v3420, 5
      %v3423 = vsel %vm3145, %v3418, %v3422
      %v3424 = vshrl.u32 %v3129, 16
      %v3426 = vrot.slane %v3424, 4
      %v3427 = vor.u32 %v3426, %v3422
      %v3428 = vrot.slane %v3427, 4
      %v3430 = vshll.u32 %v3130, 16
      %v3432 = vrot.slane %v3430, 5
      %v3433 = vsel %vm3145, %v3428, %v3432
      %v3435 = vshrl.u32 %v3131, 16
      %v3437 = vrot.slane %v3435, 4
      %v3438 = vshll.u32 %v3131, 16
      %v3440 = vrot.slane %v3438, 5
      %v3441 = vor.u32 %v3437, %v3440
      %v3442 = vrot.slane %v3441, 4
      %v3444 = vshll.u32 %v3132, 16
      %v3446 = vrot.slane %v3444, 5
      %v3447 = vsel %vm3145, %v3442, %v3446
      %v3448 = vshrl.u32 %v3132, 16
      %v3450 = vrot.slane %v3448, 4
      %v3451 = vor.u32 %v3450, %v3446
      %v3452 = vrot.slane %v3451, 4
      %v3454 = vshll.u32 %v3133, 16
      %v3456 = vrot.slane %v3454, 5
      %v3457 = vsel %vm3145, %v3452, %v3456
      %v3459 = vshrl.u32 %v3134, 16
      %v3461 = vrot.slane %v3459, 4
      %v3462 = vshll.u32 %v3134, 16
      %v3464 = vrot.slane %v3462, 5
      %v3465 = vor.u32 %v3461, %v3464
      %v3466 = vrot.slane %v3465, 4
      %v3468 = vshll.u32 %v3135, 16
      %v3470 = vrot.slane %v3468, 5
      %v3471 = vsel %vm3145, %v3466, %v3470
      %v3472 = vshrl.u32 %v3135, 16
      %v3474 = vrot.slane %v3472, 4
      %v3475 = vor.u32 %v3474, %v3470
      %v3476 = vrot.slane %v3475, 4
      %v3478 = vshll.u32 %v3136, 16
      %v3480 = vrot.slane %v3478, 5
      %v3481 = vsel %vm3145, %v3476, %v3480
      %v3483 = vshrl.u32 %v3137, 16
      %v3485 = vrot.slane %v3483, 4
      %v3486 = vshll.u32 %v3137, 16
      %v3488 = vrot.slane %v3486, 5
      %v3489 = vor.u32 %v3485, %v3488
      %v3490 = vrot.slane %v3489, 4
      %v3492 = vshll.u32 %v3138, 16
      %v3494 = vrot.slane %v3492, 5
      %v3495 = vsel %vm3145, %v3490, %v3494
      %v3496 = vshrl.u32 %v3138, 16
      %v3498 = vrot.slane %v3496, 4
      %v3499 = vor.u32 %v3498, %v3494
      %v3500 = vrot.slane %v3499, 4
      %v3502 = vshll.u32 %v3139, 16
      %v3504 = vrot.slane %v3502, 5
      %v3505 = vsel %vm3145, %v3500, %v3504
      %v3507 = vshrl.u32 %v3140, 16
      %v3509 = vrot.slane %v3507, 4
      %v3510 = vshll.u32 %v3140, 16
      %v3512 = vrot.slane %v3510, 5
      %v3513 = vor.u32 %v3509, %v3512
      %v3514 = vrot.slane %v3513, 4
      %v3516 = vshll.u32 %v3141, 16
      %v3518 = vrot.slane %v3516, 5
      %v3519 = vsel %vm3145, %v3514, %v3518
      %v3520 = vshrl.u32 %v3141, 16
      %v3522 = vrot.slane %v3520, 4
      %v3523 = vor.u32 %v3522, %v3518
      %v3524 = vrot.slane %v3523, 4
      %v3526 = vshll.u32 %v3142, 16
      %v3528 = vrot.slane %v3526, 5
      %v3529 = vsel %vm3145, %v3524, %v3528
      %s3530 = scalar_lea.vmem %s3, 256
      %v3531 = vld [vmem:[%s3530] sm:$0xf]
      %v3532 = vld [vmem:[%s3530 + $0x4] sm:$0xf]
      %v3533 = vld [vmem:[%s3530 + $0x8] sm:$0xf]
      %v3534 = vld [vmem:[%s3530 + $0xc] sm:$0xf]
      %v3535 = vld [vmem:[%s3530 + $0x10] sm:$0xf]
      %v3536 = vld [vmem:[%s3530 + $0x14] sm:$0xf]
      %v3537 = vld [vmem:[%s3530 + $0x18] sm:$0xf]
      %v3538 = vld [vmem:[%s3530 + $0x1c] sm:$0xf]
      %v3539 = vld [vmem:[%s3530 + $0x20] sm:$0xf]
      %v3540 = vld [vmem:[%s3530 + $0x24] sm:$0xf]
      %v3541 = vld [vmem:[%s3530 + $0x28] sm:$0xf]
      %v3542 = vld [vmem:[%s3530 + $0x2c] sm:$0xf]
      %v3543 = vld [vmem:[%s3530 + $0x30] sm:$0xf]
      %v3544 = vld [vmem:[%s3530 + $0x34] sm:$0xf]
      %v3545 = vld [vmem:[%s3530 + $0x38] sm:$0xf]
      %v3546 = vld [vmem:[%s3530 + $0x3c] sm:$0xf]
      %v3547 = vld [vmem:[%s3530 + $0x40] sm:$0xf]
      %v3548 = vld [vmem:[%s3530 + $0x44] sm:$0xf]
      %v3549 = vld [vmem:[%s3530 + $0x48] sm:$0xf]
      %v3550 = vld [vmem:[%s3530 + $0x4c] sm:$0xf]
      %v3551 = vld [vmem:[%s3530 + $0x50] sm:$0xf]
      %v3552 = vld [vmem:[%s3530 + $0x54] sm:$0xf]
      %v3553 = vld [vmem:[%s3530 + $0x58] sm:$0xf]
      %v3554 = vld [vmem:[%s3530 + $0x5c] sm:$0xf]
      %v3555 = vld [vmem:[%s3530 + $0x60] sm:$0xf]
      %v3556 = vld [vmem:[%s3530 + $0x64] sm:$0xf]
      %v3557 = vld [vmem:[%s3530 + $0x68] sm:$0xf]
      %v3558 = vld [vmem:[%s3530 + $0x6c] sm:$0xf]
      %v3559 = vld [vmem:[%s3530 + $0x70] sm:$0xf]
      %v3560 = vld [vmem:[%s3530 + $0x74] sm:$0xf]
      %v3561 = vld [vmem:[%s3530 + $0x78] sm:$0xf]
      %v3562 = vld [vmem:[%s3530 + $0x7c] sm:$0xf]
      %v3563 = vunpack.c.l.b16 %v3159
      %v3564 = vunpack.c.h.b16 %v3159
      %v3565 = vunpack.c.l.b16 %v3169
      %v3566 = vunpack.c.h.b16 %v3169
      %v3567 = vunpack.c.l.b16 %v3183
      %v3568 = vunpack.c.h.b16 %v3183
      %v3569 = vunpack.c.l.b16 %v3193
      %v3570 = vunpack.c.h.b16 %v3193
      %v3571 = vunpack.c.l.b16 %v3207
      %v3572 = vunpack.c.h.b16 %v3207
      %v3573 = vunpack.c.l.b16 %v3217
      %v3574 = vunpack.c.h.b16 %v3217
      %v3575 = vunpack.c.l.b16 %v3231
      %v3576 = vunpack.c.h.b16 %v3231
      %v3577 = vunpack.c.l.b16 %v3241
      %v3578 = vunpack.c.h.b16 %v3241
      %v3579 = vunpack.c.l.b16 %v3255
      %v3580 = vunpack.c.h.b16 %v3255
      %v3581 = vunpack.c.l.b16 %v3265
      %v3582 = vunpack.c.h.b16 %v3265
      %v3583 = vunpack.c.l.b16 %v3279
      %v3584 = vunpack.c.h.b16 %v3279
      %v3585 = vunpack.c.l.b16 %v3289
      %v3586 = vunpack.c.h.b16 %v3289
      %v3587 = vunpack.c.l.b16 %v3303
      %v3588 = vunpack.c.h.b16 %v3303
      %v3589 = vunpack.c.l.b16 %v3313
      %v3590 = vunpack.c.h.b16 %v3313
      %v3591 = vunpack.c.l.b16 %v3327
      %v3592 = vunpack.c.h.b16 %v3327
      %v3593 = vunpack.c.l.b16 %v3337
      %v3594 = vunpack.c.h.b16 %v3337
      %v3595 = vunpack.c.l.b16 %v3351
      %v3596 = vunpack.c.h.b16 %v3351
      %v3597 = vunpack.c.l.b16 %v3361
      %v3598 = vunpack.c.h.b16 %v3361
      %v3599 = vunpack.c.l.b16 %v3375
      %v3600 = vunpack.c.h.b16 %v3375
      %v3601 = vunpack.c.l.b16 %v3385
      %v3602 = vunpack.c.h.b16 %v3385
      %v3603 = vunpack.c.l.b16 %v3399
      %v3604 = vunpack.c.h.b16 %v3399
      %v3605 = vunpack.c.l.b16 %v3409
      %v3606 = vunpack.c.h.b16 %v3409
      %v3607 = vunpack.c.l.b16 %v3423
      %v3608 = vunpack.c.h.b16 %v3423
      %v3609 = vunpack.c.l.b16 %v3433
      %v3610 = vunpack.c.h.b16 %v3433
      %v3611 = vunpack.c.l.b16 %v3447
      %v3612 = vunpack.c.h.b16 %v3447
      %v3613 = vunpack.c.l.b16 %v3457
      %v3614 = vunpack.c.h.b16 %v3457
      %v3615 = vunpack.c.l.b16 %v3471
      %v3616 = vunpack.c.h.b16 %v3471
      %v3617 = vunpack.c.l.b16 %v3481
      %v3618 = vunpack.c.h.b16 %v3481
      %v3619 = vunpack.c.l.b16 %v3495
      %v3620 = vunpack.c.h.b16 %v3495
      %v3621 = vunpack.c.l.b16 %v3505
      %v3622 = vunpack.c.h.b16 %v3505
      %v3623 = vunpack.c.l.b16 %v3519
      %v3624 = vunpack.c.h.b16 %v3519
      %v3625 = vunpack.c.l.b16 %v3529
      %v3626 = vunpack.c.h.b16 %v3529
      %v3627 = vpack.c.b16 %v3565, %v3563
      %v3628 = vpack.c.b16 %v3566, %v3564
      %v3629 = vpack.c.b16 %v3569, %v3567
      %v3630 = vpack.c.b16 %v3570, %v3568
      %v3631 = vpack.c.b16 %v3573, %v3571
      %v3632 = vpack.c.b16 %v3574, %v3572
      %v3633 = vpack.c.b16 %v3577, %v3575
      %v3634 = vpack.c.b16 %v3578, %v3576
      %v3635 = vpack.c.b16 %v3581, %v3579
      %v3636 = vpack.c.b16 %v3582, %v3580
      %v3637 = vpack.c.b16 %v3585, %v3583
      %v3638 = vpack.c.b16 %v3586, %v3584
      %v3639 = vpack.c.b16 %v3589, %v3587
      %v3640 = vpack.c.b16 %v3590, %v3588
      %v3641 = vpack.c.b16 %v3593, %v3591
      %v3642 = vpack.c.b16 %v3594, %v3592
      %v3643 = vpack.c.b16 %v3597, %v3595
      %v3644 = vpack.c.b16 %v3598, %v3596
      %v3645 = vpack.c.b16 %v3601, %v3599
      %v3646 = vpack.c.b16 %v3602, %v3600
      %v3647 = vpack.c.b16 %v3605, %v3603
      %v3648 = vpack.c.b16 %v3606, %v3604
      %v3649 = vpack.c.b16 %v3609, %v3607
      %v3650 = vpack.c.b16 %v3610, %v3608
      %v3651 = vpack.c.b16 %v3613, %v3611
      %v3652 = vpack.c.b16 %v3614, %v3612
      %v3653 = vpack.c.b16 %v3617, %v3615
      %v3654 = vpack.c.b16 %v3618, %v3616
      %v3655 = vpack.c.b16 %v3621, %v3619
      %v3656 = vpack.c.b16 %v3622, %v3620
      %v3657 = vpack.c.b16 %v3625, %v3623
      %v3658 = vpack.c.b16 %v3626, %v3624
      %v3723 = vunpack.c.l.b16 %v3531
      %v3724 = vunpack.c.l.b16 %v3532
      %v3725 = vunpack.c.l.b16 %v3533
      %v3726 = vunpack.c.l.b16 %v3534
      %v3727 = vunpack.c.l.b16 %v3535
      %v3728 = vunpack.c.l.b16 %v3536
      %v3729 = vunpack.c.l.b16 %v3537
      %v3730 = vunpack.c.l.b16 %v3538
      %v3731 = vunpack.c.l.b16 %v3539
      %v3732 = vunpack.c.l.b16 %v3540
      %v3733 = vunpack.c.l.b16 %v3541
      %v3734 = vunpack.c.l.b16 %v3542
      %v3735 = vunpack.c.l.b16 %v3543
      %v3736 = vunpack.c.l.b16 %v3544
      %v3737 = vunpack.c.l.b16 %v3545
      %v3738 = vunpack.c.l.b16 %v3546
      %v3739 = vunpack.c.l.b16 %v3547
      %v3740 = vunpack.c.l.b16 %v3548
      %v3741 = vunpack.c.l.b16 %v3549
      %v3742 = vunpack.c.l.b16 %v3550
      %v3743 = vunpack.c.l.b16 %v3551
      %v3744 = vunpack.c.l.b16 %v3552
      %v3745 = vunpack.c.l.b16 %v3553
      %v3746 = vunpack.c.l.b16 %v3554
      %v3747 = vunpack.c.l.b16 %v3555
      %v3748 = vunpack.c.l.b16 %v3556
      %v3749 = vunpack.c.l.b16 %v3557
      %v3750 = vunpack.c.l.b16 %v3558
      %v3751 = vunpack.c.l.b16 %v3559
      %v3752 = vunpack.c.l.b16 %v3560
      %v3753 = vunpack.c.l.b16 %v3561
      %v3754 = vunpack.c.l.b16 %v3562
      %v3755 = vpack.c.b16 %v3724, %v3723
      %v3756 = vpack.c.b16 %v3726, %v3725
      %v3757 = vpack.c.b16 %v3728, %v3727
      %v3758 = vpack.c.b16 %v3730, %v3729
      %v3759 = vpack.c.b16 %v3732, %v3731
      %v3760 = vpack.c.b16 %v3734, %v3733
      %v3761 = vpack.c.b16 %v3736, %v3735
      %v3762 = vpack.c.b16 %v3738, %v3737
      %v3763 = vpack.c.b16 %v3740, %v3739
      %v3764 = vpack.c.b16 %v3742, %v3741
      %v3765 = vpack.c.b16 %v3744, %v3743
      %v3766 = vpack.c.b16 %v3746, %v3745
      %v3767 = vpack.c.b16 %v3748, %v3747
      %v3768 = vpack.c.b16 %v3750, %v3749
      %v3769 = vpack.c.b16 %v3752, %v3751
      %v3770 = vpack.c.b16 %v3754, %v3753
      %3787 = vmatprep.subr.bf16.mxu0 0
      %3788 = vmatpush1.bf16.msra.mxu0 %v3755
      %3789 = vmatprep.subr.bf16.mxu0 0
      %3790 = vmatpush1.bf16.msra.mxu0 %v3756
      %3791 = vmatprep.subr.bf16.mxu0 0
      %3792 = vmatpush1.bf16.msra.mxu0 %v3757
      %3793 = vmatprep.subr.bf16.mxu0 0
      %3794 = vmatpush1.bf16.msra.mxu0 %v3758
      %3795 = vmatprep.subr.bf16.mxu0 0
      %3796 = vmatpush1.bf16.msra.mxu0 %v3759
      %3797 = vmatprep.subr.bf16.mxu0 0
      %3798 = vmatpush1.bf16.msra.mxu0 %v3760
      %3799 = vmatprep.subr.bf16.mxu0 0
      %3800 = vmatpush1.bf16.msra.mxu0 %v3761
      %3801 = vmatprep.subr.bf16.mxu0 0
      %3802 = vmatpush1.bf16.msra.mxu0 %v3762
      %3803 = vmatprep.subr.bf16.mxu0 0
      %3804 = vmatpush1.bf16.msra.mxu0 %v3763
      %3805 = vmatprep.subr.bf16.mxu0 0
      %3806 = vmatpush1.bf16.msra.mxu0 %v3764
      %3807 = vmatprep.subr.bf16.mxu0 0
      %3808 = vmatpush1.bf16.msra.mxu0 %v3765
      %3809 = vmatprep.subr.bf16.mxu0 0
      %3810 = vmatpush1.bf16.msra.mxu0 %v3766
      %3811 = vmatprep.subr.bf16.mxu0 0
      %3812 = vmatpush1.bf16.msra.mxu0 %v3767
      %3813 = vmatprep.subr.bf16.mxu0 0
      %3814 = vmatpush1.bf16.msra.mxu0 %v3768
      %3815 = vmatprep.subr.bf16.mxu0 0
      %3816 = vmatpush1.bf16.msra.mxu0 %v3769
      %3817 = vmatprep.subr.bf16.mxu0 0
      %3818 = vmatpush1.bf16.msra.mxu0 %v3770
      %3819 = vmatprep.mubr.bf16.mxu0 %v3628
      %3820 = vmatmul.mubr.bf16.gmra.mrb[0].mxu0 %v3627
      %v3821 = vpop.f32.mrb[0].mxu0
      %v3822 = vadd.f32 0.0, %v3821
      %v3823 = vpop.f32.mrb[0].mxu0
      %v3824 = vpop.f32.mrb[0].mxu0
      %v3825 = vadd.f32 0.0, %v3824
      %v3826 = vpop.f32.mrb[0].mxu0
      %3827 = vmatprep.mubr.bf16.mxu0 %v3630
      %3828 = vmatmul.mubr.bf16.gmra.mrb[0].mxu0 %v3629
      %v3829 = vpop.f32.mrb[0].mxu0
      %v3830 = vadd.f32 0.0, %v3829
      %v3831 = vpop.f32.mrb[0].mxu0
      %v3832 = vpop.f32.mrb[0].mxu0
      %v3833 = vadd.f32 0.0, %v3832
      %v3834 = vpop.f32.mrb[0].mxu0
      %3835 = vmatprep.mubr.bf16.mxu0 %v3632
      %3836 = vmatmul.mubr.bf16.gmra.mrb[0].mxu0 %v3631
      %v3837 = vpop.f32.mrb[0].mxu0
      %v3838 = vadd.f32 0.0, %v3837
      %v3839 = vpop.f32.mrb[0].mxu0
      %v3840 = vpop.f32.mrb[0].mxu0
      %v3841 = vadd.f32 0.0, %v3840
      %v3842 = vpop.f32.mrb[0].mxu0
      %3843 = vmatprep.mubr.bf16.mxu0 %v3634
      %3844 = vmatmul.mubr.bf16.gmra.mrb[0].mxu0 %v3633
      %v3845 = vpop.f32.mrb[0].mxu0
      %v3846 = vadd.f32 0.0, %v3845
      %v3847 = vpop.f32.mrb[0].mxu0
      %v3848 = vpop.f32.mrb[0].mxu0
      %v3849 = vadd.f32 0.0, %v3848
      %v3850 = vpop.f32.mrb[0].mxu0
      %3851 = vmatprep.mubr.bf16.mxu0 %v3636
      %3852 = vmatmul.mubr.bf16.gmra.mrb[0].mxu0 %v3635
      %v3853 = vpop.f32.mrb[0].mxu0
      %v3854 = vadd.f32 0.0, %v3853
      %v3855 = vpop.f32.mrb[0].mxu0
      %v3856 = vpop.f32.mrb[0].mxu0
      %v3857 = vadd.f32 0.0, %v3856
      %v3858 = vpop.f32.mrb[0].mxu0
      %3859 = vmatprep.mubr.bf16.mxu0 %v3638
      %3860 = vmatmul.mubr.bf16.gmra.mrb[0].mxu0 %v3637
      %v3861 = vpop.f32.mrb[0].mxu0
      %v3862 = vadd.f32 0.0, %v3861
      %v3863 = vpop.f32.mrb[0].mxu0
      %v3864 = vpop.f32.mrb[0].mxu0
      %v3865 = vadd.f32 0.0, %v3864
      %v3866 = vpop.f32.mrb[0].mxu0
      %3867 = vmatprep.mubr.bf16.mxu0 %v3640
      %3868 = vmatmul.mubr.bf16.gmra.mrb[0].mxu0 %v3639
      %v3869 = vpop.f32.mrb[0].mxu0
      %v3870 = vadd.f32 0.0, %v3869
      %v3871 = vpop.f32.mrb[0].mxu0
      %v3872 = vpop.f32.mrb[0].mxu0
      %v3873 = vadd.f32 0.0, %v3872
      %v3874 = vpop.f32.mrb[0].mxu0
      %3875 = vmatprep.mubr.bf16.mxu0 %v3642
      %3876 = vmatmul.mubr.bf16.gmra.mrb[0].mxu0 %v3641
      %v3877 = vpop.f32.mrb[0].mxu0
      %v3878 = vadd.f32 0.0, %v3877
      %v3879 = vpop.f32.mrb[0].mxu0
      %v3880 = vpop.f32.mrb[0].mxu0
      %v3881 = vadd.f32 0.0, %v3880
      %v3882 = vpop.f32.mrb[0].mxu0
      %3883 = vmatprep.mubr.bf16.mxu0 %v3644
      %3884 = vmatmul.mubr.bf16.gmra.mrb[0].mxu0 %v3643
      %v3885 = vpop.f32.mrb[0].mxu0
      %v3886 = vadd.f32 0.0, %v3885
      %v3887 = vpop.f32.mrb[0].mxu0
      %v3888 = vpop.f32.mrb[0].mxu0
      %v3889 = vadd.f32 0.0, %v3888
      %v3890 = vpop.f32.mrb[0].mxu0
      %3891 = vmatprep.mubr.bf16.mxu0 %v3646
      %3892 = vmatmul.mubr.bf16.gmra.mrb[0].mxu0 %v3645
      %v3893 = vpop.f32.mrb[0].mxu0
      %v3894 = vadd.f32 0.0, %v3893
      %v3895 = vpop.f32.mrb[0].mxu0
      %v3896 = vpop.f32.mrb[0].mxu0
      %v3897 = vadd.f32 0.0, %v3896
      %v3898 = vpop.f32.mrb[0].mxu0
      %3899 = vmatprep.mubr.bf16.mxu0 %v3648
      %3900 = vmatmul.mubr.bf16.gmra.mrb[0].mxu0 %v3647
      %v3901 = vpop.f32.mrb[0].mxu0
      %v3902 = vadd.f32 0.0, %v3901
      %v3903 = vpop.f32.mrb[0].mxu0
      %v3904 = vpop.f32.mrb[0].mxu0
      %v3905 = vadd.f32 0.0, %v3904
      %v3906 = vpop.f32.mrb[0].mxu0
      %3907 = vmatprep.mubr.bf16.mxu0 %v3650
      %3908 = vmatmul.mubr.bf16.gmra.mrb[0].mxu0 %v3649
      %v3909 = vpop.f32.mrb[0].mxu0
      %v3910 = vadd.f32 0.0, %v3909
      %v3911 = vpop.f32.mrb[0].mxu0
      %v3912 = vpop.f32.mrb[0].mxu0
      %v3913 = vadd.f32 0.0, %v3912
      %v3914 = vpop.f32.mrb[0].mxu0
      %3915 = vmatprep.mubr.bf16.mxu0 %v3652
      %3916 = vmatmul.mubr.bf16.gmra.mrb[0].mxu0 %v3651
      %v3917 = vpop.f32.mrb[0].mxu0
      %v3918 = vadd.f32 0.0, %v3917
      %v3919 = vpop.f32.mrb[0].mxu0
      %v3920 = vpop.f32.mrb[0].mxu0
      %v3921 = vadd.f32 0.0, %v3920
      %v3922 = vpop.f32.mrb[0].mxu0
      %3923 = vmatprep.mubr.bf16.mxu0 %v3654
      %3924 = vmatmul.mubr.bf16.gmra.mrb[0].mxu0 %v3653
      %v3925 = vpop.f32.mrb[0].mxu0
      %v3926 = vadd.f32 0.0, %v3925
      %v3927 = vpop.f32.mrb[0].mxu0
      %v3928 = vpop.f32.mrb[0].mxu0
      %v3929 = vadd.f32 0.0, %v3928
      %v3930 = vpop.f32.mrb[0].mxu0
      %3931 = vmatprep.mubr.bf16.mxu0 %v3656
      %3932 = vmatmul.mubr.bf16.gmra.mrb[0].mxu0 %v3655
      %v3933 = vpop.f32.mrb[0].mxu0
      %v3934 = vadd.f32 0.0, %v3933
      %v3935 = vpop.f32.mrb[0].mxu0
      %v3936 = vpop.f32.mrb[0].mxu0
      %v3937 = vadd.f32 0.0, %v3936
      %v3938 = vpop.f32.mrb[0].mxu0
      %3939 = vmatprep.mubr.bf16.mxu0 %v3658
      %3940 = vmatmul.mubr.bf16.gmra.mrb[0].mxu0 %v3657
      %v3941 = vpop.f32.mrb[0].mxu0
      %v3942 = vadd.f32 0.0, %v3941
      %v3943 = vpop.f32.mrb[0].mxu0
      %v3944 = vpop.f32.mrb[0].mxu0
      %v3945 = vadd.f32 0.0, %v3944
      %v3946 = vpop.f32.mrb[0].mxu0
      %3947 = vdwg.mxu0
      %v3948 = vadd.f32 %v3063, %v3822
      %v3949 = vadd.f32 %v3064, %v3825
      %v3950 = vadd.f32 %v3065, %v3830
      %v3951 = vadd.f32 %v3066, %v3833
      %v3952 = vadd.f32 %v3067, %v3838
      %v3953 = vadd.f32 %v3068, %v3841
      %v3954 = vadd.f32 %v3069, %v3846
      %v3955 = vadd.f32 %v3070, %v3849
      %v3956 = vadd.f32 %v3071, %v3854
      %v3957 = vadd.f32 %v3072, %v3857
      %v3958 = vadd.f32 %v3073, %v3862
      %v3959 = vadd.f32 %v3074, %v3865
      %v3960 = vadd.f32 %v3075, %v3870
      %v3961 = vadd.f32 %v3076, %v3873
      %v3962 = vadd.f32 %v3077, %v3878
      %v3963 = vadd.f32 %v3078, %v3881
      %v3964 = vadd.f32 %v3079, %v3886
      %v3965 = vadd.f32 %v3080, %v3889
      %v3966 = vadd.f32 %v3081, %v3894
      %v3967 = vadd.f32 %v3082, %v3897
      %v3968 = vadd.f32 %v3083, %v3902
      %v3969 = vadd.f32 %v3084, %v3905
      %v3970 = vadd.f32 %v3085, %v3910
      %v3971 = vadd.f32 %v3086, %v3913
      %v3972 = vadd.f32 %v3087, %v3918
      %v3973 = vadd.f32 %v3088, %v3921
      %v3974 = vadd.f32 %v3089, %v3926
      %v3975 = vadd.f32 %v3090, %v3929
      %v3976 = vadd.f32 %v3091, %v3934
      %v3977 = vadd.f32 %v3092, %v3937
      %v3978 = vadd.f32 %v3093, %v3942
      %v3979 = vadd.f32 %v3094, %v3945
      %v3980 = vld [vmem:[%s1184 + $0x8] sm:$0xf]
      %v3981 = vld [vmem:[%s1184 + $0x10] sm:$0xf]
      %v3982 = vld [vmem:[%s1184 + $0x18] sm:$0x1]
      %v3983 = vld [vmem:[%s1184 + $0x28] sm:$0xf]
      %v3984 = vld [vmem:[%s1184 + $0x30] sm:$0xf]
      %v3985 = vld [vmem:[%s1184 + $0x38] sm:$0x1]
      %v3986 = vld [vmem:[%s1184 + $0x48] sm:$0xf]
      %v3987 = vld [vmem:[%s1184 + $0x50] sm:$0xf]
      %v3988 = vld [vmem:[%s1184 + $0x58] sm:$0x1]
      %v3989 = vld [vmem:[%s1184 + $0x68] sm:$0xf]
      %v3990 = vld [vmem:[%s1184 + $0x70] sm:$0xf]
      %v3991 = vld [vmem:[%s1184 + $0x78] sm:$0x1]
      %v3992 = vld [vmem:[%s1184 + $0x88] sm:$0xf]
      %v3993 = vld [vmem:[%s1184 + $0x90] sm:$0xf]
      %v3994 = vld [vmem:[%s1184 + $0x98] sm:$0x1]
      %v3995 = vld [vmem:[%s1184 + $0xa8] sm:$0xf]
      %v3996 = vld [vmem:[%s1184 + $0xb0] sm:$0xf]
      %v3997 = vld [vmem:[%s1184 + $0xb8] sm:$0x1]
      %v3998 = vld [vmem:[%s1184 + $0xc8] sm:$0xf]
      %v3999 = vld [vmem:[%s1184 + $0xd0] sm:$0xf]
      %v4000 = vld [vmem:[%s1184 + $0xd8] sm:$0x1]
      %v4001 = vld [vmem:[%s1184 + $0xe8] sm:$0xf]
      %v4002 = vld [vmem:[%s1184 + $0xf0] sm:$0xf]
      %v4003 = vld [vmem:[%s1184 + $0xf8] sm:$0x1]
      %v4004 = vld [vmem:[%s1184 + $0x108] sm:$0xf]
      %v4005 = vld [vmem:[%s1184 + $0x110] sm:$0xf]
      %v4006 = vld [vmem:[%s1184 + $0x118] sm:$0x1]
      %v4007 = vld [vmem:[%s1184 + $0x128] sm:$0xf]
      %v4008 = vld [vmem:[%s1184 + $0x130] sm:$0xf]
      %v4009 = vld [vmem:[%s1184 + $0x138] sm:$0x1]
      %v4010 = vld [vmem:[%s1184 + $0x148] sm:$0xf]
      %v4011 = vld [vmem:[%s1184 + $0x150] sm:$0xf]
      %v4012 = vld [vmem:[%s1184 + $0x158] sm:$0x1]
      %v4013 = vld [vmem:[%s1184 + $0x168] sm:$0xf]
      %v4014 = vld [vmem:[%s1184 + $0x170] sm:$0xf]
      %v4015 = vld [vmem:[%s1184 + $0x178] sm:$0x1]
      %v4016 = vld [vmem:[%s1184 + $0x188] sm:$0xf]
      %v4017 = vld [vmem:[%s1184 + $0x190] sm:$0xf]
      %v4018 = vld [vmem:[%s1184 + $0x198] sm:$0x1]
      %v4019 = vld [vmem:[%s1184 + $0x1a8] sm:$0xf]
      %v4020 = vld [vmem:[%s1184 + $0x1b0] sm:$0xf]
      %v4021 = vld [vmem:[%s1184 + $0x1b8] sm:$0x1]
      %v4022 = vld [vmem:[%s1184 + $0x1c8] sm:$0xf]
      %v4023 = vld [vmem:[%s1184 + $0x1d0] sm:$0xf]
      %v4024 = vld [vmem:[%s1184 + $0x1d8] sm:$0x1]
      %v4025 = vld [vmem:[%s1184 + $0x1e8] sm:$0xf]
      %v4026 = vld [vmem:[%s1184 + $0x1f0] sm:$0xf]
      %v4027 = vld [vmem:[%s1184 + $0x1f8] sm:$0x1]
      %v4029 = vshrl.u32 %v3980, 16
      %v4031 = vrot.slane %v4029, 4
      %v4032 = vshll.u32 %v3980, 16
      %v4034 = vrot.slane %v4032, 5
      %v4035 = vor.u32 %v4031, %v4034
      %v4036 = vrot.slane %v4035, 4
      %v4038 = vshll.u32 %v3981, 16
      %v4040 = vrot.slane %v4038, 5
      %v4041 = vsel %vm3145, %v4036, %v4040
      %v4042 = vshrl.u32 %v3981, 16
      %v4044 = vrot.slane %v4042, 4
      %v4045 = vor.u32 %v4044, %v4040
      %v4046 = vrot.slane %v4045, 4
      %v4048 = vshll.u32 %v3982, 16
      %v4050 = vrot.slane %v4048, 5
      %v4051 = vsel %vm3145, %v4046, %v4050
      %v4053 = vshrl.u32 %v3983, 16
      %v4055 = vrot.slane %v4053, 4
      %v4056 = vshll.u32 %v3983, 16
      %v4058 = vrot.slane %v4056, 5
      %v4059 = vor.u32 %v4055, %v4058
      %v4060 = vrot.slane %v4059, 4
      %v4062 = vshll.u32 %v3984, 16
      %v4064 = vrot.slane %v4062, 5
      %v4065 = vsel %vm3145, %v4060, %v4064
      %v4066 = vshrl.u32 %v3984, 16
      %v4068 = vrot.slane %v4066, 4
      %v4069 = vor.u32 %v4068, %v4064
      %v4070 = vrot.slane %v4069, 4
      %v4072 = vshll.u32 %v3985, 16
      %v4074 = vrot.slane %v4072, 5
      %v4075 = vsel %vm3145, %v4070, %v4074
      %v4077 = vshrl.u32 %v3986, 16
      %v4079 = vrot.slane %v4077, 4
      %v4080 = vshll.u32 %v3986, 16
      %v4082 = vrot.slane %v4080, 5
      %v4083 = vor.u32 %v4079, %v4082
      %v4084 = vrot.slane %v4083, 4
      %v4086 = vshll.u32 %v3987, 16
      %v4088 = vrot.slane %v4086, 5
      %v4089 = vsel %vm3145, %v4084, %v4088
      %v4090 = vshrl.u32 %v3987, 16
      %v4092 = vrot.slane %v4090, 4
      %v4093 = vor.u32 %v4092, %v4088
      %v4094 = vrot.slane %v4093, 4
      %v4096 = vshll.u32 %v3988, 16
      %v4098 = vrot.slane %v4096, 5
      %v4099 = vsel %vm3145, %v4094, %v4098
      %v4101 = vshrl.u32 %v3989, 16
      %v4103 = vrot.slane %v4101, 4
      %v4104 = vshll.u32 %v3989, 16
      %v4106 = vrot.slane %v4104, 5
      %v4107 = vor.u32 %v4103, %v4106
      %v4108 = vrot.slane %v4107, 4
      %v4110 = vshll.u32 %v3990, 16
      %v4112 = vrot.slane %v4110, 5
      %v4113 = vsel %vm3145, %v4108, %v4112
      %v4114 = vshrl.u32 %v3990, 16
      %v4116 = vrot.slane %v4114, 4
      %v4117 = vor.u32 %v4116, %v4112
      %v4118 = vrot.slane %v4117, 4
      %v4120 = vshll.u32 %v3991, 16
      %v4122 = vrot.slane %v4120, 5
      %v4123 = vsel %vm3145, %v4118, %v4122
      %v4125 = vshrl.u32 %v3992, 16
      %v4127 = vrot.slane %v4125, 4
      %v4128 = vshll.u32 %v3992, 16
      %v4130 = vrot.slane %v4128, 5
      %v4131 = vor.u32 %v4127, %v4130
      %v4132 = vrot.slane %v4131, 4
      %v4134 = vshll.u32 %v3993, 16
      %v4136 = vrot.slane %v4134, 5
      %v4137 = vsel %vm3145, %v4132, %v4136
      %v4138 = vshrl.u32 %v3993, 16
      %v4140 = vrot.slane %v4138, 4
      %v4141 = vor.u32 %v4140, %v4136
      %v4142 = vrot.slane %v4141, 4
      %v4144 = vshll.u32 %v3994, 16
      %v4146 = vrot.slane %v4144, 5
      %v4147 = vsel %vm3145, %v4142, %v4146
      %v4149 = vshrl.u32 %v3995, 16
      %v4151 = vrot.slane %v4149, 4
      %v4152 = vshll.u32 %v3995, 16
      %v4154 = vrot.slane %v4152, 5
      %v4155 = vor.u32 %v4151, %v4154
      %v4156 = vrot.slane %v4155, 4
      %v4158 = vshll.u32 %v3996, 16
      %v4160 = vrot.slane %v4158, 5
      %v4161 = vsel %vm3145, %v4156, %v4160
      %v4162 = vshrl.u32 %v3996, 16
      %v4164 = vrot.slane %v4162, 4
      %v4165 = vor.u32 %v4164, %v4160
      %v4166 = vrot.slane %v4165, 4
      %v4168 = vshll.u32 %v3997, 16
      %v4170 = vrot.slane %v4168, 5
      %v4171 = vsel %vm3145, %v4166, %v4170
      %v4173 = vshrl.u32 %v3998, 16
      %v4175 = vrot.slane %v4173, 4
      %v4176 = vshll.u32 %v3998, 16
      %v4178 = vrot.slane %v4176, 5
      %v4179 = vor.u32 %v4175, %v4178
      %v4180 = vrot.slane %v4179, 4
      %v4182 = vshll.u32 %v3999, 16
      %v4184 = vrot.slane %v4182, 5
      %v4185 = vsel %vm3145, %v4180, %v4184
      %v4186 = vshrl.u32 %v3999, 16
      %v4188 = vrot.slane %v4186, 4
      %v4189 = vor.u32 %v4188, %v4184
      %v4190 = vrot.slane %v4189, 4
      %v4192 = vshll.u32 %v4000, 16
      %v4194 = vrot.slane %v4192, 5
      %v4195 = vsel %vm3145, %v4190, %v4194
      %v4197 = vshrl.u32 %v4001, 16
      %v4199 = vrot.slane %v4197, 4
      %v4200 = vshll.u32 %v4001, 16
      %v4202 = vrot.slane %v4200, 5
      %v4203 = vor.u32 %v4199, %v4202
      %v4204 = vrot.slane %v4203, 4
      %v4206 = vshll.u32 %v4002, 16
      %v4208 = vrot.slane %v4206, 5
      %v4209 = vsel %vm3145, %v4204, %v4208
      %v4210 = vshrl.u32 %v4002, 16
      %v4212 = vrot.slane %v4210, 4
      %v4213 = vor.u32 %v4212, %v4208
      %v4214 = vrot.slane %v4213, 4
      %v4216 = vshll.u32 %v4003, 16
      %v4218 = vrot.slane %v4216, 5
      %v4219 = vsel %vm3145, %v4214, %v4218
      %v4221 = vshrl.u32 %v4004, 16
      %v4223 = vrot.slane %v4221, 4
      %v4224 = vshll.u32 %v4004, 16
      %v4226 = vrot.slane %v4224, 5
      %v4227 = vor.u32 %v4223, %v4226
      %v4228 = vrot.slane %v4227, 4
      %v4230 = vshll.u32 %v4005, 16
      %v4232 = vrot.slane %v4230, 5
      %v4233 = vsel %vm3145, %v4228, %v4232
      %v4234 = vshrl.u32 %v4005, 16
      %v4236 = vrot.slane %v4234, 4
      %v4237 = vor.u32 %v4236, %v4232
      %v4238 = vrot.slane %v4237, 4
      %v4240 = vshll.u32 %v4006, 16
      %v4242 = vrot.slane %v4240, 5
      %v4243 = vsel %vm3145, %v4238, %v4242
      %v4245 = vshrl.u32 %v4007, 16
      %v4247 = vrot.slane %v4245, 4
      %v4248 = vshll.u32 %v4007, 16
      %v4250 = vrot.slane %v4248, 5
      %v4251 = vor.u32 %v4247, %v4250
      %v4252 = vrot.slane %v4251, 4
      %v4254 = vshll.u32 %v4008, 16
      %v4256 = vrot.slane %v4254, 5
      %v4257 = vsel %vm3145, %v4252, %v4256
      %v4258 = vshrl.u32 %v4008, 16
      %v4260 = vrot.slane %v4258, 4
      %v4261 = vor.u32 %v4260, %v4256
      %v4262 = vrot.slane %v4261, 4
      %v4264 = vshll.u32 %v4009, 16
      %v4266 = vrot.slane %v4264, 5
      %v4267 = vsel %vm3145, %v4262, %v4266
      %v4269 = vshrl.u32 %v4010, 16
      %v4271 = vrot.slane %v4269, 4
      %v4272 = vshll.u32 %v4010, 16
      %v4274 = vrot.slane %v4272, 5
      %v4275 = vor.u32 %v4271, %v4274
      %v4276 = vrot.slane %v4275, 4
      %v4278 = vshll.u32 %v4011, 16
      %v4280 = vrot.slane %v4278, 5
      %v4281 = vsel %vm3145, %v4276, %v4280
      %v4282 = vshrl.u32 %v4011, 16
      %v4284 = vrot.slane %v4282, 4
      %v4285 = vor.u32 %v4284, %v4280
      %v4286 = vrot.slane %v4285, 4
      %v4288 = vshll.u32 %v4012, 16
      %v4290 = vrot.slane %v4288, 5
      %v4291 = vsel %vm3145, %v4286, %v4290
      %v4293 = vshrl.u32 %v4013, 16
      %v4295 = vrot.slane %v4293, 4
      %v4296 = vshll.u32 %v4013, 16
      %v4298 = vrot.slane %v4296, 5
      %v4299 = vor.u32 %v4295, %v4298
      %v4300 = vrot.slane %v4299, 4
      %v4302 = vshll.u32 %v4014, 16
      %v4304 = vrot.slane %v4302, 5
      %v4305 = vsel %vm3145, %v4300, %v4304
      %v4306 = vshrl.u32 %v4014, 16
      %v4308 = vrot.slane %v4306, 4
      %v4309 = vor.u32 %v4308, %v4304
      %v4310 = vrot.slane %v4309, 4
      %v4312 = vshll.u32 %v4015, 16
      %v4314 = vrot.slane %v4312, 5
      %v4315 = vsel %vm3145, %v4310, %v4314
      %v4317 = vshrl.u32 %v4016, 16
      %v4319 = vrot.slane %v4317, 4
      %v4320 = vshll.u32 %v4016, 16
      %v4322 = vrot.slane %v4320, 5
      %v4323 = vor.u32 %v4319, %v4322
      %v4324 = vrot.slane %v4323, 4
      %v4326 = vshll.u32 %v4017, 16
      %v4328 = vrot.slane %v4326, 5
      %v4329 = vsel %vm3145, %v4324, %v4328
      %v4330 = vshrl.u32 %v4017, 16
      %v4332 = vrot.slane %v4330, 4
      %v4333 = vor.u32 %v4332, %v4328
      %v4334 = vrot.slane %v4333, 4
      %v4336 = vshll.u32 %v4018, 16
      %v4338 = vrot.slane %v4336, 5
      %v4339 = vsel %vm3145, %v4334, %v4338
      %v4341 = vshrl.u32 %v4019, 16
      %v4343 = vrot.slane %v4341, 4
      %v4344 = vshll.u32 %v4019, 16
      %v4346 = vrot.slane %v4344, 5
      %v4347 = vor.u32 %v4343, %v4346
      %v4348 = vrot.slane %v4347, 4
      %v4350 = vshll.u32 %v4020, 16
      %v4352 = vrot.slane %v4350, 5
      %v4353 = vsel %vm3145, %v4348, %v4352
      %v4354 = vshrl.u32 %v4020, 16
      %v4356 = vrot.slane %v4354, 4
      %v4357 = vor.u32 %v4356, %v4352
      %v4358 = vrot.slane %v4357, 4
      %v4360 = vshll.u32 %v4021, 16
      %v4362 = vrot.slane %v4360, 5
      %v4363 = vsel %vm3145, %v4358, %v4362
      %v4365 = vshrl.u32 %v4022, 16
      %v4367 = vrot.slane %v4365, 4
      %v4368 = vshll.u32 %v4022, 16
      %v4370 = vrot.slane %v4368, 5
      %v4371 = vor.u32 %v4367, %v4370
      %v4372 = vrot.slane %v4371, 4
      %v4374 = vshll.u32 %v4023, 16
      %v4376 = vrot.slane %v4374, 5
      %v4377 = vsel %vm3145, %v4372, %v4376
      %v4378 = vshrl.u32 %v4023, 16
      %v4380 = vrot.slane %v4378, 4
      %v4381 = vor.u32 %v4380, %v4376
      %v4382 = vrot.slane %v4381, 4
      %v4384 = vshll.u32 %v4024, 16
      %v4386 = vrot.slane %v4384, 5
      %v4387 = vsel %vm3145, %v4382, %v4386
      %v4389 = vshrl.u32 %v4025, 16
      %v4391 = vrot.slane %v4389, 4
      %v4392 = vshll.u32 %v4025, 16
      %v4394 = vrot.slane %v4392, 5
      %v4395 = vor.u32 %v4391, %v4394
      %v4396 = vrot.slane %v4395, 4
      %v4398 = vshll.u32 %v4026, 16
      %v4400 = vrot.slane %v4398, 5
      %v4401 = vsel %vm3145, %v4396, %v4400
      %v4402 = vshrl.u32 %v4026, 16
      %v4404 = vrot.slane %v4402, 4
      %v4405 = vor.u32 %v4404, %v4400
      %v4406 = vrot.slane %v4405, 4
      %v4408 = vshll.u32 %v4027, 16
      %v4410 = vrot.slane %v4408, 5
      %v4411 = vsel %vm3145, %v4406, %v4410
      %s4412 = scalar_lea.vmem %s4, 128
      %v4413 = vld [vmem:[%s4412] sm:$0xf]
      %v4414 = vld [vmem:[%s4412 + $0x4] sm:$0xf]
      %v4415 = vld [vmem:[%s4412 + $0x8] sm:$0xf]
      %v4416 = vld [vmem:[%s4412 + $0xc] sm:$0xf]
      %v4417 = vld [vmem:[%s4412 + $0x10] sm:$0xf]
      %v4418 = vld [vmem:[%s4412 + $0x14] sm:$0xf]
      %v4419 = vld [vmem:[%s4412 + $0x18] sm:$0xf]
      %v4420 = vld [vmem:[%s4412 + $0x1c] sm:$0xf]
      %v4421 = vld [vmem:[%s4412 + $0x20] sm:$0xf]
      %v4422 = vld [vmem:[%s4412 + $0x24] sm:$0xf]
      %v4423 = vld [vmem:[%s4412 + $0x28] sm:$0xf]
      %v4424 = vld [vmem:[%s4412 + $0x2c] sm:$0xf]
      %v4425 = vld [vmem:[%s4412 + $0x30] sm:$0xf]
      %v4426 = vld [vmem:[%s4412 + $0x34] sm:$0xf]
      %v4427 = vld [vmem:[%s4412 + $0x38] sm:$0xf]
      %v4428 = vld [vmem:[%s4412 + $0x3c] sm:$0xf]
      %v4429 = vunpack.c.l.b16 %v4041
      %v4430 = vunpack.c.l.b16 %v4051
      %v4431 = vunpack.c.l.b16 %v4065
      %v4432 = vunpack.c.l.b16 %v4075
      %v4433 = vunpack.c.l.b16 %v4089
      %v4434 = vunpack.c.l.b16 %v4099
      %v4435 = vunpack.c.l.b16 %v4113
      %v4436 = vunpack.c.l.b16 %v4123
      %v4437 = vunpack.c.l.b16 %v4137
      %v4438 = vunpack.c.l.b16 %v4147
      %v4439 = vunpack.c.l.b16 %v4161
      %v4440 = vunpack.c.l.b16 %v4171
      %v4441 = vunpack.c.l.b16 %v4185
      %v4442 = vunpack.c.l.b16 %v4195
      %v4443 = vunpack.c.l.b16 %v4209
      %v4444 = vunpack.c.l.b16 %v4219
      %v4445 = vunpack.c.l.b16 %v4233
      %v4446 = vunpack.c.l.b16 %v4243
      %v4447 = vunpack.c.l.b16 %v4257
      %v4448 = vunpack.c.l.b16 %v4267
      %v4449 = vunpack.c.l.b16 %v4281
      %v4450 = vunpack.c.l.b16 %v4291
      %v4451 = vunpack.c.l.b16 %v4305
      %v4452 = vunpack.c.l.b16 %v4315
      %v4453 = vunpack.c.l.b16 %v4329
      %v4454 = vunpack.c.l.b16 %v4339
      %v4455 = vunpack.c.l.b16 %v4353
      %v4456 = vunpack.c.l.b16 %v4363
      %v4457 = vunpack.c.l.b16 %v4377
      %v4458 = vunpack.c.l.b16 %v4387
      %v4459 = vunpack.c.l.b16 %v4401
      %v4460 = vunpack.c.l.b16 %v4411
      %v4461 = vpack.c.b16 %v4430, %v4429
      %v4462 = vpack.c.b16 %v4432, %v4431
      %v4463 = vpack.c.b16 %v4434, %v4433
      %v4464 = vpack.c.b16 %v4436, %v4435
      %v4465 = vpack.c.b16 %v4438, %v4437
      %v4466 = vpack.c.b16 %v4440, %v4439
      %v4467 = vpack.c.b16 %v4442, %v4441
      %v4468 = vpack.c.b16 %v4444, %v4443
      %v4469 = vpack.c.b16 %v4446, %v4445
      %v4470 = vpack.c.b16 %v4448, %v4447
      %v4471 = vpack.c.b16 %v4450, %v4449
      %v4472 = vpack.c.b16 %v4452, %v4451
      %v4473 = vpack.c.b16 %v4454, %v4453
      %v4474 = vpack.c.b16 %v4456, %v4455
      %v4475 = vpack.c.b16 %v4458, %v4457
      %v4476 = vpack.c.b16 %v4460, %v4459
      %v4509 = vunpack.c.l.b16 %v4413
      %v4510 = vunpack.c.l.b16 %v4414
      %v4511 = vunpack.c.l.b16 %v4415
      %v4512 = vunpack.c.l.b16 %v4416
      %v4513 = vunpack.c.l.b16 %v4417
      %v4514 = vunpack.c.l.b16 %v4418
      %v4515 = vunpack.c.l.b16 %v4419
      %v4516 = vunpack.c.l.b16 %v4420
      %v4517 = vunpack.c.l.b16 %v4421
      %v4518 = vunpack.c.l.b16 %v4422
      %v4519 = vunpack.c.l.b16 %v4423
      %v4520 = vunpack.c.l.b16 %v4424
      %v4521 = vunpack.c.l.b16 %v4425
      %v4522 = vunpack.c.l.b16 %v4426
      %v4523 = vunpack.c.l.b16 %v4427
      %v4524 = vunpack.c.l.b16 %v4428
      %v4525 = vpack.c.b16 %v4510, %v4509
      %v4526 = vpack.c.b16 %v4512, %v4511
      %v4527 = vpack.c.b16 %v4514, %v4513
      %v4528 = vpack.c.b16 %v4516, %v4515
      %v4529 = vpack.c.b16 %v4518, %v4517
      %v4530 = vpack.c.b16 %v4520, %v4519
      %v4531 = vpack.c.b16 %v4522, %v4521
      %v4532 = vpack.c.b16 %v4524, %v4523
      %4541 = vmatprep.subr.bf16.mxu0 0
      %4542 = vmatpush1.bf16.msra.mxu0 %v4525
      %4543 = vmatprep.subr.bf16.mxu0 0
      %4544 = vmatpush1.bf16.msra.mxu0 %v4526
      %4545 = vmatprep.subr.bf16.mxu0 0
      %4546 = vmatpush1.bf16.msra.mxu0 %v4527
      %4547 = vmatprep.subr.bf16.mxu0 0
      %4548 = vmatpush1.bf16.msra.mxu0 %v4528
      %4549 = vmatprep.subr.bf16.mxu0 0
      %4550 = vmatpush1.bf16.msra.mxu0 %v4529
      %4551 = vmatprep.subr.bf16.mxu0 0
      %4552 = vmatpush1.bf16.msra.mxu0 %v4530
      %4553 = vmatprep.subr.bf16.mxu0 0
      %4554 = vmatpush1.bf16.msra.mxu0 %v4531
      %4555 = vmatprep.subr.bf16.mxu0 0
      %4556 = vmatpush1.bf16.msra.mxu0 %v4532
      %4557 = vmatprep.subr.bf16.mxu0 0
      %4558 = vmatpush1.bf16.msra.mxu0 0
      %4559 = vmatprep.subr.bf16.mxu0 0
      %4560 = vmatpush1.bf16.msra.mxu0 0
      %4561 = vmatprep.subr.bf16.mxu0 0
      %4562 = vmatpush1.bf16.msra.mxu0 0
      %4563 = vmatprep.subr.bf16.mxu0 0
      %4564 = vmatpush1.bf16.msra.mxu0 0
      %4565 = vmatprep.subr.bf16.mxu0 0
      %4566 = vmatpush1.bf16.msra.mxu0 0
      %4567 = vmatprep.subr.bf16.mxu0 0
      %4568 = vmatpush1.bf16.msra.mxu0 0
      %4569 = vmatprep.subr.bf16.mxu0 0
      %4570 = vmatpush1.bf16.msra.mxu0 0
      %4571 = vmatprep.subr.bf16.mxu0 0
      %4572 = vmatpush1.bf16.msra.mxu0 0
      %4573 = vmatprep.mubr.bf16.mxu0 0
      %4574 = vmatmul.mubr.bf16.gmra.mrb[0].mxu0 %v4461
      %v4575 = vpop.f32.mrb[0].mxu0
      %v4576 = vadd.f32 0.0, %v4575
      %v4577 = vpop.f32.mrb[0].mxu0
      %v4578 = vpop.f32.mrb[0].mxu0
      %v4579 = vadd.f32 0.0, %v4578
      %v4580 = vpop.f32.mrb[0].mxu0
      %4581 = vmatprep.mubr.bf16.mxu0 0
      %4582 = vmatmul.mubr.bf16.gmra.mrb[0].mxu0 %v4462
      %v4583 = vpop.f32.mrb[0].mxu0
      %v4584 = vadd.f32 0.0, %v4583
      %v4585 = vpop.f32.mrb[0].mxu0
      %v4586 = vpop.f32.mrb[0].mxu0
      %v4587 = vadd.f32 0.0, %v4586
      %v4588 = vpop.f32.mrb[0].mxu0
      %4589 = vmatprep.mubr.bf16.mxu0 0
      %4590 = vmatmul.mubr.bf16.gmra.mrb[0].mxu0 %v4463
      %v4591 = vpop.f32.mrb[0].mxu0
      %v4592 = vadd.f32 0.0, %v4591
      %v4593 = vpop.f32.mrb[0].mxu0
      %v4594 = vpop.f32.mrb[0].mxu0
      %v4595 = vadd.f32 0.0, %v4594
      %v4596 = vpop.f32.mrb[0].mxu0
      %4597 = vmatprep.mubr.bf16.mxu0 0
      %4598 = vmatmul.mubr.bf16.gmra.mrb[0].mxu0 %v4464
      %v4599 = vpop.f32.mrb[0].mxu0
      %v4600 = vadd.f32 0.0, %v4599
      %v4601 = vpop.f32.mrb[0].mxu0
      %v4602 = vpop.f32.mrb[0].mxu0
      %v4603 = vadd.f32 0.0, %v4602
      %v4604 = vpop.f32.mrb[0].mxu0
      %4605 = vmatprep.mubr.bf16.mxu0 0
      %4606 = vmatmul.mubr.bf16.gmra.mrb[0].mxu0 %v4465
      %v4607 = vpop.f32.mrb[0].mxu0
      %v4608 = vadd.f32 0.0, %v4607
      %v4609 = vpop.f32.mrb[0].mxu0
      %v4610 = vpop.f32.mrb[0].mxu0
      %v4611 = vadd.f32 0.0, %v4610
      %v4612 = vpop.f32.mrb[0].mxu0
      %4613 = vmatprep.mubr.bf16.mxu0 0
      %4614 = vmatmul.mubr.bf16.gmra.mrb[0].mxu0 %v4466
      %v4615 = vpop.f32.mrb[0].mxu0
      %v4616 = vadd.f32 0.0, %v4615
      %v4617 = vpop.f32.mrb[0].mxu0
      %v4618 = vpop.f32.mrb[0].mxu0
      %v4619 = vadd.f32 0.0, %v4618
      %v4620 = vpop.f32.mrb[0].mxu0
      %4621 = vmatprep.mubr.bf16.mxu0 0
      %4622 = vmatmul.mubr.bf16.gmra.mrb[0].mxu0 %v4467
      %v4623 = vpop.f32.mrb[0].mxu0
      %v4624 = vadd.f32 0.0, %v4623
      %v4625 = vpop.f32.mrb[0].mxu0
      %v4626 = vpop.f32.mrb[0].mxu0
      %v4627 = vadd.f32 0.0, %v4626
      %v4628 = vpop.f32.mrb[0].mxu0
      %4629 = vmatprep.mubr.bf16.mxu0 0
      %4630 = vmatmul.mubr.bf16.gmra.mrb[0].mxu0 %v4468
      %v4631 = vpop.f32.mrb[0].mxu0
      %v4632 = vadd.f32 0.0, %v4631
      %v4633 = vpop.f32.mrb[0].mxu0
      %v4634 = vpop.f32.mrb[0].mxu0
      %v4635 = vadd.f32 0.0, %v4634
      %v4636 = vpop.f32.mrb[0].mxu0
      %4637 = vmatprep.mubr.bf16.mxu0 0
      %4638 = vmatmul.mubr.bf16.gmra.mrb[0].mxu0 %v4469
      %v4639 = vpop.f32.mrb[0].mxu0
      %v4640 = vadd.f32 0.0, %v4639
      %v4641 = vpop.f32.mrb[0].mxu0
      %v4642 = vpop.f32.mrb[0].mxu0
      %v4643 = vadd.f32 0.0, %v4642
      %v4644 = vpop.f32.mrb[0].mxu0
      %4645 = vmatprep.mubr.bf16.mxu0 0
      %4646 = vmatmul.mubr.bf16.gmra.mrb[0].mxu0 %v4470
      %v4647 = vpop.f32.mrb[0].mxu0
      %v4648 = vadd.f32 0.0, %v4647
      %v4649 = vpop.f32.mrb[0].mxu0
      %v4650 = vpop.f32.mrb[0].mxu0
      %v4651 = vadd.f32 0.0, %v4650
      %v4652 = vpop.f32.mrb[0].mxu0
      %4653 = vmatprep.mubr.bf16.mxu0 0
      %4654 = vmatmul.mubr.bf16.gmra.mrb[0].mxu0 %v4471
      %v4655 = vpop.f32.mrb[0].mxu0
      %v4656 = vadd.f32 0.0, %v4655
      %v4657 = vpop.f32.mrb[0].mxu0
      %v4658 = vpop.f32.mrb[0].mxu0
      %v4659 = vadd.f32 0.0, %v4658
      %v4660 = vpop.f32.mrb[0].mxu0
      %4661 = vmatprep.mubr.bf16.mxu0 0
      %4662 = vmatmul.mubr.bf16.gmra.mrb[0].mxu0 %v4472
      %v4663 = vpop.f32.mrb[0].mxu0
      %v4664 = vadd.f32 0.0, %v4663
      %v4665 = vpop.f32.mrb[0].mxu0
      %v4666 = vpop.f32.mrb[0].mxu0
      %v4667 = vadd.f32 0.0, %v4666
      %v4668 = vpop.f32.mrb[0].mxu0
      %4669 = vmatprep.mubr.bf16.mxu0 0
      %4670 = vmatmul.mubr.bf16.gmra.mrb[0].mxu0 %v4473
      %v4671 = vpop.f32.mrb[0].mxu0
      %v4672 = vadd.f32 0.0, %v4671
      %v4673 = vpop.f32.mrb[0].mxu0
      %v4674 = vpop.f32.mrb[0].mxu0
      %v4675 = vadd.f32 0.0, %v4674
      %v4676 = vpop.f32.mrb[0].mxu0
      %4677 = vmatprep.mubr.bf16.mxu0 0
      %4678 = vmatmul.mubr.bf16.gmra.mrb[0].mxu0 %v4474
      %v4679 = vpop.f32.mrb[0].mxu0
      %v4680 = vadd.f32 0.0, %v4679
      %v4681 = vpop.f32.mrb[0].mxu0
      %v4682 = vpop.f32.mrb[0].mxu0
      %v4683 = vadd.f32 0.0, %v4682
      %v4684 = vpop.f32.mrb[0].mxu0
      %4685 = vmatprep.mubr.bf16.mxu0 0
      %4686 = vmatmul.mubr.bf16.gmra.mrb[0].mxu0 %v4475
      %v4687 = vpop.f32.mrb[0].mxu0
      %v4688 = vadd.f32 0.0, %v4687
      %v4689 = vpop.f32.mrb[0].mxu0
      %v4690 = vpop.f32.mrb[0].mxu0
      %v4691 = vadd.f32 0.0, %v4690
      %v4692 = vpop.f32.mrb[0].mxu0
      %4693 = vmatprep.mubr.bf16.mxu0 0
      %4694 = vmatmul.mubr.bf16.gmra.mrb[0].mxu0 %v4476
      %v4695 = vpop.f32.mrb[0].mxu0
      %v4696 = vadd.f32 0.0, %v4695
      %v4697 = vpop.f32.mrb[0].mxu0
      %v4698 = vpop.f32.mrb[0].mxu0
      %v4699 = vadd.f32 0.0, %v4698
      %v4700 = vpop.f32.mrb[0].mxu0
      %4701 = vdwg.mxu0
      %v4702 = vadd.f32 %v3948, %v4576
      %v4703 = vadd.f32 %v3949, %v4579
      %v4704 = vadd.f32 %v3950, %v4584
      %v4705 = vadd.f32 %v3951, %v4587
      %v4706 = vadd.f32 %v3952, %v4592
      %v4707 = vadd.f32 %v3953, %v4595
      %v4708 = vadd.f32 %v3954, %v4600
      %v4709 = vadd.f32 %v3955, %v4603
      %v4710 = vadd.f32 %v3956, %v4608
      %v4711 = vadd.f32 %v3957, %v4611
      %v4712 = vadd.f32 %v3958, %v4616
      %v4713 = vadd.f32 %v3959, %v4619
      %v4714 = vadd.f32 %v3960, %v4624
      %v4715 = vadd.f32 %v3961, %v4627
      %v4716 = vadd.f32 %v3962, %v4632
      %v4717 = vadd.f32 %v3963, %v4635
      %v4718 = vadd.f32 %v3964, %v4640
      %v4719 = vadd.f32 %v3965, %v4643
      %v4720 = vadd.f32 %v3966, %v4648
      %v4721 = vadd.f32 %v3967, %v4651
      %v4722 = vadd.f32 %v3968, %v4656
      %v4723 = vadd.f32 %v3969, %v4659
      %v4724 = vadd.f32 %v3970, %v4664
      %v4725 = vadd.f32 %v3971, %v4667
      %v4726 = vadd.f32 %v3972, %v4672
      %v4727 = vadd.f32 %v3973, %v4675
      %v4728 = vadd.f32 %v3974, %v4680
      %v4729 = vadd.f32 %v3975, %v4683
      %v4730 = vadd.f32 %v3976, %v4688
      %v4731 = vadd.f32 %v3977, %v4691
      %v4732 = vadd.f32 %v3978, %v4696
      %v4733 = vadd.f32 %v3979, %v4699
      %v4734 = vld [vmem:[%s5] sm:$0x1]
      %v4736 = vlaneseq
      %v4737 = vshrl.u32 %v4736, 7
      %v4738 = vsub.s32 0, %v4737
      %v4739 = vrot.slane %v4734, %v4738
      %v4741 = vadd.f32 %v4702, %v4739
      %v4742 = vadd.f32 %v4703, %v4739
      %v4743 = vadd.f32 %v4704, %v4739
      %v4744 = vadd.f32 %v4705, %v4739
      %v4745 = vadd.f32 %v4706, %v4739
      %v4746 = vadd.f32 %v4707, %v4739
      %v4747 = vadd.f32 %v4708, %v4739
      %v4748 = vadd.f32 %v4709, %v4739
      %v4749 = vadd.f32 %v4710, %v4739
      %v4750 = vadd.f32 %v4711, %v4739
      %v4751 = vadd.f32 %v4712, %v4739
      %v4752 = vadd.f32 %v4713, %v4739
      %v4753 = vadd.f32 %v4714, %v4739
      %v4754 = vadd.f32 %v4715, %v4739
      %v4755 = vadd.f32 %v4716, %v4739
      %v4756 = vadd.f32 %v4717, %v4739
      %v4757 = vadd.f32 %v4718, %v4739
      %v4758 = vadd.f32 %v4719, %v4739
      %v4759 = vadd.f32 %v4720, %v4739
      %v4760 = vadd.f32 %v4721, %v4739
      %v4761 = vadd.f32 %v4722, %v4739
      %v4762 = vadd.f32 %v4723, %v4739
      %v4763 = vadd.f32 %v4724, %v4739
      %v4764 = vadd.f32 %v4725, %v4739
      %v4765 = vadd.f32 %v4726, %v4739
      %v4766 = vadd.f32 %v4727, %v4739
      %v4767 = vadd.f32 %v4728, %v4739
      %v4768 = vadd.f32 %v4729, %v4739
      %v4769 = vadd.f32 %v4730, %v4739
      %v4770 = vadd.f32 %v4731, %v4739
      %v4771 = vadd.f32 %v4732, %v4739
      %v4772 = vadd.f32 %v4733, %v4739
      %v4773 = vpack.c.bf16 %v4742, %v4741
      %v4774 = vpack.c.bf16 %v4744, %v4743
      %v4775 = vpack.c.bf16 %v4746, %v4745
      %v4776 = vpack.c.bf16 %v4748, %v4747
      %v4777 = vpack.c.bf16 %v4750, %v4749
      %v4778 = vpack.c.bf16 %v4752, %v4751
      %v4779 = vpack.c.bf16 %v4754, %v4753
      %v4780 = vpack.c.bf16 %v4756, %v4755
      %v4781 = vpack.c.bf16 %v4758, %v4757
      %v4782 = vpack.c.bf16 %v4760, %v4759
      %v4783 = vpack.c.bf16 %v4762, %v4761
      %v4784 = vpack.c.bf16 %v4764, %v4763
      %v4785 = vpack.c.bf16 %v4766, %v4765
      %v4786 = vpack.c.bf16 %v4768, %v4767
      %v4787 = vpack.c.bf16 %v4770, %v4769
      %v4788 = vpack.c.bf16 %v4772, %v4771
      %v4805 = vunpack.c.l.b16 %v4773
      %v4806 = vunpack.c.h.b16 %v4773
      %v4807 = vunpack.c.l.b16 %v4774
      %v4808 = vunpack.c.h.b16 %v4774
      %v4809 = vunpack.c.l.b16 %v4775
      %v4810 = vunpack.c.h.b16 %v4775
      %v4811 = vunpack.c.l.b16 %v4776
      %v4812 = vunpack.c.h.b16 %v4776
      %v4813 = vunpack.c.l.b16 %v4777
      %v4814 = vunpack.c.h.b16 %v4777
      %v4815 = vunpack.c.l.b16 %v4778
      %v4816 = vunpack.c.h.b16 %v4778
      %v4817 = vunpack.c.l.b16 %v4779
      %v4818 = vunpack.c.h.b16 %v4779
      %v4819 = vunpack.c.l.b16 %v4780
      %v4820 = vunpack.c.h.b16 %v4780
      %v4821 = vunpack.c.l.b16 %v4781
      %v4822 = vunpack.c.h.b16 %v4781
      %v4823 = vunpack.c.l.b16 %v4782
      %v4824 = vunpack.c.h.b16 %v4782
      %v4825 = vunpack.c.l.b16 %v4783
      %v4826 = vunpack.c.h.b16 %v4783
      %v4827 = vunpack.c.l.b16 %v4784
      %v4828 = vunpack.c.h.b16 %v4784
      %v4829 = vunpack.c.l.b16 %v4785
      %v4830 = vunpack.c.h.b16 %v4785
      %v4831 = vunpack.c.l.b16 %v4786
      %v4832 = vunpack.c.h.b16 %v4786
      %v4833 = vunpack.c.l.b16 %v4787
      %v4834 = vunpack.c.h.b16 %v4787
      %v4835 = vunpack.c.l.b16 %v4788
      %v4836 = vunpack.c.h.b16 %v4788
      %v4837 = vpack.c.b16 %v4805, %v4805
      %v4838 = vpack.c.b16 %v4806, %v4806
      %v4839 = vpack.c.b16 %v4807, %v4807
      %v4840 = vpack.c.b16 %v4808, %v4808
      %v4841 = vpack.c.b16 %v4809, %v4809
      %v4842 = vpack.c.b16 %v4810, %v4810
      %v4843 = vpack.c.b16 %v4811, %v4811
      %v4844 = vpack.c.b16 %v4812, %v4812
      %v4845 = vpack.c.b16 %v4813, %v4813
      %v4846 = vpack.c.b16 %v4814, %v4814
      %v4847 = vpack.c.b16 %v4815, %v4815
      %v4848 = vpack.c.b16 %v4816, %v4816
      %v4849 = vpack.c.b16 %v4817, %v4817
      %v4850 = vpack.c.b16 %v4818, %v4818
      %v4851 = vpack.c.b16 %v4819, %v4819
      %v4852 = vpack.c.b16 %v4820, %v4820
      %v4853 = vpack.c.b16 %v4821, %v4821
      %v4854 = vpack.c.b16 %v4822, %v4822
      %v4855 = vpack.c.b16 %v4823, %v4823
      %v4856 = vpack.c.b16 %v4824, %v4824
      %v4857 = vpack.c.b16 %v4825, %v4825
      %v4858 = vpack.c.b16 %v4826, %v4826
      %v4859 = vpack.c.b16 %v4827, %v4827
      %v4860 = vpack.c.b16 %v4828, %v4828
      %v4861 = vpack.c.b16 %v4829, %v4829
      %v4862 = vpack.c.b16 %v4830, %v4830
      %v4863 = vpack.c.b16 %v4831, %v4831
      %v4864 = vpack.c.b16 %v4832, %v4832
      %v4865 = vpack.c.b16 %v4833, %v4833
      %v4866 = vpack.c.b16 %v4834, %v4834
      %v4867 = vpack.c.b16 %v4835, %v4835
      %v4868 = vpack.c.b16 %v4836, %v4836
      %4901 = vst [vmem:[%s285] sm:$0xf] %v4837
      %4902 = vst [vmem:[%s285 + $0x4] sm:$0xf] %v4838
      %4903 = vst [vmem:[%s285 + $0x8] sm:$0xf] %v4839
      %4904 = vst [vmem:[%s285 + $0xc] sm:$0xf] %v4840
      %4905 = vst [vmem:[%s285 + $0x10] sm:$0xf] %v4841
      %4906 = vst [vmem:[%s285 + $0x14] sm:$0xf] %v4842
      %4907 = vst [vmem:[%s285 + $0x18] sm:$0xf] %v4843
      %4908 = vst [vmem:[%s285 + $0x1c] sm:$0xf] %v4844
      %4909 = vst [vmem:[%s285 + $0x20] sm:$0xf] %v4845
      %4910 = vst [vmem:[%s285 + $0x24] sm:$0xf] %v4846
      %4911 = vst [vmem:[%s285 + $0x28] sm:$0xf] %v4847
      %4912 = vst [vmem:[%s285 + $0x2c] sm:$0xf] %v4848
      %4913 = vst [vmem:[%s285 + $0x30] sm:$0xf] %v4849
      %4914 = vst [vmem:[%s285 + $0x34] sm:$0xf] %v4850
      %4915 = vst [vmem:[%s285 + $0x38] sm:$0xf] %v4851
      %4916 = vst [vmem:[%s285 + $0x3c] sm:$0xf] %v4852
      %4917 = vst [vmem:[%s285 + $0x40] sm:$0xf] %v4853
      %4918 = vst [vmem:[%s285 + $0x44] sm:$0xf] %v4854
      %4919 = vst [vmem:[%s285 + $0x48] sm:$0xf] %v4855
      %4920 = vst [vmem:[%s285 + $0x4c] sm:$0xf] %v4856
      %4921 = vst [vmem:[%s285 + $0x50] sm:$0xf] %v4857
      %4922 = vst [vmem:[%s285 + $0x54] sm:$0xf] %v4858
      %4923 = vst [vmem:[%s285 + $0x58] sm:$0xf] %v4859
      %4924 = vst [vmem:[%s285 + $0x5c] sm:$0xf] %v4860
      %4925 = vst [vmem:[%s285 + $0x60] sm:$0xf] %v4861
      %4926 = vst [vmem:[%s285 + $0x64] sm:$0xf] %v4862
      %4927 = vst [vmem:[%s285 + $0x68] sm:$0xf] %v4863
      %4928 = vst [vmem:[%s285 + $0x6c] sm:$0xf] %v4864
      %4929 = vst [vmem:[%s285 + $0x70] sm:$0xf] %v4865
      %4930 = vst [vmem:[%s285 + $0x74] sm:$0xf] %v4866
      %4931 = vst [vmem:[%s285 + $0x78] sm:$0xf] %v4867
      %4932 = vst [vmem:[%s285 + $0x7c] sm:$0xf] %v4868
      %v4933 = vadd.f32 %v4741, %v4742
      %v4934 = vadd.f32 %v4933, %v4743
      %v4935 = vadd.f32 %v4934, %v4744
      %v4936 = vadd.f32 %v4935, %v4745
      %v4937 = vadd.f32 %v4936, %v4746
      %v4938 = vadd.f32 %v4937, %v4747
      %v4939 = vadd.f32 %v4938, %v4748
      %v4940 = vadd.f32 %v4939, %v4749
      %v4941 = vadd.f32 %v4940, %v4750
      %v4942 = vadd.f32 %v4941, %v4751
      %v4943 = vadd.f32 %v4942, %v4752
      %v4944 = vadd.f32 %v4943, %v4753
      %v4945 = vadd.f32 %v4944, %v4754
      %v4946 = vadd.f32 %v4945, %v4755
      %v4947 = vadd.f32 %v4946, %v4756
      %v4948 = vadd.f32 %v4947, %v4757
      %v4949 = vadd.f32 %v4948, %v4758
      %v4950 = vadd.f32 %v4949, %v4759
      %v4951 = vadd.f32 %v4950, %v4760
      %v4952 = vadd.f32 %v4951, %v4761
      %v4953 = vadd.f32 %v4952, %v4762
      %v4954 = vadd.f32 %v4953, %v4763
      %v4955 = vadd.f32 %v4954, %v4764
      %v4956 = vadd.f32 %v4955, %v4765
      %v4957 = vadd.f32 %v4956, %v4766
      %v4958 = vadd.f32 %v4957, %v4767
      %v4959 = vadd.f32 %v4958, %v4768
      %v4960 = vadd.f32 %v4959, %v4769
      %v4961 = vadd.f32 %v4960, %v4770
      %v4962 = vadd.f32 %v4961, %v4771
      %v4963 = vadd.f32 %v4962, %v4772
      %v4964 = vrot.slane %v4963, 4
      %v4965 = vadd.f32 %v4963, %v4964
      %v4966 = vrot.slane %v4965, 2
      %v4967 = vadd.f32 %v4965, %v4966
      %v4968 = vrot.slane %v4967, 1
      %v4969 = vadd.f32 %v4967, %v4968
      %4970 = vst [vmem:[%s289] sm:$0x1] %v4969
      %v4971 = vmul.f32 %v4741, %v4741
      %v4972 = vmul.f32 %v4742, %v4742
      %v4973 = vmul.f32 %v4743, %v4743
      %v4974 = vmul.f32 %v4744, %v4744
      %v4975 = vmul.f32 %v4745, %v4745
      %v4976 = vmul.f32 %v4746, %v4746
      %v4977 = vmul.f32 %v4747, %v4747
      %v4978 = vmul.f32 %v4748, %v4748
      %v4979 = vmul.f32 %v4749, %v4749
      %v4980 = vmul.f32 %v4750, %v4750
      %v4981 = vmul.f32 %v4751, %v4751
      %v4982 = vmul.f32 %v4752, %v4752
      %v4983 = vmul.f32 %v4753, %v4753
      %v4984 = vmul.f32 %v4754, %v4754
      %v4985 = vmul.f32 %v4755, %v4755
      %v4986 = vmul.f32 %v4756, %v4756
      %v4987 = vmul.f32 %v4757, %v4757
      %v4988 = vmul.f32 %v4758, %v4758
      %v4989 = vmul.f32 %v4759, %v4759
      %v4990 = vmul.f32 %v4760, %v4760
      %v4991 = vmul.f32 %v4761, %v4761
      %v4992 = vmul.f32 %v4762, %v4762
      %v4993 = vmul.f32 %v4763, %v4763
      %v4994 = vmul.f32 %v4764, %v4764
      %v4995 = vmul.f32 %v4765, %v4765
      %v4996 = vmul.f32 %v4766, %v4766
      %v4997 = vmul.f32 %v4767, %v4767
      %v4998 = vmul.f32 %v4768, %v4768
      %v4999 = vmul.f32 %v4769, %v4769
      %v5000 = vmul.f32 %v4770, %v4770
      %v5001 = vmul.f32 %v4771, %v4771
      %v5002 = vmul.f32 %v4772, %v4772
      %v5003 = vadd.f32 %v4971, %v4972
      %v5004 = vadd.f32 %v5003, %v4973
      %v5005 = vadd.f32 %v5004, %v4974
      %v5006 = vadd.f32 %v5005, %v4975
      %v5007 = vadd.f32 %v5006, %v4976
      %v5008 = vadd.f32 %v5007, %v4977
      %v5009 = vadd.f32 %v5008, %v4978
      %v5010 = vadd.f32 %v5009, %v4979
      %v5011 = vadd.f32 %v5010, %v4980
      %v5012 = vadd.f32 %v5011, %v4981
      %v5013 = vadd.f32 %v5012, %v4982
      %v5014 = vadd.f32 %v5013, %v4983
      %v5015 = vadd.f32 %v5014, %v4984
      %v5016 = vadd.f32 %v5015, %v4985
      %v5017 = vadd.f32 %v5016, %v4986
      %v5018 = vadd.f32 %v5017, %v4987
      %v5019 = vadd.f32 %v5018, %v4988
      %v5020 = vadd.f32 %v5019, %v4989
      %v5021 = vadd.f32 %v5020, %v4990
      %v5022 = vadd.f32 %v5021, %v4991
      %v5023 = vadd.f32 %v5022, %v4992
      %v5024 = vadd.f32 %v5023, %v4993
      %v5025 = vadd.f32 %v5024, %v4994
      %v5026 = vadd.f32 %v5025, %v4995
      %v5027 = vadd.f32 %v5026, %v4996
      %v5028 = vadd.f32 %v5027, %v4997
      %v5029 = vadd.f32 %v5028, %v4998
      %v5030 = vadd.f32 %v5029, %v4999
      %v5031 = vadd.f32 %v5030, %v5000
      %v5032 = vadd.f32 %v5031, %v5001
      %v5033 = vadd.f32 %v5032, %v5002
      %v5034 = vrot.slane %v5033, 4
      %v5035 = vadd.f32 %v5033, %v5034
      %v5036 = vrot.slane %v5035, 2
      %v5037 = vadd.f32 %v5035, %v5036
      %v5038 = vrot.slane %v5037, 1
      %v5039 = vadd.f32 %v5037, %v5038
      %5040 = vst [vmem:[%s289 + $0x1] sm:$0x1] %v5039
      %p5041 = scmp.lt.s32.totalorder %s19, 1
      %s5042 = scalar_select %p5041, %s19, 1
      %s5043 = smul.addr %s5042, 32
      %s5044 = smul.addr %s5043, 4
      %s5045 = scalar_lea.vmem %s6, %s5044
      %p5046 = scmp.lt.s32.totalorder %s19, 1
      %s5047 = scalar_select %p5046, %s19, 1
      %s5048 = smul.addr %s5047, 2
      %s5049 = scalar_lea.vmem %s7, %s5048
      // Predicated region
      $region45: #{down_block.4} parent=43 // pred_check
        %p5050 = pneg %p168
      $region46: #{down_block.4} parent=43 // pred_check_branch
        %5052 = sbr.rel (%p5050) target = $region48
      $region47: #{down_block.4} parent=43 // pred_region
        _
      $region48: #{down_block.4} parent=43 // pred_fallthru
        _
      // Predicated region
      $region49: #{down_block.4} parent=43 // pred_check
        %p5053 = pneg %p194
      $region50: #{down_block.4} parent=43 // pred_check_branch
        %5055 = sbr.rel (%p5053) target = $region52
      $region51: #{down_block.4} parent=43 // pred_region
        _
      $region52: #{down_block.4} parent=43 // pred_fallthru
        _
    $region44: #{down_block.4} parent=5 // pred_fallthru
      _
    %p5056 = scmp.le.s32.totalorder 2, %s14
    // Predicated region
    $region53: #{down_block.4} parent=5 // pred_check
      %p5057 = pneg %p5056
    $region54: #{down_block.4} parent=5 // pred_check_branch
      %5059 = sbr.rel (%p5057) target = $region56
    $region55: #{down_block.4} parent=5 // pred_region
      %s5060 = ssub.s32 %s14, 2
      // Predicated region
      $region57: #{down_block.4} parent=55 // pred_check
        %p5061 = pneg %p174
      $region58: #{down_block.4} parent=55 // pred_check_branch
        %5063 = sbr.rel (%p5061) target = $region60
      $region59: #{down_block.4} parent=55 // pred_region
        %p5064 = scmp.lt.s32.totalorder %s20, 1
        %s5065 = scalar_select %p5064, %s20, 1
        %s5066 = smul.addr %s5065, 32
        %s5067 = smul.addr %s5066, 4
        %s5068 = scalar_lea.vmem %s6, %s5067
      $region60: #{down_block.4} parent=55 // pred_fallthru
        _
      // Predicated region
      $region61: #{down_block.4} parent=55 // pred_check
        %p5069 = pneg %p200
      $region62: #{down_block.4} parent=55 // pred_check_branch
        %5071 = sbr.rel (%p5069) target = $region64
      $region63: #{down_block.4} parent=55 // pred_region
        %p5072 = scmp.lt.s32.totalorder %s20, 1
        %s5073 = scalar_select %p5072, %s20, 1
        %s5074 = smul.addr %s5073, 2
        %s5075 = scalar_lea.vmem %s7, %s5074
      $region64: #{down_block.4} parent=55 // pred_fallthru
        _
    $region56: #{down_block.4} parent=5 // pred_fallthru
      _
  $region6: #{down_block.4} parent=0 // loop_footer
    %s18 = sadd.s32 1, %s14
  $region7: #{down_block.4} parent=0 // loop_footer_branch
    %13 = sbr.rel target = $region3
  $region8: #{down_block.4} parent=0 // loop_exit
    _

</llo_original>
